<compile_context>
chip_gen: v5e
topology: v5e:2x2
jax: 0.10.0
libtpu: 0.0.40
codegen_flags: <defaults>
</compile_context>

<pallas_src>
import functools
import math

import jax
import jax.numpy as jnp
from jax.experimental import pallas as pl
from jax.experimental.pallas import tpu as pltpu


ROWS_PER_TILE = 256      # target packed rows (M) per grid step; multiple of 128
NEG_INF = -1e9


# ---------------------------------------------------------------------------
# In-kernel helpers
# ---------------------------------------------------------------------------
def _layernorm(x, gamma, beta, eps=1e-6):
    # x: (..., H); gamma/beta broadcastable (1, H)
    mu = jnp.mean(x, axis=-1, keepdims=True)
    var = jnp.mean(jnp.square(x - mu), axis=-1, keepdims=True)
    return (x - mu) * jax.lax.rsqrt(var + eps) * gamma + beta


# ---------------------------------------------------------------------------
# Pallas kernels
# ---------------------------------------------------------------------------
def fused_layers_kernel(x_ref, bias_ref, eg_ref, eb_ref,
                        wq_ref, wk_ref, wv_ref, wo_ref,
                        g1_ref, t1_ref, w1_ref, b1_ref,
                        w2_ref, b2_ref, g2_ref, t2_ref,
                        o_ref, *, hidden_units):
    layer = pl.program_id(1)
    bt, seq, hid = o_ref.shape

    # Layer 0: embedding LayerNorm, fused.  o_ref then stays resident in VMEM
    # across the whole layer axis (output block index constant in `layer`).
    @pl.when(layer == 0)
    def _():
        x0 = x_ref[...].astype(jnp.float32)
        o_ref[...] = _layernorm(x0, eg_ref[...], eb_ref[...]).astype(o_ref.dtype)

    x = o_ref[...].astype(jnp.float32)                        # (bt, seq, hid)
    xb = x.reshape(bt * seq, hid).astype(jnp.bfloat16)        # packed rows

    # --- multi-head attention (num_heads == 1) ---
    q = jnp.dot(xb, wq_ref[0], preferred_element_type=jnp.float32).reshape(bt, seq, hid)
    k = jnp.dot(xb, wk_ref[0], preferred_element_type=jnp.float32).reshape(bt, seq, hid)
    v = jnp.dot(xb, wv_ref[0], preferred_element_type=jnp.float32).reshape(bt, seq, hid)

    scale = jnp.float32(1.0 / math.sqrt(hidden_units))
    scores = jax.lax.dot_general(                             # q @ k^T, no k transpose
        q.astype(jnp.bfloat16), k.astype(jnp.bfloat16),
        dimension_numbers=(((2,), (2,)), ((0,), (0,))),
        preferred_element_type=jnp.float32)                   # (bt, seq, seq)
    scores = scores * scale + bias_ref[...]                   # additive pad-key bias
    smax = jnp.max(scores, axis=-1, keepdims=True)
    e = jnp.exp(scores - smax)
    attn = e * pl.reciprocal(jnp.sum(e, axis=-1, keepdims=True), approx=True)
    ctx = jax.lax.dot_general(
        attn.astype(jnp.bfloat16), v.astype(jnp.bfloat16),
        dimension_numbers=(((2,), (1,)), ((0,), (0,))),
        preferred_element_type=jnp.float32)                   # (bt, seq, hid)

    proj = jnp.dot(ctx.reshape(bt * seq, hid).astype(jnp.bfloat16), wo_ref[0],
                   preferred_element_type=jnp.float32).reshape(bt, seq, hid)
    h = _layernorm(proj + x, g1_ref[0], t1_ref[0])

    # --- position-wise feed-forward ---
    ff = jnp.dot(h.reshape(bt * seq, hid).astype(jnp.bfloat16), w1_ref[0],
                 preferred_element_type=jnp.float32) + b1_ref[0]
    c = jnp.float32(0.7978845608028654)                       # sqrt(2/pi); tanh GELU
    ff = 0.5 * ff * (1.0 + jnp.tanh(c * (ff + 0.044715 * ff * ff * ff)))
    ff = jnp.dot(ff.astype(jnp.bfloat16), w2_ref[0],
                 preferred_element_type=jnp.float32).reshape(bt, seq, hid) + b2_ref[0]

    o_ref[...] = _layernorm(ff + h, g2_ref[0], t2_ref[0]).astype(o_ref.dtype)


def out_proj_kernel(x_ref, w_ref, b_ref, o_ref):
    bt, seq, hid = x_ref.shape
    x = x_ref[...].reshape(bt * seq, hid).astype(jnp.bfloat16)
    y = jnp.dot(x, w_ref[...], preferred_element_type=jnp.float32) + b_ref[...]
    o_ref[...] = y.reshape(o_ref.shape).astype(o_ref.dtype)


# ---------------------------------------------------------------------------
# Pallas wrappers
# ---------------------------------------------------------------------------
def _batch_tile(batch, seq):
    return min(batch, max(1, ROWS_PER_TILE // seq))


def fused_transformer(x_emb, attn_bias, prep, hidden_units, bt):
    b_pad, seq, hid = x_emb.shape
    num_layers = prep["wq"].shape[0]
    grid_b = b_pad // bt

    const2 = lambda shape: pl.BlockSpec(shape, lambda i, l: (0, 0))
    per_layer = lambda shape: pl.BlockSpec((1,) + shape, lambda i, l: (l, 0, 0))
    in_specs = [
        pl.BlockSpec((bt, seq, hid), lambda i, l: (i, 0, 0)),   # embeddings (pre-LN)
        pl.BlockSpec((bt, 1, seq), lambda i, l: (i, 0, 0)),     # additive mask bias
        const2((1, hid)), const2((1, hid)),                     # emb LN gamma / beta
        per_layer((hid, hid)), per_layer((hid, hid)),           # Wq, Wk
        per_layer((hid, hid)), per_layer((hid, hid)),           # Wv, Wo
        per_layer((1, hid)), per_layer((1, hid)),               # LN1 gamma / beta
        per_layer((hid, 4 * hid)), per_layer((1, 4 * hid)),     # W1, b1
        per_layer((4 * hid, hid)), per_layer((1, hid)),         # W2, b2
        per_layer((1, hid)), per_layer((1, hid)),               # LN2 gamma / beta
    ]
    return pl.pallas_call(
        functools.partial(fused_layers_kernel, hidden_units=hidden_units),
        out_shape=jax.ShapeDtypeStruct((b_pad, seq, hid), jnp.float32),
        grid=(grid_b, num_layers),
        in_specs=in_specs,
        out_specs=pl.BlockSpec((bt, seq, hid), lambda i, l: (i, 0, 0)),
        compiler_params=pltpu.CompilerParams(
            dimension_semantics=("parallel", "arbitrary")),
    )(x_emb, attn_bias,
      prep["emb_ln_g"], prep["emb_ln_b"],
      prep["wq"], prep["wk"], prep["wv"], prep["wo"],
      prep["ln1_g"], prep["ln1_b"], prep["w1"], prep["b1"],
      prep["w2"], prep["b2"], prep["ln2_g"], prep["ln2_b"])


def vocab_projection(x, out_w, out_b, bt):
    b_pad, seq, hid = x.shape
    vocab = out_w.shape[1]
    tn = 128 if vocab <= 128 else 512                    # lane-dense V tile
    v_pad = ((vocab + tn - 1) // tn) * tn
    if v_pad != vocab:
        out_w = jnp.pad(out_w, ((0, 0), (0, v_pad - vocab)))
        out_b = jnp.pad(out_b, ((0, 0), (0, v_pad - vocab)))
    grid_b = b_pad // bt
    logits = pl.pallas_call(
        out_proj_kernel,
        out_shape=jax.ShapeDtypeStruct((b_pad, seq, v_pad), jnp.float32),
        grid=(grid_b, v_pad // tn),
        in_specs=[
            pl.BlockSpec((bt, seq, hid), lambda i, j: (i, 0, 0)),  # x stays resident
            pl.BlockSpec((hid, tn), lambda i, j: (0, j)),          # V-tiled weight
            pl.BlockSpec((1, tn), lambda i, j: (0, j)),            # V-tiled bias
        ],
        out_specs=pl.BlockSpec((bt, seq, tn), lambda i, j: (i, 0, j)),
        compiler_params=pltpu.CompilerParams(
            dimension_semantics=("parallel", "parallel")),
    )(x, out_w, out_b)
    return logits[:, :, :vocab]


def bert4rec_forward(prep, log_seqs):
    batch, seq = log_seqs.shape
    hid = prep["item_emb"].shape[1]

    bt = _batch_tile(batch, seq)
    grid_b = (batch + bt - 1) // bt
    b_pad = grid_b * bt
    if b_pad != batch:
        log_seqs = jnp.pad(log_seqs, ((0, b_pad - batch), (0, 0)))  # pad rows = item 0

    # Embedding lookups (data-dependent gather) stay as JAX glue.
    x = jnp.take(prep["item_emb"], log_seqs, axis=0)
    x = x + prep["pos_emb"][None, :seq, :]
    # Key-padding mask as an additive bias: 0 for valid keys, -1e9 for padding.
    attn_bias = jnp.where(log_seqs > 0, 0.0, NEG_INF).astype(jnp.float32)[:, None, :]

    y = fused_transformer(x, attn_bias, prep, hid, bt)
    logits = vocab_projection(y, prep["out_w"], prep["out_b"], bt)
    return logits[:batch]


# ---------------------------------------------------------------------------
# Model: parameter init + kernel-side parameter packing
# ---------------------------------------------------------------------------
def init_params(key, num_item, hidden_units, num_layers, max_len):
    H = hidden_units
    V_out = num_item + 1
    ks = jax.random.split(key, 4 + num_layers)

    item_emb = 0.02 * jax.random.normal(ks[0], (num_item + 2, H), jnp.float32)
    item_emb = item_emb.at[0].set(0.0)                     # padding_idx = 0
    pos_emb = 0.02 * jax.random.normal(ks[1], (max_len, H), jnp.float32)

    blocks = []
    for l in range(num_layers):
        bk = jax.random.split(ks[2 + l], 8)
        blocks.append(dict(
            wq=0.05 * jax.random.normal(bk[0], (H, H), jnp.float32),
            wk=0.05 * jax.random.normal(bk[1], (H, H), jnp.float32),
            wv=0.05 * jax.random.normal(bk[2], (H, H), jnp.float32),
            wo=0.05 * jax.random.normal(bk[3], (H, H), jnp.float32),
            ln1_g=jnp.ones((1, H), jnp.float32),
            ln1_b=jnp.zeros((1, H), jnp.float32),
            w1=0.05 * jax.random.normal(bk[4], (H, 4 * H), jnp.float32),
            b1=0.01 * jax.random.normal(bk[5], (1, 4 * H), jnp.float32),
            w2=0.05 * jax.random.normal(bk[6], (4 * H, H), jnp.float32),
            b2=0.01 * jax.random.normal(bk[7], (1, H), jnp.float32),
            ln2_g=jnp.ones((1, H), jnp.float32),
            ln2_b=jnp.zeros((1, H), jnp.float32),
        ))

    out_w = 0.05 * jax.random.normal(ks[2 + num_layers], (H, V_out), jnp.float32)
    out_b = 0.01 * jax.random.normal(ks[3 + num_layers], (1, V_out), jnp.float32)

    return dict(item_emb=item_emb, pos_emb=pos_emb, blocks=blocks,
                out_w=out_w, out_b=out_b,
                emb_ln_g=jnp.ones((1, H), jnp.float32),
                emb_ln_b=jnp.zeros((1, H), jnp.float32))


def prepare_pallas_params(params):
    """Stack per-layer weights to (L, ...) and cast matmul weights to bf16."""
    def stack(name, dtype=None):
        arr = jnp.stack([blk[name] for blk in params["blocks"]], axis=0)
        return arr.astype(dtype) if dtype is not None else arr

    return dict(
        item_emb=params["item_emb"],
        pos_emb=params["pos_emb"],
        emb_ln_g=params["emb_ln_g"],
        emb_ln_b=params["emb_ln_b"],
        wq=stack("wq", jnp.bfloat16),
        wk=stack("wk", jnp.bfloat16),
        wv=stack("wv", jnp.bfloat16),
        wo=stack("wo", jnp.bfloat16),
        ln1_g=stack("ln1_g"), ln1_b=stack("ln1_b"),
        w1=stack("w1", jnp.bfloat16), b1=stack("b1"),
        w2=stack("w2", jnp.bfloat16), b2=stack("b2"),
        ln2_g=stack("ln2_g"), ln2_b=stack("ln2_b"),
        out_w=params["out_w"].astype(jnp.bfloat16),
        out_b=params["out_b"],
    )


# ---------------------------------------------------------------------------
# Pure-JAX f32 reference (faithful to the PyTorch module) for correctness check
# ---------------------------------------------------------------------------
def _ln_ref(x, g, b, eps=1e-6):
    mu = jnp.mean(x, -1, keepdims=True)
    var = jnp.mean((x - mu) ** 2, -1, keepdims=True)
    return (x - mu) / jnp.sqrt(var + eps) * g + b


def reference_forward(params, log_seqs, hidden_units):
    B, S = log_seqs.shape
    x = jnp.take(params["item_emb"], log_seqs, axis=0)
    x = x + jnp.take(params["pos_emb"],
                     jnp.broadcast_to(jnp.arange(S), (B, S)), axis=0)
    x = _ln_ref(x, params["emb_ln_g"][0], params["emb_ln_b"][0])
    valid = (log_seqs > 0)[:, None, :]                     # (B, 1, S)
    for p in params["blocks"]:
        q = x @ p["wq"]; k = x @ p["wk"]; v = x @ p["wv"]
        sc = jnp.einsum("bqd,bkd->bqk", q, k) / math.sqrt(hidden_units)
        sc = jnp.where(valid == 0, NEG_INF, sc)
        attn = jax.nn.softmax(sc, axis=-1)
        ctx = jnp.einsum("bqk,bkd->bqd", attn, v)
        h = _ln_ref(ctx @ p["wo"] + x, p["ln1_g"][0], p["ln1_b"][0])
        ff = h @ p["w1"] + p["b1"][0]
        ff = 0.5 * ff * (1.0 + jax.lax.erf(ff / jnp.sqrt(2.0)))   # exact GELU
        ff = ff @ p["w2"] + p["b2"][0]
        x = _ln_ref(ff + h, p["ln2_g"][0], p["ln2_b"][0])
    return x @ params["out_w"] + params["out_b"][0]


# ---------------------------------------------------------------------------
if __name__ == "__main__":
    # small config consistent with BERT4Rec (num_heads must be 1, see note above)
    hidden_units = 32
    num_layers = 2
    max_len = 8
    num_item = 50
    batch = 64          # packs to 2 batch tiles of 32 seqs (256 rows) each

    key = jax.random.PRNGKey(0)
    pkey, dkey = jax.random.split(key)
    params = init_params(pkey, num_item, hidden_units, num_layers, max_len)
    prep = prepare_pallas_params(params)

    log_seqs = jax.random.randint(dkey, (batch, max_len), 0, num_item + 2,
                                  dtype=jnp.int32)
    log_seqs = log_seqs.at[0, 0].set(0).at[1, -1].set(0)   # include padding positions

    fwd = jax.jit(bert4rec_forward)
    out = jax.block_until_ready(fwd(prep, log_seqs))
    assert out.shape == (batch, max_len, num_item + 1), out.shape

    ref = jax.block_until_ready(reference_forward(params, log_seqs, hidden_units))
    # bf16 matmuls + tanh-GELU + approx reciprocal => relaxed tolerance vs f32 ref.
    max_err = float(jnp.max(jnp.abs(out - ref)))
    assert jnp.allclose(out, ref, rtol=5e-2, atol=5e-2), max_err

    print("KERNEL_OK")
</pallas_src>

<mosaic_0001>
module attributes {stable_mosaic.version = 11 : i64} {
  func.func @fused_layers_kernel(%arg0: i32, %arg1: i32, %arg2: memref<32x8x32xf32, #tpu.memory_space<vmem>>, %arg3: memref<32x1x8xf32, #tpu.memory_space<vmem>>, %arg4: memref<1x32xf32, #tpu.memory_space<vmem>>, %arg5: memref<1x32xf32, #tpu.memory_space<vmem>>, %arg6: memref<1x32x32xbf16, #tpu.memory_space<vmem>>, %arg7: memref<1x32x32xbf16, #tpu.memory_space<vmem>>, %arg8: memref<1x32x32xbf16, #tpu.memory_space<vmem>>, %arg9: memref<1x32x32xbf16, #tpu.memory_space<vmem>>, %arg10: memref<1x1x32xf32, #tpu.memory_space<vmem>>, %arg11: memref<1x1x32xf32, #tpu.memory_space<vmem>>, %arg12: memref<1x32x128xbf16, #tpu.memory_space<vmem>>, %arg13: memref<1x1x128xf32, #tpu.memory_space<vmem>>, %arg14: memref<1x128x32xbf16, #tpu.memory_space<vmem>>, %arg15: memref<1x1x32xf32, #tpu.memory_space<vmem>>, %arg16: memref<1x1x32xf32, #tpu.memory_space<vmem>>, %arg17: memref<1x1x32xf32, #tpu.memory_space<vmem>>, %arg18: memref<32x8x32xf32, #tpu.memory_space<vmem>>) attributes {dimension_semantics = [#tpu.dimension_semantics<parallel>, #tpu.dimension_semantics<arbitrary>], iteration_bounds = array<i64: 2, 2>, scalar_prefetch = 0 : i64, scratch_operands = 0 : i64, tpu.core_type = #tpu.core_type<tc>, window_params = [{transform_indices = @transform_0, window_bounds = array<i64: 32, 8, 32>}, {transform_indices = @transform_1, window_bounds = array<i64: 32, 1, 8>}, {pipeline_mode = #tpu.pipeline_mode<synchronous>, transform_indices = @transform_2, window_bounds = array<i64: 1, 32>}, {pipeline_mode = #tpu.pipeline_mode<synchronous>, transform_indices = @transform_3, window_bounds = array<i64: 1, 32>}, {transform_indices = @transform_4, window_bounds = array<i64: 1, 32, 32>}, {transform_indices = @transform_5, window_bounds = array<i64: 1, 32, 32>}, {transform_indices = @transform_6, window_bounds = array<i64: 1, 32, 32>}, {transform_indices = @transform_7, window_bounds = array<i64: 1, 32, 32>}, {transform_indices = @transform_8, window_bounds = array<i64: 1, 1, 32>}, {transform_indices = @transform_9, window_bounds = array<i64: 1, 1, 32>}, {transform_indices = @transform_10, window_bounds = array<i64: 1, 32, 128>}, {transform_indices = @transform_11, window_bounds = array<i64: 1, 1, 128>}, {transform_indices = @transform_12, window_bounds = array<i64: 1, 128, 32>}, {transform_indices = @transform_13, window_bounds = array<i64: 1, 1, 32>}, {transform_indices = @transform_14, window_bounds = array<i64: 1, 1, 32>}, {transform_indices = @transform_15, window_bounds = array<i64: 1, 1, 32>}, {transform_indices = @transform_16, window_bounds = array<i64: 32, 8, 32>}]} {
    %c0_i32 = arith.constant 0 : i32
    %0 = arith.cmpi eq, %arg1, %c0_i32 : i32
    %1 = arith.extui %0 : i1 to i32
    %c0_i32_0 = arith.constant 0 : i32
    %2 = arith.cmpi ne, %1, %c0_i32_0 : i32
    scf.if %2 {
      %c0_69 = arith.constant 0 : index
      %c0_70 = arith.constant 0 : index
      %c0_71 = arith.constant 0 : index
      %136 = vector.load %arg2[%c0_69, %c0_70, %c0_71] : memref<32x8x32xf32, #tpu.memory_space<vmem>>, vector<32x8x32xf32>
      %c0_72 = arith.constant 0 : index
      %c0_73 = arith.constant 0 : index
      %137 = vector.load %arg4[%c0_72, %c0_73] : memref<1x32xf32, #tpu.memory_space<vmem>>, vector<1x32xf32>
      %c0_74 = arith.constant 0 : index
      %c0_75 = arith.constant 0 : index
      %138 = vector.load %arg5[%c0_74, %c0_75] : memref<1x32xf32, #tpu.memory_space<vmem>>, vector<1x32xf32>
      %cst_76 = arith.constant dense<0.000000e+00> : vector<32x8xf32>
      %139 = vector.multi_reduction <add>, %136, %cst_76 [2] : vector<32x8x32xf32> to vector<32x8xf32>
      %140 = vector.shape_cast %139 : vector<32x8xf32> to vector<32x8x1xf32>
      %cst_77 = arith.constant 3.200000e+01 : f32
      %141 = vector.broadcast %cst_77 : f32 to vector<32x8x1xf32>
      %142 = arith.divf %140, %141 : vector<32x8x1xf32>
      %143 = vector.broadcast %142 : vector<32x8x1xf32> to vector<32x8x32xf32>
      %144 = arith.subf %136, %143 : vector<32x8x32xf32>
      %145 = arith.mulf %144, %144 : vector<32x8x32xf32>
      %cst_78 = arith.constant dense<0.000000e+00> : vector<32x8xf32>
      %146 = vector.multi_reduction <add>, %145, %cst_78 [2] : vector<32x8x32xf32> to vector<32x8xf32>
      %147 = vector.shape_cast %146 : vector<32x8xf32> to vector<32x8x1xf32>
      %cst_79 = arith.constant 3.200000e+01 : f32
      %148 = vector.broadcast %cst_79 : f32 to vector<32x8x1xf32>
      %149 = arith.divf %147, %148 : vector<32x8x1xf32>
      %150 = vector.broadcast %142 : vector<32x8x1xf32> to vector<32x8x32xf32>
      %151 = arith.subf %136, %150 : vector<32x8x32xf32>
      %cst_80 = arith.constant 9.99999997E-7 : f32
      %152 = vector.broadcast %cst_80 : f32 to vector<32x8x1xf32>
      %153 = arith.addf %149, %152 : vector<32x8x1xf32>
      %154 = math.rsqrt %153 : vector<32x8x1xf32>
      %155 = vector.broadcast %154 : vector<32x8x1xf32> to vector<32x8x32xf32>
      %156 = arith.mulf %151, %155 : vector<32x8x32xf32>
      %157 = vector.shape_cast %137 : vector<1x32xf32> to vector<1x1x32xf32>
      %158 = vector.broadcast %157 : vector<1x1x32xf32> to vector<32x8x32xf32>
      %159 = arith.mulf %156, %158 : vector<32x8x32xf32>
      %160 = vector.shape_cast %138 : vector<1x32xf32> to vector<1x1x32xf32>
      %161 = vector.broadcast %160 : vector<1x1x32xf32> to vector<32x8x32xf32>
      %162 = arith.addf %159, %161 : vector<32x8x32xf32>
      %c0_81 = arith.constant 0 : index
      %c0_82 = arith.constant 0 : index
      %c0_83 = arith.constant 0 : index
      %163 = vector.load %arg18[%c0_81, %c0_82, %c0_83] : memref<32x8x32xf32, #tpu.memory_space<vmem>>, vector<32x8x32xf32>
      tpu.vector_store %arg18[%c0_81, %c0_82, %c0_83], %162 {strides = array<i32>} : memref<32x8x32xf32, #tpu.memory_space<vmem>>, vector<32x8x32xf32>,
    } else {
    }
    %c0 = arith.constant 0 : index
    %c0_1 = arith.constant 0 : index
    %c0_2 = arith.constant 0 : index
    %3 = vector.load %arg18[%c0, %c0_1, %c0_2] : memref<32x8x32xf32, #tpu.memory_space<vmem>>, vector<32x8x32xf32>
    %4 = vector.shape_cast %3 : vector<32x8x32xf32> to vector<256x32xf32>
    %5 = arith.truncf %4 : vector<256x32xf32> to vector<256x32xbf16>
    %c0_3 = arith.constant 0 : index
    %c0_4 = arith.constant 0 : index
    %c0_5 = arith.constant 0 : index
    %6 = vector.load %arg6[%c0_3, %c0_4, %c0_5] : memref<1x32x32xbf16, #tpu.memory_space<vmem>>, vector<1x32x32xbf16>
    %7 = vector.shape_cast %6 : vector<1x32x32xbf16> to vector<32x32xbf16>
    %cst = arith.constant dense<0.000000e+00> : vector<256x32xf32>
    %8 = tpu.matmul %5, %7, %cst {dimension_numbers = #tpu.dot_dimension_numbers<[1], [0], [0], [1], [0, 0, 1, 1], [], []>} : vector<256x32xbf16>, vector<32x32xbf16>, vector<256x32xf32> -> vector<256x32xf32>
    %9 = vector.shape_cast %8 : vector<256x32xf32> to vector<32x8x32xf32>
    %c0_6 = arith.constant 0 : index
    %c0_7 = arith.constant 0 : index
    %c0_8 = arith.constant 0 : index
    %10 = vector.load %arg7[%c0_6, %c0_7, %c0_8] : memref<1x32x32xbf16, #tpu.memory_space<vmem>>, vector<1x32x32xbf16>
    %11 = vector.shape_cast %10 : vector<1x32x32xbf16> to vector<32x32xbf16>
    %cst_9 = arith.constant dense<0.000000e+00> : vector<256x32xf32>
    %12 = tpu.matmul %5, %11, %cst_9 {dimension_numbers = #tpu.dot_dimension_numbers<[1], [0], [0], [1], [0, 0, 1, 1], [], []>} : vector<256x32xbf16>, vector<32x32xbf16>, vector<256x32xf32> -> vector<256x32xf32>
    %13 = vector.shape_cast %12 : vector<256x32xf32> to vector<32x8x32xf32>
    %c0_10 = arith.constant 0 : index
    %c0_11 = arith.constant 0 : index
    %c0_12 = arith.constant 0 : index
    %14 = vector.load %arg8[%c0_10, %c0_11, %c0_12] : memref<1x32x32xbf16, #tpu.memory_space<vmem>>, vector<1x32x32xbf16>
    %15 = vector.shape_cast %14 : vector<1x32x32xbf16> to vector<32x32xbf16>
    %cst_13 = arith.constant dense<0.000000e+00> : vector<256x32xf32>
    %16 = tpu.matmul %5, %15, %cst_13 {dimension_numbers = #tpu.dot_dimension_numbers<[1], [0], [0], [1], [0, 0, 1, 1], [], []>} : vector<256x32xbf16>, vector<32x32xbf16>, vector<256x32xf32> -> vector<256x32xf32>
    %17 = vector.shape_cast %16 : vector<256x32xf32> to vector<32x8x32xf32>
    %18 = arith.truncf %9 : vector<32x8x32xf32> to vector<32x8x32xbf16>
    %19 = arith.truncf %13 : vector<32x8x32xf32> to vector<32x8x32xbf16>
    %cst_14 = arith.constant dense<0.000000e+00> : vector<32x8x8xf32>
    %20 = tpu.matmul %18, %19, %cst_14 {dimension_numbers = #tpu.dot_dimension_numbers<[2], [2], [1], [1], [0, 0, 0, 1, 1, 1], [0], [0]>} : vector<32x8x32xbf16>, vector<32x8x32xbf16>, vector<32x8x8xf32> -> vector<32x8x8xf32>
    %cst_15 = arith.constant 0.176776692 : f32
    %21 = vector.broadcast %cst_15 : f32 to vector<32x8x8xf32>
    %22 = arith.mulf %20, %21 : vector<32x8x8xf32>
    %c0_16 = arith.constant 0 : index
    %c0_17 = arith.constant 0 : index
    %c0_18 = arith.constant 0 : index
    %23 = vector.load %arg3[%c0_16, %c0_17, %c0_18] : memref<32x1x8xf32, #tpu.memory_space<vmem>>, vector<32x1x8xf32>
    %24 = vector.broadcast %23 : vector<32x1x8xf32> to vector<32x8x8xf32>
    %25 = arith.addf %22, %24 : vector<32x8x8xf32>
    %cst_19 = arith.constant dense<0xFF800000> : vector<32x8xf32>
    %26 = vector.multi_reduction <maximumf>, %25, %cst_19 [2] : vector<32x8x8xf32> to vector<32x8xf32>
    %27 = vector.shape_cast %26 : vector<32x8xf32> to vector<32x8x1xf32>
    %28 = vector.broadcast %27 : vector<32x8x1xf32> to vector<32x8x8xf32>
    %29 = arith.subf %25, %28 : vector<32x8x8xf32>
    %30 = math.exp %29 : vector<32x8x8xf32>
    %cst_20 = arith.constant dense<0.000000e+00> : vector<32x8xf32>
    %31 = vector.multi_reduction <add>, %30, %cst_20 [2] : vector<32x8x8xf32> to vector<32x8xf32>
    %32 = vector.shape_cast %31 : vector<32x8xf32> to vector<32x8x1xf32>
    %33 = tpu.reciprocal %32 {approx = true} : vector<32x8x1xf32> -> vector<32x8x1xf32>
    %34 = vector.broadcast %33 : vector<32x8x1xf32> to vector<32x8x8xf32>
    %35 = arith.mulf %30, %34 : vector<32x8x8xf32>
    %36 = arith.truncf %35 : vector<32x8x8xf32> to vector<32x8x8xbf16>
    %37 = arith.truncf %17 : vector<32x8x32xf32> to vector<32x8x32xbf16>
    %cst_21 = arith.constant dense<0.000000e+00> : vector<32x8x32xf32>
    %38 = tpu.matmul %36, %37, %cst_21 {dimension_numbers = #tpu.dot_dimension_numbers<[2], [1], [1], [2], [0, 0, 0, 1, 1, 2], [0], [0]>} : vector<32x8x8xbf16>, vector<32x8x32xbf16>, vector<32x8x32xf32> -> vector<32x8x32xf32>
    %39 = vector.shape_cast %38 : vector<32x8x32xf32> to vector<256x32xf32>
    %40 = arith.truncf %39 : vector<256x32xf32> to vector<256x32xbf16>
    %c0_22 = arith.constant 0 : index
    %c0_23 = arith.constant 0 : index
    %c0_24 = arith.constant 0 : index
    %41 = vector.load %arg9[%c0_22, %c0_23, %c0_24] : memref<1x32x32xbf16, #tpu.memory_space<vmem>>, vector<1x32x32xbf16>
    %42 = vector.shape_cast %41 : vector<1x32x32xbf16> to vector<32x32xbf16>
    %cst_25 = arith.constant dense<0.000000e+00> : vector<256x32xf32>
    %43 = tpu.matmul %40, %42, %cst_25 {dimension_numbers = #tpu.dot_dimension_numbers<[1], [0], [0], [1], [0, 0, 1, 1], [], []>} : vector<256x32xbf16>, vector<32x32xbf16>, vector<256x32xf32> -> vector<256x32xf32>
    %44 = vector.shape_cast %43 : vector<256x32xf32> to vector<32x8x32xf32>
    %45 = arith.addf %44, %3 : vector<32x8x32xf32>
    %c0_26 = arith.constant 0 : index
    %c0_27 = arith.constant 0 : index
    %c0_28 = arith.constant 0 : index
    %46 = vector.load %arg10[%c0_26, %c0_27, %c0_28] : memref<1x1x32xf32, #tpu.memory_space<vmem>>, vector<1x1x32xf32>
    %47 = vector.shape_cast %46 : vector<1x1x32xf32> to vector<1x32xf32>
    %c0_29 = arith.constant 0 : index
    %c0_30 = arith.constant 0 : index
    %c0_31 = arith.constant 0 : index
    %48 = vector.load %arg11[%c0_29, %c0_30, %c0_31] : memref<1x1x32xf32, #tpu.memory_space<vmem>>, vector<1x1x32xf32>
    %49 = vector.shape_cast %48 : vector<1x1x32xf32> to vector<1x32xf32>
    %cst_32 = arith.constant dense<0.000000e+00> : vector<32x8xf32>
    %50 = vector.multi_reduction <add>, %45, %cst_32 [2] : vector<32x8x32xf32> to vector<32x8xf32>
    %51 = vector.shape_cast %50 : vector<32x8xf32> to vector<32x8x1xf32>
    %cst_33 = arith.constant 3.200000e+01 : f32
    %52 = vector.broadcast %cst_33 : f32 to vector<32x8x1xf32>
    %53 = arith.divf %51, %52 : vector<32x8x1xf32>
    %54 = vector.broadcast %53 : vector<32x8x1xf32> to vector<32x8x32xf32>
    %55 = arith.subf %45, %54 : vector<32x8x32xf32>
    %56 = arith.mulf %55, %55 : vector<32x8x32xf32>
    %cst_34 = arith.constant dense<0.000000e+00> : vector<32x8xf32>
    %57 = vector.multi_reduction <add>, %56, %cst_34 [2] : vector<32x8x32xf32> to vector<32x8xf32>
    %58 = vector.shape_cast %57 : vector<32x8xf32> to vector<32x8x1xf32>
    %cst_35 = arith.constant 3.200000e+01 : f32
    %59 = vector.broadcast %cst_35 : f32 to vector<32x8x1xf32>
    %60 = arith.divf %58, %59 : vector<32x8x1xf32>
    %61 = vector.broadcast %53 : vector<32x8x1xf32> to vector<32x8x32xf32>
    %62 = arith.subf %45, %61 : vector<32x8x32xf32>
    %cst_36 = arith.constant 9.99999997E-7 : f32
    %63 = vector.broadcast %cst_36 : f32 to vector<32x8x1xf32>
    %64 = arith.addf %60, %63 : vector<32x8x1xf32>
    %65 = math.rsqrt %64 : vector<32x8x1xf32>
    %66 = vector.broadcast %65 : vector<32x8x1xf32> to vector<32x8x32xf32>
    %67 = arith.mulf %62, %66 : vector<32x8x32xf32>
    %68 = vector.shape_cast %47 : vector<1x32xf32> to vector<1x1x32xf32>
    %69 = vector.broadcast %68 : vector<1x1x32xf32> to vector<32x8x32xf32>
    %70 = arith.mulf %67, %69 : vector<32x8x32xf32>
    %71 = vector.shape_cast %49 : vector<1x32xf32> to vector<1x1x32xf32>
    %72 = vector.broadcast %71 : vector<1x1x32xf32> to vector<32x8x32xf32>
    %73 = arith.addf %70, %72 : vector<32x8x32xf32>
    %74 = vector.shape_cast %73 : vector<32x8x32xf32> to vector<256x32xf32>
    %75 = arith.truncf %74 : vector<256x32xf32> to vector<256x32xbf16>
    %c0_37 = arith.constant 0 : index
    %c0_38 = arith.constant 0 : index
    %c0_39 = arith.constant 0 : index
    %76 = vector.load %arg12[%c0_37, %c0_38, %c0_39] : memref<1x32x128xbf16, #tpu.memory_space<vmem>>, vector<1x32x128xbf16>
    %77 = vector.shape_cast %76 : vector<1x32x128xbf16> to vector<32x128xbf16>
    %cst_40 = arith.constant dense<0.000000e+00> : vector<256x128xf32>
    %78 = tpu.matmul %75, %77, %cst_40 {dimension_numbers = #tpu.dot_dimension_numbers<[1], [0], [0], [1], [0, 0, 1, 1], [], []>} : vector<256x32xbf16>, vector<32x128xbf16>, vector<256x128xf32> -> vector<256x128xf32>
    %c0_41 = arith.constant 0 : index
    %c0_42 = arith.constant 0 : index
    %c0_43 = arith.constant 0 : index
    %79 = vector.load %arg13[%c0_41, %c0_42, %c0_43] : memref<1x1x128xf32, #tpu.memory_space<vmem>>, vector<1x1x128xf32>
    %80 = vector.shape_cast %79 : vector<1x1x128xf32> to vector<1x128xf32>
    %81 = vector.broadcast %80 : vector<1x128xf32> to vector<256x128xf32>
    %82 = arith.addf %78, %81 : vector<256x128xf32>
    %cst_44 = arith.constant 5.000000e-01 : f32
    %83 = vector.broadcast %cst_44 : f32 to vector<256x128xf32>
    %84 = arith.mulf %83, %82 : vector<256x128xf32>
    %cst_45 = arith.constant 4.471500e-02 : f32
    %85 = vector.broadcast %cst_45 : f32 to vector<256x128xf32>
    %86 = arith.mulf %85, %82 : vector<256x128xf32>
    %87 = arith.mulf %86, %82 : vector<256x128xf32>
    %88 = arith.mulf %87, %82 : vector<256x128xf32>
    %89 = arith.addf %82, %88 : vector<256x128xf32>
    %cst_46 = arith.constant 0.797884583 : f32
    %90 = vector.broadcast %cst_46 : f32 to vector<256x128xf32>
    %91 = arith.mulf %90, %89 : vector<256x128xf32>
    %92 = math.tanh %91 : vector<256x128xf32>
    %cst_47 = arith.constant 1.000000e+00 : f32
    %93 = vector.broadcast %cst_47 : f32 to vector<256x128xf32>
    %94 = arith.addf %93, %92 : vector<256x128xf32>
    %95 = arith.mulf %84, %94 : vector<256x128xf32>
    %96 = arith.truncf %95 : vector<256x128xf32> to vector<256x128xbf16>
    %c0_48 = arith.constant 0 : index
    %c0_49 = arith.constant 0 : index
    %c0_50 = arith.constant 0 : index
    %97 = vector.load %arg14[%c0_48, %c0_49, %c0_50] : memref<1x128x32xbf16, #tpu.memory_space<vmem>>, vector<1x128x32xbf16>
    %98 = vector.shape_cast %97 : vector<1x128x32xbf16> to vector<128x32xbf16>
    %cst_51 = arith.constant dense<0.000000e+00> : vector<256x32xf32>
    %99 = tpu.matmul %96, %98, %cst_51 {dimension_numbers = #tpu.dot_dimension_numbers<[1], [0], [0], [1], [0, 0, 1, 1], [], []>} : vector<256x128xbf16>, vector<128x32xbf16>, vector<256x32xf32> -> vector<256x32xf32>
    %100 = vector.shape_cast %99 : vector<256x32xf32> to vector<32x8x32xf32>
    %c0_52 = arith.constant 0 : index
    %c0_53 = arith.constant 0 : index
    %c0_54 = arith.constant 0 : index
    %101 = vector.load %arg15[%c0_52, %c0_53, %c0_54] : memref<1x1x32xf32, #tpu.memory_space<vmem>>, vector<1x1x32xf32>
    %102 = vector.shape_cast %101 : vector<1x1x32xf32> to vector<1x32xf32>
    %103 = vector.shape_cast %102 : vector<1x32xf32> to vector<1x1x32xf32>
    %104 = vector.broadcast %103 : vector<1x1x32xf32> to vector<32x8x32xf32>
    %105 = arith.addf %100, %104 : vector<32x8x32xf32>
    %106 = arith.addf %105, %73 : vector<32x8x32xf32>
    %c0_55 = arith.constant 0 : index
    %c0_56 = arith.constant 0 : index
    %c0_57 = arith.constant 0 : index
    %107 = vector.load %arg16[%c0_55, %c0_56, %c0_57] : memref<1x1x32xf32, #tpu.memory_space<vmem>>, vector<1x1x32xf32>
    %108 = vector.shape_cast %107 : vector<1x1x32xf32> to vector<1x32xf32>
    %c0_58 = arith.constant 0 : index
    %c0_59 = arith.constant 0 : index
    %c0_60 = arith.constant 0 : index
    %109 = vector.load %arg17[%c0_58, %c0_59, %c0_60] : memref<1x1x32xf32, #tpu.memory_space<vmem>>, vector<1x1x32xf32>
    %110 = vector.shape_cast %109 : vector<1x1x32xf32> to vector<1x32xf32>
    %cst_61 = arith.constant dense<0.000000e+00> : vector<32x8xf32>
    %111 = vector.multi_reduction <add>, %106, %cst_61 [2] : vector<32x8x32xf32> to vector<32x8xf32>
    %112 = vector.shape_cast %111 : vector<32x8xf32> to vector<32x8x1xf32>
    %cst_62 = arith.constant 3.200000e+01 : f32
    %113 = vector.broadcast %cst_62 : f32 to vector<32x8x1xf32>
    %114 = arith.divf %112, %113 : vector<32x8x1xf32>
    %115 = vector.broadcast %114 : vector<32x8x1xf32> to vector<32x8x32xf32>
    %116 = arith.subf %106, %115 : vector<32x8x32xf32>
    %117 = arith.mulf %116, %116 : vector<32x8x32xf32>
    %cst_63 = arith.constant dense<0.000000e+00> : vector<32x8xf32>
    %118 = vector.multi_reduction <add>, %117, %cst_63 [2] : vector<32x8x32xf32> to vector<32x8xf32>
    %119 = vector.shape_cast %118 : vector<32x8xf32> to vector<32x8x1xf32>
    %cst_64 = arith.constant 3.200000e+01 : f32
    %120 = vector.broadcast %cst_64 : f32 to vector<32x8x1xf32>
    %121 = arith.divf %119, %120 : vector<32x8x1xf32>
    %122 = vector.broadcast %114 : vector<32x8x1xf32> to vector<32x8x32xf32>
    %123 = arith.subf %106, %122 : vector<32x8x32xf32>
    %cst_65 = arith.constant 9.99999997E-7 : f32
    %124 = vector.broadcast %cst_65 : f32 to vector<32x8x1xf32>
    %125 = arith.addf %121, %124 : vector<32x8x1xf32>
    %126 = math.rsqrt %125 : vector<32x8x1xf32>
    %127 = vector.broadcast %126 : vector<32x8x1xf32> to vector<32x8x32xf32>
    %128 = arith.mulf %123, %127 : vector<32x8x32xf32>
    %129 = vector.shape_cast %108 : vector<1x32xf32> to vector<1x1x32xf32>
    %130 = vector.broadcast %129 : vector<1x1x32xf32> to vector<32x8x32xf32>
    %131 = arith.mulf %128, %130 : vector<32x8x32xf32>
    %132 = vector.shape_cast %110 : vector<1x32xf32> to vector<1x1x32xf32>
    %133 = vector.broadcast %132 : vector<1x1x32xf32> to vector<32x8x32xf32>
    %134 = arith.addf %131, %133 : vector<32x8x32xf32>
    %c0_66 = arith.constant 0 : index
    %c0_67 = arith.constant 0 : index
    %c0_68 = arith.constant 0 : index
    %135 = vector.load %arg18[%c0_66, %c0_67, %c0_68] : memref<32x8x32xf32, #tpu.memory_space<vmem>>, vector<32x8x32xf32>
    tpu.vector_store %arg18[%c0_66, %c0_67, %c0_68], %134 {strides = array<i32>} : memref<32x8x32xf32, #tpu.memory_space<vmem>>, vector<32x8x32xf32>,
    return
  }
  func.func @transform_0(%arg0: i32, %arg1: i32) -> (i32, i32, i32) {
    %c0_i32 = arith.constant 0 : i32
    %c0_i32_0 = arith.constant 0 : i32
    %c0_i32_1 = arith.constant 0 : i32
    return %arg0, %c0_i32, %c0_i32_0 : i32, i32, i32
  }
  func.func @transform_1(%arg0: i32, %arg1: i32) -> (i32, i32, i32) {
    %c0_i32 = arith.constant 0 : i32
    %c0_i32_0 = arith.constant 0 : i32
    %c0_i32_1 = arith.constant 0 : i32
    return %arg0, %c0_i32, %c0_i32_0 : i32, i32, i32
  }
  func.func @transform_2(%arg0: i32, %arg1: i32) -> (i32, i32) {
    %c0_i32 = arith.constant 0 : i32
    %c0_i32_0 = arith.constant 0 : i32
    %c0_i32_1 = arith.constant 0 : i32
    return %c0_i32, %c0_i32_0 : i32, i32
  }
  func.func @transform_3(%arg0: i32, %arg1: i32) -> (i32, i32) {
    %c0_i32 = arith.constant 0 : i32
    %c0_i32_0 = arith.constant 0 : i32
    %c0_i32_1 = arith.constant 0 : i32
    return %c0_i32, %c0_i32_0 : i32, i32
  }
  func.func @transform_4(%arg0: i32, %arg1: i32) -> (i32, i32, i32) {
    %c0_i32 = arith.constant 0 : i32
    %c0_i32_0 = arith.constant 0 : i32
    %c0_i32_1 = arith.constant 0 : i32
    return %arg1, %c0_i32, %c0_i32_0 : i32, i32, i32
  }
  func.func @transform_5(%arg0: i32, %arg1: i32) -> (i32, i32, i32) {
    %c0_i32 = arith.constant 0 : i32
    %c0_i32_0 = arith.constant 0 : i32
    %c0_i32_1 = arith.constant 0 : i32
    return %arg1, %c0_i32, %c0_i32_0 : i32, i32, i32
  }
  func.func @transform_6(%arg0: i32, %arg1: i32) -> (i32, i32, i32) {
    %c0_i32 = arith.constant 0 : i32
    %c0_i32_0 = arith.constant 0 : i32
    %c0_i32_1 = arith.constant 0 : i32
    return %arg1, %c0_i32, %c0_i32_0 : i32, i32, i32
  }
  func.func @transform_7(%arg0: i32, %arg1: i32) -> (i32, i32, i32) {
    %c0_i32 = arith.constant 0 : i32
    %c0_i32_0 = arith.constant 0 : i32
    %c0_i32_1 = arith.constant 0 : i32
    return %arg1, %c0_i32, %c0_i32_0 : i32, i32, i32
  }
  func.func @transform_8(%arg0: i32, %arg1: i32) -> (i32, i32, i32) {
    %c0_i32 = arith.constant 0 : i32
    %c0_i32_0 = arith.constant 0 : i32
    %c0_i32_1 = arith.constant 0 : i32
    return %arg1, %c0_i32, %c0_i32_0 : i32, i32, i32
  }
  func.func @transform_9(%arg0: i32, %arg1: i32) -> (i32, i32, i32) {
    %c0_i32 = arith.constant 0 : i32
    %c0_i32_0 = arith.constant 0 : i32
    %c0_i32_1 = arith.constant 0 : i32
    return %arg1, %c0_i32, %c0_i32_0 : i32, i32, i32
  }
  func.func @transform_10(%arg0: i32, %arg1: i32) -> (i32, i32, i32) {
    %c0_i32 = arith.constant 0 : i32
    %c0_i32_0 = arith.constant 0 : i32
    %c0_i32_1 = arith.constant 0 : i32
    return %arg1, %c0_i32, %c0_i32_0 : i32, i32, i32
  }
  func.func @transform_11(%arg0: i32, %arg1: i32) -> (i32, i32, i32) {
    %c0_i32 = arith.constant 0 : i32
    %c0_i32_0 = arith.constant 0 : i32
    %c0_i32_1 = arith.constant 0 : i32
    return %arg1, %c0_i32, %c0_i32_0 : i32, i32, i32
  }
  func.func @transform_12(%arg0: i32, %arg1: i32) -> (i32, i32, i32) {
    %c0_i32 = arith.constant 0 : i32
    %c0_i32_0 = arith.constant 0 : i32
    %c0_i32_1 = arith.constant 0 : i32
    return %arg1, %c0_i32, %c0_i32_0 : i32, i32, i32
  }
  func.func @transform_13(%arg0: i32, %arg1: i32) -> (i32, i32, i32) {
    %c0_i32 = arith.constant 0 : i32
    %c0_i32_0 = arith.constant 0 : i32
    %c0_i32_1 = arith.constant 0 : i32
    return %arg1, %c0_i32, %c0_i32_0 : i32, i32, i32
  }
  func.func @transform_14(%arg0: i32, %arg1: i32) -> (i32, i32, i32) {
    %c0_i32 = arith.constant 0 : i32
    %c0_i32_0 = arith.constant 0 : i32
    %c0_i32_1 = arith.constant 0 : i32
    return %arg1, %c0_i32, %c0_i32_0 : i32, i32, i32
  }
  func.func @transform_15(%arg0: i32, %arg1: i32) -> (i32, i32, i32) {
    %c0_i32 = arith.constant 0 : i32
    %c0_i32_0 = arith.constant 0 : i32
    %c0_i32_1 = arith.constant 0 : i32
    return %arg1, %c0_i32, %c0_i32_0 : i32, i32, i32
  }
  func.func @transform_16(%arg0: i32, %arg1: i32) -> (i32, i32, i32) {
    %c0_i32 = arith.constant 0 : i32
    %c0_i32_0 = arith.constant 0 : i32
    %c0_i32_1 = arith.constant 0 : i32
    return %arg0, %c0_i32, %c0_i32_0 : i32, i32, i32
  }
}

module attributes {stable_mosaic.version = 11 : i64} {
  func.func @out_proj_kernel(%arg0: i32, %arg1: i32, %arg2: memref<32x8x32xf32, #tpu.memory_space<vmem>>, %arg3: memref<32x128xbf16, #tpu.memory_space<vmem>>, %arg4: memref<1x128xf32, #tpu.memory_space<vmem>>, %arg5: memref<32x8x128xf32, #tpu.memory_space<vmem>>) attributes {dimension_semantics = [#tpu.dimension_semantics<parallel>, #tpu.dimension_semantics<parallel>], iteration_bounds = array<i64: 2, 1>, scalar_prefetch = 0 : i64, scratch_operands = 0 : i64, tpu.core_type = #tpu.core_type<tc>, window_params = [{transform_indices = @transform_0, window_bounds = array<i64: 32, 8, 32>}, {transform_indices = @transform_1, window_bounds = array<i64: 32, 128>}, {transform_indices = @transform_2, window_bounds = array<i64: 1, 128>}, {transform_indices = @transform_3, window_bounds = array<i64: 32, 8, 128>}]} {
    %c0 = arith.constant 0 : index
    %c0_0 = arith.constant 0 : index
    %c0_1 = arith.constant 0 : index
    %0 = vector.load %arg2[%c0, %c0_0, %c0_1] : memref<32x8x32xf32, #tpu.memory_space<vmem>>, vector<32x8x32xf32>
    %1 = vector.shape_cast %0 : vector<32x8x32xf32> to vector<256x32xf32>
    %2 = arith.truncf %1 : vector<256x32xf32> to vector<256x32xbf16>
    %c0_2 = arith.constant 0 : index
    %c0_3 = arith.constant 0 : index
    %3 = vector.load %arg3[%c0_2, %c0_3] : memref<32x128xbf16, #tpu.memory_space<vmem>>, vector<32x128xbf16>
    %cst = arith.constant dense<0.000000e+00> : vector<256x128xf32>
    %4 = tpu.matmul %2, %3, %cst {dimension_numbers = #tpu.dot_dimension_numbers<[1], [0], [0], [1], [0, 0, 1, 1], [], []>} : vector<256x32xbf16>, vector<32x128xbf16>, vector<256x128xf32> -> vector<256x128xf32>
    %c0_4 = arith.constant 0 : index
    %c0_5 = arith.constant 0 : index
    %5 = vector.load %arg4[%c0_4, %c0_5] : memref<1x128xf32, #tpu.memory_space<vmem>>, vector<1x128xf32>
    %6 = vector.broadcast %5 : vector<1x128xf32> to vector<256x128xf32>
    %7 = arith.addf %4, %6 : vector<256x128xf32>
    %8 = vector.shape_cast %7 : vector<256x128xf32> to vector<32x8x128xf32>
    %c0_6 = arith.constant 0 : index
    %c0_7 = arith.constant 0 : index
    %c0_8 = arith.constant 0 : index
    %9 = vector.load %arg5[%c0_6, %c0_7, %c0_8] : memref<32x8x128xf32, #tpu.memory_space<vmem>>, vector<32x8x128xf32>
    tpu.vector_store %arg5[%c0_6, %c0_7, %c0_8], %8 {strides = array<i32>} : memref<32x8x128xf32, #tpu.memory_space<vmem>>, vector<32x8x128xf32>,
    return
  }
  func.func @transform_0(%arg0: i32, %arg1: i32) -> (i32, i32, i32) {
    %c0_i32 = arith.constant 0 : i32
    %c0_i32_0 = arith.constant 0 : i32
    %c0_i32_1 = arith.constant 0 : i32
    return %arg0, %c0_i32, %c0_i32_0 : i32, i32, i32
  }
  func.func @transform_1(%arg0: i32, %arg1: i32) -> (i32, i32) {
    %c0_i32 = arith.constant 0 : i32
    %c0_i32_0 = arith.constant 0 : i32
    return %c0_i32, %arg1 : i32, i32
  }
  func.func @transform_2(%arg0: i32, %arg1: i32) -> (i32, i32) {
    %c0_i32 = arith.constant 0 : i32
    %c0_i32_0 = arith.constant 0 : i32
    return %c0_i32, %arg1 : i32, i32
  }
  func.func @transform_3(%arg0: i32, %arg1: i32) -> (i32, i32, i32) {
    %c0_i32 = arith.constant 0 : i32
    %c0_i32_0 = arith.constant 0 : i32
    return %arg0, %c0_i32, %arg1 : i32, i32, i32
  }
}

</mosaic_0001>

<llo_original>
// kernel: bert4rec_forward.3
$region0: #{bert4rec_forward.3}
  #allocation0 [shape = 'u32[]', space=smem, size = 0x4, offset = 0x4, fixed_abs, tag = 'smem constant byte address 0x4 - core index']
  #allocation1 [shape = 'u32[72,128]{1,0:T(1,128)}', space=vmem, size = 0x9000, scoped, tag = 'internal scratch']
  %s0 = inlined_call_operand.vmem [shape: f32[64,8,32], index: 0, kind: input, shape index: {}]
  %s1 = inlined_call_operand.vmem [shape: bf16[32,128], index: 1, kind: input, shape index: {}]
  %s2 = inlined_call_operand.vmem [shape: f32[1,128], index: 2, kind: input, shape index: {}]
  %s3 = inlined_call_operand.vmem [shape: f32[64,8,128], index: 3, kind: output, shape index: {}]
  %s4 = sld [smem:[#allocation0]]
  $region45: #{bert4rec_forward.3} parent=0
    _
  %s6 = ssub.s32 1, %s4
  %s7 = scalar_select 0, %s6, %s4
  loop: start=0, step=1, limit=4
  $region2: #{bert4rec_forward.3} parent=0 // loop_pre_header
    _
  $region3: #{bert4rec_forward.3} parent=0 // loop_header
    %s9 = sphi 0, %s13
    %p10 = scmp.ge.s32.totalorder %s9, 4
    %s16 = sphi 0, %s28
    %s17 = sphi 0, %s24
    %s18 = sphi 0, %s16
    %s19 = sphi 0, %s17
    %s20 = sphi 0, %s18
    %s21 = sphi 0, %s19
    %s31 = sphi 0, %s33
    %s34 = sphi 0, %s31
    %s35 = sphi 0, %s34
    %s51 = sphi 0, %s35
    %s57 = sphi 0, %s59
    %s60 = sphi 0, %s57
    %s61 = sphi 0, %s60
    %s77 = sphi 0, %s61
    %s83 = sphi 0, %s85
    %s86 = sphi 0, %s83
    %s87 = sphi 0, %s86
    %s103 = sphi 0, %s87
    %s111 = sphi 0, %s113
    %s114 = sphi 0, %s111
    %s115 = sphi 0, %s114
    %s131 = sphi 0, %s115
  $region4: #{bert4rec_forward.3} parent=0 // loop_header_branch
    %12 = sbr.rel (%p10) target = $region8
  $region5: #{bert4rec_forward.3} parent=0 // loop_body
    %s14 = ssub.s32 %s9, 1
    %s15 = ssub.s32 %s9, 2
    %s22 = sadd.s32 1, %s17
    %p23 = scmp.ge.s32.totalorder %s22, 1
    %s24 = scalar_select %p23, 0, %s22
    %s25 = sadd.s32 1, %s16
    %s26 = scalar_select %p23, %s25, %s16
    %p27 = scmp.ge.s32.totalorder %s26, 2
    %s28 = scalar_select %p27, 0, %s26
    %s29 = ssub.s32 %s16, %s28
    %p30 = scmp.eq.s32.totalorder %s29, 0
    %s32 = sadd.s32 %s31, 1
    %s33 = scalar_select %p30, %s31, %s32
    %p36 = pneg %p30
    %p37 = scmp.eq.s32.totalorder %s9, 1
    %p38 = por %p36, %p37
    %p39 = scmp.ne.s32.totalorder %s31, %s34
    %p40 = scmp.eq.s32.totalorder %s9, 0
    %p41 = por %p39, %p40
    %p42 = scmp.ne.s32.totalorder %s31, %s34
    %p43 = scmp.eq.s32.totalorder %s14, 1
    %p44 = por %p42, %p43
    %p45 = scmp.ne.s32.totalorder %s34, %s35
    %p46 = scmp.eq.s32.totalorder %s14, 0
    %p47 = por %p45, %p46
    %p48 = scmp.ne.s32.totalorder %s34, %s35
    %p49 = scmp.eq.s32.totalorder %s15, 1
    %p50 = por %p48, %p49
    %p52 = scmp.ne.s32.totalorder %s35, %s51
    %p53 = scmp.eq.s32.totalorder %s15, 0
    %p54 = por %p52, %p53
    %s55 = ssub.s32 %s17, %s24
    %p56 = scmp.eq.s32.totalorder %s55, 0
    %s58 = sadd.s32 %s57, 1
    %s59 = scalar_select %p56, %s57, %s58
    %p62 = pneg %p56
    %p63 = scmp.eq.s32.totalorder %s9, 1
    %p64 = por %p62, %p63
    %p65 = scmp.ne.s32.totalorder %s57, %s60
    %p66 = scmp.eq.s32.totalorder %s9, 0
    %p67 = por %p65, %p66
    %p68 = scmp.ne.s32.totalorder %s57, %s60
    %p69 = scmp.eq.s32.totalorder %s14, 1
    %p70 = por %p68, %p69
    %p71 = scmp.ne.s32.totalorder %s60, %s61
    %p72 = scmp.eq.s32.totalorder %s14, 0
    %p73 = por %p71, %p72
    %p74 = scmp.ne.s32.totalorder %s60, %s61
    %p75 = scmp.eq.s32.totalorder %s15, 1
    %p76 = por %p74, %p75
    %p78 = scmp.ne.s32.totalorder %s61, %s77
    %p79 = scmp.eq.s32.totalorder %s15, 0
    %p80 = por %p78, %p79
    %s81 = ssub.s32 %s17, %s24
    %p82 = scmp.eq.s32.totalorder %s81, 0
    %s84 = sadd.s32 %s83, 1
    %s85 = scalar_select %p82, %s83, %s84
    %p88 = pneg %p82
    %p89 = scmp.eq.s32.totalorder %s9, 1
    %p90 = por %p88, %p89
    %p91 = scmp.ne.s32.totalorder %s83, %s86
    %p92 = scmp.eq.s32.totalorder %s9, 0
    %p93 = por %p91, %p92
    %p94 = scmp.ne.s32.totalorder %s83, %s86
    %p95 = scmp.eq.s32.totalorder %s14, 1
    %p96 = por %p94, %p95
    %p97 = scmp.ne.s32.totalorder %s86, %s87
    %p98 = scmp.eq.s32.totalorder %s14, 0
    %p99 = por %p97, %p98
    %p100 = scmp.ne.s32.totalorder %s86, %s87
    %p101 = scmp.eq.s32.totalorder %s15, 1
    %p102 = por %p100, %p101
    %p104 = scmp.ne.s32.totalorder %s87, %s103
    %p105 = scmp.eq.s32.totalorder %s15, 0
    %p106 = por %p104, %p105
    %s107 = ssub.s32 %s16, %s28
    %s108 = ssub.s32 %s17, %s24
    %s109 = sor.u32 %s107, %s108
    %p110 = scmp.eq.s32.totalorder %s109, 0
    %s112 = sadd.s32 %s111, 1
    %s113 = scalar_select %p110, %s111, %s112
    %p116 = pneg %p110
    %p117 = scmp.eq.s32.totalorder %s9, 1
    %p118 = por %p116, %p117
    %p119 = scmp.ne.s32.totalorder %s111, %s114
    %p120 = scmp.eq.s32.totalorder %s9, 0
    %p121 = por %p119, %p120
    %p122 = scmp.ne.s32.totalorder %s111, %s114
    %p123 = scmp.eq.s32.totalorder %s14, 1
    %p124 = por %p122, %p123
    %p125 = scmp.ne.s32.totalorder %s114, %s115
    %p126 = scmp.eq.s32.totalorder %s14, 0
    %p127 = por %p125, %p126
    %p128 = scmp.ne.s32.totalorder %s114, %s115
    %p129 = scmp.eq.s32.totalorder %s15, 1
    %p130 = por %p128, %p129
    %p132 = scmp.ne.s32.totalorder %s115, %s131
    %p133 = scmp.eq.s32.totalorder %s15, 0
    %p134 = por %p132, %p133
    %p135 = scmp.le.s32.totalorder 1, %s9
    %p136 = scmp.lt.s32.totalorder %s9, 3
    %p137 = pnand %p135, %p136
    %p138 = pneg %p137
    // Predicated region
    $region9: #{bert4rec_forward.3} parent=5 // pred_check
      _
    $region10: #{bert4rec_forward.3} parent=5 // pred_check_branch
      %140 = sbr.rel (%p137) target = $region12
    $region11: #{bert4rec_forward.3} parent=5 // pred_region
      %s141 = ssub.s32 %s9, 1
      // Predicated region
      $region13: #{bert4rec_forward.3} parent=11 // pred_check
        %p142 = pneg %p73
      $region14: #{bert4rec_forward.3} parent=11 // pred_check_branch
        %144 = sbr.rel (%p142) target = $region16
      $region15: #{bert4rec_forward.3} parent=11 // pred_region
        %p145 = scmp.lt.s32.totalorder %s19, 0
        %s146 = scalar_select %p145, %s19, 0
        %s147 = smul.addr %s146, 4
        %s148 = scalar_lea.vmem %s1, %s147
      $region16: #{bert4rec_forward.3} parent=11 // pred_fallthru
        _
      // Predicated region
      $region17: #{bert4rec_forward.3} parent=11 // pred_check
        %p149 = pneg %p99
      $region18: #{bert4rec_forward.3} parent=11 // pred_check_branch
        %151 = sbr.rel (%p149) target = $region20
      $region19: #{bert4rec_forward.3} parent=11 // pred_region
        %p152 = scmp.lt.s32.totalorder %s19, 0
        %s153 = scalar_select %p152, %s19, 0
        %s154 = scalar_lea.vmem %s2, %s153
      $region20: #{bert4rec_forward.3} parent=11 // pred_fallthru
        _
    $region12: #{bert4rec_forward.3} parent=5 // pred_fallthru
      _
    %p155 = scmp.lt.s32.totalorder %s9, 2
    // Predicated region
    $region21: #{bert4rec_forward.3} parent=5 // pred_check
      %p156 = pneg %p155
    $region22: #{bert4rec_forward.3} parent=5 // pred_check_branch
      %158 = sbr.rel (%p156) target = $region24
    $region23: #{bert4rec_forward.3} parent=5 // pred_region
      // Predicated region
      $region25: #{bert4rec_forward.3} parent=23 // pred_check
        %p159 = pneg %p41
      $region26: #{bert4rec_forward.3} parent=23 // pred_check_branch
        %161 = sbr.rel (%p159) target = $region28
      $region27: #{bert4rec_forward.3} parent=23 // pred_region
        %s162 = smul.u32 32, %s16
        %p163 = scmp.lt.s32.totalorder %s162, 63
        %s164 = scalar_select %p163, %s162, 63
        %s165 = smul.addr %s164, 8
        %s166 = scalar_lea.vmem %s0, %s165
        %s167 = smul.u32 32, %s16
      $region28: #{bert4rec_forward.3} parent=23 // pred_fallthru
        _
    $region24: #{bert4rec_forward.3} parent=5 // pred_fallthru
      _
    %p168 = scmp.le.s32.totalorder 1, %s9
    %p169 = scmp.lt.s32.totalorder %s9, 3
    %p170 = pnand %p168, %p169
    %p171 = pneg %p170
    // Predicated region
    $region29: #{bert4rec_forward.3} parent=5 // pred_check
      _
    $region30: #{bert4rec_forward.3} parent=5 // pred_check_branch
      %173 = sbr.rel (%p170) target = $region32
    $region31: #{bert4rec_forward.3} parent=5 // pred_region
      %s174 = ssub.s32 %s9, 1
      %s175 = smul.u32 32, %s18
      %p176 = scmp.lt.s32.totalorder %s175, 63
      %s177 = scalar_select %p176, %s175, 63
      %s178 = smul.addr %s177, 8
      %s179 = scalar_lea.vmem %s0, %s178
      %p180 = pneg %p47
      %p181 = pneg %p44
      %p182 = scmp.lt.s32.totalorder %s19, 0
      %s183 = scalar_select %p182, %s19, 0
      %s184 = smul.addr %s183, 4
      %s185 = scalar_lea.vmem %s1, %s184
      %p186 = pneg %p73
      %p187 = pneg %p70
      %p188 = scmp.lt.s32.totalorder %s19, 0
      %s189 = scalar_select %p188, %s19, 0
      %s190 = scalar_lea.vmem %s2, %s189
      %p191 = pneg %p99
      %p192 = pneg %p96
      %p193 = pneg %p127
      %p194 = pneg %p124
      %s195 = smul.u32 32, %s18
      %p196 = scmp.lt.s32.totalorder %s195, 63
      %s197 = scalar_select %p196, %s195, 63
      %p198 = scmp.lt.s32.totalorder %s19, 0
      %s199 = scalar_select %p198, %s19, 0
      %s200 = sadd.s32 %s199, %s197
      %s201 = smul.addr %s200, 8
      %s202 = scalar_lea.vmem %s3, %s201
      %s203 = smul.u32 32, %s18
      %p204 = scmp.lt.s32.totalorder %s203, 63
      %s205 = scalar_select %p204, %s203, 63
      %s206 = smul.addr %s205, 8
      %s207 = scalar_lea.vmem %s0, %s206
      %s208 = smul.u32 32, %s18
      %p209 = scmp.lt.s32.totalorder %s19, 0
      %s210 = scalar_select %p209, %s19, 0
      %s211 = smul.addr %s210, 4
      %s212 = scalar_lea.vmem %s1, %s211
      %p213 = scmp.lt.s32.totalorder %s19, 0
      %s214 = scalar_select %p213, %s19, 0
      %s215 = scalar_lea.vmem %s2, %s214
      %s216 = smul.u32 32, %s18
      %p217 = scmp.lt.s32.totalorder %s216, 63
      %s218 = scalar_select %p217, %s216, 63
      %p219 = scmp.lt.s32.totalorder %s19, 0
      %s220 = scalar_select %p219, %s19, 0
      %s221 = sadd.s32 %s220, %s218
      %s222 = smul.addr %s221, 8
      %s223 = scalar_lea.vmem %s3, %s222
      %s224 = smul.u32 32, %s18
      %v226 = vld [vmem:[%s207] sm:$0xff]
      %v227 = vld [vmem:[%s207 + $0x8] sm:$0xff]
      %v228 = vld [vmem:[%s207 + $0x10] sm:$0xff]
      %v229 = vld [vmem:[%s207 + $0x18] sm:$0xff]
      %v230 = vld [vmem:[%s207 + $0x20] sm:$0xff]
      %v231 = vld [vmem:[%s207 + $0x28] sm:$0xff]
      %v232 = vld [vmem:[%s207 + $0x30] sm:$0xff]
      %v233 = vld [vmem:[%s207 + $0x38] sm:$0xff]
      %v234 = vld [vmem:[%s207 + $0x40] sm:$0xff]
      %v235 = vld [vmem:[%s207 + $0x48] sm:$0xff]
      %v236 = vld [vmem:[%s207 + $0x50] sm:$0xff]
      %v237 = vld [vmem:[%s207 + $0x58] sm:$0xff]
      %v238 = vld [vmem:[%s207 + $0x60] sm:$0xff]
      %v239 = vld [vmem:[%s207 + $0x68] sm:$0xff]
      %v240 = vld [vmem:[%s207 + $0x70] sm:$0xff]
      %v241 = vld [vmem:[%s207 + $0x78] sm:$0xff]
      %v242 = vld [vmem:[%s207 + $0x80] sm:$0xff]
      %v243 = vld [vmem:[%s207 + $0x88] sm:$0xff]
      %v244 = vld [vmem:[%s207 + $0x90] sm:$0xff]
      %v245 = vld [vmem:[%s207 + $0x98] sm:$0xff]
      %v246 = vld [vmem:[%s207 + $0xa0] sm:$0xff]
      %v247 = vld [vmem:[%s207 + $0xa8] sm:$0xff]
      %v248 = vld [vmem:[%s207 + $0xb0] sm:$0xff]
      %v249 = vld [vmem:[%s207 + $0xb8] sm:$0xff]
      %v250 = vld [vmem:[%s207 + $0xc0] sm:$0xff]
      %v251 = vld [vmem:[%s207 + $0xc8] sm:$0xff]
      %v252 = vld [vmem:[%s207 + $0xd0] sm:$0xff]
      %v253 = vld [vmem:[%s207 + $0xd8] sm:$0xff]
      %v254 = vld [vmem:[%s207 + $0xe0] sm:$0xff]
      %v255 = vld [vmem:[%s207 + $0xe8] sm:$0xff]
      %v256 = vld [vmem:[%s207 + $0xf0] sm:$0xff]
      %v257 = vld [vmem:[%s207 + $0xf8] sm:$0xff]
      %v258 = vpack.c.bf16 %v227, %v226
      %v259 = vpack.c.bf16 %v229, %v228
      %v260 = vpack.c.bf16 %v231, %v230
      %v261 = vpack.c.bf16 %v233, %v232
      %v262 = vpack.c.bf16 %v235, %v234
      %v263 = vpack.c.bf16 %v237, %v236
      %v264 = vpack.c.bf16 %v239, %v238
      %v265 = vpack.c.bf16 %v241, %v240
      %v266 = vpack.c.bf16 %v243, %v242
      %v267 = vpack.c.bf16 %v245, %v244
      %v268 = vpack.c.bf16 %v247, %v246
      %v269 = vpack.c.bf16 %v249, %v248
      %v270 = vpack.c.bf16 %v251, %v250
      %v271 = vpack.c.bf16 %v253, %v252
      %v272 = vpack.c.bf16 %v255, %v254
      %v273 = vpack.c.bf16 %v257, %v256
      %v274 = vld [vmem:[%s212] sm:$0xf]
      %v275 = vld [vmem:[%s212 + $0x4] sm:$0xf]
      %v276 = vld [vmem:[%s212 + $0x8] sm:$0xf]
      %v277 = vld [vmem:[%s212 + $0xc] sm:$0xf]
      %v278 = vld [vmem:[%s215] sm:$0x1]
      %v280 = vperm.slane %v278, 0
      %v286 = vunpack.c.l.b16 %v274
      %v287 = vunpack.c.l.b16 %v275
      %v288 = vunpack.c.l.b16 %v276
      %v289 = vunpack.c.l.b16 %v277
      %v290 = vpack.c.b16 %v287, %v286
      %v291 = vpack.c.b16 %v289, %v288
      %vm294 = vcmask 261120
      %v296 = vsel %vm294, %v258, 0
      %v299 = vsel %vm294, %v259, 0
      %v302 = vsel %vm294, %v260, 0
      %v305 = vsel %vm294, %v261, 0
      %v308 = vsel %vm294, %v262, 0
      %v311 = vsel %vm294, %v263, 0
      %v314 = vsel %vm294, %v264, 0
      %v317 = vsel %vm294, %v265, 0
      %v320 = vsel %vm294, %v266, 0
      %v323 = vsel %vm294, %v267, 0
      %v326 = vsel %vm294, %v268, 0
      %v329 = vsel %vm294, %v269, 0
      %v332 = vsel %vm294, %v270, 0
      %v335 = vsel %vm294, %v271, 0
      %v338 = vsel %vm294, %v272, 0
      %v341 = vsel %vm294, %v273, 0
      %343 = vmatpush.bf16.msra.mxu0 0
      %344 = vmatpush.bf16.msra.mxu0 0
      %345 = vmatpush.bf16.msra.mxu0 0
      %346 = vmatpush.bf16.msra.mxu0 0
      %347 = vmatpush.bf16.msra.mxu0 0
      %348 = vmatpush.bf16.msra.mxu0 0
      %349 = vmatpush.bf16.msra.mxu0 %v291
      %350 = vmatpush.bf16.msra.mxu0 %v290
      %351 = vmatmul.bf16.gmra.mxu0 %v296
      %v352 = vpop.f32.mrf.mxu0
      %v353 = vadd.f32 %v280, %v352
      %v354 = vpop.f32.mrf.mxu0
      %v355 = vadd.f32 %v280, %v354
      %356 = vmatmul.bf16.gmra.mxu0 %v299
      %v357 = vpop.f32.mrf.mxu0
      %v358 = vadd.f32 %v280, %v357
      %v359 = vpop.f32.mrf.mxu0
      %v360 = vadd.f32 %v280, %v359
      %361 = vmatmul.bf16.gmra.mxu0 %v302
      %v362 = vpop.f32.mrf.mxu0
      %v363 = vadd.f32 %v280, %v362
      %v364 = vpop.f32.mrf.mxu0
      %v365 = vadd.f32 %v280, %v364
      %366 = vmatmul.bf16.gmra.mxu0 %v305
      %v367 = vpop.f32.mrf.mxu0
      %v368 = vadd.f32 %v280, %v367
      %v369 = vpop.f32.mrf.mxu0
      %v370 = vadd.f32 %v280, %v369
      %371 = vmatmul.bf16.gmra.mxu0 %v308
      %v372 = vpop.f32.mrf.mxu0
      %v373 = vadd.f32 %v280, %v372
      %v374 = vpop.f32.mrf.mxu0
      %v375 = vadd.f32 %v280, %v374
      %376 = vmatmul.bf16.gmra.mxu0 %v311
      %v377 = vpop.f32.mrf.mxu0
      %v378 = vadd.f32 %v280, %v377
      %v379 = vpop.f32.mrf.mxu0
      %v380 = vadd.f32 %v280, %v379
      %381 = vmatmul.bf16.gmra.mxu0 %v314
      %v382 = vpop.f32.mrf.mxu0
      %v383 = vadd.f32 %v280, %v382
      %v384 = vpop.f32.mrf.mxu0
      %v385 = vadd.f32 %v280, %v384
      %386 = vmatmul.bf16.gmra.mxu0 %v317
      %v387 = vpop.f32.mrf.mxu0
      %v388 = vadd.f32 %v280, %v387
      %v389 = vpop.f32.mrf.mxu0
      %v390 = vadd.f32 %v280, %v389
      %391 = vmatmul.bf16.gmra.mxu0 %v320
      %v392 = vpop.f32.mrf.mxu0
      %v393 = vadd.f32 %v280, %v392
      %v394 = vpop.f32.mrf.mxu0
      %v395 = vadd.f32 %v280, %v394
      %396 = vmatmul.bf16.gmra.mxu0 %v323
      %v397 = vpop.f32.mrf.mxu0
      %v398 = vadd.f32 %v280, %v397
      %v399 = vpop.f32.mrf.mxu0
      %v400 = vadd.f32 %v280, %v399
      %401 = vmatmul.bf16.gmra.mxu0 %v326
      %v402 = vpop.f32.mrf.mxu0
      %v403 = vadd.f32 %v280, %v402
      %v404 = vpop.f32.mrf.mxu0
      %v405 = vadd.f32 %v280, %v404
      %406 = vmatmul.bf16.gmra.mxu0 %v329
      %v407 = vpop.f32.mrf.mxu0
      %v408 = vadd.f32 %v280, %v407
      %v409 = vpop.f32.mrf.mxu0
      %v410 = vadd.f32 %v280, %v409
      %411 = vmatmul.bf16.gmra.mxu0 %v332
      %v412 = vpop.f32.mrf.mxu0
      %v413 = vadd.f32 %v280, %v412
      %v414 = vpop.f32.mrf.mxu0
      %v415 = vadd.f32 %v280, %v414
      %416 = vmatmul.bf16.gmra.mxu0 %v335
      %v417 = vpop.f32.mrf.mxu0
      %v418 = vadd.f32 %v280, %v417
      %v419 = vpop.f32.mrf.mxu0
      %v420 = vadd.f32 %v280, %v419
      %421 = vmatmul.bf16.gmra.mxu0 %v338
      %v422 = vpop.f32.mrf.mxu0
      %v423 = vadd.f32 %v280, %v422
      %v424 = vpop.f32.mrf.mxu0
      %v425 = vadd.f32 %v280, %v424
      %426 = vmatmul.bf16.gmra.mxu0 %v341
      %v427 = vpop.f32.mrf.mxu0
      %v428 = vadd.f32 %v280, %v427
      %v429 = vpop.f32.mrf.mxu0
      %v430 = vadd.f32 %v280, %v429
      %431 = vdwg.mxu0
      %432 = vst [vmem:[%s223] sm:$0xff] %v353
      %433 = vst [vmem:[%s223 + $0x8] sm:$0xff] %v355
      %434 = vst [vmem:[%s223 + $0x10] sm:$0xff] %v358
      %435 = vst [vmem:[%s223 + $0x18] sm:$0xff] %v360
      %436 = vst [vmem:[%s223 + $0x20] sm:$0xff] %v363
      %437 = vst [vmem:[%s223 + $0x28] sm:$0xff] %v365
      %438 = vst [vmem:[%s223 + $0x30] sm:$0xff] %v368
      %439 = vst [vmem:[%s223 + $0x38] sm:$0xff] %v370
      %440 = vst [vmem:[%s223 + $0x40] sm:$0xff] %v373
      %441 = vst [vmem:[%s223 + $0x48] sm:$0xff] %v375
      %442 = vst [vmem:[%s223 + $0x50] sm:$0xff] %v378
      %443 = vst [vmem:[%s223 + $0x58] sm:$0xff] %v380
      %444 = vst [vmem:[%s223 + $0x60] sm:$0xff] %v383
      %445 = vst [vmem:[%s223 + $0x68] sm:$0xff] %v385
      %446 = vst [vmem:[%s223 + $0x70] sm:$0xff] %v388
      %447 = vst [vmem:[%s223 + $0x78] sm:$0xff] %v390
      %448 = vst [vmem:[%s223 + $0x80] sm:$0xff] %v393
      %449 = vst [vmem:[%s223 + $0x88] sm:$0xff] %v395
      %450 = vst [vmem:[%s223 + $0x90] sm:$0xff] %v398
      %451 = vst [vmem:[%s223 + $0x98] sm:$0xff] %v400
      %452 = vst [vmem:[%s223 + $0xa0] sm:$0xff] %v403
      %453 = vst [vmem:[%s223 + $0xa8] sm:$0xff] %v405
      %454 = vst [vmem:[%s223 + $0xb0] sm:$0xff] %v408
      %455 = vst [vmem:[%s223 + $0xb8] sm:$0xff] %v410
      %456 = vst [vmem:[%s223 + $0xc0] sm:$0xff] %v413
      %457 = vst [vmem:[%s223 + $0xc8] sm:$0xff] %v415
      %458 = vst [vmem:[%s223 + $0xd0] sm:$0xff] %v418
      %459 = vst [vmem:[%s223 + $0xd8] sm:$0xff] %v420
      %460 = vst [vmem:[%s223 + $0xe0] sm:$0xff] %v423
      %461 = vst [vmem:[%s223 + $0xe8] sm:$0xff] %v425
      %462 = vst [vmem:[%s223 + $0xf0] sm:$0xff] %v428
      %463 = vst [vmem:[%s223 + $0xf8] sm:$0xff] %v430
      %s464 = smul.u32 32, %s18
      %p465 = scmp.lt.s32.totalorder %s464, 63
      %s466 = scalar_select %p465, %s464, 63
      %p467 = scmp.lt.s32.totalorder %s19, 0
      %s468 = scalar_select %p467, %s19, 0
      %s469 = sadd.s32 %s468, %s466
      %s470 = smul.addr %s469, 8
      %s471 = scalar_lea.vmem %s3, %s470
      // Predicated region
      $region33: #{bert4rec_forward.3} parent=31 // pred_check
        %p472 = pneg %p124
      $region34: #{bert4rec_forward.3} parent=31 // pred_check_branch
        %474 = sbr.rel (%p472) target = $region36
      $region35: #{bert4rec_forward.3} parent=31 // pred_region
        %s475 = smul.u32 32, %s18
      $region36: #{bert4rec_forward.3} parent=31 // pred_fallthru
        _
    $region32: #{bert4rec_forward.3} parent=5 // pred_fallthru
      _
    %p476 = scmp.le.s32.totalorder 2, %s9
    // Predicated region
    $region37: #{bert4rec_forward.3} parent=5 // pred_check
      %p477 = pneg %p476
    $region38: #{bert4rec_forward.3} parent=5 // pred_check_branch
      %479 = sbr.rel (%p477) target = $region40
    $region39: #{bert4rec_forward.3} parent=5 // pred_region
      %s480 = ssub.s32 %s9, 2
      // Predicated region
      $region41: #{bert4rec_forward.3} parent=39 // pred_check
        %p481 = pneg %p130
      $region42: #{bert4rec_forward.3} parent=39 // pred_check_branch
        %483 = sbr.rel (%p481) target = $region44
      $region43: #{bert4rec_forward.3} parent=39 // pred_region
        %s484 = smul.u32 32, %s20
        %p485 = scmp.lt.s32.totalorder %s484, 63
        %s486 = scalar_select %p485, %s484, 63
        %p487 = scmp.lt.s32.totalorder %s21, 0
        %s488 = scalar_select %p487, %s21, 0
        %s489 = sadd.s32 %s488, %s486
        %s490 = smul.addr %s489, 8
        %s491 = scalar_lea.vmem %s3, %s490
      $region44: #{bert4rec_forward.3} parent=39 // pred_fallthru
        _
    $region40: #{bert4rec_forward.3} parent=5 // pred_fallthru
      _
  $region6: #{bert4rec_forward.3} parent=0 // loop_footer
    %s13 = sadd.s32 1, %s9
  $region7: #{bert4rec_forward.3} parent=0 // loop_footer_branch
    %8 = sbr.rel target = $region3
  $region8: #{bert4rec_forward.3} parent=0 // loop_exit
    _

// kernel: bert4rec_forward.2
$region0: #{bert4rec_forward.2}
  #allocation0 [shape = 'u32[]', space=smem, size = 0x4, offset = 0x4, fixed_abs, tag = 'smem constant byte address 0x4 - core index']
  #allocation1 [shape = 'u32[72,128]{1,0:T(1,128)}', space=vmem, size = 0x9000, scoped, tag = 'internal scratch']
  %s0 = inlined_call_operand.vmem [shape: f32[64,8,32], index: 0, kind: input, shape index: {}]
  %s1 = inlined_call_operand.vmem [shape: f32[64,1,8], index: 1, kind: input, shape index: {}]
  %s2 = inlined_call_operand.vmem [shape: f32[1,32], index: 2, kind: input, shape index: {}]
  %s3 = inlined_call_operand.vmem [shape: f32[1,32], index: 3, kind: input, shape index: {}]
  %s4 = inlined_call_operand.vmem [shape: bf16[2,32,32], index: 4, kind: input, shape index: {}]
  %s5 = inlined_call_operand.vmem [shape: bf16[2,32,32], index: 5, kind: input, shape index: {}]
  %s6 = inlined_call_operand.vmem [shape: bf16[2,32,32], index: 6, kind: input, shape index: {}]
  %s7 = inlined_call_operand.vmem [shape: bf16[2,32,32], index: 7, kind: input, shape index: {}]
  %s8 = inlined_call_operand.vmem [shape: f32[2,1,32], index: 8, kind: input, shape index: {}]
  %s9 = inlined_call_operand.vmem [shape: f32[2,1,32], index: 9, kind: input, shape index: {}]
  %s10 = inlined_call_operand.vmem [shape: bf16[2,32,128], index: 10, kind: input, shape index: {}]
  %s11 = inlined_call_operand.vmem [shape: f32[2,1,128], index: 11, kind: input, shape index: {}]
  %s12 = inlined_call_operand.vmem [shape: bf16[2,128,32], index: 12, kind: input, shape index: {}]
  %s13 = inlined_call_operand.vmem [shape: f32[2,1,32], index: 13, kind: input, shape index: {}]
  %s14 = inlined_call_operand.vmem [shape: f32[2,1,32], index: 14, kind: input, shape index: {}]
  %s15 = inlined_call_operand.vmem [shape: f32[2,1,32], index: 15, kind: input, shape index: {}]
  %s16 = inlined_call_operand.vmem [shape: f32[64,8,32], index: 16, kind: output, shape index: {}]
  %s17 = sld [smem:[#allocation0]]
  $region101: #{bert4rec_forward.2} parent=0
    _
  %s19 = ssub.s32 1, %s17
  %s20 = scalar_select 0, %s19, %s17
  loop: start=0, step=1, limit=6
  $region2: #{bert4rec_forward.2} parent=0 // loop_pre_header
    _
  $region3: #{bert4rec_forward.2} parent=0 // loop_header
    %s22 = sphi 0, %s26
    %p23 = scmp.ge.s32.totalorder %s22, 6
    %s29 = sphi 0, %s41
    %s30 = sphi 0, %s37
    %s31 = sphi 0, %s29
    %s32 = sphi 0, %s30
    %s33 = sphi 0, %s31
    %s34 = sphi 0, %s32
    %s44 = sphi 0, %s46
    %s47 = sphi 0, %s44
    %s48 = sphi 0, %s47
    %s64 = sphi 0, %s48
    %s70 = sphi 0, %s72
    %s73 = sphi 0, %s70
    %s74 = sphi 0, %s73
    %s90 = sphi 0, %s74
    %s94 = sphi 0, %s94
    %s96 = sphi 0, %s94
    %s97 = sphi 0, %s96
    %s111 = sphi 0, %s97
    %s115 = sphi 0, %s115
    %s117 = sphi 0, %s115
    %s118 = sphi 0, %s117
    %s132 = sphi 0, %s118
    %s138 = sphi 0, %s140
    %s141 = sphi 0, %s138
    %s142 = sphi 0, %s141
    %s158 = sphi 0, %s142
    %s164 = sphi 0, %s166
    %s167 = sphi 0, %s164
    %s168 = sphi 0, %s167
    %s184 = sphi 0, %s168
    %s190 = sphi 0, %s192
    %s193 = sphi 0, %s190
    %s194 = sphi 0, %s193
    %s210 = sphi 0, %s194
    %s216 = sphi 0, %s218
    %s219 = sphi 0, %s216
    %s220 = sphi 0, %s219
    %s236 = sphi 0, %s220
    %s242 = sphi 0, %s244
    %s245 = sphi 0, %s242
    %s246 = sphi 0, %s245
    %s262 = sphi 0, %s246
    %s268 = sphi 0, %s270
    %s271 = sphi 0, %s268
    %s272 = sphi 0, %s271
    %s288 = sphi 0, %s272
    %s294 = sphi 0, %s296
    %s297 = sphi 0, %s294
    %s298 = sphi 0, %s297
    %s314 = sphi 0, %s298
    %s320 = sphi 0, %s322
    %s323 = sphi 0, %s320
    %s324 = sphi 0, %s323
    %s340 = sphi 0, %s324
    %s346 = sphi 0, %s348
    %s349 = sphi 0, %s346
    %s350 = sphi 0, %s349
    %s366 = sphi 0, %s350
    %s372 = sphi 0, %s374
    %s375 = sphi 0, %s372
    %s376 = sphi 0, %s375
    %s392 = sphi 0, %s376
    %s398 = sphi 0, %s400
    %s401 = sphi 0, %s398
    %s402 = sphi 0, %s401
    %s418 = sphi 0, %s402
    %s424 = sphi 0, %s426
    %s427 = sphi 0, %s424
    %s428 = sphi 0, %s427
    %s444 = sphi 0, %s428
    %s450 = sphi 0, %s452
    %s453 = sphi 0, %s450
    %s454 = sphi 0, %s453
    %s470 = sphi 0, %s454
  $region4: #{bert4rec_forward.2} parent=0 // loop_header_branch
    %25 = sbr.rel (%p23) target = $region8
  $region5: #{bert4rec_forward.2} parent=0 // loop_body
    %s27 = ssub.s32 %s22, 1
    %s28 = ssub.s32 %s22, 2
    %s35 = sadd.s32 1, %s30
    %p36 = scmp.ge.s32.totalorder %s35, 2
    %s37 = scalar_select %p36, 0, %s35
    %s38 = sadd.s32 1, %s29
    %s39 = scalar_select %p36, %s38, %s29
    %p40 = scmp.ge.s32.totalorder %s39, 2
    %s41 = scalar_select %p40, 0, %s39
    %s42 = ssub.s32 %s29, %s41
    %p43 = scmp.eq.s32.totalorder %s42, 0
    %s45 = sadd.s32 %s44, 1
    %s46 = scalar_select %p43, %s44, %s45
    %p49 = pneg %p43
    %p50 = scmp.eq.s32.totalorder %s22, 3
    %p51 = por %p49, %p50
    %p52 = scmp.ne.s32.totalorder %s44, %s47
    %p53 = scmp.eq.s32.totalorder %s22, 0
    %p54 = por %p52, %p53
    %p55 = scmp.ne.s32.totalorder %s44, %s47
    %p56 = scmp.eq.s32.totalorder %s27, 3
    %p57 = por %p55, %p56
    %p58 = scmp.ne.s32.totalorder %s47, %s48
    %p59 = scmp.eq.s32.totalorder %s27, 0
    %p60 = por %p58, %p59
    %p61 = scmp.ne.s32.totalorder %s47, %s48
    %p62 = scmp.eq.s32.totalorder %s28, 3
    %p63 = por %p61, %p62
    %p65 = scmp.ne.s32.totalorder %s48, %s64
    %p66 = scmp.eq.s32.totalorder %s28, 0
    %p67 = por %p65, %p66
    %s68 = ssub.s32 %s29, %s41
    %p69 = scmp.eq.s32.totalorder %s68, 0
    %s71 = sadd.s32 %s70, 1
    %s72 = scalar_select %p69, %s70, %s71
    %p75 = pneg %p69
    %p76 = scmp.eq.s32.totalorder %s22, 3
    %p77 = por %p75, %p76
    %p78 = scmp.ne.s32.totalorder %s70, %s73
    %p79 = scmp.eq.s32.totalorder %s22, 0
    %p80 = por %p78, %p79
    %p81 = scmp.ne.s32.totalorder %s70, %s73
    %p82 = scmp.eq.s32.totalorder %s27, 3
    %p83 = por %p81, %p82
    %p84 = scmp.ne.s32.totalorder %s73, %s74
    %p85 = scmp.eq.s32.totalorder %s27, 0
    %p86 = por %p84, %p85
    %p87 = scmp.ne.s32.totalorder %s73, %s74
    %p88 = scmp.eq.s32.totalorder %s28, 3
    %p89 = por %p87, %p88
    %p91 = scmp.ne.s32.totalorder %s74, %s90
    %p92 = scmp.eq.s32.totalorder %s28, 0
    %p93 = por %p91, %p92
    %s95 = sadd.s32 %s94, 1
    %p98 = scmp.eq.s32.totalorder %s22, 3
    %p99 = scmp.ne.s32.totalorder %s94, %s96
    %p100 = scmp.eq.s32.totalorder %s22, 0
    %p101 = por %p99, %p100
    %p102 = scmp.ne.s32.totalorder %s94, %s96
    %p103 = scmp.eq.s32.totalorder %s27, 3
    %p104 = por %p102, %p103
    %p105 = scmp.ne.s32.totalorder %s96, %s97
    %p106 = scmp.eq.s32.totalorder %s27, 0
    %p107 = por %p105, %p106
    %p108 = scmp.ne.s32.totalorder %s96, %s97
    %p109 = scmp.eq.s32.totalorder %s28, 3
    %p110 = por %p108, %p109
    %p112 = scmp.ne.s32.totalorder %s97, %s111
    %p113 = scmp.eq.s32.totalorder %s28, 0
    %p114 = por %p112, %p113
    %s116 = sadd.s32 %s115, 1
    %p119 = scmp.eq.s32.totalorder %s22, 3
    %p120 = scmp.ne.s32.totalorder %s115, %s117
    %p121 = scmp.eq.s32.totalorder %s22, 0
    %p122 = por %p120, %p121
    %p123 = scmp.ne.s32.totalorder %s115, %s117
    %p124 = scmp.eq.s32.totalorder %s27, 3
    %p125 = por %p123, %p124
    %p126 = scmp.ne.s32.totalorder %s117, %s118
    %p127 = scmp.eq.s32.totalorder %s27, 0
    %p128 = por %p126, %p127
    %p129 = scmp.ne.s32.totalorder %s117, %s118
    %p130 = scmp.eq.s32.totalorder %s28, 3
    %p131 = por %p129, %p130
    %p133 = scmp.ne.s32.totalorder %s118, %s132
    %p134 = scmp.eq.s32.totalorder %s28, 0
    %p135 = por %p133, %p134
    %s136 = ssub.s32 %s30, %s37
    %p137 = scmp.eq.s32.totalorder %s136, 0
    %s139 = sadd.s32 %s138, 1
    %s140 = scalar_select %p137, %s138, %s139
    %p143 = pneg %p137
    %p144 = scmp.eq.s32.totalorder %s22, 3
    %p145 = por %p143, %p144
    %p146 = scmp.ne.s32.totalorder %s138, %s141
    %p147 = scmp.eq.s32.totalorder %s22, 0
    %p148 = por %p146, %p147
    %p149 = scmp.ne.s32.totalorder %s138, %s141
    %p150 = scmp.eq.s32.totalorder %s27, 3
    %p151 = por %p149, %p150
    %p152 = scmp.ne.s32.totalorder %s141, %s142
    %p153 = scmp.eq.s32.totalorder %s27, 0
    %p154 = por %p152, %p153
    %p155 = scmp.ne.s32.totalorder %s141, %s142
    %p156 = scmp.eq.s32.totalorder %s28, 3
    %p157 = por %p155, %p156
    %p159 = scmp.ne.s32.totalorder %s142, %s158
    %p160 = scmp.eq.s32.totalorder %s28, 0
    %p161 = por %p159, %p160
    %s162 = ssub.s32 %s30, %s37
    %p163 = scmp.eq.s32.totalorder %s162, 0
    %s165 = sadd.s32 %s164, 1
    %s166 = scalar_select %p163, %s164, %s165
    %p169 = pneg %p163
    %p170 = scmp.eq.s32.totalorder %s22, 3
    %p171 = por %p169, %p170
    %p172 = scmp.ne.s32.totalorder %s164, %s167
    %p173 = scmp.eq.s32.totalorder %s22, 0
    %p174 = por %p172, %p173
    %p175 = scmp.ne.s32.totalorder %s164, %s167
    %p176 = scmp.eq.s32.totalorder %s27, 3
    %p177 = por %p175, %p176
    %p178 = scmp.ne.s32.totalorder %s167, %s168
    %p179 = scmp.eq.s32.totalorder %s27, 0
    %p180 = por %p178, %p179
    %p181 = scmp.ne.s32.totalorder %s167, %s168
    %p182 = scmp.eq.s32.totalorder %s28, 3
    %p183 = por %p181, %p182
    %p185 = scmp.ne.s32.totalorder %s168, %s184
    %p186 = scmp.eq.s32.totalorder %s28, 0
    %p187 = por %p185, %p186
    %s188 = ssub.s32 %s30, %s37
    %p189 = scmp.eq.s32.totalorder %s188, 0
    %s191 = sadd.s32 %s190, 1
    %s192 = scalar_select %p189, %s190, %s191
    %p195 = pneg %p189
    %p196 = scmp.eq.s32.totalorder %s22, 3
    %p197 = por %p195, %p196
    %p198 = scmp.ne.s32.totalorder %s190, %s193
    %p199 = scmp.eq.s32.totalorder %s22, 0
    %p200 = por %p198, %p199
    %p201 = scmp.ne.s32.totalorder %s190, %s193
    %p202 = scmp.eq.s32.totalorder %s27, 3
    %p203 = por %p201, %p202
    %p204 = scmp.ne.s32.totalorder %s193, %s194
    %p205 = scmp.eq.s32.totalorder %s27, 0
    %p206 = por %p204, %p205
    %p207 = scmp.ne.s32.totalorder %s193, %s194
    %p208 = scmp.eq.s32.totalorder %s28, 3
    %p209 = por %p207, %p208
    %p211 = scmp.ne.s32.totalorder %s194, %s210
    %p212 = scmp.eq.s32.totalorder %s28, 0
    %p213 = por %p211, %p212
    %s214 = ssub.s32 %s30, %s37
    %p215 = scmp.eq.s32.totalorder %s214, 0
    %s217 = sadd.s32 %s216, 1
    %s218 = scalar_select %p215, %s216, %s217
    %p221 = pneg %p215
    %p222 = scmp.eq.s32.totalorder %s22, 3
    %p223 = por %p221, %p222
    %p224 = scmp.ne.s32.totalorder %s216, %s219
    %p225 = scmp.eq.s32.totalorder %s22, 0
    %p226 = por %p224, %p225
    %p227 = scmp.ne.s32.totalorder %s216, %s219
    %p228 = scmp.eq.s32.totalorder %s27, 3
    %p229 = por %p227, %p228
    %p230 = scmp.ne.s32.totalorder %s219, %s220
    %p231 = scmp.eq.s32.totalorder %s27, 0
    %p232 = por %p230, %p231
    %p233 = scmp.ne.s32.totalorder %s219, %s220
    %p234 = scmp.eq.s32.totalorder %s28, 3
    %p235 = por %p233, %p234
    %p237 = scmp.ne.s32.totalorder %s220, %s236
    %p238 = scmp.eq.s32.totalorder %s28, 0
    %p239 = por %p237, %p238
    %s240 = ssub.s32 %s30, %s37
    %p241 = scmp.eq.s32.totalorder %s240, 0
    %s243 = sadd.s32 %s242, 1
    %s244 = scalar_select %p241, %s242, %s243
    %p247 = pneg %p241
    %p248 = scmp.eq.s32.totalorder %s22, 3
    %p249 = por %p247, %p248
    %p250 = scmp.ne.s32.totalorder %s242, %s245
    %p251 = scmp.eq.s32.totalorder %s22, 0
    %p252 = por %p250, %p251
    %p253 = scmp.ne.s32.totalorder %s242, %s245
    %p254 = scmp.eq.s32.totalorder %s27, 3
    %p255 = por %p253, %p254
    %p256 = scmp.ne.s32.totalorder %s245, %s246
    %p257 = scmp.eq.s32.totalorder %s27, 0
    %p258 = por %p256, %p257
    %p259 = scmp.ne.s32.totalorder %s245, %s246
    %p260 = scmp.eq.s32.totalorder %s28, 3
    %p261 = por %p259, %p260
    %p263 = scmp.ne.s32.totalorder %s246, %s262
    %p264 = scmp.eq.s32.totalorder %s28, 0
    %p265 = por %p263, %p264
    %s266 = ssub.s32 %s30, %s37
    %p267 = scmp.eq.s32.totalorder %s266, 0
    %s269 = sadd.s32 %s268, 1
    %s270 = scalar_select %p267, %s268, %s269
    %p273 = pneg %p267
    %p274 = scmp.eq.s32.totalorder %s22, 3
    %p275 = por %p273, %p274
    %p276 = scmp.ne.s32.totalorder %s268, %s271
    %p277 = scmp.eq.s32.totalorder %s22, 0
    %p278 = por %p276, %p277
    %p279 = scmp.ne.s32.totalorder %s268, %s271
    %p280 = scmp.eq.s32.totalorder %s27, 3
    %p281 = por %p279, %p280
    %p282 = scmp.ne.s32.totalorder %s271, %s272
    %p283 = scmp.eq.s32.totalorder %s27, 0
    %p284 = por %p282, %p283
    %p285 = scmp.ne.s32.totalorder %s271, %s272
    %p286 = scmp.eq.s32.totalorder %s28, 3
    %p287 = por %p285, %p286
    %p289 = scmp.ne.s32.totalorder %s272, %s288
    %p290 = scmp.eq.s32.totalorder %s28, 0
    %p291 = por %p289, %p290
    %s292 = ssub.s32 %s30, %s37
    %p293 = scmp.eq.s32.totalorder %s292, 0
    %s295 = sadd.s32 %s294, 1
    %s296 = scalar_select %p293, %s294, %s295
    %p299 = pneg %p293
    %p300 = scmp.eq.s32.totalorder %s22, 3
    %p301 = por %p299, %p300
    %p302 = scmp.ne.s32.totalorder %s294, %s297
    %p303 = scmp.eq.s32.totalorder %s22, 0
    %p304 = por %p302, %p303
    %p305 = scmp.ne.s32.totalorder %s294, %s297
    %p306 = scmp.eq.s32.totalorder %s27, 3
    %p307 = por %p305, %p306
    %p308 = scmp.ne.s32.totalorder %s297, %s298
    %p309 = scmp.eq.s32.totalorder %s27, 0
    %p310 = por %p308, %p309
    %p311 = scmp.ne.s32.totalorder %s297, %s298
    %p312 = scmp.eq.s32.totalorder %s28, 3
    %p313 = por %p311, %p312
    %p315 = scmp.ne.s32.totalorder %s298, %s314
    %p316 = scmp.eq.s32.totalorder %s28, 0
    %p317 = por %p315, %p316
    %s318 = ssub.s32 %s30, %s37
    %p319 = scmp.eq.s32.totalorder %s318, 0
    %s321 = sadd.s32 %s320, 1
    %s322 = scalar_select %p319, %s320, %s321
    %p325 = pneg %p319
    %p326 = scmp.eq.s32.totalorder %s22, 3
    %p327 = por %p325, %p326
    %p328 = scmp.ne.s32.totalorder %s320, %s323
    %p329 = scmp.eq.s32.totalorder %s22, 0
    %p330 = por %p328, %p329
    %p331 = scmp.ne.s32.totalorder %s320, %s323
    %p332 = scmp.eq.s32.totalorder %s27, 3
    %p333 = por %p331, %p332
    %p334 = scmp.ne.s32.totalorder %s323, %s324
    %p335 = scmp.eq.s32.totalorder %s27, 0
    %p336 = por %p334, %p335
    %p337 = scmp.ne.s32.totalorder %s323, %s324
    %p338 = scmp.eq.s32.totalorder %s28, 3
    %p339 = por %p337, %p338
    %p341 = scmp.ne.s32.totalorder %s324, %s340
    %p342 = scmp.eq.s32.totalorder %s28, 0
    %p343 = por %p341, %p342
    %s344 = ssub.s32 %s30, %s37
    %p345 = scmp.eq.s32.totalorder %s344, 0
    %s347 = sadd.s32 %s346, 1
    %s348 = scalar_select %p345, %s346, %s347
    %p351 = pneg %p345
    %p352 = scmp.eq.s32.totalorder %s22, 3
    %p353 = por %p351, %p352
    %p354 = scmp.ne.s32.totalorder %s346, %s349
    %p355 = scmp.eq.s32.totalorder %s22, 0
    %p356 = por %p354, %p355
    %p357 = scmp.ne.s32.totalorder %s346, %s349
    %p358 = scmp.eq.s32.totalorder %s27, 3
    %p359 = por %p357, %p358
    %p360 = scmp.ne.s32.totalorder %s349, %s350
    %p361 = scmp.eq.s32.totalorder %s27, 0
    %p362 = por %p360, %p361
    %p363 = scmp.ne.s32.totalorder %s349, %s350
    %p364 = scmp.eq.s32.totalorder %s28, 3
    %p365 = por %p363, %p364
    %p367 = scmp.ne.s32.totalorder %s350, %s366
    %p368 = scmp.eq.s32.totalorder %s28, 0
    %p369 = por %p367, %p368
    %s370 = ssub.s32 %s30, %s37
    %p371 = scmp.eq.s32.totalorder %s370, 0
    %s373 = sadd.s32 %s372, 1
    %s374 = scalar_select %p371, %s372, %s373
    %p377 = pneg %p371
    %p378 = scmp.eq.s32.totalorder %s22, 3
    %p379 = por %p377, %p378
    %p380 = scmp.ne.s32.totalorder %s372, %s375
    %p381 = scmp.eq.s32.totalorder %s22, 0
    %p382 = por %p380, %p381
    %p383 = scmp.ne.s32.totalorder %s372, %s375
    %p384 = scmp.eq.s32.totalorder %s27, 3
    %p385 = por %p383, %p384
    %p386 = scmp.ne.s32.totalorder %s375, %s376
    %p387 = scmp.eq.s32.totalorder %s27, 0
    %p388 = por %p386, %p387
    %p389 = scmp.ne.s32.totalorder %s375, %s376
    %p390 = scmp.eq.s32.totalorder %s28, 3
    %p391 = por %p389, %p390
    %p393 = scmp.ne.s32.totalorder %s376, %s392
    %p394 = scmp.eq.s32.totalorder %s28, 0
    %p395 = por %p393, %p394
    %s396 = ssub.s32 %s30, %s37
    %p397 = scmp.eq.s32.totalorder %s396, 0
    %s399 = sadd.s32 %s398, 1
    %s400 = scalar_select %p397, %s398, %s399
    %p403 = pneg %p397
    %p404 = scmp.eq.s32.totalorder %s22, 3
    %p405 = por %p403, %p404
    %p406 = scmp.ne.s32.totalorder %s398, %s401
    %p407 = scmp.eq.s32.totalorder %s22, 0
    %p408 = por %p406, %p407
    %p409 = scmp.ne.s32.totalorder %s398, %s401
    %p410 = scmp.eq.s32.totalorder %s27, 3
    %p411 = por %p409, %p410
    %p412 = scmp.ne.s32.totalorder %s401, %s402
    %p413 = scmp.eq.s32.totalorder %s27, 0
    %p414 = por %p412, %p413
    %p415 = scmp.ne.s32.totalorder %s401, %s402
    %p416 = scmp.eq.s32.totalorder %s28, 3
    %p417 = por %p415, %p416
    %p419 = scmp.ne.s32.totalorder %s402, %s418
    %p420 = scmp.eq.s32.totalorder %s28, 0
    %p421 = por %p419, %p420
    %s422 = ssub.s32 %s30, %s37
    %p423 = scmp.eq.s32.totalorder %s422, 0
    %s425 = sadd.s32 %s424, 1
    %s426 = scalar_select %p423, %s424, %s425
    %p429 = pneg %p423
    %p430 = scmp.eq.s32.totalorder %s22, 3
    %p431 = por %p429, %p430
    %p432 = scmp.ne.s32.totalorder %s424, %s427
    %p433 = scmp.eq.s32.totalorder %s22, 0
    %p434 = por %p432, %p433
    %p435 = scmp.ne.s32.totalorder %s424, %s427
    %p436 = scmp.eq.s32.totalorder %s27, 3
    %p437 = por %p435, %p436
    %p438 = scmp.ne.s32.totalorder %s427, %s428
    %p439 = scmp.eq.s32.totalorder %s27, 0
    %p440 = por %p438, %p439
    %p441 = scmp.ne.s32.totalorder %s427, %s428
    %p442 = scmp.eq.s32.totalorder %s28, 3
    %p443 = por %p441, %p442
    %p445 = scmp.ne.s32.totalorder %s428, %s444
    %p446 = scmp.eq.s32.totalorder %s28, 0
    %p447 = por %p445, %p446
    %s448 = ssub.s32 %s29, %s41
    %p449 = scmp.eq.s32.totalorder %s448, 0
    %s451 = sadd.s32 %s450, 1
    %s452 = scalar_select %p449, %s450, %s451
    %p455 = pneg %p449
    %p456 = scmp.eq.s32.totalorder %s22, 3
    %p457 = por %p455, %p456
    %p458 = scmp.ne.s32.totalorder %s450, %s453
    %p459 = scmp.eq.s32.totalorder %s22, 0
    %p460 = por %p458, %p459
    %p461 = scmp.ne.s32.totalorder %s450, %s453
    %p462 = scmp.eq.s32.totalorder %s27, 3
    %p463 = por %p461, %p462
    %p464 = scmp.ne.s32.totalorder %s453, %s454
    %p465 = scmp.eq.s32.totalorder %s27, 0
    %p466 = por %p464, %p465
    %p467 = scmp.ne.s32.totalorder %s453, %s454
    %p468 = scmp.eq.s32.totalorder %s28, 3
    %p469 = por %p467, %p468
    %p471 = scmp.ne.s32.totalorder %s454, %s470
    %p472 = scmp.eq.s32.totalorder %s28, 0
    %p473 = por %p471, %p472
    %p474 = scmp.le.s32.totalorder 1, %s22
    %p475 = scmp.lt.s32.totalorder %s22, 5
    %p476 = pnand %p474, %p475
    %p477 = pneg %p476
    // Predicated region
    $region9: #{bert4rec_forward.2} parent=5 // pred_check
      _
    $region10: #{bert4rec_forward.2} parent=5 // pred_check_branch
      %479 = sbr.rel (%p476) target = $region12
    $region11: #{bert4rec_forward.2} parent=5 // pred_region
      %s480 = ssub.s32 %s22, 1
      // Predicated region
      $region13: #{bert4rec_forward.2} parent=11 // pred_check
        %p481 = pneg %p107
      $region14: #{bert4rec_forward.2} parent=11 // pred_check_branch
        %483 = sbr.rel (%p481) target = $region16
      $region15: #{bert4rec_forward.2} parent=11 // pred_region
        _
      $region16: #{bert4rec_forward.2} parent=11 // pred_fallthru
        _
      // Predicated region
      $region17: #{bert4rec_forward.2} parent=11 // pred_check
        %p484 = pneg %p128
      $region18: #{bert4rec_forward.2} parent=11 // pred_check_branch
        %486 = sbr.rel (%p484) target = $region20
      $region19: #{bert4rec_forward.2} parent=11 // pred_region
        _
      $region20: #{bert4rec_forward.2} parent=11 // pred_fallthru
        _
    $region12: #{bert4rec_forward.2} parent=5 // pred_fallthru
      _
    %p487 = scmp.lt.s32.totalorder %s22, 4
    // Predicated region
    $region21: #{bert4rec_forward.2} parent=5 // pred_check
      %p488 = pneg %p487
    $region22: #{bert4rec_forward.2} parent=5 // pred_check_branch
      %490 = sbr.rel (%p488) target = $region24
    $region23: #{bert4rec_forward.2} parent=5 // pred_region
      // Predicated region
      $region25: #{bert4rec_forward.2} parent=23 // pred_check
        %p491 = pneg %p54
      $region26: #{bert4rec_forward.2} parent=23 // pred_check_branch
        %493 = sbr.rel (%p491) target = $region28
      $region27: #{bert4rec_forward.2} parent=23 // pred_region
        %s494 = smul.u32 32, %s29
        %p495 = scmp.lt.s32.totalorder %s494, 63
        %s496 = scalar_select %p495, %s494, 63
        %s497 = smul.addr %s496, 8
        %s498 = scalar_lea.vmem %s0, %s497
        %s499 = smul.u32 32, %s29
      $region28: #{bert4rec_forward.2} parent=23 // pred_fallthru
        _
      // Predicated region
      $region29: #{bert4rec_forward.2} parent=23 // pred_check
        %p500 = pneg %p80
      $region30: #{bert4rec_forward.2} parent=23 // pred_check_branch
        %502 = sbr.rel (%p500) target = $region32
      $region31: #{bert4rec_forward.2} parent=23 // pred_region
        %s503 = smul.u32 32, %s29
        %p504 = scmp.lt.s32.totalorder %s503, 63
        %s505 = scalar_select %p504, %s503, 63
        %s506 = scalar_lea.vmem %s1, %s505
        %s507 = smul.u32 32, %s29
      $region32: #{bert4rec_forward.2} parent=23 // pred_fallthru
        _
      // Predicated region
      $region33: #{bert4rec_forward.2} parent=23 // pred_check
        %p508 = pneg %p148
      $region34: #{bert4rec_forward.2} parent=23 // pred_check_branch
        %510 = sbr.rel (%p508) target = $region36
      $region35: #{bert4rec_forward.2} parent=23 // pred_region
        %p511 = scmp.lt.s32.totalorder %s30, 1
        %s512 = scalar_select %p511, %s30, 1
        %s513 = smul.addr %s512, 4
        %s514 = smul.addr %s513, 4
        %s515 = scalar_lea.vmem %s4, %s514
      $region36: #{bert4rec_forward.2} parent=23 // pred_fallthru
        _
      // Predicated region
      $region37: #{bert4rec_forward.2} parent=23 // pred_check
        %p516 = pneg %p174
      $region38: #{bert4rec_forward.2} parent=23 // pred_check_branch
        %518 = sbr.rel (%p516) target = $region40
      $region39: #{bert4rec_forward.2} parent=23 // pred_region
        %p519 = scmp.lt.s32.totalorder %s30, 1
        %s520 = scalar_select %p519, %s30, 1
        %s521 = smul.addr %s520, 4
        %s522 = smul.addr %s521, 4
        %s523 = scalar_lea.vmem %s5, %s522
      $region40: #{bert4rec_forward.2} parent=23 // pred_fallthru
        _
      // Predicated region
      $region41: #{bert4rec_forward.2} parent=23 // pred_check
        %p524 = pneg %p200
      $region42: #{bert4rec_forward.2} parent=23 // pred_check_branch
        %526 = sbr.rel (%p524) target = $region44
      $region43: #{bert4rec_forward.2} parent=23 // pred_region
        %p527 = scmp.lt.s32.totalorder %s30, 1
        %s528 = scalar_select %p527, %s30, 1
        %s529 = smul.addr %s528, 4
        %s530 = smul.addr %s529, 4
        %s531 = scalar_lea.vmem %s6, %s530
      $region44: #{bert4rec_forward.2} parent=23 // pred_fallthru
        _
      // Predicated region
      $region45: #{bert4rec_forward.2} parent=23 // pred_check
        %p532 = pneg %p226
      $region46: #{bert4rec_forward.2} parent=23 // pred_check_branch
        %534 = sbr.rel (%p532) target = $region48
      $region47: #{bert4rec_forward.2} parent=23 // pred_region
        %p535 = scmp.lt.s32.totalorder %s30, 1
        %s536 = scalar_select %p535, %s30, 1
        %s537 = smul.addr %s536, 4
        %s538 = smul.addr %s537, 4
        %s539 = scalar_lea.vmem %s7, %s538
      $region48: #{bert4rec_forward.2} parent=23 // pred_fallthru
        _
      // Predicated region
      $region49: #{bert4rec_forward.2} parent=23 // pred_check
        %p540 = pneg %p252
      $region50: #{bert4rec_forward.2} parent=23 // pred_check_branch
        %542 = sbr.rel (%p540) target = $region52
      $region51: #{bert4rec_forward.2} parent=23 // pred_region
        %p543 = scmp.lt.s32.totalorder %s30, 1
        %s544 = scalar_select %p543, %s30, 1
        %s545 = scalar_lea.vmem %s8, %s544
      $region52: #{bert4rec_forward.2} parent=23 // pred_fallthru
        _
      // Predicated region
      $region53: #{bert4rec_forward.2} parent=23 // pred_check
        %p546 = pneg %p278
      $region54: #{bert4rec_forward.2} parent=23 // pred_check_branch
        %548 = sbr.rel (%p546) target = $region56
      $region55: #{bert4rec_forward.2} parent=23 // pred_region
        %p549 = scmp.lt.s32.totalorder %s30, 1
        %s550 = scalar_select %p549, %s30, 1
        %s551 = scalar_lea.vmem %s9, %s550
      $region56: #{bert4rec_forward.2} parent=23 // pred_fallthru
        _
      // Predicated region
      $region57: #{bert4rec_forward.2} parent=23 // pred_check
        %p552 = pneg %p304
      $region58: #{bert4rec_forward.2} parent=23 // pred_check_branch
        %554 = sbr.rel (%p552) target = $region60
      $region59: #{bert4rec_forward.2} parent=23 // pred_region
        %p555 = scmp.lt.s32.totalorder %s30, 1
        %s556 = scalar_select %p555, %s30, 1
        %s557 = smul.addr %s556, 4
        %s558 = smul.addr %s557, 4
        %s559 = scalar_lea.vmem %s10, %s558
      $region60: #{bert4rec_forward.2} parent=23 // pred_fallthru
        _
      // Predicated region
      $region61: #{bert4rec_forward.2} parent=23 // pred_check
        %p560 = pneg %p330
      $region62: #{bert4rec_forward.2} parent=23 // pred_check_branch
        %562 = sbr.rel (%p560) target = $region64
      $region63: #{bert4rec_forward.2} parent=23 // pred_region
        %p563 = scmp.lt.s32.totalorder %s30, 1
        %s564 = scalar_select %p563, %s30, 1
        %s565 = scalar_lea.vmem %s11, %s564
      $region64: #{bert4rec_forward.2} parent=23 // pred_fallthru
        _
      // Predicated region
      $region65: #{bert4rec_forward.2} parent=23 // pred_check
        %p566 = pneg %p356
      $region66: #{bert4rec_forward.2} parent=23 // pred_check_branch
        %568 = sbr.rel (%p566) target = $region68
      $region67: #{bert4rec_forward.2} parent=23 // pred_region
        %p569 = scmp.lt.s32.totalorder %s30, 1
        %s570 = scalar_select %p569, %s30, 1
        %s571 = smul.addr %s570, 16
        %s572 = smul.addr %s571, 4
        %s573 = scalar_lea.vmem %s12, %s572
      $region68: #{bert4rec_forward.2} parent=23 // pred_fallthru
        _
      // Predicated region
      $region69: #{bert4rec_forward.2} parent=23 // pred_check
        %p574 = pneg %p382
      $region70: #{bert4rec_forward.2} parent=23 // pred_check_branch
        %576 = sbr.rel (%p574) target = $region72
      $region71: #{bert4rec_forward.2} parent=23 // pred_region
        %p577 = scmp.lt.s32.totalorder %s30, 1
        %s578 = scalar_select %p577, %s30, 1
        %s579 = scalar_lea.vmem %s13, %s578
      $region72: #{bert4rec_forward.2} parent=23 // pred_fallthru
        _
      // Predicated region
      $region73: #{bert4rec_forward.2} parent=23 // pred_check
        %p580 = pneg %p408
      $region74: #{bert4rec_forward.2} parent=23 // pred_check_branch
        %582 = sbr.rel (%p580) target = $region76
      $region75: #{bert4rec_forward.2} parent=23 // pred_region
        %p583 = scmp.lt.s32.totalorder %s30, 1
        %s584 = scalar_select %p583, %s30, 1
        %s585 = scalar_lea.vmem %s14, %s584
      $region76: #{bert4rec_forward.2} parent=23 // pred_fallthru
        _
      // Predicated region
      $region77: #{bert4rec_forward.2} parent=23 // pred_check
        %p586 = pneg %p434
      $region78: #{bert4rec_forward.2} parent=23 // pred_check_branch
        %588 = sbr.rel (%p586) target = $region80
      $region79: #{bert4rec_forward.2} parent=23 // pred_region
        %p589 = scmp.lt.s32.totalorder %s30, 1
        %s590 = scalar_select %p589, %s30, 1
        %s591 = scalar_lea.vmem %s15, %s590
      $region80: #{bert4rec_forward.2} parent=23 // pred_fallthru
        _
    $region24: #{bert4rec_forward.2} parent=5 // pred_fallthru
      _
    %p592 = scmp.le.s32.totalorder 1, %s22
    %p593 = scmp.lt.s32.totalorder %s22, 5
    %p594 = pnand %p592, %p593
    %p595 = pneg %p594
    // Predicated region
    $region81: #{bert4rec_forward.2} parent=5 // pred_check
      _
    $region82: #{bert4rec_forward.2} parent=5 // pred_check_branch
      %597 = sbr.rel (%p594) target = $region84
    $region83: #{bert4rec_forward.2} parent=5 // pred_region
      %s598 = ssub.s32 %s22, 1
      %s599 = smul.u32 32, %s31
      %p600 = scmp.lt.s32.totalorder %s599, 63
      %s601 = scalar_select %p600, %s599, 63
      %s602 = smul.addr %s601, 8
      %s603 = scalar_lea.vmem %s0, %s602
      %p604 = pneg %p60
      %p605 = pneg %p57
      %s606 = smul.u32 32, %s31
      %p607 = scmp.lt.s32.totalorder %s606, 63
      %s608 = scalar_select %p607, %s606, 63
      %s609 = scalar_lea.vmem %s1, %s608
      %p610 = pneg %p86
      %p611 = pneg %p83
      %p612 = pneg %p107
      %p613 = pneg %p104
      %p614 = pneg %p128
      %p615 = pneg %p125
      %p616 = scmp.lt.s32.totalorder %s32, 1
      %s617 = scalar_select %p616, %s32, 1
      %s618 = smul.addr %s617, 4
      %s619 = smul.addr %s618, 4
      %s620 = scalar_lea.vmem %s4, %s619
      %p621 = pneg %p154
      %p622 = pneg %p151
      %p623 = scmp.lt.s32.totalorder %s32, 1
      %s624 = scalar_select %p623, %s32, 1
      %s625 = smul.addr %s624, 4
      %s626 = smul.addr %s625, 4
      %s627 = scalar_lea.vmem %s5, %s626
      %p628 = pneg %p180
      %p629 = pneg %p177
      %p630 = scmp.lt.s32.totalorder %s32, 1
      %s631 = scalar_select %p630, %s32, 1
      %s632 = smul.addr %s631, 4
      %s633 = smul.addr %s632, 4
      %s634 = scalar_lea.vmem %s6, %s633
      %p635 = pneg %p206
      %p636 = pneg %p203
      %p637 = scmp.lt.s32.totalorder %s32, 1
      %s638 = scalar_select %p637, %s32, 1
      %s639 = smul.addr %s638, 4
      %s640 = smul.addr %s639, 4
      %s641 = scalar_lea.vmem %s7, %s640
      %p642 = pneg %p232
      %p643 = pneg %p229
      %p644 = scmp.lt.s32.totalorder %s32, 1
      %s645 = scalar_select %p644, %s32, 1
      %s646 = scalar_lea.vmem %s8, %s645
      %p647 = pneg %p258
      %p648 = pneg %p255
      %p649 = scmp.lt.s32.totalorder %s32, 1
      %s650 = scalar_select %p649, %s32, 1
      %s651 = scalar_lea.vmem %s9, %s650
      %p652 = pneg %p284
      %p653 = pneg %p281
      %p654 = scmp.lt.s32.totalorder %s32, 1
      %s655 = scalar_select %p654, %s32, 1
      %s656 = smul.addr %s655, 4
      %s657 = smul.addr %s656, 4
      %s658 = scalar_lea.vmem %s10, %s657
      %p659 = pneg %p310
      %p660 = pneg %p307
      %p661 = scmp.lt.s32.totalorder %s32, 1
      %s662 = scalar_select %p661, %s32, 1
      %s663 = scalar_lea.vmem %s11, %s662
      %p664 = pneg %p336
      %p665 = pneg %p333
      %p666 = scmp.lt.s32.totalorder %s32, 1
      %s667 = scalar_select %p666, %s32, 1
      %s668 = smul.addr %s667, 16
      %s669 = smul.addr %s668, 4
      %s670 = scalar_lea.vmem %s12, %s669
      %p671 = pneg %p362
      %p672 = pneg %p359
      %p673 = scmp.lt.s32.totalorder %s32, 1
      %s674 = scalar_select %p673, %s32, 1
      %s675 = scalar_lea.vmem %s13, %s674
      %p676 = pneg %p388
      %p677 = pneg %p385
      %p678 = scmp.lt.s32.totalorder %s32, 1
      %s679 = scalar_select %p678, %s32, 1
      %s680 = scalar_lea.vmem %s14, %s679
      %p681 = pneg %p414
      %p682 = pneg %p411
      %p683 = scmp.lt.s32.totalorder %s32, 1
      %s684 = scalar_select %p683, %s32, 1
      %s685 = scalar_lea.vmem %s15, %s684
      %p686 = pneg %p440
      %p687 = pneg %p437
      %p688 = pneg %p466
      %p689 = pneg %p463
      %s690 = smul.u32 32, %s31
      %p691 = scmp.lt.s32.totalorder %s690, 63
      %s692 = scalar_select %p691, %s690, 63
      %s693 = smul.addr %s692, 8
      %s694 = scalar_lea.vmem %s16, %s693
      %s695 = smul.u32 32, %s31
      %p696 = scmp.lt.s32.totalorder %s695, 63
      %s697 = scalar_select %p696, %s695, 63
      %s698 = smul.addr %s697, 8
      %s699 = scalar_lea.vmem %s0, %s698
      %s700 = smul.u32 32, %s31
      %s701 = smul.u32 32, %s31
      %p702 = scmp.lt.s32.totalorder %s701, 63
      %s703 = scalar_select %p702, %s701, 63
      %s704 = scalar_lea.vmem %s1, %s703
      %s705 = smul.u32 32, %s31
      %p706 = scmp.lt.s32.totalorder %s32, 1
      %s707 = scalar_select %p706, %s32, 1
      %s708 = smul.addr %s707, 4
      %s709 = smul.addr %s708, 4
      %s710 = scalar_lea.vmem %s4, %s709
      %p711 = scmp.lt.s32.totalorder %s32, 1
      %s712 = scalar_select %p711, %s32, 1
      %s713 = smul.addr %s712, 4
      %s714 = smul.addr %s713, 4
      %s715 = scalar_lea.vmem %s5, %s714
      %p716 = scmp.lt.s32.totalorder %s32, 1
      %s717 = scalar_select %p716, %s32, 1
      %s718 = smul.addr %s717, 4
      %s719 = smul.addr %s718, 4
      %s720 = scalar_lea.vmem %s6, %s719
      %p721 = scmp.lt.s32.totalorder %s32, 1
      %s722 = scalar_select %p721, %s32, 1
      %s723 = smul.addr %s722, 4
      %s724 = smul.addr %s723, 4
      %s725 = scalar_lea.vmem %s7, %s724
      %p726 = scmp.lt.s32.totalorder %s32, 1
      %s727 = scalar_select %p726, %s32, 1
      %s728 = scalar_lea.vmem %s8, %s727
      %p729 = scmp.lt.s32.totalorder %s32, 1
      %s730 = scalar_select %p729, %s32, 1
      %s731 = scalar_lea.vmem %s9, %s730
      %p732 = scmp.lt.s32.totalorder %s32, 1
      %s733 = scalar_select %p732, %s32, 1
      %s734 = smul.addr %s733, 4
      %s735 = smul.addr %s734, 4
      %s736 = scalar_lea.vmem %s10, %s735
      %p737 = scmp.lt.s32.totalorder %s32, 1
      %s738 = scalar_select %p737, %s32, 1
      %s739 = scalar_lea.vmem %s11, %s738
      %p740 = scmp.lt.s32.totalorder %s32, 1
      %s741 = scalar_select %p740, %s32, 1
      %s742 = smul.addr %s741, 16
      %s743 = smul.addr %s742, 4
      %s744 = scalar_lea.vmem %s12, %s743
      %p745 = scmp.lt.s32.totalorder %s32, 1
      %s746 = scalar_select %p745, %s32, 1
      %s747 = scalar_lea.vmem %s13, %s746
      %p748 = scmp.lt.s32.totalorder %s32, 1
      %s749 = scalar_select %p748, %s32, 1
      %s750 = scalar_lea.vmem %s14, %s749
      %p751 = scmp.lt.s32.totalorder %s32, 1
      %s752 = scalar_select %p751, %s32, 1
      %s753 = scalar_lea.vmem %s15, %s752
      %s754 = smul.u32 32, %s31
      %p755 = scmp.lt.s32.totalorder %s754, 63
      %s756 = scalar_select %p755, %s754, 63
      %s757 = smul.addr %s756, 8
      %s758 = scalar_lea.vmem %s16, %s757
      %s759 = smul.u32 32, %s31
      %p761 = scmp.eq.s32.totalorder %s32, 0
      // Predicated region
      $region85: #{bert4rec_forward.2} parent=83 // pred_check
        %p762 = pneg %p761
      $region86: #{bert4rec_forward.2} parent=83 // pred_check_branch
        %764 = sbr.rel (%p762) target = $region88
      $region87: #{bert4rec_forward.2} parent=83 // pred_region
        %v765 = vld [vmem:[%s699] sm:$0xff]
        %v766 = vld [vmem:[%s699 + $0x8] sm:$0xff]
        %v767 = vld [vmem:[%s699 + $0x10] sm:$0xff]
        %v768 = vld [vmem:[%s699 + $0x18] sm:$0xff]
        %v769 = vld [vmem:[%s699 + $0x20] sm:$0xff]
        %v770 = vld [vmem:[%s699 + $0x28] sm:$0xff]
        %v771 = vld [vmem:[%s699 + $0x30] sm:$0xff]
        %v772 = vld [vmem:[%s699 + $0x38] sm:$0xff]
        %v773 = vld [vmem:[%s699 + $0x40] sm:$0xff]
        %v774 = vld [vmem:[%s699 + $0x48] sm:$0xff]
        %v775 = vld [vmem:[%s699 + $0x50] sm:$0xff]
        %v776 = vld [vmem:[%s699 + $0x58] sm:$0xff]
        %v777 = vld [vmem:[%s699 + $0x60] sm:$0xff]
        %v778 = vld [vmem:[%s699 + $0x68] sm:$0xff]
        %v779 = vld [vmem:[%s699 + $0x70] sm:$0xff]
        %v780 = vld [vmem:[%s699 + $0x78] sm:$0xff]
        %v781 = vld [vmem:[%s699 + $0x80] sm:$0xff]
        %v782 = vld [vmem:[%s699 + $0x88] sm:$0xff]
        %v783 = vld [vmem:[%s699 + $0x90] sm:$0xff]
        %v784 = vld [vmem:[%s699 + $0x98] sm:$0xff]
        %v785 = vld [vmem:[%s699 + $0xa0] sm:$0xff]
        %v786 = vld [vmem:[%s699 + $0xa8] sm:$0xff]
        %v787 = vld [vmem:[%s699 + $0xb0] sm:$0xff]
        %v788 = vld [vmem:[%s699 + $0xb8] sm:$0xff]
        %v789 = vld [vmem:[%s699 + $0xc0] sm:$0xff]
        %v790 = vld [vmem:[%s699 + $0xc8] sm:$0xff]
        %v791 = vld [vmem:[%s699 + $0xd0] sm:$0xff]
        %v792 = vld [vmem:[%s699 + $0xd8] sm:$0xff]
        %v793 = vld [vmem:[%s699 + $0xe0] sm:$0xff]
        %v794 = vld [vmem:[%s699 + $0xe8] sm:$0xff]
        %v795 = vld [vmem:[%s699 + $0xf0] sm:$0xff]
        %v796 = vld [vmem:[%s699 + $0xf8] sm:$0xff]
        %v797 = vld [vmem:[%s2] sm:$0x1]
        %v798 = vld [vmem:[%s3] sm:$0x1]
        %vm799 = vcmask 261120
        %v800 = vsel %vm799, %v765, 0.0
        %801 = vadd.xlane.f32.xlu0 %v800
        %v802 = vpop.xlane.xlu0 %801
        %v803 = vsel %vm799, %v766, 0.0
        %804 = vadd.xlane.f32.xlu0 %v803
        %v805 = vpop.xlane.xlu0 %804
        %v806 = vsel %vm799, %v767, 0.0
        %807 = vadd.xlane.f32.xlu0 %v806
        %v808 = vpop.xlane.xlu0 %807
        %v809 = vsel %vm799, %v768, 0.0
        %810 = vadd.xlane.f32.xlu0 %v809
        %v811 = vpop.xlane.xlu0 %810
        %v812 = vsel %vm799, %v769, 0.0
        %813 = vadd.xlane.f32.xlu0 %v812
        %v814 = vpop.xlane.xlu0 %813
        %v815 = vsel %vm799, %v770, 0.0
        %816 = vadd.xlane.f32.xlu0 %v815
        %v817 = vpop.xlane.xlu0 %816
        %v818 = vsel %vm799, %v771, 0.0
        %819 = vadd.xlane.f32.xlu0 %v818
        %v820 = vpop.xlane.xlu0 %819
        %v821 = vsel %vm799, %v772, 0.0
        %822 = vadd.xlane.f32.xlu0 %v821
        %v823 = vpop.xlane.xlu0 %822
        %v824 = vsel %vm799, %v773, 0.0
        %825 = vadd.xlane.f32.xlu0 %v824
        %v826 = vpop.xlane.xlu0 %825
        %v827 = vsel %vm799, %v774, 0.0
        %828 = vadd.xlane.f32.xlu0 %v827
        %v829 = vpop.xlane.xlu0 %828
        %v830 = vsel %vm799, %v775, 0.0
        %831 = vadd.xlane.f32.xlu0 %v830
        %v832 = vpop.xlane.xlu0 %831
        %v833 = vsel %vm799, %v776, 0.0
        %834 = vadd.xlane.f32.xlu0 %v833
        %v835 = vpop.xlane.xlu0 %834
        %v836 = vsel %vm799, %v777, 0.0
        %837 = vadd.xlane.f32.xlu0 %v836
        %v838 = vpop.xlane.xlu0 %837
        %v839 = vsel %vm799, %v778, 0.0
        %840 = vadd.xlane.f32.xlu0 %v839
        %v841 = vpop.xlane.xlu0 %840
        %v842 = vsel %vm799, %v779, 0.0
        %843 = vadd.xlane.f32.xlu0 %v842
        %v844 = vpop.xlane.xlu0 %843
        %v845 = vsel %vm799, %v780, 0.0
        %846 = vadd.xlane.f32.xlu0 %v845
        %v847 = vpop.xlane.xlu0 %846
        %v848 = vsel %vm799, %v781, 0.0
        %849 = vadd.xlane.f32.xlu0 %v848
        %v850 = vpop.xlane.xlu0 %849
        %v851 = vsel %vm799, %v782, 0.0
        %852 = vadd.xlane.f32.xlu0 %v851
        %v853 = vpop.xlane.xlu0 %852
        %v854 = vsel %vm799, %v783, 0.0
        %855 = vadd.xlane.f32.xlu0 %v854
        %v856 = vpop.xlane.xlu0 %855
        %v857 = vsel %vm799, %v784, 0.0
        %858 = vadd.xlane.f32.xlu0 %v857
        %v859 = vpop.xlane.xlu0 %858
        %v860 = vsel %vm799, %v785, 0.0
        %861 = vadd.xlane.f32.xlu0 %v860
        %v862 = vpop.xlane.xlu0 %861
        %v863 = vsel %vm799, %v786, 0.0
        %864 = vadd.xlane.f32.xlu0 %v863
        %v865 = vpop.xlane.xlu0 %864
        %v866 = vsel %vm799, %v787, 0.0
        %867 = vadd.xlane.f32.xlu0 %v866
        %v868 = vpop.xlane.xlu0 %867
        %v869 = vsel %vm799, %v788, 0.0
        %870 = vadd.xlane.f32.xlu0 %v869
        %v871 = vpop.xlane.xlu0 %870
        %v872 = vsel %vm799, %v789, 0.0
        %873 = vadd.xlane.f32.xlu0 %v872
        %v874 = vpop.xlane.xlu0 %873
        %v875 = vsel %vm799, %v790, 0.0
        %876 = vadd.xlane.f32.xlu0 %v875
        %v877 = vpop.xlane.xlu0 %876
        %v878 = vsel %vm799, %v791, 0.0
        %879 = vadd.xlane.f32.xlu0 %v878
        %v880 = vpop.xlane.xlu0 %879
        %v881 = vsel %vm799, %v792, 0.0
        %882 = vadd.xlane.f32.xlu0 %v881
        %v883 = vpop.xlane.xlu0 %882
        %v884 = vsel %vm799, %v793, 0.0
        %885 = vadd.xlane.f32.xlu0 %v884
        %v886 = vpop.xlane.xlu0 %885
        %v887 = vsel %vm799, %v794, 0.0
        %888 = vadd.xlane.f32.xlu0 %v887
        %v889 = vpop.xlane.xlu0 %888
        %v890 = vsel %vm799, %v795, 0.0
        %891 = vadd.xlane.f32.xlu0 %v890
        %v892 = vpop.xlane.xlu0 %891
        %v893 = vsel %vm799, %v796, 0.0
        %894 = vadd.xlane.f32.xlu0 %v893
        %v895 = vpop.xlane.xlu0 %894
        %v896 = vrcp.pop 32.0
        %v897 = vmul.f32 32.0, %v896
        %v898 = vsub.f32 1.0, %v897
        %v899 = vmul.f32 %v896, %v898
        %v900 = vadd.f32 %v896, %v899
        %vm901 = vweird.f32 %v896
        %v902 = vsel %vm901, %v896, %v900
        %v903 = vmul.f32 %v802, %v902
        %v904 = vmul.f32 %v805, %v902
        %v905 = vmul.f32 %v808, %v902
        %v906 = vmul.f32 %v811, %v902
        %v907 = vmul.f32 %v814, %v902
        %v908 = vmul.f32 %v817, %v902
        %v909 = vmul.f32 %v820, %v902
        %v910 = vmul.f32 %v823, %v902
        %v911 = vmul.f32 %v826, %v902
        %v912 = vmul.f32 %v829, %v902
        %v913 = vmul.f32 %v832, %v902
        %v914 = vmul.f32 %v835, %v902
        %v915 = vmul.f32 %v838, %v902
        %v916 = vmul.f32 %v841, %v902
        %v917 = vmul.f32 %v844, %v902
        %v918 = vmul.f32 %v847, %v902
        %v919 = vmul.f32 %v850, %v902
        %v920 = vmul.f32 %v853, %v902
        %v921 = vmul.f32 %v856, %v902
        %v922 = vmul.f32 %v859, %v902
        %v923 = vmul.f32 %v862, %v902
        %v924 = vmul.f32 %v865, %v902
        %v925 = vmul.f32 %v868, %v902
        %v926 = vmul.f32 %v871, %v902
        %v927 = vmul.f32 %v874, %v902
        %v928 = vmul.f32 %v877, %v902
        %v929 = vmul.f32 %v880, %v902
        %v930 = vmul.f32 %v883, %v902
        %v931 = vmul.f32 %v886, %v902
        %v932 = vmul.f32 %v889, %v902
        %v933 = vmul.f32 %v892, %v902
        %v934 = vmul.f32 %v895, %v902
        %v935 = vsub.f32 %v765, %v903
        %v936 = vsub.f32 %v766, %v904
        %v937 = vsub.f32 %v767, %v905
        %v938 = vsub.f32 %v768, %v906
        %v939 = vsub.f32 %v769, %v907
        %v940 = vsub.f32 %v770, %v908
        %v941 = vsub.f32 %v771, %v909
        %v942 = vsub.f32 %v772, %v910
        %v943 = vsub.f32 %v773, %v911
        %v944 = vsub.f32 %v774, %v912
        %v945 = vsub.f32 %v775, %v913
        %v946 = vsub.f32 %v776, %v914
        %v947 = vsub.f32 %v777, %v915
        %v948 = vsub.f32 %v778, %v916
        %v949 = vsub.f32 %v779, %v917
        %v950 = vsub.f32 %v780, %v918
        %v951 = vsub.f32 %v781, %v919
        %v952 = vsub.f32 %v782, %v920
        %v953 = vsub.f32 %v783, %v921
        %v954 = vsub.f32 %v784, %v922
        %v955 = vsub.f32 %v785, %v923
        %v956 = vsub.f32 %v786, %v924
        %v957 = vsub.f32 %v787, %v925
        %v958 = vsub.f32 %v788, %v926
        %v959 = vsub.f32 %v789, %v927
        %v960 = vsub.f32 %v790, %v928
        %v961 = vsub.f32 %v791, %v929
        %v962 = vsub.f32 %v792, %v930
        %v963 = vsub.f32 %v793, %v931
        %v964 = vsub.f32 %v794, %v932
        %v965 = vsub.f32 %v795, %v933
        %v966 = vsub.f32 %v796, %v934
        %v967 = vmul.f32 %v935, %v935
        %v968 = vmul.f32 %v936, %v936
        %v969 = vmul.f32 %v937, %v937
        %v970 = vmul.f32 %v938, %v938
        %v971 = vmul.f32 %v939, %v939
        %v972 = vmul.f32 %v940, %v940
        %v973 = vmul.f32 %v941, %v941
        %v974 = vmul.f32 %v942, %v942
        %v975 = vmul.f32 %v943, %v943
        %v976 = vmul.f32 %v944, %v944
        %v977 = vmul.f32 %v945, %v945
        %v978 = vmul.f32 %v946, %v946
        %v979 = vmul.f32 %v947, %v947
        %v980 = vmul.f32 %v948, %v948
        %v981 = vmul.f32 %v949, %v949
        %v982 = vmul.f32 %v950, %v950
        %v983 = vmul.f32 %v951, %v951
        %v984 = vmul.f32 %v952, %v952
        %v985 = vmul.f32 %v953, %v953
        %v986 = vmul.f32 %v954, %v954
        %v987 = vmul.f32 %v955, %v955
        %v988 = vmul.f32 %v956, %v956
        %v989 = vmul.f32 %v957, %v957
        %v990 = vmul.f32 %v958, %v958
        %v991 = vmul.f32 %v959, %v959
        %v992 = vmul.f32 %v960, %v960
        %v993 = vmul.f32 %v961, %v961
        %v994 = vmul.f32 %v962, %v962
        %v995 = vmul.f32 %v963, %v963
        %v996 = vmul.f32 %v964, %v964
        %v997 = vmul.f32 %v965, %v965
        %v998 = vmul.f32 %v966, %v966
        %v999 = vsel %vm799, %v967, 0.0
        %1000 = vadd.xlane.f32.xlu0 %v999
        %v1001 = vpop.xlane.xlu0 %1000
        %v1002 = vsel %vm799, %v968, 0.0
        %1003 = vadd.xlane.f32.xlu0 %v1002
        %v1004 = vpop.xlane.xlu0 %1003
        %v1005 = vsel %vm799, %v969, 0.0
        %1006 = vadd.xlane.f32.xlu0 %v1005
        %v1007 = vpop.xlane.xlu0 %1006
        %v1008 = vsel %vm799, %v970, 0.0
        %1009 = vadd.xlane.f32.xlu0 %v1008
        %v1010 = vpop.xlane.xlu0 %1009
        %v1011 = vsel %vm799, %v971, 0.0
        %1012 = vadd.xlane.f32.xlu0 %v1011
        %v1013 = vpop.xlane.xlu0 %1012
        %v1014 = vsel %vm799, %v972, 0.0
        %1015 = vadd.xlane.f32.xlu0 %v1014
        %v1016 = vpop.xlane.xlu0 %1015
        %v1017 = vsel %vm799, %v973, 0.0
        %1018 = vadd.xlane.f32.xlu0 %v1017
        %v1019 = vpop.xlane.xlu0 %1018
        %v1020 = vsel %vm799, %v974, 0.0
        %1021 = vadd.xlane.f32.xlu0 %v1020
        %v1022 = vpop.xlane.xlu0 %1021
        %v1023 = vsel %vm799, %v975, 0.0
        %1024 = vadd.xlane.f32.xlu0 %v1023
        %v1025 = vpop.xlane.xlu0 %1024
        %v1026 = vsel %vm799, %v976, 0.0
        %1027 = vadd.xlane.f32.xlu0 %v1026
        %v1028 = vpop.xlane.xlu0 %1027
        %v1029 = vsel %vm799, %v977, 0.0
        %1030 = vadd.xlane.f32.xlu0 %v1029
        %v1031 = vpop.xlane.xlu0 %1030
        %v1032 = vsel %vm799, %v978, 0.0
        %1033 = vadd.xlane.f32.xlu0 %v1032
        %v1034 = vpop.xlane.xlu0 %1033
        %v1035 = vsel %vm799, %v979, 0.0
        %1036 = vadd.xlane.f32.xlu0 %v1035
        %v1037 = vpop.xlane.xlu0 %1036
        %v1038 = vsel %vm799, %v980, 0.0
        %1039 = vadd.xlane.f32.xlu0 %v1038
        %v1040 = vpop.xlane.xlu0 %1039
        %v1041 = vsel %vm799, %v981, 0.0
        %1042 = vadd.xlane.f32.xlu0 %v1041
        %v1043 = vpop.xlane.xlu0 %1042
        %v1044 = vsel %vm799, %v982, 0.0
        %1045 = vadd.xlane.f32.xlu0 %v1044
        %v1046 = vpop.xlane.xlu0 %1045
        %v1047 = vsel %vm799, %v983, 0.0
        %1048 = vadd.xlane.f32.xlu0 %v1047
        %v1049 = vpop.xlane.xlu0 %1048
        %v1050 = vsel %vm799, %v984, 0.0
        %1051 = vadd.xlane.f32.xlu0 %v1050
        %v1052 = vpop.xlane.xlu0 %1051
        %v1053 = vsel %vm799, %v985, 0.0
        %1054 = vadd.xlane.f32.xlu0 %v1053
        %v1055 = vpop.xlane.xlu0 %1054
        %v1056 = vsel %vm799, %v986, 0.0
        %1057 = vadd.xlane.f32.xlu0 %v1056
        %v1058 = vpop.xlane.xlu0 %1057
        %v1059 = vsel %vm799, %v987, 0.0
        %1060 = vadd.xlane.f32.xlu0 %v1059
        %v1061 = vpop.xlane.xlu0 %1060
        %v1062 = vsel %vm799, %v988, 0.0
        %1063 = vadd.xlane.f32.xlu0 %v1062
        %v1064 = vpop.xlane.xlu0 %1063
        %v1065 = vsel %vm799, %v989, 0.0
        %1066 = vadd.xlane.f32.xlu0 %v1065
        %v1067 = vpop.xlane.xlu0 %1066
        %v1068 = vsel %vm799, %v990, 0.0
        %1069 = vadd.xlane.f32.xlu0 %v1068
        %v1070 = vpop.xlane.xlu0 %1069
        %v1071 = vsel %vm799, %v991, 0.0
        %1072 = vadd.xlane.f32.xlu0 %v1071
        %v1073 = vpop.xlane.xlu0 %1072
        %v1074 = vsel %vm799, %v992, 0.0
        %1075 = vadd.xlane.f32.xlu0 %v1074
        %v1076 = vpop.xlane.xlu0 %1075
        %v1077 = vsel %vm799, %v993, 0.0
        %1078 = vadd.xlane.f32.xlu0 %v1077
        %v1079 = vpop.xlane.xlu0 %1078
        %v1080 = vsel %vm799, %v994, 0.0
        %1081 = vadd.xlane.f32.xlu0 %v1080
        %v1082 = vpop.xlane.xlu0 %1081
        %v1083 = vsel %vm799, %v995, 0.0
        %1084 = vadd.xlane.f32.xlu0 %v1083
        %v1085 = vpop.xlane.xlu0 %1084
        %v1086 = vsel %vm799, %v996, 0.0
        %1087 = vadd.xlane.f32.xlu0 %v1086
        %v1088 = vpop.xlane.xlu0 %1087
        %v1089 = vsel %vm799, %v997, 0.0
        %1090 = vadd.xlane.f32.xlu0 %v1089
        %v1091 = vpop.xlane.xlu0 %1090
        %v1092 = vsel %vm799, %v998, 0.0
        %1093 = vadd.xlane.f32.xlu0 %v1092
        %v1094 = vpop.xlane.xlu0 %1093
        %v1095 = vmul.f32 %v1001, %v902
        %v1096 = vmul.f32 %v1004, %v902
        %v1097 = vmul.f32 %v1007, %v902
        %v1098 = vmul.f32 %v1010, %v902
        %v1099 = vmul.f32 %v1013, %v902
        %v1100 = vmul.f32 %v1016, %v902
        %v1101 = vmul.f32 %v1019, %v902
        %v1102 = vmul.f32 %v1022, %v902
        %v1103 = vmul.f32 %v1025, %v902
        %v1104 = vmul.f32 %v1028, %v902
        %v1105 = vmul.f32 %v1031, %v902
        %v1106 = vmul.f32 %v1034, %v902
        %v1107 = vmul.f32 %v1037, %v902
        %v1108 = vmul.f32 %v1040, %v902
        %v1109 = vmul.f32 %v1043, %v902
        %v1110 = vmul.f32 %v1046, %v902
        %v1111 = vmul.f32 %v1049, %v902
        %v1112 = vmul.f32 %v1052, %v902
        %v1113 = vmul.f32 %v1055, %v902
        %v1114 = vmul.f32 %v1058, %v902
        %v1115 = vmul.f32 %v1061, %v902
        %v1116 = vmul.f32 %v1064, %v902
        %v1117 = vmul.f32 %v1067, %v902
        %v1118 = vmul.f32 %v1070, %v902
        %v1119 = vmul.f32 %v1073, %v902
        %v1120 = vmul.f32 %v1076, %v902
        %v1121 = vmul.f32 %v1079, %v902
        %v1122 = vmul.f32 %v1082, %v902
        %v1123 = vmul.f32 %v1085, %v902
        %v1124 = vmul.f32 %v1088, %v902
        %v1125 = vmul.f32 %v1091, %v902
        %v1126 = vmul.f32 %v1094, %v902
        %v1127 = vadd.f32 %v1095, 1e-06
        %v1128 = vadd.f32 %v1096, 1e-06
        %v1129 = vadd.f32 %v1097, 1e-06
        %v1130 = vadd.f32 %v1098, 1e-06
        %v1131 = vadd.f32 %v1099, 1e-06
        %v1132 = vadd.f32 %v1100, 1e-06
        %v1133 = vadd.f32 %v1101, 1e-06
        %v1134 = vadd.f32 %v1102, 1e-06
        %v1135 = vadd.f32 %v1103, 1e-06
        %v1136 = vadd.f32 %v1104, 1e-06
        %v1137 = vadd.f32 %v1105, 1e-06
        %v1138 = vadd.f32 %v1106, 1e-06
        %v1139 = vadd.f32 %v1107, 1e-06
        %v1140 = vadd.f32 %v1108, 1e-06
        %v1141 = vadd.f32 %v1109, 1e-06
        %v1142 = vadd.f32 %v1110, 1e-06
        %v1143 = vadd.f32 %v1111, 1e-06
        %v1144 = vadd.f32 %v1112, 1e-06
        %v1145 = vadd.f32 %v1113, 1e-06
        %v1146 = vadd.f32 %v1114, 1e-06
        %v1147 = vadd.f32 %v1115, 1e-06
        %v1148 = vadd.f32 %v1116, 1e-06
        %v1149 = vadd.f32 %v1117, 1e-06
        %v1150 = vadd.f32 %v1118, 1e-06
        %v1151 = vadd.f32 %v1119, 1e-06
        %v1152 = vadd.f32 %v1120, 1e-06
        %v1153 = vadd.f32 %v1121, 1e-06
        %v1154 = vadd.f32 %v1122, 1e-06
        %v1155 = vadd.f32 %v1123, 1e-06
        %v1156 = vadd.f32 %v1124, 1e-06
        %v1157 = vadd.f32 %v1125, 1e-06
        %v1158 = vadd.f32 %v1126, 1e-06
        %v1159 = vrsqrt.pop %v1127
        %v1160 = vmul.f32 %v1159, %v1127
        %v1161 = vmul.f32 %v1160, %v1159
        %v1162 = vmul.f32 0.5, %v1161
        %v1163 = vsub.f32 1.5, %v1162
        %v1164 = vmul.f32 %v1159, %v1163
        %vm1165 = vweird.f32 %v1127
        %vm1166 = vweird.f32 %v1159
        %vm1167 = vmor %vm1165, %vm1166
        %v1168 = vsel %vm1167, %v1159, %v1164
        %v1169 = vrsqrt.pop %v1128
        %v1170 = vmul.f32 %v1169, %v1128
        %v1171 = vmul.f32 %v1170, %v1169
        %v1172 = vmul.f32 0.5, %v1171
        %v1173 = vsub.f32 1.5, %v1172
        %v1174 = vmul.f32 %v1169, %v1173
        %vm1175 = vweird.f32 %v1128
        %vm1176 = vweird.f32 %v1169
        %vm1177 = vmor %vm1175, %vm1176
        %v1178 = vsel %vm1177, %v1169, %v1174
        %v1179 = vrsqrt.pop %v1129
        %v1180 = vmul.f32 %v1179, %v1129
        %v1181 = vmul.f32 %v1180, %v1179
        %v1182 = vmul.f32 0.5, %v1181
        %v1183 = vsub.f32 1.5, %v1182
        %v1184 = vmul.f32 %v1179, %v1183
        %vm1185 = vweird.f32 %v1129
        %vm1186 = vweird.f32 %v1179
        %vm1187 = vmor %vm1185, %vm1186
        %v1188 = vsel %vm1187, %v1179, %v1184
        %v1189 = vrsqrt.pop %v1130
        %v1190 = vmul.f32 %v1189, %v1130
        %v1191 = vmul.f32 %v1190, %v1189
        %v1192 = vmul.f32 0.5, %v1191
        %v1193 = vsub.f32 1.5, %v1192
        %v1194 = vmul.f32 %v1189, %v1193
        %vm1195 = vweird.f32 %v1130
        %vm1196 = vweird.f32 %v1189
        %vm1197 = vmor %vm1195, %vm1196
        %v1198 = vsel %vm1197, %v1189, %v1194
        %v1199 = vrsqrt.pop %v1131
        %v1200 = vmul.f32 %v1199, %v1131
        %v1201 = vmul.f32 %v1200, %v1199
        %v1202 = vmul.f32 0.5, %v1201
        %v1203 = vsub.f32 1.5, %v1202
        %v1204 = vmul.f32 %v1199, %v1203
        %vm1205 = vweird.f32 %v1131
        %vm1206 = vweird.f32 %v1199
        %vm1207 = vmor %vm1205, %vm1206
        %v1208 = vsel %vm1207, %v1199, %v1204
        %v1209 = vrsqrt.pop %v1132
        %v1210 = vmul.f32 %v1209, %v1132
        %v1211 = vmul.f32 %v1210, %v1209
        %v1212 = vmul.f32 0.5, %v1211
        %v1213 = vsub.f32 1.5, %v1212
        %v1214 = vmul.f32 %v1209, %v1213
        %vm1215 = vweird.f32 %v1132
        %vm1216 = vweird.f32 %v1209
        %vm1217 = vmor %vm1215, %vm1216
        %v1218 = vsel %vm1217, %v1209, %v1214
        %v1219 = vrsqrt.pop %v1133
        %v1220 = vmul.f32 %v1219, %v1133
        %v1221 = vmul.f32 %v1220, %v1219
        %v1222 = vmul.f32 0.5, %v1221
        %v1223 = vsub.f32 1.5, %v1222
        %v1224 = vmul.f32 %v1219, %v1223
        %vm1225 = vweird.f32 %v1133
        %vm1226 = vweird.f32 %v1219
        %vm1227 = vmor %vm1225, %vm1226
        %v1228 = vsel %vm1227, %v1219, %v1224
        %v1229 = vrsqrt.pop %v1134
        %v1230 = vmul.f32 %v1229, %v1134
        %v1231 = vmul.f32 %v1230, %v1229
        %v1232 = vmul.f32 0.5, %v1231
        %v1233 = vsub.f32 1.5, %v1232
        %v1234 = vmul.f32 %v1229, %v1233
        %vm1235 = vweird.f32 %v1134
        %vm1236 = vweird.f32 %v1229
        %vm1237 = vmor %vm1235, %vm1236
        %v1238 = vsel %vm1237, %v1229, %v1234
        %v1239 = vrsqrt.pop %v1135
        %v1240 = vmul.f32 %v1239, %v1135
        %v1241 = vmul.f32 %v1240, %v1239
        %v1242 = vmul.f32 0.5, %v1241
        %v1243 = vsub.f32 1.5, %v1242
        %v1244 = vmul.f32 %v1239, %v1243
        %vm1245 = vweird.f32 %v1135
        %vm1246 = vweird.f32 %v1239
        %vm1247 = vmor %vm1245, %vm1246
        %v1248 = vsel %vm1247, %v1239, %v1244
        %v1249 = vrsqrt.pop %v1136
        %v1250 = vmul.f32 %v1249, %v1136
        %v1251 = vmul.f32 %v1250, %v1249
        %v1252 = vmul.f32 0.5, %v1251
        %v1253 = vsub.f32 1.5, %v1252
        %v1254 = vmul.f32 %v1249, %v1253
        %vm1255 = vweird.f32 %v1136
        %vm1256 = vweird.f32 %v1249
        %vm1257 = vmor %vm1255, %vm1256
        %v1258 = vsel %vm1257, %v1249, %v1254
        %v1259 = vrsqrt.pop %v1137
        %v1260 = vmul.f32 %v1259, %v1137
        %v1261 = vmul.f32 %v1260, %v1259
        %v1262 = vmul.f32 0.5, %v1261
        %v1263 = vsub.f32 1.5, %v1262
        %v1264 = vmul.f32 %v1259, %v1263
        %vm1265 = vweird.f32 %v1137
        %vm1266 = vweird.f32 %v1259
        %vm1267 = vmor %vm1265, %vm1266
        %v1268 = vsel %vm1267, %v1259, %v1264
        %v1269 = vrsqrt.pop %v1138
        %v1270 = vmul.f32 %v1269, %v1138
        %v1271 = vmul.f32 %v1270, %v1269
        %v1272 = vmul.f32 0.5, %v1271
        %v1273 = vsub.f32 1.5, %v1272
        %v1274 = vmul.f32 %v1269, %v1273
        %vm1275 = vweird.f32 %v1138
        %vm1276 = vweird.f32 %v1269
        %vm1277 = vmor %vm1275, %vm1276
        %v1278 = vsel %vm1277, %v1269, %v1274
        %v1279 = vrsqrt.pop %v1139
        %v1280 = vmul.f32 %v1279, %v1139
        %v1281 = vmul.f32 %v1280, %v1279
        %v1282 = vmul.f32 0.5, %v1281
        %v1283 = vsub.f32 1.5, %v1282
        %v1284 = vmul.f32 %v1279, %v1283
        %vm1285 = vweird.f32 %v1139
        %vm1286 = vweird.f32 %v1279
        %vm1287 = vmor %vm1285, %vm1286
        %v1288 = vsel %vm1287, %v1279, %v1284
        %v1289 = vrsqrt.pop %v1140
        %v1290 = vmul.f32 %v1289, %v1140
        %v1291 = vmul.f32 %v1290, %v1289
        %v1292 = vmul.f32 0.5, %v1291
        %v1293 = vsub.f32 1.5, %v1292
        %v1294 = vmul.f32 %v1289, %v1293
        %vm1295 = vweird.f32 %v1140
        %vm1296 = vweird.f32 %v1289
        %vm1297 = vmor %vm1295, %vm1296
        %v1298 = vsel %vm1297, %v1289, %v1294
        %v1299 = vrsqrt.pop %v1141
        %v1300 = vmul.f32 %v1299, %v1141
        %v1301 = vmul.f32 %v1300, %v1299
        %v1302 = vmul.f32 0.5, %v1301
        %v1303 = vsub.f32 1.5, %v1302
        %v1304 = vmul.f32 %v1299, %v1303
        %vm1305 = vweird.f32 %v1141
        %vm1306 = vweird.f32 %v1299
        %vm1307 = vmor %vm1305, %vm1306
        %v1308 = vsel %vm1307, %v1299, %v1304
        %v1309 = vrsqrt.pop %v1142
        %v1310 = vmul.f32 %v1309, %v1142
        %v1311 = vmul.f32 %v1310, %v1309
        %v1312 = vmul.f32 0.5, %v1311
        %v1313 = vsub.f32 1.5, %v1312
        %v1314 = vmul.f32 %v1309, %v1313
        %vm1315 = vweird.f32 %v1142
        %vm1316 = vweird.f32 %v1309
        %vm1317 = vmor %vm1315, %vm1316
        %v1318 = vsel %vm1317, %v1309, %v1314
        %v1319 = vrsqrt.pop %v1143
        %v1320 = vmul.f32 %v1319, %v1143
        %v1321 = vmul.f32 %v1320, %v1319
        %v1322 = vmul.f32 0.5, %v1321
        %v1323 = vsub.f32 1.5, %v1322
        %v1324 = vmul.f32 %v1319, %v1323
        %vm1325 = vweird.f32 %v1143
        %vm1326 = vweird.f32 %v1319
        %vm1327 = vmor %vm1325, %vm1326
        %v1328 = vsel %vm1327, %v1319, %v1324
        %v1329 = vrsqrt.pop %v1144
        %v1330 = vmul.f32 %v1329, %v1144
        %v1331 = vmul.f32 %v1330, %v1329
        %v1332 = vmul.f32 0.5, %v1331
        %v1333 = vsub.f32 1.5, %v1332
        %v1334 = vmul.f32 %v1329, %v1333
        %vm1335 = vweird.f32 %v1144
        %vm1336 = vweird.f32 %v1329
        %vm1337 = vmor %vm1335, %vm1336
        %v1338 = vsel %vm1337, %v1329, %v1334
        %v1339 = vrsqrt.pop %v1145
        %v1340 = vmul.f32 %v1339, %v1145
        %v1341 = vmul.f32 %v1340, %v1339
        %v1342 = vmul.f32 0.5, %v1341
        %v1343 = vsub.f32 1.5, %v1342
        %v1344 = vmul.f32 %v1339, %v1343
        %vm1345 = vweird.f32 %v1145
        %vm1346 = vweird.f32 %v1339
        %vm1347 = vmor %vm1345, %vm1346
        %v1348 = vsel %vm1347, %v1339, %v1344
        %v1349 = vrsqrt.pop %v1146
        %v1350 = vmul.f32 %v1349, %v1146
        %v1351 = vmul.f32 %v1350, %v1349
        %v1352 = vmul.f32 0.5, %v1351
        %v1353 = vsub.f32 1.5, %v1352
        %v1354 = vmul.f32 %v1349, %v1353
        %vm1355 = vweird.f32 %v1146
        %vm1356 = vweird.f32 %v1349
        %vm1357 = vmor %vm1355, %vm1356
        %v1358 = vsel %vm1357, %v1349, %v1354
        %v1359 = vrsqrt.pop %v1147
        %v1360 = vmul.f32 %v1359, %v1147
        %v1361 = vmul.f32 %v1360, %v1359
        %v1362 = vmul.f32 0.5, %v1361
        %v1363 = vsub.f32 1.5, %v1362
        %v1364 = vmul.f32 %v1359, %v1363
        %vm1365 = vweird.f32 %v1147
        %vm1366 = vweird.f32 %v1359
        %vm1367 = vmor %vm1365, %vm1366
        %v1368 = vsel %vm1367, %v1359, %v1364
        %v1369 = vrsqrt.pop %v1148
        %v1370 = vmul.f32 %v1369, %v1148
        %v1371 = vmul.f32 %v1370, %v1369
        %v1372 = vmul.f32 0.5, %v1371
        %v1373 = vsub.f32 1.5, %v1372
        %v1374 = vmul.f32 %v1369, %v1373
        %vm1375 = vweird.f32 %v1148
        %vm1376 = vweird.f32 %v1369
        %vm1377 = vmor %vm1375, %vm1376
        %v1378 = vsel %vm1377, %v1369, %v1374
        %v1379 = vrsqrt.pop %v1149
        %v1380 = vmul.f32 %v1379, %v1149
        %v1381 = vmul.f32 %v1380, %v1379
        %v1382 = vmul.f32 0.5, %v1381
        %v1383 = vsub.f32 1.5, %v1382
        %v1384 = vmul.f32 %v1379, %v1383
        %vm1385 = vweird.f32 %v1149
        %vm1386 = vweird.f32 %v1379
        %vm1387 = vmor %vm1385, %vm1386
        %v1388 = vsel %vm1387, %v1379, %v1384
        %v1389 = vrsqrt.pop %v1150
        %v1390 = vmul.f32 %v1389, %v1150
        %v1391 = vmul.f32 %v1390, %v1389
        %v1392 = vmul.f32 0.5, %v1391
        %v1393 = vsub.f32 1.5, %v1392
        %v1394 = vmul.f32 %v1389, %v1393
        %vm1395 = vweird.f32 %v1150
        %vm1396 = vweird.f32 %v1389
        %vm1397 = vmor %vm1395, %vm1396
        %v1398 = vsel %vm1397, %v1389, %v1394
        %v1399 = vrsqrt.pop %v1151
        %v1400 = vmul.f32 %v1399, %v1151
        %v1401 = vmul.f32 %v1400, %v1399
        %v1402 = vmul.f32 0.5, %v1401
        %v1403 = vsub.f32 1.5, %v1402
        %v1404 = vmul.f32 %v1399, %v1403
        %vm1405 = vweird.f32 %v1151
        %vm1406 = vweird.f32 %v1399
        %vm1407 = vmor %vm1405, %vm1406
        %v1408 = vsel %vm1407, %v1399, %v1404
        %v1409 = vrsqrt.pop %v1152
        %v1410 = vmul.f32 %v1409, %v1152
        %v1411 = vmul.f32 %v1410, %v1409
        %v1412 = vmul.f32 0.5, %v1411
        %v1413 = vsub.f32 1.5, %v1412
        %v1414 = vmul.f32 %v1409, %v1413
        %vm1415 = vweird.f32 %v1152
        %vm1416 = vweird.f32 %v1409
        %vm1417 = vmor %vm1415, %vm1416
        %v1418 = vsel %vm1417, %v1409, %v1414
        %v1419 = vrsqrt.pop %v1153
        %v1420 = vmul.f32 %v1419, %v1153
        %v1421 = vmul.f32 %v1420, %v1419
        %v1422 = vmul.f32 0.5, %v1421
        %v1423 = vsub.f32 1.5, %v1422
        %v1424 = vmul.f32 %v1419, %v1423
        %vm1425 = vweird.f32 %v1153
        %vm1426 = vweird.f32 %v1419
        %vm1427 = vmor %vm1425, %vm1426
        %v1428 = vsel %vm1427, %v1419, %v1424
        %v1429 = vrsqrt.pop %v1154
        %v1430 = vmul.f32 %v1429, %v1154
        %v1431 = vmul.f32 %v1430, %v1429
        %v1432 = vmul.f32 0.5, %v1431
        %v1433 = vsub.f32 1.5, %v1432
        %v1434 = vmul.f32 %v1429, %v1433
        %vm1435 = vweird.f32 %v1154
        %vm1436 = vweird.f32 %v1429
        %vm1437 = vmor %vm1435, %vm1436
        %v1438 = vsel %vm1437, %v1429, %v1434
        %v1439 = vrsqrt.pop %v1155
        %v1440 = vmul.f32 %v1439, %v1155
        %v1441 = vmul.f32 %v1440, %v1439
        %v1442 = vmul.f32 0.5, %v1441
        %v1443 = vsub.f32 1.5, %v1442
        %v1444 = vmul.f32 %v1439, %v1443
        %vm1445 = vweird.f32 %v1155
        %vm1446 = vweird.f32 %v1439
        %vm1447 = vmor %vm1445, %vm1446
        %v1448 = vsel %vm1447, %v1439, %v1444
        %v1449 = vrsqrt.pop %v1156
        %v1450 = vmul.f32 %v1449, %v1156
        %v1451 = vmul.f32 %v1450, %v1449
        %v1452 = vmul.f32 0.5, %v1451
        %v1453 = vsub.f32 1.5, %v1452
        %v1454 = vmul.f32 %v1449, %v1453
        %vm1455 = vweird.f32 %v1156
        %vm1456 = vweird.f32 %v1449
        %vm1457 = vmor %vm1455, %vm1456
        %v1458 = vsel %vm1457, %v1449, %v1454
        %v1459 = vrsqrt.pop %v1157
        %v1460 = vmul.f32 %v1459, %v1157
        %v1461 = vmul.f32 %v1460, %v1459
        %v1462 = vmul.f32 0.5, %v1461
        %v1463 = vsub.f32 1.5, %v1462
        %v1464 = vmul.f32 %v1459, %v1463
        %vm1465 = vweird.f32 %v1157
        %vm1466 = vweird.f32 %v1459
        %vm1467 = vmor %vm1465, %vm1466
        %v1468 = vsel %vm1467, %v1459, %v1464
        %v1469 = vrsqrt.pop %v1158
        %v1470 = vmul.f32 %v1469, %v1158
        %v1471 = vmul.f32 %v1470, %v1469
        %v1472 = vmul.f32 0.5, %v1471
        %v1473 = vsub.f32 1.5, %v1472
        %v1474 = vmul.f32 %v1469, %v1473
        %vm1475 = vweird.f32 %v1158
        %vm1476 = vweird.f32 %v1469
        %vm1477 = vmor %vm1475, %vm1476
        %v1478 = vsel %vm1477, %v1469, %v1474
        %v1479 = vmul.f32 %v935, %v1168
        %v1480 = vmul.f32 %v936, %v1178
        %v1481 = vmul.f32 %v937, %v1188
        %v1482 = vmul.f32 %v938, %v1198
        %v1483 = vmul.f32 %v939, %v1208
        %v1484 = vmul.f32 %v940, %v1218
        %v1485 = vmul.f32 %v941, %v1228
        %v1486 = vmul.f32 %v942, %v1238
        %v1487 = vmul.f32 %v943, %v1248
        %v1488 = vmul.f32 %v944, %v1258
        %v1489 = vmul.f32 %v945, %v1268
        %v1490 = vmul.f32 %v946, %v1278
        %v1491 = vmul.f32 %v947, %v1288
        %v1492 = vmul.f32 %v948, %v1298
        %v1493 = vmul.f32 %v949, %v1308
        %v1494 = vmul.f32 %v950, %v1318
        %v1495 = vmul.f32 %v951, %v1328
        %v1496 = vmul.f32 %v952, %v1338
        %v1497 = vmul.f32 %v953, %v1348
        %v1498 = vmul.f32 %v954, %v1358
        %v1499 = vmul.f32 %v955, %v1368
        %v1500 = vmul.f32 %v956, %v1378
        %v1501 = vmul.f32 %v957, %v1388
        %v1502 = vmul.f32 %v958, %v1398
        %v1503 = vmul.f32 %v959, %v1408
        %v1504 = vmul.f32 %v960, %v1418
        %v1505 = vmul.f32 %v961, %v1428
        %v1506 = vmul.f32 %v962, %v1438
        %v1507 = vmul.f32 %v963, %v1448
        %v1508 = vmul.f32 %v964, %v1458
        %v1509 = vmul.f32 %v965, %v1468
        %v1510 = vmul.f32 %v966, %v1478
        %v1512 = vperm.slane %v797, 0
        %v1514 = vmul.f32 %v1479, %v1512
        %v1515 = vmul.f32 %v1480, %v1512
        %v1516 = vmul.f32 %v1481, %v1512
        %v1517 = vmul.f32 %v1482, %v1512
        %v1518 = vmul.f32 %v1483, %v1512
        %v1519 = vmul.f32 %v1484, %v1512
        %v1520 = vmul.f32 %v1485, %v1512
        %v1521 = vmul.f32 %v1486, %v1512
        %v1522 = vmul.f32 %v1487, %v1512
        %v1523 = vmul.f32 %v1488, %v1512
        %v1524 = vmul.f32 %v1489, %v1512
        %v1525 = vmul.f32 %v1490, %v1512
        %v1526 = vmul.f32 %v1491, %v1512
        %v1527 = vmul.f32 %v1492, %v1512
        %v1528 = vmul.f32 %v1493, %v1512
        %v1529 = vmul.f32 %v1494, %v1512
        %v1530 = vmul.f32 %v1495, %v1512
        %v1531 = vmul.f32 %v1496, %v1512
        %v1532 = vmul.f32 %v1497, %v1512
        %v1533 = vmul.f32 %v1498, %v1512
        %v1534 = vmul.f32 %v1499, %v1512
        %v1535 = vmul.f32 %v1500, %v1512
        %v1536 = vmul.f32 %v1501, %v1512
        %v1537 = vmul.f32 %v1502, %v1512
        %v1538 = vmul.f32 %v1503, %v1512
        %v1539 = vmul.f32 %v1504, %v1512
        %v1540 = vmul.f32 %v1505, %v1512
        %v1541 = vmul.f32 %v1506, %v1512
        %v1542 = vmul.f32 %v1507, %v1512
        %v1543 = vmul.f32 %v1508, %v1512
        %v1544 = vmul.f32 %v1509, %v1512
        %v1545 = vmul.f32 %v1510, %v1512
        %v1547 = vperm.slane %v798, 0
        %v1549 = vadd.f32 %v1514, %v1547
        %v1550 = vadd.f32 %v1515, %v1547
        %v1551 = vadd.f32 %v1516, %v1547
        %v1552 = vadd.f32 %v1517, %v1547
        %v1553 = vadd.f32 %v1518, %v1547
        %v1554 = vadd.f32 %v1519, %v1547
        %v1555 = vadd.f32 %v1520, %v1547
        %v1556 = vadd.f32 %v1521, %v1547
        %v1557 = vadd.f32 %v1522, %v1547
        %v1558 = vadd.f32 %v1523, %v1547
        %v1559 = vadd.f32 %v1524, %v1547
        %v1560 = vadd.f32 %v1525, %v1547
        %v1561 = vadd.f32 %v1526, %v1547
        %v1562 = vadd.f32 %v1527, %v1547
        %v1563 = vadd.f32 %v1528, %v1547
        %v1564 = vadd.f32 %v1529, %v1547
        %v1565 = vadd.f32 %v1530, %v1547
        %v1566 = vadd.f32 %v1531, %v1547
        %v1567 = vadd.f32 %v1532, %v1547
        %v1568 = vadd.f32 %v1533, %v1547
        %v1569 = vadd.f32 %v1534, %v1547
        %v1570 = vadd.f32 %v1535, %v1547
        %v1571 = vadd.f32 %v1536, %v1547
        %v1572 = vadd.f32 %v1537, %v1547
        %v1573 = vadd.f32 %v1538, %v1547
        %v1574 = vadd.f32 %v1539, %v1547
        %v1575 = vadd.f32 %v1540, %v1547
        %v1576 = vadd.f32 %v1541, %v1547
        %v1577 = vadd.f32 %v1542, %v1547
        %v1578 = vadd.f32 %v1543, %v1547
        %v1579 = vadd.f32 %v1544, %v1547
        %v1580 = vadd.f32 %v1545, %v1547
        %1581 = vst.msk [vmem:[%s758] sm:$0xff] %vm799, %v1549
        %1582 = vst.msk [vmem:[%s758 + $0x8] sm:$0xff] %vm799, %v1550
        %1583 = vst.msk [vmem:[%s758 + $0x10] sm:$0xff] %vm799, %v1551
        %1584 = vst.msk [vmem:[%s758 + $0x18] sm:$0xff] %vm799, %v1552
        %1585 = vst.msk [vmem:[%s758 + $0x20] sm:$0xff] %vm799, %v1553
        %1586 = vst.msk [vmem:[%s758 + $0x28] sm:$0xff] %vm799, %v1554
        %1587 = vst.msk [vmem:[%s758 + $0x30] sm:$0xff] %vm799, %v1555
        %1588 = vst.msk [vmem:[%s758 + $0x38] sm:$0xff] %vm799, %v1556
        %1589 = vst.msk [vmem:[%s758 + $0x40] sm:$0xff] %vm799, %v1557
        %1590 = vst.msk [vmem:[%s758 + $0x48] sm:$0xff] %vm799, %v1558
        %1591 = vst.msk [vmem:[%s758 + $0x50] sm:$0xff] %vm799, %v1559
        %1592 = vst.msk [vmem:[%s758 + $0x58] sm:$0xff] %vm799, %v1560
        %1593 = vst.msk [vmem:[%s758 + $0x60] sm:$0xff] %vm799, %v1561
        %1594 = vst.msk [vmem:[%s758 + $0x68] sm:$0xff] %vm799, %v1562
        %1595 = vst.msk [vmem:[%s758 + $0x70] sm:$0xff] %vm799, %v1563
        %1596 = vst.msk [vmem:[%s758 + $0x78] sm:$0xff] %vm799, %v1564
        %1597 = vst.msk [vmem:[%s758 + $0x80] sm:$0xff] %vm799, %v1565
        %1598 = vst.msk [vmem:[%s758 + $0x88] sm:$0xff] %vm799, %v1566
        %1599 = vst.msk [vmem:[%s758 + $0x90] sm:$0xff] %vm799, %v1567
        %1600 = vst.msk [vmem:[%s758 + $0x98] sm:$0xff] %vm799, %v1568
        %1601 = vst.msk [vmem:[%s758 + $0xa0] sm:$0xff] %vm799, %v1569
        %1602 = vst.msk [vmem:[%s758 + $0xa8] sm:$0xff] %vm799, %v1570
        %1603 = vst.msk [vmem:[%s758 + $0xb0] sm:$0xff] %vm799, %v1571
        %1604 = vst.msk [vmem:[%s758 + $0xb8] sm:$0xff] %vm799, %v1572
        %1605 = vst.msk [vmem:[%s758 + $0xc0] sm:$0xff] %vm799, %v1573
        %1606 = vst.msk [vmem:[%s758 + $0xc8] sm:$0xff] %vm799, %v1574
        %1607 = vst.msk [vmem:[%s758 + $0xd0] sm:$0xff] %vm799, %v1575
        %1608 = vst.msk [vmem:[%s758 + $0xd8] sm:$0xff] %vm799, %v1576
        %1609 = vst.msk [vmem:[%s758 + $0xe0] sm:$0xff] %vm799, %v1577
        %1610 = vst.msk [vmem:[%s758 + $0xe8] sm:$0xff] %vm799, %v1578
        %1611 = vst.msk [vmem:[%s758 + $0xf0] sm:$0xff] %vm799, %v1579
        %1612 = vst.msk [vmem:[%s758 + $0xf8] sm:$0xff] %vm799, %v1580
      $region88: #{bert4rec_forward.2} parent=83 // pred_fallthru
        _
      %v1613 = vld [vmem:[%s758] sm:$0xff]
      %v1614 = vld [vmem:[%s758 + $0x8] sm:$0xff]
      %v1615 = vld [vmem:[%s758 + $0x10] sm:$0xff]
      %v1616 = vld [vmem:[%s758 + $0x18] sm:$0xff]
      %v1617 = vld [vmem:[%s758 + $0x20] sm:$0xff]
      %v1618 = vld [vmem:[%s758 + $0x28] sm:$0xff]
      %v1619 = vld [vmem:[%s758 + $0x30] sm:$0xff]
      %v1620 = vld [vmem:[%s758 + $0x38] sm:$0xff]
      %v1621 = vld [vmem:[%s758 + $0x40] sm:$0xff]
      %v1622 = vld [vmem:[%s758 + $0x48] sm:$0xff]
      %v1623 = vld [vmem:[%s758 + $0x50] sm:$0xff]
      %v1624 = vld [vmem:[%s758 + $0x58] sm:$0xff]
      %v1625 = vld [vmem:[%s758 + $0x60] sm:$0xff]
      %v1626 = vld [vmem:[%s758 + $0x68] sm:$0xff]
      %v1627 = vld [vmem:[%s758 + $0x70] sm:$0xff]
      %v1628 = vld [vmem:[%s758 + $0x78] sm:$0xff]
      %v1629 = vld [vmem:[%s758 + $0x80] sm:$0xff]
      %v1630 = vld [vmem:[%s758 + $0x88] sm:$0xff]
      %v1631 = vld [vmem:[%s758 + $0x90] sm:$0xff]
      %v1632 = vld [vmem:[%s758 + $0x98] sm:$0xff]
      %v1633 = vld [vmem:[%s758 + $0xa0] sm:$0xff]
      %v1634 = vld [vmem:[%s758 + $0xa8] sm:$0xff]
      %v1635 = vld [vmem:[%s758 + $0xb0] sm:$0xff]
      %v1636 = vld [vmem:[%s758 + $0xb8] sm:$0xff]
      %v1637 = vld [vmem:[%s758 + $0xc0] sm:$0xff]
      %v1638 = vld [vmem:[%s758 + $0xc8] sm:$0xff]
      %v1639 = vld [vmem:[%s758 + $0xd0] sm:$0xff]
      %v1640 = vld [vmem:[%s758 + $0xd8] sm:$0xff]
      %v1641 = vld [vmem:[%s758 + $0xe0] sm:$0xff]
      %v1642 = vld [vmem:[%s758 + $0xe8] sm:$0xff]
      %v1643 = vld [vmem:[%s758 + $0xf0] sm:$0xff]
      %v1644 = vld [vmem:[%s758 + $0xf8] sm:$0xff]
      %v1645 = vpack.c.bf16 %v1614, %v1613
      %v1646 = vpack.c.bf16 %v1616, %v1615
      %v1647 = vpack.c.bf16 %v1618, %v1617
      %v1648 = vpack.c.bf16 %v1620, %v1619
      %v1649 = vpack.c.bf16 %v1622, %v1621
      %v1650 = vpack.c.bf16 %v1624, %v1623
      %v1651 = vpack.c.bf16 %v1626, %v1625
      %v1652 = vpack.c.bf16 %v1628, %v1627
      %v1653 = vpack.c.bf16 %v1630, %v1629
      %v1654 = vpack.c.bf16 %v1632, %v1631
      %v1655 = vpack.c.bf16 %v1634, %v1633
      %v1656 = vpack.c.bf16 %v1636, %v1635
      %v1657 = vpack.c.bf16 %v1638, %v1637
      %v1658 = vpack.c.bf16 %v1640, %v1639
      %v1659 = vpack.c.bf16 %v1642, %v1641
      %v1660 = vpack.c.bf16 %v1644, %v1643
      %v1661 = vld [vmem:[%s710] sm:$0xf]
      %v1662 = vld [vmem:[%s710 + $0x4] sm:$0xf]
      %v1663 = vld [vmem:[%s710 + $0x8] sm:$0xf]
      %v1664 = vld [vmem:[%s710 + $0xc] sm:$0xf]
      %v1669 = vunpack.c.l.b16 %v1661
      %v1670 = vunpack.c.l.b16 %v1662
      %v1671 = vunpack.c.l.b16 %v1663
      %v1672 = vunpack.c.l.b16 %v1664
      %v1673 = vpack.c.b16 %v1670, %v1669
      %v1674 = vpack.c.b16 %v1672, %v1671
      %vm1677 = vcmask 261120
      %v1679 = vsel %vm1677, %v1645, 0
      %v1682 = vsel %vm1677, %v1646, 0
      %v1685 = vsel %vm1677, %v1647, 0
      %v1688 = vsel %vm1677, %v1648, 0
      %v1691 = vsel %vm1677, %v1649, 0
      %v1694 = vsel %vm1677, %v1650, 0
      %v1697 = vsel %vm1677, %v1651, 0
      %v1700 = vsel %vm1677, %v1652, 0
      %v1703 = vsel %vm1677, %v1653, 0
      %v1706 = vsel %vm1677, %v1654, 0
      %v1709 = vsel %vm1677, %v1655, 0
      %v1712 = vsel %vm1677, %v1656, 0
      %v1715 = vsel %vm1677, %v1657, 0
      %v1718 = vsel %vm1677, %v1658, 0
      %v1721 = vsel %vm1677, %v1659, 0
      %v1724 = vsel %vm1677, %v1660, 0
      %1726 = vmatpush.bf16.msra.mxu0 0
      %1727 = vmatpush.bf16.msra.mxu0 0
      %1728 = vmatpush.bf16.msra.mxu0 0
      %1729 = vmatpush.bf16.msra.mxu0 0
      %1730 = vmatpush.bf16.msra.mxu0 0
      %1731 = vmatpush.bf16.msra.mxu0 0
      %1732 = vmatpush.bf16.msra.mxu0 %v1674
      %1733 = vmatpush.bf16.msra.mxu0 %v1673
      %1734 = vmatmul.bf16.gmra.mxu0 %v1679
      %v1735 = vpop.f32.mrf.mxu0
      %v1736 = vadd.f32 0.0, %v1735
      %v1737 = vpop.f32.mrf.mxu0
      %v1738 = vadd.f32 0.0, %v1737
      %1739 = vmatmul.bf16.gmra.mxu0 %v1682
      %v1740 = vpop.f32.mrf.mxu0
      %v1741 = vadd.f32 0.0, %v1740
      %v1742 = vpop.f32.mrf.mxu0
      %v1743 = vadd.f32 0.0, %v1742
      %1744 = vmatmul.bf16.gmra.mxu0 %v1685
      %v1745 = vpop.f32.mrf.mxu0
      %v1746 = vadd.f32 0.0, %v1745
      %v1747 = vpop.f32.mrf.mxu0
      %v1748 = vadd.f32 0.0, %v1747
      %1749 = vmatmul.bf16.gmra.mxu0 %v1688
      %v1750 = vpop.f32.mrf.mxu0
      %v1751 = vadd.f32 0.0, %v1750
      %v1752 = vpop.f32.mrf.mxu0
      %v1753 = vadd.f32 0.0, %v1752
      %1754 = vmatmul.bf16.gmra.mxu0 %v1691
      %v1755 = vpop.f32.mrf.mxu0
      %v1756 = vadd.f32 0.0, %v1755
      %v1757 = vpop.f32.mrf.mxu0
      %v1758 = vadd.f32 0.0, %v1757
      %1759 = vmatmul.bf16.gmra.mxu0 %v1694
      %v1760 = vpop.f32.mrf.mxu0
      %v1761 = vadd.f32 0.0, %v1760
      %v1762 = vpop.f32.mrf.mxu0
      %v1763 = vadd.f32 0.0, %v1762
      %1764 = vmatmul.bf16.gmra.mxu0 %v1697
      %v1765 = vpop.f32.mrf.mxu0
      %v1766 = vadd.f32 0.0, %v1765
      %v1767 = vpop.f32.mrf.mxu0
      %v1768 = vadd.f32 0.0, %v1767
      %1769 = vmatmul.bf16.gmra.mxu0 %v1700
      %v1770 = vpop.f32.mrf.mxu0
      %v1771 = vadd.f32 0.0, %v1770
      %v1772 = vpop.f32.mrf.mxu0
      %v1773 = vadd.f32 0.0, %v1772
      %1774 = vmatmul.bf16.gmra.mxu0 %v1703
      %v1775 = vpop.f32.mrf.mxu0
      %v1776 = vadd.f32 0.0, %v1775
      %v1777 = vpop.f32.mrf.mxu0
      %v1778 = vadd.f32 0.0, %v1777
      %1779 = vmatmul.bf16.gmra.mxu0 %v1706
      %v1780 = vpop.f32.mrf.mxu0
      %v1781 = vadd.f32 0.0, %v1780
      %v1782 = vpop.f32.mrf.mxu0
      %v1783 = vadd.f32 0.0, %v1782
      %1784 = vmatmul.bf16.gmra.mxu0 %v1709
      %v1785 = vpop.f32.mrf.mxu0
      %v1786 = vadd.f32 0.0, %v1785
      %v1787 = vpop.f32.mrf.mxu0
      %v1788 = vadd.f32 0.0, %v1787
      %1789 = vmatmul.bf16.gmra.mxu0 %v1712
      %v1790 = vpop.f32.mrf.mxu0
      %v1791 = vadd.f32 0.0, %v1790
      %v1792 = vpop.f32.mrf.mxu0
      %v1793 = vadd.f32 0.0, %v1792
      %1794 = vmatmul.bf16.gmra.mxu0 %v1715
      %v1795 = vpop.f32.mrf.mxu0
      %v1796 = vadd.f32 0.0, %v1795
      %v1797 = vpop.f32.mrf.mxu0
      %v1798 = vadd.f32 0.0, %v1797
      %1799 = vmatmul.bf16.gmra.mxu0 %v1718
      %v1800 = vpop.f32.mrf.mxu0
      %v1801 = vadd.f32 0.0, %v1800
      %v1802 = vpop.f32.mrf.mxu0
      %v1803 = vadd.f32 0.0, %v1802
      %1804 = vmatmul.bf16.gmra.mxu0 %v1721
      %v1805 = vpop.f32.mrf.mxu0
      %v1806 = vadd.f32 0.0, %v1805
      %v1807 = vpop.f32.mrf.mxu0
      %v1808 = vadd.f32 0.0, %v1807
      %1809 = vmatmul.bf16.gmra.mxu0 %v1724
      %v1810 = vpop.f32.mrf.mxu0
      %v1811 = vadd.f32 0.0, %v1810
      %v1812 = vpop.f32.mrf.mxu0
      %v1813 = vadd.f32 0.0, %v1812
      %1814 = vdwg.mxu0
      %v1815 = vld [vmem:[%s715] sm:$0xf]
      %v1816 = vld [vmem:[%s715 + $0x4] sm:$0xf]
      %v1817 = vld [vmem:[%s715 + $0x8] sm:$0xf]
      %v1818 = vld [vmem:[%s715 + $0xc] sm:$0xf]
      %v1823 = vunpack.c.l.b16 %v1815
      %v1824 = vunpack.c.l.b16 %v1816
      %v1825 = vunpack.c.l.b16 %v1817
      %v1826 = vunpack.c.l.b16 %v1818
      %v1827 = vpack.c.b16 %v1824, %v1823
      %v1828 = vpack.c.b16 %v1826, %v1825
      %1831 = vmatpush.bf16.msra.mxu0 0
      %1832 = vmatpush.bf16.msra.mxu0 0
      %1833 = vmatpush.bf16.msra.mxu0 0
      %1834 = vmatpush.bf16.msra.mxu0 0
      %1835 = vmatpush.bf16.msra.mxu0 0
      %1836 = vmatpush.bf16.msra.mxu0 0
      %1837 = vmatpush.bf16.msra.mxu0 %v1828
      %1838 = vmatpush.bf16.msra.mxu0 %v1827
      %1839 = vmatmul.bf16.gmra.mxu0 %v1679
      %v1840 = vpop.f32.mrf.mxu0
      %v1841 = vadd.f32 0.0, %v1840
      %v1842 = vpop.f32.mrf.mxu0
      %v1843 = vadd.f32 0.0, %v1842
      %1844 = vmatmul.bf16.gmra.mxu0 %v1682
      %v1845 = vpop.f32.mrf.mxu0
      %v1846 = vadd.f32 0.0, %v1845
      %v1847 = vpop.f32.mrf.mxu0
      %v1848 = vadd.f32 0.0, %v1847
      %1849 = vmatmul.bf16.gmra.mxu0 %v1685
      %v1850 = vpop.f32.mrf.mxu0
      %v1851 = vadd.f32 0.0, %v1850
      %v1852 = vpop.f32.mrf.mxu0
      %v1853 = vadd.f32 0.0, %v1852
      %1854 = vmatmul.bf16.gmra.mxu0 %v1688
      %v1855 = vpop.f32.mrf.mxu0
      %v1856 = vadd.f32 0.0, %v1855
      %v1857 = vpop.f32.mrf.mxu0
      %v1858 = vadd.f32 0.0, %v1857
      %1859 = vmatmul.bf16.gmra.mxu0 %v1691
      %v1860 = vpop.f32.mrf.mxu0
      %v1861 = vadd.f32 0.0, %v1860
      %v1862 = vpop.f32.mrf.mxu0
      %v1863 = vadd.f32 0.0, %v1862
      %1864 = vmatmul.bf16.gmra.mxu0 %v1694
      %v1865 = vpop.f32.mrf.mxu0
      %v1866 = vadd.f32 0.0, %v1865
      %v1867 = vpop.f32.mrf.mxu0
      %v1868 = vadd.f32 0.0, %v1867
      %1869 = vmatmul.bf16.gmra.mxu0 %v1697
      %v1870 = vpop.f32.mrf.mxu0
      %v1871 = vadd.f32 0.0, %v1870
      %v1872 = vpop.f32.mrf.mxu0
      %v1873 = vadd.f32 0.0, %v1872
      %1874 = vmatmul.bf16.gmra.mxu0 %v1700
      %v1875 = vpop.f32.mrf.mxu0
      %v1876 = vadd.f32 0.0, %v1875
      %v1877 = vpop.f32.mrf.mxu0
      %v1878 = vadd.f32 0.0, %v1877
      %1879 = vmatmul.bf16.gmra.mxu0 %v1703
      %v1880 = vpop.f32.mrf.mxu0
      %v1881 = vadd.f32 0.0, %v1880
      %v1882 = vpop.f32.mrf.mxu0
      %v1883 = vadd.f32 0.0, %v1882
      %1884 = vmatmul.bf16.gmra.mxu0 %v1706
      %v1885 = vpop.f32.mrf.mxu0
      %v1886 = vadd.f32 0.0, %v1885
      %v1887 = vpop.f32.mrf.mxu0
      %v1888 = vadd.f32 0.0, %v1887
      %1889 = vmatmul.bf16.gmra.mxu0 %v1709
      %v1890 = vpop.f32.mrf.mxu0
      %v1891 = vadd.f32 0.0, %v1890
      %v1892 = vpop.f32.mrf.mxu0
      %v1893 = vadd.f32 0.0, %v1892
      %1894 = vmatmul.bf16.gmra.mxu0 %v1712
      %v1895 = vpop.f32.mrf.mxu0
      %v1896 = vadd.f32 0.0, %v1895
      %v1897 = vpop.f32.mrf.mxu0
      %v1898 = vadd.f32 0.0, %v1897
      %1899 = vmatmul.bf16.gmra.mxu0 %v1715
      %v1900 = vpop.f32.mrf.mxu0
      %v1901 = vadd.f32 0.0, %v1900
      %v1902 = vpop.f32.mrf.mxu0
      %v1903 = vadd.f32 0.0, %v1902
      %1904 = vmatmul.bf16.gmra.mxu0 %v1718
      %v1905 = vpop.f32.mrf.mxu0
      %v1906 = vadd.f32 0.0, %v1905
      %v1907 = vpop.f32.mrf.mxu0
      %v1908 = vadd.f32 0.0, %v1907
      %1909 = vmatmul.bf16.gmra.mxu0 %v1721
      %v1910 = vpop.f32.mrf.mxu0
      %v1911 = vadd.f32 0.0, %v1910
      %v1912 = vpop.f32.mrf.mxu0
      %v1913 = vadd.f32 0.0, %v1912
      %1914 = vmatmul.bf16.gmra.mxu0 %v1724
      %v1915 = vpop.f32.mrf.mxu0
      %v1916 = vadd.f32 0.0, %v1915
      %v1917 = vpop.f32.mrf.mxu0
      %v1918 = vadd.f32 0.0, %v1917
      %1919 = vdwg.mxu0
      %v1920 = vld [vmem:[%s720] sm:$0xf]
      %v1921 = vld [vmem:[%s720 + $0x4] sm:$0xf]
      %v1922 = vld [vmem:[%s720 + $0x8] sm:$0xf]
      %v1923 = vld [vmem:[%s720 + $0xc] sm:$0xf]
      %v1928 = vunpack.c.l.b16 %v1920
      %v1929 = vunpack.c.l.b16 %v1921
      %v1930 = vunpack.c.l.b16 %v1922
      %v1931 = vunpack.c.l.b16 %v1923
      %v1932 = vpack.c.b16 %v1929, %v1928
      %v1933 = vpack.c.b16 %v1931, %v1930
      %1936 = vmatpush.bf16.msra.mxu0 0
      %1937 = vmatpush.bf16.msra.mxu0 0
      %1938 = vmatpush.bf16.msra.mxu0 0
      %1939 = vmatpush.bf16.msra.mxu0 0
      %1940 = vmatpush.bf16.msra.mxu0 0
      %1941 = vmatpush.bf16.msra.mxu0 0
      %1942 = vmatpush.bf16.msra.mxu0 %v1933
      %1943 = vmatpush.bf16.msra.mxu0 %v1932
      %1944 = vmatmul.bf16.gmra.mxu0 %v1679
      %v1945 = vpop.f32.mrf.mxu0
      %v1946 = vadd.f32 0.0, %v1945
      %v1947 = vpop.f32.mrf.mxu0
      %v1948 = vadd.f32 0.0, %v1947
      %1949 = vmatmul.bf16.gmra.mxu0 %v1682
      %v1950 = vpop.f32.mrf.mxu0
      %v1951 = vadd.f32 0.0, %v1950
      %v1952 = vpop.f32.mrf.mxu0
      %v1953 = vadd.f32 0.0, %v1952
      %1954 = vmatmul.bf16.gmra.mxu0 %v1685
      %v1955 = vpop.f32.mrf.mxu0
      %v1956 = vadd.f32 0.0, %v1955
      %v1957 = vpop.f32.mrf.mxu0
      %v1958 = vadd.f32 0.0, %v1957
      %1959 = vmatmul.bf16.gmra.mxu0 %v1688
      %v1960 = vpop.f32.mrf.mxu0
      %v1961 = vadd.f32 0.0, %v1960
      %v1962 = vpop.f32.mrf.mxu0
      %v1963 = vadd.f32 0.0, %v1962
      %1964 = vmatmul.bf16.gmra.mxu0 %v1691
      %v1965 = vpop.f32.mrf.mxu0
      %v1966 = vadd.f32 0.0, %v1965
      %v1967 = vpop.f32.mrf.mxu0
      %v1968 = vadd.f32 0.0, %v1967
      %1969 = vmatmul.bf16.gmra.mxu0 %v1694
      %v1970 = vpop.f32.mrf.mxu0
      %v1971 = vadd.f32 0.0, %v1970
      %v1972 = vpop.f32.mrf.mxu0
      %v1973 = vadd.f32 0.0, %v1972
      %1974 = vmatmul.bf16.gmra.mxu0 %v1697
      %v1975 = vpop.f32.mrf.mxu0
      %v1976 = vadd.f32 0.0, %v1975
      %v1977 = vpop.f32.mrf.mxu0
      %v1978 = vadd.f32 0.0, %v1977
      %1979 = vmatmul.bf16.gmra.mxu0 %v1700
      %v1980 = vpop.f32.mrf.mxu0
      %v1981 = vadd.f32 0.0, %v1980
      %v1982 = vpop.f32.mrf.mxu0
      %v1983 = vadd.f32 0.0, %v1982
      %1984 = vmatmul.bf16.gmra.mxu0 %v1703
      %v1985 = vpop.f32.mrf.mxu0
      %v1986 = vadd.f32 0.0, %v1985
      %v1987 = vpop.f32.mrf.mxu0
      %v1988 = vadd.f32 0.0, %v1987
      %1989 = vmatmul.bf16.gmra.mxu0 %v1706
      %v1990 = vpop.f32.mrf.mxu0
      %v1991 = vadd.f32 0.0, %v1990
      %v1992 = vpop.f32.mrf.mxu0
      %v1993 = vadd.f32 0.0, %v1992
      %1994 = vmatmul.bf16.gmra.mxu0 %v1709
      %v1995 = vpop.f32.mrf.mxu0
      %v1996 = vadd.f32 0.0, %v1995
      %v1997 = vpop.f32.mrf.mxu0
      %v1998 = vadd.f32 0.0, %v1997
      %1999 = vmatmul.bf16.gmra.mxu0 %v1712
      %v2000 = vpop.f32.mrf.mxu0
      %v2001 = vadd.f32 0.0, %v2000
      %v2002 = vpop.f32.mrf.mxu0
      %v2003 = vadd.f32 0.0, %v2002
      %2004 = vmatmul.bf16.gmra.mxu0 %v1715
      %v2005 = vpop.f32.mrf.mxu0
      %v2006 = vadd.f32 0.0, %v2005
      %v2007 = vpop.f32.mrf.mxu0
      %v2008 = vadd.f32 0.0, %v2007
      %2009 = vmatmul.bf16.gmra.mxu0 %v1718
      %v2010 = vpop.f32.mrf.mxu0
      %v2011 = vadd.f32 0.0, %v2010
      %v2012 = vpop.f32.mrf.mxu0
      %v2013 = vadd.f32 0.0, %v2012
      %2014 = vmatmul.bf16.gmra.mxu0 %v1721
      %v2015 = vpop.f32.mrf.mxu0
      %v2016 = vadd.f32 0.0, %v2015
      %v2017 = vpop.f32.mrf.mxu0
      %v2018 = vadd.f32 0.0, %v2017
      %2019 = vmatmul.bf16.gmra.mxu0 %v1724
      %v2020 = vpop.f32.mrf.mxu0
      %v2021 = vadd.f32 0.0, %v2020
      %v2022 = vpop.f32.mrf.mxu0
      %v2023 = vadd.f32 0.0, %v2022
      %2024 = vdwg.mxu0
      %v2025 = vpack.c.bf16 %v1736, %v1736
      %v2026 = vpack.c.bf16 %v1738, %v1738
      %v2027 = vpack.c.bf16 %v1741, %v1741
      %v2028 = vpack.c.bf16 %v1743, %v1743
      %v2029 = vpack.c.bf16 %v1746, %v1746
      %v2030 = vpack.c.bf16 %v1748, %v1748
      %v2031 = vpack.c.bf16 %v1751, %v1751
      %v2032 = vpack.c.bf16 %v1753, %v1753
      %v2033 = vpack.c.bf16 %v1756, %v1756
      %v2034 = vpack.c.bf16 %v1758, %v1758
      %v2035 = vpack.c.bf16 %v1761, %v1761
      %v2036 = vpack.c.bf16 %v1763, %v1763
      %v2037 = vpack.c.bf16 %v1766, %v1766
      %v2038 = vpack.c.bf16 %v1768, %v1768
      %v2039 = vpack.c.bf16 %v1771, %v1771
      %v2040 = vpack.c.bf16 %v1773, %v1773
      %v2041 = vpack.c.bf16 %v1776, %v1776
      %v2042 = vpack.c.bf16 %v1778, %v1778
      %v2043 = vpack.c.bf16 %v1781, %v1781
      %v2044 = vpack.c.bf16 %v1783, %v1783
      %v2045 = vpack.c.bf16 %v1786, %v1786
      %v2046 = vpack.c.bf16 %v1788, %v1788
      %v2047 = vpack.c.bf16 %v1791, %v1791
      %v2048 = vpack.c.bf16 %v1793, %v1793
      %v2049 = vpack.c.bf16 %v1796, %v1796
      %v2050 = vpack.c.bf16 %v1798, %v1798
      %v2051 = vpack.c.bf16 %v1801, %v1801
      %v2052 = vpack.c.bf16 %v1803, %v1803
      %v2053 = vpack.c.bf16 %v1806, %v1806
      %v2054 = vpack.c.bf16 %v1808, %v1808
      %v2055 = vpack.c.bf16 %v1811, %v1811
      %v2056 = vpack.c.bf16 %v1813, %v1813
      %v2057 = vpack.c.bf16 %v1841, %v1841
      %v2058 = vpack.c.bf16 %v1843, %v1843
      %v2059 = vpack.c.bf16 %v1846, %v1846
      %v2060 = vpack.c.bf16 %v1848, %v1848
      %v2061 = vpack.c.bf16 %v1851, %v1851
      %v2062 = vpack.c.bf16 %v1853, %v1853
      %v2063 = vpack.c.bf16 %v1856, %v1856
      %v2064 = vpack.c.bf16 %v1858, %v1858
      %v2065 = vpack.c.bf16 %v1861, %v1861
      %v2066 = vpack.c.bf16 %v1863, %v1863
      %v2067 = vpack.c.bf16 %v1866, %v1866
      %v2068 = vpack.c.bf16 %v1868, %v1868
      %v2069 = vpack.c.bf16 %v1871, %v1871
      %v2070 = vpack.c.bf16 %v1873, %v1873
      %v2071 = vpack.c.bf16 %v1876, %v1876
      %v2072 = vpack.c.bf16 %v1878, %v1878
      %v2073 = vpack.c.bf16 %v1881, %v1881
      %v2074 = vpack.c.bf16 %v1883, %v1883
      %v2075 = vpack.c.bf16 %v1886, %v1886
      %v2076 = vpack.c.bf16 %v1888, %v1888
      %v2077 = vpack.c.bf16 %v1891, %v1891
      %v2078 = vpack.c.bf16 %v1893, %v1893
      %v2079 = vpack.c.bf16 %v1896, %v1896
      %v2080 = vpack.c.bf16 %v1898, %v1898
      %v2081 = vpack.c.bf16 %v1901, %v1901
      %v2082 = vpack.c.bf16 %v1903, %v1903
      %v2083 = vpack.c.bf16 %v1906, %v1906
      %v2084 = vpack.c.bf16 %v1908, %v1908
      %v2085 = vpack.c.bf16 %v1911, %v1911
      %v2086 = vpack.c.bf16 %v1913, %v1913
      %v2087 = vpack.c.bf16 %v1916, %v1916
      %v2088 = vpack.c.bf16 %v1918, %v1918
      %v2090 = vsel %vm1677, %v2025, 0
      %v2093 = vsel %vm1677, %v2057, 0
      %2095 = vmatpush.bf16.xpose.msra.mxu0 0
      %2096 = vmatpush.bf16.xpose.msra.mxu0 0
      %2097 = vmatpush.bf16.xpose.msra.mxu0 0
      %2098 = vmatpush.bf16.xpose.msra.mxu0 0
      %2099 = vmatpush.bf16.xpose.msra.mxu0 0
      %2100 = vmatpush.bf16.xpose.msra.mxu0 0
      %2101 = vmatpush.bf16.xpose.msra.mxu0 0
      %2102 = vmatpush.bf16.xpose.msra.mxu0 %v2093
      %2103 = vmatmul.bf16.gmra.mxu0 %v2090
      %v2104 = vpop.f32.mrf.mxu0
      %v2105 = vadd.f32 0.0, %v2104
      %v2106 = vpop.f32.mrf.mxu0
      %2107 = vdwg.mxu0
      %v2109 = vsel %vm1677, %v2026, 0
      %v2112 = vsel %vm1677, %v2058, 0
      %2114 = vmatpush.bf16.xpose.msra.mxu0 0
      %2115 = vmatpush.bf16.xpose.msra.mxu0 0
      %2116 = vmatpush.bf16.xpose.msra.mxu0 0
      %2117 = vmatpush.bf16.xpose.msra.mxu0 0
      %2118 = vmatpush.bf16.xpose.msra.mxu0 0
      %2119 = vmatpush.bf16.xpose.msra.mxu0 0
      %2120 = vmatpush.bf16.xpose.msra.mxu0 0
      %2121 = vmatpush.bf16.xpose.msra.mxu0 %v2112
      %2122 = vmatmul.bf16.gmra.mxu0 %v2109
      %v2123 = vpop.f32.mrf.mxu0
      %v2124 = vadd.f32 0.0, %v2123
      %v2125 = vpop.f32.mrf.mxu0
      %2126 = vdwg.mxu0
      %v2128 = vsel %vm1677, %v2027, 0
      %v2131 = vsel %vm1677, %v2059, 0
      %2133 = vmatpush.bf16.xpose.msra.mxu0 0
      %2134 = vmatpush.bf16.xpose.msra.mxu0 0
      %2135 = vmatpush.bf16.xpose.msra.mxu0 0
      %2136 = vmatpush.bf16.xpose.msra.mxu0 0
      %2137 = vmatpush.bf16.xpose.msra.mxu0 0
      %2138 = vmatpush.bf16.xpose.msra.mxu0 0
      %2139 = vmatpush.bf16.xpose.msra.mxu0 0
      %2140 = vmatpush.bf16.xpose.msra.mxu0 %v2131
      %2141 = vmatmul.bf16.gmra.mxu0 %v2128
      %v2142 = vpop.f32.mrf.mxu0
      %v2143 = vadd.f32 0.0, %v2142
      %v2144 = vpop.f32.mrf.mxu0
      %2145 = vdwg.mxu0
      %v2147 = vsel %vm1677, %v2028, 0
      %v2150 = vsel %vm1677, %v2060, 0
      %2152 = vmatpush.bf16.xpose.msra.mxu0 0
      %2153 = vmatpush.bf16.xpose.msra.mxu0 0
      %2154 = vmatpush.bf16.xpose.msra.mxu0 0
      %2155 = vmatpush.bf16.xpose.msra.mxu0 0
      %2156 = vmatpush.bf16.xpose.msra.mxu0 0
      %2157 = vmatpush.bf16.xpose.msra.mxu0 0
      %2158 = vmatpush.bf16.xpose.msra.mxu0 0
      %2159 = vmatpush.bf16.xpose.msra.mxu0 %v2150
      %2160 = vmatmul.bf16.gmra.mxu0 %v2147
      %v2161 = vpop.f32.mrf.mxu0
      %v2162 = vadd.f32 0.0, %v2161
      %v2163 = vpop.f32.mrf.mxu0
      %2164 = vdwg.mxu0
      %v2166 = vsel %vm1677, %v2029, 0
      %v2169 = vsel %vm1677, %v2061, 0
      %2171 = vmatpush.bf16.xpose.msra.mxu0 0
      %2172 = vmatpush.bf16.xpose.msra.mxu0 0
      %2173 = vmatpush.bf16.xpose.msra.mxu0 0
      %2174 = vmatpush.bf16.xpose.msra.mxu0 0
      %2175 = vmatpush.bf16.xpose.msra.mxu0 0
      %2176 = vmatpush.bf16.xpose.msra.mxu0 0
      %2177 = vmatpush.bf16.xpose.msra.mxu0 0
      %2178 = vmatpush.bf16.xpose.msra.mxu0 %v2169
      %2179 = vmatmul.bf16.gmra.mxu0 %v2166
      %v2180 = vpop.f32.mrf.mxu0
      %v2181 = vadd.f32 0.0, %v2180
      %v2182 = vpop.f32.mrf.mxu0
      %2183 = vdwg.mxu0
      %v2185 = vsel %vm1677, %v2030, 0
      %v2188 = vsel %vm1677, %v2062, 0
      %2190 = vmatpush.bf16.xpose.msra.mxu0 0
      %2191 = vmatpush.bf16.xpose.msra.mxu0 0
      %2192 = vmatpush.bf16.xpose.msra.mxu0 0
      %2193 = vmatpush.bf16.xpose.msra.mxu0 0
      %2194 = vmatpush.bf16.xpose.msra.mxu0 0
      %2195 = vmatpush.bf16.xpose.msra.mxu0 0
      %2196 = vmatpush.bf16.xpose.msra.mxu0 0
      %2197 = vmatpush.bf16.xpose.msra.mxu0 %v2188
      %2198 = vmatmul.bf16.gmra.mxu0 %v2185
      %v2199 = vpop.f32.mrf.mxu0
      %v2200 = vadd.f32 0.0, %v2199
      %v2201 = vpop.f32.mrf.mxu0
      %2202 = vdwg.mxu0
      %v2204 = vsel %vm1677, %v2031, 0
      %v2207 = vsel %vm1677, %v2063, 0
      %2209 = vmatpush.bf16.xpose.msra.mxu0 0
      %2210 = vmatpush.bf16.xpose.msra.mxu0 0
      %2211 = vmatpush.bf16.xpose.msra.mxu0 0
      %2212 = vmatpush.bf16.xpose.msra.mxu0 0
      %2213 = vmatpush.bf16.xpose.msra.mxu0 0
      %2214 = vmatpush.bf16.xpose.msra.mxu0 0
      %2215 = vmatpush.bf16.xpose.msra.mxu0 0
      %2216 = vmatpush.bf16.xpose.msra.mxu0 %v2207
      %2217 = vmatmul.bf16.gmra.mxu0 %v2204
      %v2218 = vpop.f32.mrf.mxu0
      %v2219 = vadd.f32 0.0, %v2218
      %v2220 = vpop.f32.mrf.mxu0
      %2221 = vdwg.mxu0
      %v2223 = vsel %vm1677, %v2032, 0
      %v2226 = vsel %vm1677, %v2064, 0
      %2228 = vmatpush.bf16.xpose.msra.mxu0 0
      %2229 = vmatpush.bf16.xpose.msra.mxu0 0
      %2230 = vmatpush.bf16.xpose.msra.mxu0 0
      %2231 = vmatpush.bf16.xpose.msra.mxu0 0
      %2232 = vmatpush.bf16.xpose.msra.mxu0 0
      %2233 = vmatpush.bf16.xpose.msra.mxu0 0
      %2234 = vmatpush.bf16.xpose.msra.mxu0 0
      %2235 = vmatpush.bf16.xpose.msra.mxu0 %v2226
      %2236 = vmatmul.bf16.gmra.mxu0 %v2223
      %v2237 = vpop.f32.mrf.mxu0
      %v2238 = vadd.f32 0.0, %v2237
      %v2239 = vpop.f32.mrf.mxu0
      %2240 = vdwg.mxu0
      %v2242 = vsel %vm1677, %v2033, 0
      %v2245 = vsel %vm1677, %v2065, 0
      %2247 = vmatpush.bf16.xpose.msra.mxu0 0
      %2248 = vmatpush.bf16.xpose.msra.mxu0 0
      %2249 = vmatpush.bf16.xpose.msra.mxu0 0
      %2250 = vmatpush.bf16.xpose.msra.mxu0 0
      %2251 = vmatpush.bf16.xpose.msra.mxu0 0
      %2252 = vmatpush.bf16.xpose.msra.mxu0 0
      %2253 = vmatpush.bf16.xpose.msra.mxu0 0
      %2254 = vmatpush.bf16.xpose.msra.mxu0 %v2245
      %2255 = vmatmul.bf16.gmra.mxu0 %v2242
      %v2256 = vpop.f32.mrf.mxu0
      %v2257 = vadd.f32 0.0, %v2256
      %v2258 = vpop.f32.mrf.mxu0
      %2259 = vdwg.mxu0
      %v2261 = vsel %vm1677, %v2034, 0
      %v2264 = vsel %vm1677, %v2066, 0
      %2266 = vmatpush.bf16.xpose.msra.mxu0 0
      %2267 = vmatpush.bf16.xpose.msra.mxu0 0
      %2268 = vmatpush.bf16.xpose.msra.mxu0 0
      %2269 = vmatpush.bf16.xpose.msra.mxu0 0
      %2270 = vmatpush.bf16.xpose.msra.mxu0 0
      %2271 = vmatpush.bf16.xpose.msra.mxu0 0
      %2272 = vmatpush.bf16.xpose.msra.mxu0 0
      %2273 = vmatpush.bf16.xpose.msra.mxu0 %v2264
      %2274 = vmatmul.bf16.gmra.mxu0 %v2261
      %v2275 = vpop.f32.mrf.mxu0
      %v2276 = vadd.f32 0.0, %v2275
      %v2277 = vpop.f32.mrf.mxu0
      %2278 = vdwg.mxu0
      %v2280 = vsel %vm1677, %v2035, 0
      %v2283 = vsel %vm1677, %v2067, 0
      %2285 = vmatpush.bf16.xpose.msra.mxu0 0
      %2286 = vmatpush.bf16.xpose.msra.mxu0 0
      %2287 = vmatpush.bf16.xpose.msra.mxu0 0
      %2288 = vmatpush.bf16.xpose.msra.mxu0 0
      %2289 = vmatpush.bf16.xpose.msra.mxu0 0
      %2290 = vmatpush.bf16.xpose.msra.mxu0 0
      %2291 = vmatpush.bf16.xpose.msra.mxu0 0
      %2292 = vmatpush.bf16.xpose.msra.mxu0 %v2283
      %2293 = vmatmul.bf16.gmra.mxu0 %v2280
      %v2294 = vpop.f32.mrf.mxu0
      %v2295 = vadd.f32 0.0, %v2294
      %v2296 = vpop.f32.mrf.mxu0
      %2297 = vdwg.mxu0
      %v2299 = vsel %vm1677, %v2036, 0
      %v2302 = vsel %vm1677, %v2068, 0
      %2304 = vmatpush.bf16.xpose.msra.mxu0 0
      %2305 = vmatpush.bf16.xpose.msra.mxu0 0
      %2306 = vmatpush.bf16.xpose.msra.mxu0 0
      %2307 = vmatpush.bf16.xpose.msra.mxu0 0
      %2308 = vmatpush.bf16.xpose.msra.mxu0 0
      %2309 = vmatpush.bf16.xpose.msra.mxu0 0
      %2310 = vmatpush.bf16.xpose.msra.mxu0 0
      %2311 = vmatpush.bf16.xpose.msra.mxu0 %v2302
      %2312 = vmatmul.bf16.gmra.mxu0 %v2299
      %v2313 = vpop.f32.mrf.mxu0
      %v2314 = vadd.f32 0.0, %v2313
      %v2315 = vpop.f32.mrf.mxu0
      %2316 = vdwg.mxu0
      %v2318 = vsel %vm1677, %v2037, 0
      %v2321 = vsel %vm1677, %v2069, 0
      %2323 = vmatpush.bf16.xpose.msra.mxu0 0
      %2324 = vmatpush.bf16.xpose.msra.mxu0 0
      %2325 = vmatpush.bf16.xpose.msra.mxu0 0
      %2326 = vmatpush.bf16.xpose.msra.mxu0 0
      %2327 = vmatpush.bf16.xpose.msra.mxu0 0
      %2328 = vmatpush.bf16.xpose.msra.mxu0 0
      %2329 = vmatpush.bf16.xpose.msra.mxu0 0
      %2330 = vmatpush.bf16.xpose.msra.mxu0 %v2321
      %2331 = vmatmul.bf16.gmra.mxu0 %v2318
      %v2332 = vpop.f32.mrf.mxu0
      %v2333 = vadd.f32 0.0, %v2332
      %v2334 = vpop.f32.mrf.mxu0
      %2335 = vdwg.mxu0
      %v2337 = vsel %vm1677, %v2038, 0
      %v2340 = vsel %vm1677, %v2070, 0
      %2342 = vmatpush.bf16.xpose.msra.mxu0 0
      %2343 = vmatpush.bf16.xpose.msra.mxu0 0
      %2344 = vmatpush.bf16.xpose.msra.mxu0 0
      %2345 = vmatpush.bf16.xpose.msra.mxu0 0
      %2346 = vmatpush.bf16.xpose.msra.mxu0 0
      %2347 = vmatpush.bf16.xpose.msra.mxu0 0
      %2348 = vmatpush.bf16.xpose.msra.mxu0 0
      %2349 = vmatpush.bf16.xpose.msra.mxu0 %v2340
      %2350 = vmatmul.bf16.gmra.mxu0 %v2337
      %v2351 = vpop.f32.mrf.mxu0
      %v2352 = vadd.f32 0.0, %v2351
      %v2353 = vpop.f32.mrf.mxu0
      %2354 = vdwg.mxu0
      %v2356 = vsel %vm1677, %v2039, 0
      %v2359 = vsel %vm1677, %v2071, 0
      %2361 = vmatpush.bf16.xpose.msra.mxu0 0
      %2362 = vmatpush.bf16.xpose.msra.mxu0 0
      %2363 = vmatpush.bf16.xpose.msra.mxu0 0
      %2364 = vmatpush.bf16.xpose.msra.mxu0 0
      %2365 = vmatpush.bf16.xpose.msra.mxu0 0
      %2366 = vmatpush.bf16.xpose.msra.mxu0 0
      %2367 = vmatpush.bf16.xpose.msra.mxu0 0
      %2368 = vmatpush.bf16.xpose.msra.mxu0 %v2359
      %2369 = vmatmul.bf16.gmra.mxu0 %v2356
      %v2370 = vpop.f32.mrf.mxu0
      %v2371 = vadd.f32 0.0, %v2370
      %v2372 = vpop.f32.mrf.mxu0
      %2373 = vdwg.mxu0
      %v2375 = vsel %vm1677, %v2040, 0
      %v2378 = vsel %vm1677, %v2072, 0
      %2380 = vmatpush.bf16.xpose.msra.mxu0 0
      %2381 = vmatpush.bf16.xpose.msra.mxu0 0
      %2382 = vmatpush.bf16.xpose.msra.mxu0 0
      %2383 = vmatpush.bf16.xpose.msra.mxu0 0
      %2384 = vmatpush.bf16.xpose.msra.mxu0 0
      %2385 = vmatpush.bf16.xpose.msra.mxu0 0
      %2386 = vmatpush.bf16.xpose.msra.mxu0 0
      %2387 = vmatpush.bf16.xpose.msra.mxu0 %v2378
      %2388 = vmatmul.bf16.gmra.mxu0 %v2375
      %v2389 = vpop.f32.mrf.mxu0
      %v2390 = vadd.f32 0.0, %v2389
      %v2391 = vpop.f32.mrf.mxu0
      %2392 = vdwg.mxu0
      %v2394 = vsel %vm1677, %v2041, 0
      %v2397 = vsel %vm1677, %v2073, 0
      %2399 = vmatpush.bf16.xpose.msra.mxu0 0
      %2400 = vmatpush.bf16.xpose.msra.mxu0 0
      %2401 = vmatpush.bf16.xpose.msra.mxu0 0
      %2402 = vmatpush.bf16.xpose.msra.mxu0 0
      %2403 = vmatpush.bf16.xpose.msra.mxu0 0
      %2404 = vmatpush.bf16.xpose.msra.mxu0 0
      %2405 = vmatpush.bf16.xpose.msra.mxu0 0
      %2406 = vmatpush.bf16.xpose.msra.mxu0 %v2397
      %2407 = vmatmul.bf16.gmra.mxu0 %v2394
      %v2408 = vpop.f32.mrf.mxu0
      %v2409 = vadd.f32 0.0, %v2408
      %v2410 = vpop.f32.mrf.mxu0
      %2411 = vdwg.mxu0
      %v2413 = vsel %vm1677, %v2042, 0
      %v2416 = vsel %vm1677, %v2074, 0
      %2418 = vmatpush.bf16.xpose.msra.mxu0 0
      %2419 = vmatpush.bf16.xpose.msra.mxu0 0
      %2420 = vmatpush.bf16.xpose.msra.mxu0 0
      %2421 = vmatpush.bf16.xpose.msra.mxu0 0
      %2422 = vmatpush.bf16.xpose.msra.mxu0 0
      %2423 = vmatpush.bf16.xpose.msra.mxu0 0
      %2424 = vmatpush.bf16.xpose.msra.mxu0 0
      %2425 = vmatpush.bf16.xpose.msra.mxu0 %v2416
      %2426 = vmatmul.bf16.gmra.mxu0 %v2413
      %v2427 = vpop.f32.mrf.mxu0
      %v2428 = vadd.f32 0.0, %v2427
      %v2429 = vpop.f32.mrf.mxu0
      %2430 = vdwg.mxu0
      %v2432 = vsel %vm1677, %v2043, 0
      %v2435 = vsel %vm1677, %v2075, 0
      %2437 = vmatpush.bf16.xpose.msra.mxu0 0
      %2438 = vmatpush.bf16.xpose.msra.mxu0 0
      %2439 = vmatpush.bf16.xpose.msra.mxu0 0
      %2440 = vmatpush.bf16.xpose.msra.mxu0 0
      %2441 = vmatpush.bf16.xpose.msra.mxu0 0
      %2442 = vmatpush.bf16.xpose.msra.mxu0 0
      %2443 = vmatpush.bf16.xpose.msra.mxu0 0
      %2444 = vmatpush.bf16.xpose.msra.mxu0 %v2435
      %2445 = vmatmul.bf16.gmra.mxu0 %v2432
      %v2446 = vpop.f32.mrf.mxu0
      %v2447 = vadd.f32 0.0, %v2446
      %v2448 = vpop.f32.mrf.mxu0
      %2449 = vdwg.mxu0
      %v2451 = vsel %vm1677, %v2044, 0
      %v2454 = vsel %vm1677, %v2076, 0
      %2456 = vmatpush.bf16.xpose.msra.mxu0 0
      %2457 = vmatpush.bf16.xpose.msra.mxu0 0
      %2458 = vmatpush.bf16.xpose.msra.mxu0 0
      %2459 = vmatpush.bf16.xpose.msra.mxu0 0
      %2460 = vmatpush.bf16.xpose.msra.mxu0 0
      %2461 = vmatpush.bf16.xpose.msra.mxu0 0
      %2462 = vmatpush.bf16.xpose.msra.mxu0 0
      %2463 = vmatpush.bf16.xpose.msra.mxu0 %v2454
      %2464 = vmatmul.bf16.gmra.mxu0 %v2451
      %v2465 = vpop.f32.mrf.mxu0
      %v2466 = vadd.f32 0.0, %v2465
      %v2467 = vpop.f32.mrf.mxu0
      %2468 = vdwg.mxu0
      %v2470 = vsel %vm1677, %v2045, 0
      %v2473 = vsel %vm1677, %v2077, 0
      %2475 = vmatpush.bf16.xpose.msra.mxu0 0
      %2476 = vmatpush.bf16.xpose.msra.mxu0 0
      %2477 = vmatpush.bf16.xpose.msra.mxu0 0
      %2478 = vmatpush.bf16.xpose.msra.mxu0 0
      %2479 = vmatpush.bf16.xpose.msra.mxu0 0
      %2480 = vmatpush.bf16.xpose.msra.mxu0 0
      %2481 = vmatpush.bf16.xpose.msra.mxu0 0
      %2482 = vmatpush.bf16.xpose.msra.mxu0 %v2473
      %2483 = vmatmul.bf16.gmra.mxu0 %v2470
      %v2484 = vpop.f32.mrf.mxu0
      %v2485 = vadd.f32 0.0, %v2484
      %v2486 = vpop.f32.mrf.mxu0
      %2487 = vdwg.mxu0
      %v2489 = vsel %vm1677, %v2046, 0
      %v2492 = vsel %vm1677, %v2078, 0
      %2494 = vmatpush.bf16.xpose.msra.mxu0 0
      %2495 = vmatpush.bf16.xpose.msra.mxu0 0
      %2496 = vmatpush.bf16.xpose.msra.mxu0 0
      %2497 = vmatpush.bf16.xpose.msra.mxu0 0
      %2498 = vmatpush.bf16.xpose.msra.mxu0 0
      %2499 = vmatpush.bf16.xpose.msra.mxu0 0
      %2500 = vmatpush.bf16.xpose.msra.mxu0 0
      %2501 = vmatpush.bf16.xpose.msra.mxu0 %v2492
      %2502 = vmatmul.bf16.gmra.mxu0 %v2489
      %v2503 = vpop.f32.mrf.mxu0
      %v2504 = vadd.f32 0.0, %v2503
      %v2505 = vpop.f32.mrf.mxu0
      %2506 = vdwg.mxu0
      %v2508 = vsel %vm1677, %v2047, 0
      %v2511 = vsel %vm1677, %v2079, 0
      %2513 = vmatpush.bf16.xpose.msra.mxu0 0
      %2514 = vmatpush.bf16.xpose.msra.mxu0 0
      %2515 = vmatpush.bf16.xpose.msra.mxu0 0
      %2516 = vmatpush.bf16.xpose.msra.mxu0 0
      %2517 = vmatpush.bf16.xpose.msra.mxu0 0
      %2518 = vmatpush.bf16.xpose.msra.mxu0 0
      %2519 = vmatpush.bf16.xpose.msra.mxu0 0
      %2520 = vmatpush.bf16.xpose.msra.mxu0 %v2511
      %2521 = vmatmul.bf16.gmra.mxu0 %v2508
      %v2522 = vpop.f32.mrf.mxu0
      %v2523 = vadd.f32 0.0, %v2522
      %v2524 = vpop.f32.mrf.mxu0
      %2525 = vdwg.mxu0
      %v2527 = vsel %vm1677, %v2048, 0
      %v2530 = vsel %vm1677, %v2080, 0
      %2532 = vmatpush.bf16.xpose.msra.mxu0 0
      %2533 = vmatpush.bf16.xpose.msra.mxu0 0
      %2534 = vmatpush.bf16.xpose.msra.mxu0 0
      %2535 = vmatpush.bf16.xpose.msra.mxu0 0
      %2536 = vmatpush.bf16.xpose.msra.mxu0 0
      %2537 = vmatpush.bf16.xpose.msra.mxu0 0
      %2538 = vmatpush.bf16.xpose.msra.mxu0 0
      %2539 = vmatpush.bf16.xpose.msra.mxu0 %v2530
      %2540 = vmatmul.bf16.gmra.mxu0 %v2527
      %v2541 = vpop.f32.mrf.mxu0
      %v2542 = vadd.f32 0.0, %v2541
      %v2543 = vpop.f32.mrf.mxu0
      %2544 = vdwg.mxu0
      %v2546 = vsel %vm1677, %v2049, 0
      %v2549 = vsel %vm1677, %v2081, 0
      %2551 = vmatpush.bf16.xpose.msra.mxu0 0
      %2552 = vmatpush.bf16.xpose.msra.mxu0 0
      %2553 = vmatpush.bf16.xpose.msra.mxu0 0
      %2554 = vmatpush.bf16.xpose.msra.mxu0 0
      %2555 = vmatpush.bf16.xpose.msra.mxu0 0
      %2556 = vmatpush.bf16.xpose.msra.mxu0 0
      %2557 = vmatpush.bf16.xpose.msra.mxu0 0
      %2558 = vmatpush.bf16.xpose.msra.mxu0 %v2549
      %2559 = vmatmul.bf16.gmra.mxu0 %v2546
      %v2560 = vpop.f32.mrf.mxu0
      %v2561 = vadd.f32 0.0, %v2560
      %v2562 = vpop.f32.mrf.mxu0
      %2563 = vdwg.mxu0
      %v2565 = vsel %vm1677, %v2050, 0
      %v2568 = vsel %vm1677, %v2082, 0
      %2570 = vmatpush.bf16.xpose.msra.mxu0 0
      %2571 = vmatpush.bf16.xpose.msra.mxu0 0
      %2572 = vmatpush.bf16.xpose.msra.mxu0 0
      %2573 = vmatpush.bf16.xpose.msra.mxu0 0
      %2574 = vmatpush.bf16.xpose.msra.mxu0 0
      %2575 = vmatpush.bf16.xpose.msra.mxu0 0
      %2576 = vmatpush.bf16.xpose.msra.mxu0 0
      %2577 = vmatpush.bf16.xpose.msra.mxu0 %v2568
      %2578 = vmatmul.bf16.gmra.mxu0 %v2565
      %v2579 = vpop.f32.mrf.mxu0
      %v2580 = vadd.f32 0.0, %v2579
      %v2581 = vpop.f32.mrf.mxu0
      %2582 = vdwg.mxu0
      %v2584 = vsel %vm1677, %v2051, 0
      %v2587 = vsel %vm1677, %v2083, 0
      %2589 = vmatpush.bf16.xpose.msra.mxu0 0
      %2590 = vmatpush.bf16.xpose.msra.mxu0 0
      %2591 = vmatpush.bf16.xpose.msra.mxu0 0
      %2592 = vmatpush.bf16.xpose.msra.mxu0 0
      %2593 = vmatpush.bf16.xpose.msra.mxu0 0
      %2594 = vmatpush.bf16.xpose.msra.mxu0 0
      %2595 = vmatpush.bf16.xpose.msra.mxu0 0
      %2596 = vmatpush.bf16.xpose.msra.mxu0 %v2587
      %2597 = vmatmul.bf16.gmra.mxu0 %v2584
      %v2598 = vpop.f32.mrf.mxu0
      %v2599 = vadd.f32 0.0, %v2598
      %v2600 = vpop.f32.mrf.mxu0
      %2601 = vdwg.mxu0
      %v2603 = vsel %vm1677, %v2052, 0
      %v2606 = vsel %vm1677, %v2084, 0
      %2608 = vmatpush.bf16.xpose.msra.mxu0 0
      %2609 = vmatpush.bf16.xpose.msra.mxu0 0
      %2610 = vmatpush.bf16.xpose.msra.mxu0 0
      %2611 = vmatpush.bf16.xpose.msra.mxu0 0
      %2612 = vmatpush.bf16.xpose.msra.mxu0 0
      %2613 = vmatpush.bf16.xpose.msra.mxu0 0
      %2614 = vmatpush.bf16.xpose.msra.mxu0 0
      %2615 = vmatpush.bf16.xpose.msra.mxu0 %v2606
      %2616 = vmatmul.bf16.gmra.mxu0 %v2603
      %v2617 = vpop.f32.mrf.mxu0
      %v2618 = vadd.f32 0.0, %v2617
      %v2619 = vpop.f32.mrf.mxu0
      %2620 = vdwg.mxu0
      %v2622 = vsel %vm1677, %v2053, 0
      %v2625 = vsel %vm1677, %v2085, 0
      %2627 = vmatpush.bf16.xpose.msra.mxu0 0
      %2628 = vmatpush.bf16.xpose.msra.mxu0 0
      %2629 = vmatpush.bf16.xpose.msra.mxu0 0
      %2630 = vmatpush.bf16.xpose.msra.mxu0 0
      %2631 = vmatpush.bf16.xpose.msra.mxu0 0
      %2632 = vmatpush.bf16.xpose.msra.mxu0 0
      %2633 = vmatpush.bf16.xpose.msra.mxu0 0
      %2634 = vmatpush.bf16.xpose.msra.mxu0 %v2625
      %2635 = vmatmul.bf16.gmra.mxu0 %v2622
      %v2636 = vpop.f32.mrf.mxu0
      %v2637 = vadd.f32 0.0, %v2636
      %v2638 = vpop.f32.mrf.mxu0
      %2639 = vdwg.mxu0
      %v2641 = vsel %vm1677, %v2054, 0
      %v2644 = vsel %vm1677, %v2086, 0
      %2646 = vmatpush.bf16.xpose.msra.mxu0 0
      %2647 = vmatpush.bf16.xpose.msra.mxu0 0
      %2648 = vmatpush.bf16.xpose.msra.mxu0 0
      %2649 = vmatpush.bf16.xpose.msra.mxu0 0
      %2650 = vmatpush.bf16.xpose.msra.mxu0 0
      %2651 = vmatpush.bf16.xpose.msra.mxu0 0
      %2652 = vmatpush.bf16.xpose.msra.mxu0 0
      %2653 = vmatpush.bf16.xpose.msra.mxu0 %v2644
      %2654 = vmatmul.bf16.gmra.mxu0 %v2641
      %v2655 = vpop.f32.mrf.mxu0
      %v2656 = vadd.f32 0.0, %v2655
      %v2657 = vpop.f32.mrf.mxu0
      %2658 = vdwg.mxu0
      %v2660 = vsel %vm1677, %v2055, 0
      %v2663 = vsel %vm1677, %v2087, 0
      %2665 = vmatpush.bf16.xpose.msra.mxu0 0
      %2666 = vmatpush.bf16.xpose.msra.mxu0 0
      %2667 = vmatpush.bf16.xpose.msra.mxu0 0
      %2668 = vmatpush.bf16.xpose.msra.mxu0 0
      %2669 = vmatpush.bf16.xpose.msra.mxu0 0
      %2670 = vmatpush.bf16.xpose.msra.mxu0 0
      %2671 = vmatpush.bf16.xpose.msra.mxu0 0
      %2672 = vmatpush.bf16.xpose.msra.mxu0 %v2663
      %2673 = vmatmul.bf16.gmra.mxu0 %v2660
      %v2674 = vpop.f32.mrf.mxu0
      %v2675 = vadd.f32 0.0, %v2674
      %v2676 = vpop.f32.mrf.mxu0
      %2677 = vdwg.mxu0
      %v2679 = vsel %vm1677, %v2056, 0
      %v2682 = vsel %vm1677, %v2088, 0
      %2684 = vmatpush.bf16.xpose.msra.mxu0 0
      %2685 = vmatpush.bf16.xpose.msra.mxu0 0
      %2686 = vmatpush.bf16.xpose.msra.mxu0 0
      %2687 = vmatpush.bf16.xpose.msra.mxu0 0
      %2688 = vmatpush.bf16.xpose.msra.mxu0 0
      %2689 = vmatpush.bf16.xpose.msra.mxu0 0
      %2690 = vmatpush.bf16.xpose.msra.mxu0 0
      %2691 = vmatpush.bf16.xpose.msra.mxu0 %v2682
      %2692 = vmatmul.bf16.gmra.mxu0 %v2679
      %v2693 = vpop.f32.mrf.mxu0
      %v2694 = vadd.f32 0.0, %v2693
      %v2695 = vpop.f32.mrf.mxu0
      %2696 = vdwg.mxu0
      %v2697 = vmul.f32 %v2105, 0.17677669
      %v2698 = vmul.f32 %v2124, 0.17677669
      %v2699 = vmul.f32 %v2143, 0.17677669
      %v2700 = vmul.f32 %v2162, 0.17677669
      %v2701 = vmul.f32 %v2181, 0.17677669
      %v2702 = vmul.f32 %v2200, 0.17677669
      %v2703 = vmul.f32 %v2219, 0.17677669
      %v2704 = vmul.f32 %v2238, 0.17677669
      %v2705 = vmul.f32 %v2257, 0.17677669
      %v2706 = vmul.f32 %v2276, 0.17677669
      %v2707 = vmul.f32 %v2295, 0.17677669
      %v2708 = vmul.f32 %v2314, 0.17677669
      %v2709 = vmul.f32 %v2333, 0.17677669
      %v2710 = vmul.f32 %v2352, 0.17677669
      %v2711 = vmul.f32 %v2371, 0.17677669
      %v2712 = vmul.f32 %v2390, 0.17677669
      %v2713 = vmul.f32 %v2409, 0.17677669
      %v2714 = vmul.f32 %v2428, 0.17677669
      %v2715 = vmul.f32 %v2447, 0.17677669
      %v2716 = vmul.f32 %v2466, 0.17677669
      %v2717 = vmul.f32 %v2485, 0.17677669
      %v2718 = vmul.f32 %v2504, 0.17677669
      %v2719 = vmul.f32 %v2523, 0.17677669
      %v2720 = vmul.f32 %v2542, 0.17677669
      %v2721 = vmul.f32 %v2561, 0.17677669
      %v2722 = vmul.f32 %v2580, 0.17677669
      %v2723 = vmul.f32 %v2599, 0.17677669
      %v2724 = vmul.f32 %v2618, 0.17677669
      %v2725 = vmul.f32 %v2637, 0.17677669
      %v2726 = vmul.f32 %v2656, 0.17677669
      %v2727 = vmul.f32 %v2675, 0.17677669
      %v2728 = vmul.f32 %v2694, 0.17677669
      %v2729 = vld [vmem:[%s704] sm:$0x1]
      %v2730 = vld [vmem:[%s704 + $0x1] sm:$0x1]
      %v2731 = vld [vmem:[%s704 + $0x2] sm:$0x1]
      %v2732 = vld [vmem:[%s704 + $0x3] sm:$0x1]
      %v2733 = vld [vmem:[%s704 + $0x4] sm:$0x1]
      %v2734 = vld [vmem:[%s704 + $0x5] sm:$0x1]
      %v2735 = vld [vmem:[%s704 + $0x6] sm:$0x1]
      %v2736 = vld [vmem:[%s704 + $0x7] sm:$0x1]
      %v2737 = vld [vmem:[%s704 + $0x8] sm:$0x1]
      %v2738 = vld [vmem:[%s704 + $0x9] sm:$0x1]
      %v2739 = vld [vmem:[%s704 + $0xa] sm:$0x1]
      %v2740 = vld [vmem:[%s704 + $0xb] sm:$0x1]
      %v2741 = vld [vmem:[%s704 + $0xc] sm:$0x1]
      %v2742 = vld [vmem:[%s704 + $0xd] sm:$0x1]
      %v2743 = vld [vmem:[%s704 + $0xe] sm:$0x1]
      %v2744 = vld [vmem:[%s704 + $0xf] sm:$0x1]
      %v2745 = vld [vmem:[%s704 + $0x10] sm:$0x1]
      %v2746 = vld [vmem:[%s704 + $0x11] sm:$0x1]
      %v2747 = vld [vmem:[%s704 + $0x12] sm:$0x1]
      %v2748 = vld [vmem:[%s704 + $0x13] sm:$0x1]
      %v2749 = vld [vmem:[%s704 + $0x14] sm:$0x1]
      %v2750 = vld [vmem:[%s704 + $0x15] sm:$0x1]
      %v2751 = vld [vmem:[%s704 + $0x16] sm:$0x1]
      %v2752 = vld [vmem:[%s704 + $0x17] sm:$0x1]
      %v2753 = vld [vmem:[%s704 + $0x18] sm:$0x1]
      %v2754 = vld [vmem:[%s704 + $0x19] sm:$0x1]
      %v2755 = vld [vmem:[%s704 + $0x1a] sm:$0x1]
      %v2756 = vld [vmem:[%s704 + $0x1b] sm:$0x1]
      %v2757 = vld [vmem:[%s704 + $0x1c] sm:$0x1]
      %v2758 = vld [vmem:[%s704 + $0x1d] sm:$0x1]
      %v2759 = vld [vmem:[%s704 + $0x1e] sm:$0x1]
      %v2760 = vld [vmem:[%s704 + $0x1f] sm:$0x1]
      %v2793 = vperm.slane %v2729, 0
      %v2794 = vperm.slane %v2730, 0
      %v2795 = vperm.slane %v2731, 0
      %v2796 = vperm.slane %v2732, 0
      %v2797 = vperm.slane %v2733, 0
      %v2798 = vperm.slane %v2734, 0
      %v2799 = vperm.slane %v2735, 0
      %v2800 = vperm.slane %v2736, 0
      %v2801 = vperm.slane %v2737, 0
      %v2802 = vperm.slane %v2738, 0
      %v2803 = vperm.slane %v2739, 0
      %v2804 = vperm.slane %v2740, 0
      %v2805 = vperm.slane %v2741, 0
      %v2806 = vperm.slane %v2742, 0
      %v2807 = vperm.slane %v2743, 0
      %v2808 = vperm.slane %v2744, 0
      %v2809 = vperm.slane %v2745, 0
      %v2810 = vperm.slane %v2746, 0
      %v2811 = vperm.slane %v2747, 0
      %v2812 = vperm.slane %v2748, 0
      %v2813 = vperm.slane %v2749, 0
      %v2814 = vperm.slane %v2750, 0
      %v2815 = vperm.slane %v2751, 0
      %v2816 = vperm.slane %v2752, 0
      %v2817 = vperm.slane %v2753, 0
      %v2818 = vperm.slane %v2754, 0
      %v2819 = vperm.slane %v2755, 0
      %v2820 = vperm.slane %v2756, 0
      %v2821 = vperm.slane %v2757, 0
      %v2822 = vperm.slane %v2758, 0
      %v2823 = vperm.slane %v2759, 0
      %v2824 = vperm.slane %v2760, 0
      %v2857 = vadd.f32 %v2697, %v2793
      %v2858 = vadd.f32 %v2698, %v2794
      %v2859 = vadd.f32 %v2699, %v2795
      %v2860 = vadd.f32 %v2700, %v2796
      %v2861 = vadd.f32 %v2701, %v2797
      %v2862 = vadd.f32 %v2702, %v2798
      %v2863 = vadd.f32 %v2703, %v2799
      %v2864 = vadd.f32 %v2704, %v2800
      %v2865 = vadd.f32 %v2705, %v2801
      %v2866 = vadd.f32 %v2706, %v2802
      %v2867 = vadd.f32 %v2707, %v2803
      %v2868 = vadd.f32 %v2708, %v2804
      %v2869 = vadd.f32 %v2709, %v2805
      %v2870 = vadd.f32 %v2710, %v2806
      %v2871 = vadd.f32 %v2711, %v2807
      %v2872 = vadd.f32 %v2712, %v2808
      %v2873 = vadd.f32 %v2713, %v2809
      %v2874 = vadd.f32 %v2714, %v2810
      %v2875 = vadd.f32 %v2715, %v2811
      %v2876 = vadd.f32 %v2716, %v2812
      %v2877 = vadd.f32 %v2717, %v2813
      %v2878 = vadd.f32 %v2718, %v2814
      %v2879 = vadd.f32 %v2719, %v2815
      %v2880 = vadd.f32 %v2720, %v2816
      %v2881 = vadd.f32 %v2721, %v2817
      %v2882 = vadd.f32 %v2722, %v2818
      %v2883 = vadd.f32 %v2723, %v2819
      %v2884 = vadd.f32 %v2724, %v2820
      %v2885 = vadd.f32 %v2725, %v2821
      %v2886 = vadd.f32 %v2726, %v2822
      %v2887 = vadd.f32 %v2727, %v2823
      %v2888 = vadd.f32 %v2728, %v2824
      %vm2889 = vcmask 64512
      %v2890 = vsel %vm2889, %v2857, -inf
      %2891 = vmax.xlane.f32.xlu0 %v2890
      %v2892 = vpop.xlane.xlu0 %2891
      %v2893 = vsel %vm2889, %v2858, -inf
      %2894 = vmax.xlane.f32.xlu0 %v2893
      %v2895 = vpop.xlane.xlu0 %2894
      %v2896 = vsel %vm2889, %v2859, -inf
      %2897 = vmax.xlane.f32.xlu0 %v2896
      %v2898 = vpop.xlane.xlu0 %2897
      %v2899 = vsel %vm2889, %v2860, -inf
      %2900 = vmax.xlane.f32.xlu0 %v2899
      %v2901 = vpop.xlane.xlu0 %2900
      %v2902 = vsel %vm2889, %v2861, -inf
      %2903 = vmax.xlane.f32.xlu0 %v2902
      %v2904 = vpop.xlane.xlu0 %2903
      %v2905 = vsel %vm2889, %v2862, -inf
      %2906 = vmax.xlane.f32.xlu0 %v2905
      %v2907 = vpop.xlane.xlu0 %2906
      %v2908 = vsel %vm2889, %v2863, -inf
      %2909 = vmax.xlane.f32.xlu0 %v2908
      %v2910 = vpop.xlane.xlu0 %2909
      %v2911 = vsel %vm2889, %v2864, -inf
      %2912 = vmax.xlane.f32.xlu0 %v2911
      %v2913 = vpop.xlane.xlu0 %2912
      %v2914 = vsel %vm2889, %v2865, -inf
      %2915 = vmax.xlane.f32.xlu0 %v2914
      %v2916 = vpop.xlane.xlu0 %2915
      %v2917 = vsel %vm2889, %v2866, -inf
      %2918 = vmax.xlane.f32.xlu0 %v2917
      %v2919 = vpop.xlane.xlu0 %2918
      %v2920 = vsel %vm2889, %v2867, -inf
      %2921 = vmax.xlane.f32.xlu0 %v2920
      %v2922 = vpop.xlane.xlu0 %2921
      %v2923 = vsel %vm2889, %v2868, -inf
      %2924 = vmax.xlane.f32.xlu0 %v2923
      %v2925 = vpop.xlane.xlu0 %2924
      %v2926 = vsel %vm2889, %v2869, -inf
      %2927 = vmax.xlane.f32.xlu0 %v2926
      %v2928 = vpop.xlane.xlu0 %2927
      %v2929 = vsel %vm2889, %v2870, -inf
      %2930 = vmax.xlane.f32.xlu0 %v2929
      %v2931 = vpop.xlane.xlu0 %2930
      %v2932 = vsel %vm2889, %v2871, -inf
      %2933 = vmax.xlane.f32.xlu0 %v2932
      %v2934 = vpop.xlane.xlu0 %2933
      %v2935 = vsel %vm2889, %v2872, -inf
      %2936 = vmax.xlane.f32.xlu0 %v2935
      %v2937 = vpop.xlane.xlu0 %2936
      %v2938 = vsel %vm2889, %v2873, -inf
      %2939 = vmax.xlane.f32.xlu0 %v2938
      %v2940 = vpop.xlane.xlu0 %2939
      %v2941 = vsel %vm2889, %v2874, -inf
      %2942 = vmax.xlane.f32.xlu0 %v2941
      %v2943 = vpop.xlane.xlu0 %2942
      %v2944 = vsel %vm2889, %v2875, -inf
      %2945 = vmax.xlane.f32.xlu0 %v2944
      %v2946 = vpop.xlane.xlu0 %2945
      %v2947 = vsel %vm2889, %v2876, -inf
      %2948 = vmax.xlane.f32.xlu0 %v2947
      %v2949 = vpop.xlane.xlu0 %2948
      %v2950 = vsel %vm2889, %v2877, -inf
      %2951 = vmax.xlane.f32.xlu0 %v2950
      %v2952 = vpop.xlane.xlu0 %2951
      %v2953 = vsel %vm2889, %v2878, -inf
      %2954 = vmax.xlane.f32.xlu0 %v2953
      %v2955 = vpop.xlane.xlu0 %2954
      %v2956 = vsel %vm2889, %v2879, -inf
      %2957 = vmax.xlane.f32.xlu0 %v2956
      %v2958 = vpop.xlane.xlu0 %2957
      %v2959 = vsel %vm2889, %v2880, -inf
      %2960 = vmax.xlane.f32.xlu0 %v2959
      %v2961 = vpop.xlane.xlu0 %2960
      %v2962 = vsel %vm2889, %v2881, -inf
      %2963 = vmax.xlane.f32.xlu0 %v2962
      %v2964 = vpop.xlane.xlu0 %2963
      %v2965 = vsel %vm2889, %v2882, -inf
      %2966 = vmax.xlane.f32.xlu0 %v2965
      %v2967 = vpop.xlane.xlu0 %2966
      %v2968 = vsel %vm2889, %v2883, -inf
      %2969 = vmax.xlane.f32.xlu0 %v2968
      %v2970 = vpop.xlane.xlu0 %2969
      %v2971 = vsel %vm2889, %v2884, -inf
      %2972 = vmax.xlane.f32.xlu0 %v2971
      %v2973 = vpop.xlane.xlu0 %2972
      %v2974 = vsel %vm2889, %v2885, -inf
      %2975 = vmax.xlane.f32.xlu0 %v2974
      %v2976 = vpop.xlane.xlu0 %2975
      %v2977 = vsel %vm2889, %v2886, -inf
      %2978 = vmax.xlane.f32.xlu0 %v2977
      %v2979 = vpop.xlane.xlu0 %2978
      %v2980 = vsel %vm2889, %v2887, -inf
      %2981 = vmax.xlane.f32.xlu0 %v2980
      %v2982 = vpop.xlane.xlu0 %2981
      %v2983 = vsel %vm2889, %v2888, -inf
      %2984 = vmax.xlane.f32.xlu0 %v2983
      %v2985 = vpop.xlane.xlu0 %2984
      %v2986 = vsub.f32 %v2857, %v2892
      %v2987 = vsub.f32 %v2858, %v2895
      %v2988 = vsub.f32 %v2859, %v2898
      %v2989 = vsub.f32 %v2860, %v2901
      %v2990 = vsub.f32 %v2861, %v2904
      %v2991 = vsub.f32 %v2862, %v2907
      %v2992 = vsub.f32 %v2863, %v2910
      %v2993 = vsub.f32 %v2864, %v2913
      %v2994 = vsub.f32 %v2865, %v2916
      %v2995 = vsub.f32 %v2866, %v2919
      %v2996 = vsub.f32 %v2867, %v2922
      %v2997 = vsub.f32 %v2868, %v2925
      %v2998 = vsub.f32 %v2869, %v2928
      %v2999 = vsub.f32 %v2870, %v2931
      %v3000 = vsub.f32 %v2871, %v2934
      %v3001 = vsub.f32 %v2872, %v2937
      %v3002 = vsub.f32 %v2873, %v2940
      %v3003 = vsub.f32 %v2874, %v2943
      %v3004 = vsub.f32 %v2875, %v2946
      %v3005 = vsub.f32 %v2876, %v2949
      %v3006 = vsub.f32 %v2877, %v2952
      %v3007 = vsub.f32 %v2878, %v2955
      %v3008 = vsub.f32 %v2879, %v2958
      %v3009 = vsub.f32 %v2880, %v2961
      %v3010 = vsub.f32 %v2881, %v2964
      %v3011 = vsub.f32 %v2882, %v2967
      %v3012 = vsub.f32 %v2883, %v2970
      %v3013 = vsub.f32 %v2884, %v2973
      %v3014 = vsub.f32 %v2885, %v2976
      %v3015 = vsub.f32 %v2886, %v2979
      %v3016 = vsub.f32 %v2887, %v2982
      %v3017 = vsub.f32 %v2888, %v2985
      %v3018 = vmul.f32 %v2986, 1.442695
      %v3019 = vpow.pop %v3018
      %v3020 = vmul.f32 %v2987, 1.442695
      %v3021 = vpow.pop %v3020
      %v3022 = vmul.f32 %v2988, 1.442695
      %v3023 = vpow.pop %v3022
      %v3024 = vmul.f32 %v2989, 1.442695
      %v3025 = vpow.pop %v3024
      %v3026 = vmul.f32 %v2990, 1.442695
      %v3027 = vpow.pop %v3026
      %v3028 = vmul.f32 %v2991, 1.442695
      %v3029 = vpow.pop %v3028
      %v3030 = vmul.f32 %v2992, 1.442695
      %v3031 = vpow.pop %v3030
      %v3032 = vmul.f32 %v2993, 1.442695
      %v3033 = vpow.pop %v3032
      %v3034 = vmul.f32 %v2994, 1.442695
      %v3035 = vpow.pop %v3034
      %v3036 = vmul.f32 %v2995, 1.442695
      %v3037 = vpow.pop %v3036
      %v3038 = vmul.f32 %v2996, 1.442695
      %v3039 = vpow.pop %v3038
      %v3040 = vmul.f32 %v2997, 1.442695
      %v3041 = vpow.pop %v3040
      %v3042 = vmul.f32 %v2998, 1.442695
      %v3043 = vpow.pop %v3042
      %v3044 = vmul.f32 %v2999, 1.442695
      %v3045 = vpow.pop %v3044
      %v3046 = vmul.f32 %v3000, 1.442695
      %v3047 = vpow.pop %v3046
      %v3048 = vmul.f32 %v3001, 1.442695
      %v3049 = vpow.pop %v3048
      %v3050 = vmul.f32 %v3002, 1.442695
      %v3051 = vpow.pop %v3050
      %v3052 = vmul.f32 %v3003, 1.442695
      %v3053 = vpow.pop %v3052
      %v3054 = vmul.f32 %v3004, 1.442695
      %v3055 = vpow.pop %v3054
      %v3056 = vmul.f32 %v3005, 1.442695
      %v3057 = vpow.pop %v3056
      %v3058 = vmul.f32 %v3006, 1.442695
      %v3059 = vpow.pop %v3058
      %v3060 = vmul.f32 %v3007, 1.442695
      %v3061 = vpow.pop %v3060
      %v3062 = vmul.f32 %v3008, 1.442695
      %v3063 = vpow.pop %v3062
      %v3064 = vmul.f32 %v3009, 1.442695
      %v3065 = vpow.pop %v3064
      %v3066 = vmul.f32 %v3010, 1.442695
      %v3067 = vpow.pop %v3066
      %v3068 = vmul.f32 %v3011, 1.442695
      %v3069 = vpow.pop %v3068
      %v3070 = vmul.f32 %v3012, 1.442695
      %v3071 = vpow.pop %v3070
      %v3072 = vmul.f32 %v3013, 1.442695
      %v3073 = vpow.pop %v3072
      %v3074 = vmul.f32 %v3014, 1.442695
      %v3075 = vpow.pop %v3074
      %v3076 = vmul.f32 %v3015, 1.442695
      %v3077 = vpow.pop %v3076
      %v3078 = vmul.f32 %v3016, 1.442695
      %v3079 = vpow.pop %v3078
      %v3080 = vmul.f32 %v3017, 1.442695
      %v3081 = vpow.pop %v3080
      %v3082 = vsel %vm2889, %v3019, 0.0
      %3083 = vadd.xlane.f32.xlu0 %v3082
      %v3084 = vpop.xlane.xlu0 %3083
      %v3085 = vsel %vm2889, %v3021, 0.0
      %3086 = vadd.xlane.f32.xlu0 %v3085
      %v3087 = vpop.xlane.xlu0 %3086
      %v3088 = vsel %vm2889, %v3023, 0.0
      %3089 = vadd.xlane.f32.xlu0 %v3088
      %v3090 = vpop.xlane.xlu0 %3089
      %v3091 = vsel %vm2889, %v3025, 0.0
      %3092 = vadd.xlane.f32.xlu0 %v3091
      %v3093 = vpop.xlane.xlu0 %3092
      %v3094 = vsel %vm2889, %v3027, 0.0
      %3095 = vadd.xlane.f32.xlu0 %v3094
      %v3096 = vpop.xlane.xlu0 %3095
      %v3097 = vsel %vm2889, %v3029, 0.0
      %3098 = vadd.xlane.f32.xlu0 %v3097
      %v3099 = vpop.xlane.xlu0 %3098
      %v3100 = vsel %vm2889, %v3031, 0.0
      %3101 = vadd.xlane.f32.xlu0 %v3100
      %v3102 = vpop.xlane.xlu0 %3101
      %v3103 = vsel %vm2889, %v3033, 0.0
      %3104 = vadd.xlane.f32.xlu0 %v3103
      %v3105 = vpop.xlane.xlu0 %3104
      %v3106 = vsel %vm2889, %v3035, 0.0
      %3107 = vadd.xlane.f32.xlu0 %v3106
      %v3108 = vpop.xlane.xlu0 %3107
      %v3109 = vsel %vm2889, %v3037, 0.0
      %3110 = vadd.xlane.f32.xlu0 %v3109
      %v3111 = vpop.xlane.xlu0 %3110
      %v3112 = vsel %vm2889, %v3039, 0.0
      %3113 = vadd.xlane.f32.xlu0 %v3112
      %v3114 = vpop.xlane.xlu0 %3113
      %v3115 = vsel %vm2889, %v3041, 0.0
      %3116 = vadd.xlane.f32.xlu0 %v3115
      %v3117 = vpop.xlane.xlu0 %3116
      %v3118 = vsel %vm2889, %v3043, 0.0
      %3119 = vadd.xlane.f32.xlu0 %v3118
      %v3120 = vpop.xlane.xlu0 %3119
      %v3121 = vsel %vm2889, %v3045, 0.0
      %3122 = vadd.xlane.f32.xlu0 %v3121
      %v3123 = vpop.xlane.xlu0 %3122
      %v3124 = vsel %vm2889, %v3047, 0.0
      %3125 = vadd.xlane.f32.xlu0 %v3124
      %v3126 = vpop.xlane.xlu0 %3125
      %v3127 = vsel %vm2889, %v3049, 0.0
      %3128 = vadd.xlane.f32.xlu0 %v3127
      %v3129 = vpop.xlane.xlu0 %3128
      %v3130 = vsel %vm2889, %v3051, 0.0
      %3131 = vadd.xlane.f32.xlu0 %v3130
      %v3132 = vpop.xlane.xlu0 %3131
      %v3133 = vsel %vm2889, %v3053, 0.0
      %3134 = vadd.xlane.f32.xlu0 %v3133
      %v3135 = vpop.xlane.xlu0 %3134
      %v3136 = vsel %vm2889, %v3055, 0.0
      %3137 = vadd.xlane.f32.xlu0 %v3136
      %v3138 = vpop.xlane.xlu0 %3137
      %v3139 = vsel %vm2889, %v3057, 0.0
      %3140 = vadd.xlane.f32.xlu0 %v3139
      %v3141 = vpop.xlane.xlu0 %3140
      %v3142 = vsel %vm2889, %v3059, 0.0
      %3143 = vadd.xlane.f32.xlu0 %v3142
      %v3144 = vpop.xlane.xlu0 %3143
      %v3145 = vsel %vm2889, %v3061, 0.0
      %3146 = vadd.xlane.f32.xlu0 %v3145
      %v3147 = vpop.xlane.xlu0 %3146
      %v3148 = vsel %vm2889, %v3063, 0.0
      %3149 = vadd.xlane.f32.xlu0 %v3148
      %v3150 = vpop.xlane.xlu0 %3149
      %v3151 = vsel %vm2889, %v3065, 0.0
      %3152 = vadd.xlane.f32.xlu0 %v3151
      %v3153 = vpop.xlane.xlu0 %3152
      %v3154 = vsel %vm2889, %v3067, 0.0
      %3155 = vadd.xlane.f32.xlu0 %v3154
      %v3156 = vpop.xlane.xlu0 %3155
      %v3157 = vsel %vm2889, %v3069, 0.0
      %3158 = vadd.xlane.f32.xlu0 %v3157
      %v3159 = vpop.xlane.xlu0 %3158
      %v3160 = vsel %vm2889, %v3071, 0.0
      %3161 = vadd.xlane.f32.xlu0 %v3160
      %v3162 = vpop.xlane.xlu0 %3161
      %v3163 = vsel %vm2889, %v3073, 0.0
      %3164 = vadd.xlane.f32.xlu0 %v3163
      %v3165 = vpop.xlane.xlu0 %3164
      %v3166 = vsel %vm2889, %v3075, 0.0
      %3167 = vadd.xlane.f32.xlu0 %v3166
      %v3168 = vpop.xlane.xlu0 %3167
      %v3169 = vsel %vm2889, %v3077, 0.0
      %3170 = vadd.xlane.f32.xlu0 %v3169
      %v3171 = vpop.xlane.xlu0 %3170
      %v3172 = vsel %vm2889, %v3079, 0.0
      %3173 = vadd.xlane.f32.xlu0 %v3172
      %v3174 = vpop.xlane.xlu0 %3173
      %v3175 = vsel %vm2889, %v3081, 0.0
      %3176 = vadd.xlane.f32.xlu0 %v3175
      %v3177 = vpop.xlane.xlu0 %3176
      %v3178 = vrcp.pop %v3084
      %v3179 = vrcp.pop %v3087
      %v3180 = vrcp.pop %v3090
      %v3181 = vrcp.pop %v3093
      %v3182 = vrcp.pop %v3096
      %v3183 = vrcp.pop %v3099
      %v3184 = vrcp.pop %v3102
      %v3185 = vrcp.pop %v3105
      %v3186 = vrcp.pop %v3108
      %v3187 = vrcp.pop %v3111
      %v3188 = vrcp.pop %v3114
      %v3189 = vrcp.pop %v3117
      %v3190 = vrcp.pop %v3120
      %v3191 = vrcp.pop %v3123
      %v3192 = vrcp.pop %v3126
      %v3193 = vrcp.pop %v3129
      %v3194 = vrcp.pop %v3132
      %v3195 = vrcp.pop %v3135
      %v3196 = vrcp.pop %v3138
      %v3197 = vrcp.pop %v3141
      %v3198 = vrcp.pop %v3144
      %v3199 = vrcp.pop %v3147
      %v3200 = vrcp.pop %v3150
      %v3201 = vrcp.pop %v3153
      %v3202 = vrcp.pop %v3156
      %v3203 = vrcp.pop %v3159
      %v3204 = vrcp.pop %v3162
      %v3205 = vrcp.pop %v3165
      %v3206 = vrcp.pop %v3168
      %v3207 = vrcp.pop %v3171
      %v3208 = vrcp.pop %v3174
      %v3209 = vrcp.pop %v3177
      %v3210 = vmul.f32 %v3019, %v3178
      %v3211 = vmul.f32 %v3021, %v3179
      %v3212 = vmul.f32 %v3023, %v3180
      %v3213 = vmul.f32 %v3025, %v3181
      %v3214 = vmul.f32 %v3027, %v3182
      %v3215 = vmul.f32 %v3029, %v3183
      %v3216 = vmul.f32 %v3031, %v3184
      %v3217 = vmul.f32 %v3033, %v3185
      %v3218 = vmul.f32 %v3035, %v3186
      %v3219 = vmul.f32 %v3037, %v3187
      %v3220 = vmul.f32 %v3039, %v3188
      %v3221 = vmul.f32 %v3041, %v3189
      %v3222 = vmul.f32 %v3043, %v3190
      %v3223 = vmul.f32 %v3045, %v3191
      %v3224 = vmul.f32 %v3047, %v3192
      %v3225 = vmul.f32 %v3049, %v3193
      %v3226 = vmul.f32 %v3051, %v3194
      %v3227 = vmul.f32 %v3053, %v3195
      %v3228 = vmul.f32 %v3055, %v3196
      %v3229 = vmul.f32 %v3057, %v3197
      %v3230 = vmul.f32 %v3059, %v3198
      %v3231 = vmul.f32 %v3061, %v3199
      %v3232 = vmul.f32 %v3063, %v3200
      %v3233 = vmul.f32 %v3065, %v3201
      %v3234 = vmul.f32 %v3067, %v3202
      %v3235 = vmul.f32 %v3069, %v3203
      %v3236 = vmul.f32 %v3071, %v3204
      %v3237 = vmul.f32 %v3073, %v3205
      %v3238 = vmul.f32 %v3075, %v3206
      %v3239 = vmul.f32 %v3077, %v3207
      %v3240 = vmul.f32 %v3079, %v3208
      %v3241 = vmul.f32 %v3081, %v3209
      %v3242 = vpack.c.bf16 %v3210, %v3210
      %v3243 = vpack.c.bf16 %v3211, %v3211
      %v3244 = vpack.c.bf16 %v3212, %v3212
      %v3245 = vpack.c.bf16 %v3213, %v3213
      %v3246 = vpack.c.bf16 %v3214, %v3214
      %v3247 = vpack.c.bf16 %v3215, %v3215
      %v3248 = vpack.c.bf16 %v3216, %v3216
      %v3249 = vpack.c.bf16 %v3217, %v3217
      %v3250 = vpack.c.bf16 %v3218, %v3218
      %v3251 = vpack.c.bf16 %v3219, %v3219
      %v3252 = vpack.c.bf16 %v3220, %v3220
      %v3253 = vpack.c.bf16 %v3221, %v3221
      %v3254 = vpack.c.bf16 %v3222, %v3222
      %v3255 = vpack.c.bf16 %v3223, %v3223
      %v3256 = vpack.c.bf16 %v3224, %v3224
      %v3257 = vpack.c.bf16 %v3225, %v3225
      %v3258 = vpack.c.bf16 %v3226, %v3226
      %v3259 = vpack.c.bf16 %v3227, %v3227
      %v3260 = vpack.c.bf16 %v3228, %v3228
      %v3261 = vpack.c.bf16 %v3229, %v3229
      %v3262 = vpack.c.bf16 %v3230, %v3230
      %v3263 = vpack.c.bf16 %v3231, %v3231
      %v3264 = vpack.c.bf16 %v3232, %v3232
      %v3265 = vpack.c.bf16 %v3233, %v3233
      %v3266 = vpack.c.bf16 %v3234, %v3234
      %v3267 = vpack.c.bf16 %v3235, %v3235
      %v3268 = vpack.c.bf16 %v3236, %v3236
      %v3269 = vpack.c.bf16 %v3237, %v3237
      %v3270 = vpack.c.bf16 %v3238, %v3238
      %v3271 = vpack.c.bf16 %v3239, %v3239
      %v3272 = vpack.c.bf16 %v3240, %v3240
      %v3273 = vpack.c.bf16 %v3241, %v3241
      %v3274 = vpack.c.bf16 %v1946, %v1946
      %v3275 = vpack.c.bf16 %v1948, %v1948
      %v3276 = vpack.c.bf16 %v1951, %v1951
      %v3277 = vpack.c.bf16 %v1953, %v1953
      %v3278 = vpack.c.bf16 %v1956, %v1956
      %v3279 = vpack.c.bf16 %v1958, %v1958
      %v3280 = vpack.c.bf16 %v1961, %v1961
      %v3281 = vpack.c.bf16 %v1963, %v1963
      %v3282 = vpack.c.bf16 %v1966, %v1966
      %v3283 = vpack.c.bf16 %v1968, %v1968
      %v3284 = vpack.c.bf16 %v1971, %v1971
      %v3285 = vpack.c.bf16 %v1973, %v1973
      %v3286 = vpack.c.bf16 %v1976, %v1976
      %v3287 = vpack.c.bf16 %v1978, %v1978
      %v3288 = vpack.c.bf16 %v1981, %v1981
      %v3289 = vpack.c.bf16 %v1983, %v1983
      %v3290 = vpack.c.bf16 %v1986, %v1986
      %v3291 = vpack.c.bf16 %v1988, %v1988
      %v3292 = vpack.c.bf16 %v1991, %v1991
      %v3293 = vpack.c.bf16 %v1993, %v1993
      %v3294 = vpack.c.bf16 %v1996, %v1996
      %v3295 = vpack.c.bf16 %v1998, %v1998
      %v3296 = vpack.c.bf16 %v2001, %v2001
      %v3297 = vpack.c.bf16 %v2003, %v2003
      %v3298 = vpack.c.bf16 %v2006, %v2006
      %v3299 = vpack.c.bf16 %v2008, %v2008
      %v3300 = vpack.c.bf16 %v2011, %v2011
      %v3301 = vpack.c.bf16 %v2013, %v2013
      %v3302 = vpack.c.bf16 %v2016, %v2016
      %v3303 = vpack.c.bf16 %v2018, %v2018
      %v3304 = vpack.c.bf16 %v2021, %v2021
      %v3305 = vpack.c.bf16 %v2023, %v2023
      %v3307 = vsel %vm2889, %v3242, 0
      %vm3309 = vcmask 1043456
      %v3311 = vsel %vm3309, %v3274, 0
      %3313 = vmatpush.bf16.msra.mxu0 0
      %3314 = vmatpush.bf16.msra.mxu0 0
      %3315 = vmatpush.bf16.msra.mxu0 0
      %3316 = vmatpush.bf16.msra.mxu0 0
      %3317 = vmatpush.bf16.msra.mxu0 0
      %3318 = vmatpush.bf16.msra.mxu0 0
      %3319 = vmatpush.bf16.msra.mxu0 0
      %3320 = vmatpush.bf16.msra.mxu0 %v3311
      %3321 = vmatmul.bf16.gmra.mxu0 %v3307
      %v3322 = vpop.f32.mrf.mxu0
      %v3323 = vadd.f32 0.0, %v3322
      %v3324 = vpop.f32.mrf.mxu0
      %3325 = vdwg.mxu0
      %v3327 = vsel %vm2889, %v3243, 0
      %v3330 = vsel %vm3309, %v3275, 0
      %3332 = vmatpush.bf16.msra.mxu0 0
      %3333 = vmatpush.bf16.msra.mxu0 0
      %3334 = vmatpush.bf16.msra.mxu0 0
      %3335 = vmatpush.bf16.msra.mxu0 0
      %3336 = vmatpush.bf16.msra.mxu0 0
      %3337 = vmatpush.bf16.msra.mxu0 0
      %3338 = vmatpush.bf16.msra.mxu0 0
      %3339 = vmatpush.bf16.msra.mxu0 %v3330
      %3340 = vmatmul.bf16.gmra.mxu0 %v3327
      %v3341 = vpop.f32.mrf.mxu0
      %v3342 = vadd.f32 0.0, %v3341
      %v3343 = vpop.f32.mrf.mxu0
      %3344 = vdwg.mxu0
      %v3346 = vsel %vm2889, %v3244, 0
      %v3349 = vsel %vm3309, %v3276, 0
      %3351 = vmatpush.bf16.msra.mxu0 0
      %3352 = vmatpush.bf16.msra.mxu0 0
      %3353 = vmatpush.bf16.msra.mxu0 0
      %3354 = vmatpush.bf16.msra.mxu0 0
      %3355 = vmatpush.bf16.msra.mxu0 0
      %3356 = vmatpush.bf16.msra.mxu0 0
      %3357 = vmatpush.bf16.msra.mxu0 0
      %3358 = vmatpush.bf16.msra.mxu0 %v3349
      %3359 = vmatmul.bf16.gmra.mxu0 %v3346
      %v3360 = vpop.f32.mrf.mxu0
      %v3361 = vadd.f32 0.0, %v3360
      %v3362 = vpop.f32.mrf.mxu0
      %3363 = vdwg.mxu0
      %v3365 = vsel %vm2889, %v3245, 0
      %v3368 = vsel %vm3309, %v3277, 0
      %3370 = vmatpush.bf16.msra.mxu0 0
      %3371 = vmatpush.bf16.msra.mxu0 0
      %3372 = vmatpush.bf16.msra.mxu0 0
      %3373 = vmatpush.bf16.msra.mxu0 0
      %3374 = vmatpush.bf16.msra.mxu0 0
      %3375 = vmatpush.bf16.msra.mxu0 0
      %3376 = vmatpush.bf16.msra.mxu0 0
      %3377 = vmatpush.bf16.msra.mxu0 %v3368
      %3378 = vmatmul.bf16.gmra.mxu0 %v3365
      %v3379 = vpop.f32.mrf.mxu0
      %v3380 = vadd.f32 0.0, %v3379
      %v3381 = vpop.f32.mrf.mxu0
      %3382 = vdwg.mxu0
      %v3384 = vsel %vm2889, %v3246, 0
      %v3387 = vsel %vm3309, %v3278, 0
      %3389 = vmatpush.bf16.msra.mxu0 0
      %3390 = vmatpush.bf16.msra.mxu0 0
      %3391 = vmatpush.bf16.msra.mxu0 0
      %3392 = vmatpush.bf16.msra.mxu0 0
      %3393 = vmatpush.bf16.msra.mxu0 0
      %3394 = vmatpush.bf16.msra.mxu0 0
      %3395 = vmatpush.bf16.msra.mxu0 0
      %3396 = vmatpush.bf16.msra.mxu0 %v3387
      %3397 = vmatmul.bf16.gmra.mxu0 %v3384
      %v3398 = vpop.f32.mrf.mxu0
      %v3399 = vadd.f32 0.0, %v3398
      %v3400 = vpop.f32.mrf.mxu0
      %3401 = vdwg.mxu0
      %v3403 = vsel %vm2889, %v3247, 0
      %v3406 = vsel %vm3309, %v3279, 0
      %3408 = vmatpush.bf16.msra.mxu0 0
      %3409 = vmatpush.bf16.msra.mxu0 0
      %3410 = vmatpush.bf16.msra.mxu0 0
      %3411 = vmatpush.bf16.msra.mxu0 0
      %3412 = vmatpush.bf16.msra.mxu0 0
      %3413 = vmatpush.bf16.msra.mxu0 0
      %3414 = vmatpush.bf16.msra.mxu0 0
      %3415 = vmatpush.bf16.msra.mxu0 %v3406
      %3416 = vmatmul.bf16.gmra.mxu0 %v3403
      %v3417 = vpop.f32.mrf.mxu0
      %v3418 = vadd.f32 0.0, %v3417
      %v3419 = vpop.f32.mrf.mxu0
      %3420 = vdwg.mxu0
      %v3422 = vsel %vm2889, %v3248, 0
      %v3425 = vsel %vm3309, %v3280, 0
      %3427 = vmatpush.bf16.msra.mxu0 0
      %3428 = vmatpush.bf16.msra.mxu0 0
      %3429 = vmatpush.bf16.msra.mxu0 0
      %3430 = vmatpush.bf16.msra.mxu0 0
      %3431 = vmatpush.bf16.msra.mxu0 0
      %3432 = vmatpush.bf16.msra.mxu0 0
      %3433 = vmatpush.bf16.msra.mxu0 0
      %3434 = vmatpush.bf16.msra.mxu0 %v3425
      %3435 = vmatmul.bf16.gmra.mxu0 %v3422
      %v3436 = vpop.f32.mrf.mxu0
      %v3437 = vadd.f32 0.0, %v3436
      %v3438 = vpop.f32.mrf.mxu0
      %3439 = vdwg.mxu0
      %v3441 = vsel %vm2889, %v3249, 0
      %v3444 = vsel %vm3309, %v3281, 0
      %3446 = vmatpush.bf16.msra.mxu0 0
      %3447 = vmatpush.bf16.msra.mxu0 0
      %3448 = vmatpush.bf16.msra.mxu0 0
      %3449 = vmatpush.bf16.msra.mxu0 0
      %3450 = vmatpush.bf16.msra.mxu0 0
      %3451 = vmatpush.bf16.msra.mxu0 0
      %3452 = vmatpush.bf16.msra.mxu0 0
      %3453 = vmatpush.bf16.msra.mxu0 %v3444
      %3454 = vmatmul.bf16.gmra.mxu0 %v3441
      %v3455 = vpop.f32.mrf.mxu0
      %v3456 = vadd.f32 0.0, %v3455
      %v3457 = vpop.f32.mrf.mxu0
      %3458 = vdwg.mxu0
      %v3460 = vsel %vm2889, %v3250, 0
      %v3463 = vsel %vm3309, %v3282, 0
      %3465 = vmatpush.bf16.msra.mxu0 0
      %3466 = vmatpush.bf16.msra.mxu0 0
      %3467 = vmatpush.bf16.msra.mxu0 0
      %3468 = vmatpush.bf16.msra.mxu0 0
      %3469 = vmatpush.bf16.msra.mxu0 0
      %3470 = vmatpush.bf16.msra.mxu0 0
      %3471 = vmatpush.bf16.msra.mxu0 0
      %3472 = vmatpush.bf16.msra.mxu0 %v3463
      %3473 = vmatmul.bf16.gmra.mxu0 %v3460
      %v3474 = vpop.f32.mrf.mxu0
      %v3475 = vadd.f32 0.0, %v3474
      %v3476 = vpop.f32.mrf.mxu0
      %3477 = vdwg.mxu0
      %v3479 = vsel %vm2889, %v3251, 0
      %v3482 = vsel %vm3309, %v3283, 0
      %3484 = vmatpush.bf16.msra.mxu0 0
      %3485 = vmatpush.bf16.msra.mxu0 0
      %3486 = vmatpush.bf16.msra.mxu0 0
      %3487 = vmatpush.bf16.msra.mxu0 0
      %3488 = vmatpush.bf16.msra.mxu0 0
      %3489 = vmatpush.bf16.msra.mxu0 0
      %3490 = vmatpush.bf16.msra.mxu0 0
      %3491 = vmatpush.bf16.msra.mxu0 %v3482
      %3492 = vmatmul.bf16.gmra.mxu0 %v3479
      %v3493 = vpop.f32.mrf.mxu0
      %v3494 = vadd.f32 0.0, %v3493
      %v3495 = vpop.f32.mrf.mxu0
      %3496 = vdwg.mxu0
      %v3498 = vsel %vm2889, %v3252, 0
      %v3501 = vsel %vm3309, %v3284, 0
      %3503 = vmatpush.bf16.msra.mxu0 0
      %3504 = vmatpush.bf16.msra.mxu0 0
      %3505 = vmatpush.bf16.msra.mxu0 0
      %3506 = vmatpush.bf16.msra.mxu0 0
      %3507 = vmatpush.bf16.msra.mxu0 0
      %3508 = vmatpush.bf16.msra.mxu0 0
      %3509 = vmatpush.bf16.msra.mxu0 0
      %3510 = vmatpush.bf16.msra.mxu0 %v3501
      %3511 = vmatmul.bf16.gmra.mxu0 %v3498
      %v3512 = vpop.f32.mrf.mxu0
      %v3513 = vadd.f32 0.0, %v3512
      %v3514 = vpop.f32.mrf.mxu0
      %3515 = vdwg.mxu0
      %v3517 = vsel %vm2889, %v3253, 0
      %v3520 = vsel %vm3309, %v3285, 0
      %3522 = vmatpush.bf16.msra.mxu0 0
      %3523 = vmatpush.bf16.msra.mxu0 0
      %3524 = vmatpush.bf16.msra.mxu0 0
      %3525 = vmatpush.bf16.msra.mxu0 0
      %3526 = vmatpush.bf16.msra.mxu0 0
      %3527 = vmatpush.bf16.msra.mxu0 0
      %3528 = vmatpush.bf16.msra.mxu0 0
      %3529 = vmatpush.bf16.msra.mxu0 %v3520
      %3530 = vmatmul.bf16.gmra.mxu0 %v3517
      %v3531 = vpop.f32.mrf.mxu0
      %v3532 = vadd.f32 0.0, %v3531
      %v3533 = vpop.f32.mrf.mxu0
      %3534 = vdwg.mxu0
      %v3536 = vsel %vm2889, %v3254, 0
      %v3539 = vsel %vm3309, %v3286, 0
      %3541 = vmatpush.bf16.msra.mxu0 0
      %3542 = vmatpush.bf16.msra.mxu0 0
      %3543 = vmatpush.bf16.msra.mxu0 0
      %3544 = vmatpush.bf16.msra.mxu0 0
      %3545 = vmatpush.bf16.msra.mxu0 0
      %3546 = vmatpush.bf16.msra.mxu0 0
      %3547 = vmatpush.bf16.msra.mxu0 0
      %3548 = vmatpush.bf16.msra.mxu0 %v3539
      %3549 = vmatmul.bf16.gmra.mxu0 %v3536
      %v3550 = vpop.f32.mrf.mxu0
      %v3551 = vadd.f32 0.0, %v3550
      %v3552 = vpop.f32.mrf.mxu0
      %3553 = vdwg.mxu0
      %v3555 = vsel %vm2889, %v3255, 0
      %v3558 = vsel %vm3309, %v3287, 0
      %3560 = vmatpush.bf16.msra.mxu0 0
      %3561 = vmatpush.bf16.msra.mxu0 0
      %3562 = vmatpush.bf16.msra.mxu0 0
      %3563 = vmatpush.bf16.msra.mxu0 0
      %3564 = vmatpush.bf16.msra.mxu0 0
      %3565 = vmatpush.bf16.msra.mxu0 0
      %3566 = vmatpush.bf16.msra.mxu0 0
      %3567 = vmatpush.bf16.msra.mxu0 %v3558
      %3568 = vmatmul.bf16.gmra.mxu0 %v3555
      %v3569 = vpop.f32.mrf.mxu0
      %v3570 = vadd.f32 0.0, %v3569
      %v3571 = vpop.f32.mrf.mxu0
      %3572 = vdwg.mxu0
      %v3574 = vsel %vm2889, %v3256, 0
      %v3577 = vsel %vm3309, %v3288, 0
      %3579 = vmatpush.bf16.msra.mxu0 0
      %3580 = vmatpush.bf16.msra.mxu0 0
      %3581 = vmatpush.bf16.msra.mxu0 0
      %3582 = vmatpush.bf16.msra.mxu0 0
      %3583 = vmatpush.bf16.msra.mxu0 0
      %3584 = vmatpush.bf16.msra.mxu0 0
      %3585 = vmatpush.bf16.msra.mxu0 0
      %3586 = vmatpush.bf16.msra.mxu0 %v3577
      %3587 = vmatmul.bf16.gmra.mxu0 %v3574
      %v3588 = vpop.f32.mrf.mxu0
      %v3589 = vadd.f32 0.0, %v3588
      %v3590 = vpop.f32.mrf.mxu0
      %3591 = vdwg.mxu0
      %v3593 = vsel %vm2889, %v3257, 0
      %v3596 = vsel %vm3309, %v3289, 0
      %3598 = vmatpush.bf16.msra.mxu0 0
      %3599 = vmatpush.bf16.msra.mxu0 0
      %3600 = vmatpush.bf16.msra.mxu0 0
      %3601 = vmatpush.bf16.msra.mxu0 0
      %3602 = vmatpush.bf16.msra.mxu0 0
      %3603 = vmatpush.bf16.msra.mxu0 0
      %3604 = vmatpush.bf16.msra.mxu0 0
      %3605 = vmatpush.bf16.msra.mxu0 %v3596
      %3606 = vmatmul.bf16.gmra.mxu0 %v3593
      %v3607 = vpop.f32.mrf.mxu0
      %v3608 = vadd.f32 0.0, %v3607
      %v3609 = vpop.f32.mrf.mxu0
      %3610 = vdwg.mxu0
      %v3612 = vsel %vm2889, %v3258, 0
      %v3615 = vsel %vm3309, %v3290, 0
      %3617 = vmatpush.bf16.msra.mxu0 0
      %3618 = vmatpush.bf16.msra.mxu0 0
      %3619 = vmatpush.bf16.msra.mxu0 0
      %3620 = vmatpush.bf16.msra.mxu0 0
      %3621 = vmatpush.bf16.msra.mxu0 0
      %3622 = vmatpush.bf16.msra.mxu0 0
      %3623 = vmatpush.bf16.msra.mxu0 0
      %3624 = vmatpush.bf16.msra.mxu0 %v3615
      %3625 = vmatmul.bf16.gmra.mxu0 %v3612
      %v3626 = vpop.f32.mrf.mxu0
      %v3627 = vadd.f32 0.0, %v3626
      %v3628 = vpop.f32.mrf.mxu0
      %3629 = vdwg.mxu0
      %v3631 = vsel %vm2889, %v3259, 0
      %v3634 = vsel %vm3309, %v3291, 0
      %3636 = vmatpush.bf16.msra.mxu0 0
      %3637 = vmatpush.bf16.msra.mxu0 0
      %3638 = vmatpush.bf16.msra.mxu0 0
      %3639 = vmatpush.bf16.msra.mxu0 0
      %3640 = vmatpush.bf16.msra.mxu0 0
      %3641 = vmatpush.bf16.msra.mxu0 0
      %3642 = vmatpush.bf16.msra.mxu0 0
      %3643 = vmatpush.bf16.msra.mxu0 %v3634
      %3644 = vmatmul.bf16.gmra.mxu0 %v3631
      %v3645 = vpop.f32.mrf.mxu0
      %v3646 = vadd.f32 0.0, %v3645
      %v3647 = vpop.f32.mrf.mxu0
      %3648 = vdwg.mxu0
      %v3650 = vsel %vm2889, %v3260, 0
      %v3653 = vsel %vm3309, %v3292, 0
      %3655 = vmatpush.bf16.msra.mxu0 0
      %3656 = vmatpush.bf16.msra.mxu0 0
      %3657 = vmatpush.bf16.msra.mxu0 0
      %3658 = vmatpush.bf16.msra.mxu0 0
      %3659 = vmatpush.bf16.msra.mxu0 0
      %3660 = vmatpush.bf16.msra.mxu0 0
      %3661 = vmatpush.bf16.msra.mxu0 0
      %3662 = vmatpush.bf16.msra.mxu0 %v3653
      %3663 = vmatmul.bf16.gmra.mxu0 %v3650
      %v3664 = vpop.f32.mrf.mxu0
      %v3665 = vadd.f32 0.0, %v3664
      %v3666 = vpop.f32.mrf.mxu0
      %3667 = vdwg.mxu0
      %v3669 = vsel %vm2889, %v3261, 0
      %v3672 = vsel %vm3309, %v3293, 0
      %3674 = vmatpush.bf16.msra.mxu0 0
      %3675 = vmatpush.bf16.msra.mxu0 0
      %3676 = vmatpush.bf16.msra.mxu0 0
      %3677 = vmatpush.bf16.msra.mxu0 0
      %3678 = vmatpush.bf16.msra.mxu0 0
      %3679 = vmatpush.bf16.msra.mxu0 0
      %3680 = vmatpush.bf16.msra.mxu0 0
      %3681 = vmatpush.bf16.msra.mxu0 %v3672
      %3682 = vmatmul.bf16.gmra.mxu0 %v3669
      %v3683 = vpop.f32.mrf.mxu0
      %v3684 = vadd.f32 0.0, %v3683
      %v3685 = vpop.f32.mrf.mxu0
      %3686 = vdwg.mxu0
      %v3688 = vsel %vm2889, %v3262, 0
      %v3691 = vsel %vm3309, %v3294, 0
      %3693 = vmatpush.bf16.msra.mxu0 0
      %3694 = vmatpush.bf16.msra.mxu0 0
      %3695 = vmatpush.bf16.msra.mxu0 0
      %3696 = vmatpush.bf16.msra.mxu0 0
      %3697 = vmatpush.bf16.msra.mxu0 0
      %3698 = vmatpush.bf16.msra.mxu0 0
      %3699 = vmatpush.bf16.msra.mxu0 0
      %3700 = vmatpush.bf16.msra.mxu0 %v3691
      %3701 = vmatmul.bf16.gmra.mxu0 %v3688
      %v3702 = vpop.f32.mrf.mxu0
      %v3703 = vadd.f32 0.0, %v3702
      %v3704 = vpop.f32.mrf.mxu0
      %3705 = vdwg.mxu0
      %v3707 = vsel %vm2889, %v3263, 0
      %v3710 = vsel %vm3309, %v3295, 0
      %3712 = vmatpush.bf16.msra.mxu0 0
      %3713 = vmatpush.bf16.msra.mxu0 0
      %3714 = vmatpush.bf16.msra.mxu0 0
      %3715 = vmatpush.bf16.msra.mxu0 0
      %3716 = vmatpush.bf16.msra.mxu0 0
      %3717 = vmatpush.bf16.msra.mxu0 0
      %3718 = vmatpush.bf16.msra.mxu0 0
      %3719 = vmatpush.bf16.msra.mxu0 %v3710
      %3720 = vmatmul.bf16.gmra.mxu0 %v3707
      %v3721 = vpop.f32.mrf.mxu0
      %v3722 = vadd.f32 0.0, %v3721
      %v3723 = vpop.f32.mrf.mxu0
      %3724 = vdwg.mxu0
      %v3726 = vsel %vm2889, %v3264, 0
      %v3729 = vsel %vm3309, %v3296, 0
      %3731 = vmatpush.bf16.msra.mxu0 0
      %3732 = vmatpush.bf16.msra.mxu0 0
      %3733 = vmatpush.bf16.msra.mxu0 0
      %3734 = vmatpush.bf16.msra.mxu0 0
      %3735 = vmatpush.bf16.msra.mxu0 0
      %3736 = vmatpush.bf16.msra.mxu0 0
      %3737 = vmatpush.bf16.msra.mxu0 0
      %3738 = vmatpush.bf16.msra.mxu0 %v3729
      %3739 = vmatmul.bf16.gmra.mxu0 %v3726
      %v3740 = vpop.f32.mrf.mxu0
      %v3741 = vadd.f32 0.0, %v3740
      %v3742 = vpop.f32.mrf.mxu0
      %3743 = vdwg.mxu0
      %v3745 = vsel %vm2889, %v3265, 0
      %v3748 = vsel %vm3309, %v3297, 0
      %3750 = vmatpush.bf16.msra.mxu0 0
      %3751 = vmatpush.bf16.msra.mxu0 0
      %3752 = vmatpush.bf16.msra.mxu0 0
      %3753 = vmatpush.bf16.msra.mxu0 0
      %3754 = vmatpush.bf16.msra.mxu0 0
      %3755 = vmatpush.bf16.msra.mxu0 0
      %3756 = vmatpush.bf16.msra.mxu0 0
      %3757 = vmatpush.bf16.msra.mxu0 %v3748
      %3758 = vmatmul.bf16.gmra.mxu0 %v3745
      %v3759 = vpop.f32.mrf.mxu0
      %v3760 = vadd.f32 0.0, %v3759
      %v3761 = vpop.f32.mrf.mxu0
      %3762 = vdwg.mxu0
      %v3764 = vsel %vm2889, %v3266, 0
      %v3767 = vsel %vm3309, %v3298, 0
      %3769 = vmatpush.bf16.msra.mxu0 0
      %3770 = vmatpush.bf16.msra.mxu0 0
      %3771 = vmatpush.bf16.msra.mxu0 0
      %3772 = vmatpush.bf16.msra.mxu0 0
      %3773 = vmatpush.bf16.msra.mxu0 0
      %3774 = vmatpush.bf16.msra.mxu0 0
      %3775 = vmatpush.bf16.msra.mxu0 0
      %3776 = vmatpush.bf16.msra.mxu0 %v3767
      %3777 = vmatmul.bf16.gmra.mxu0 %v3764
      %v3778 = vpop.f32.mrf.mxu0
      %v3779 = vadd.f32 0.0, %v3778
      %v3780 = vpop.f32.mrf.mxu0
      %3781 = vdwg.mxu0
      %v3783 = vsel %vm2889, %v3267, 0
      %v3786 = vsel %vm3309, %v3299, 0
      %3788 = vmatpush.bf16.msra.mxu0 0
      %3789 = vmatpush.bf16.msra.mxu0 0
      %3790 = vmatpush.bf16.msra.mxu0 0
      %3791 = vmatpush.bf16.msra.mxu0 0
      %3792 = vmatpush.bf16.msra.mxu0 0
      %3793 = vmatpush.bf16.msra.mxu0 0
      %3794 = vmatpush.bf16.msra.mxu0 0
      %3795 = vmatpush.bf16.msra.mxu0 %v3786
      %3796 = vmatmul.bf16.gmra.mxu0 %v3783
      %v3797 = vpop.f32.mrf.mxu0
      %v3798 = vadd.f32 0.0, %v3797
      %v3799 = vpop.f32.mrf.mxu0
      %3800 = vdwg.mxu0
      %v3802 = vsel %vm2889, %v3268, 0
      %v3805 = vsel %vm3309, %v3300, 0
      %3807 = vmatpush.bf16.msra.mxu0 0
      %3808 = vmatpush.bf16.msra.mxu0 0
      %3809 = vmatpush.bf16.msra.mxu0 0
      %3810 = vmatpush.bf16.msra.mxu0 0
      %3811 = vmatpush.bf16.msra.mxu0 0
      %3812 = vmatpush.bf16.msra.mxu0 0
      %3813 = vmatpush.bf16.msra.mxu0 0
      %3814 = vmatpush.bf16.msra.mxu0 %v3805
      %3815 = vmatmul.bf16.gmra.mxu0 %v3802
      %v3816 = vpop.f32.mrf.mxu0
      %v3817 = vadd.f32 0.0, %v3816
      %v3818 = vpop.f32.mrf.mxu0
      %3819 = vdwg.mxu0
      %v3821 = vsel %vm2889, %v3269, 0
      %v3824 = vsel %vm3309, %v3301, 0
      %3826 = vmatpush.bf16.msra.mxu0 0
      %3827 = vmatpush.bf16.msra.mxu0 0
      %3828 = vmatpush.bf16.msra.mxu0 0
      %3829 = vmatpush.bf16.msra.mxu0 0
      %3830 = vmatpush.bf16.msra.mxu0 0
      %3831 = vmatpush.bf16.msra.mxu0 0
      %3832 = vmatpush.bf16.msra.mxu0 0
      %3833 = vmatpush.bf16.msra.mxu0 %v3824
      %3834 = vmatmul.bf16.gmra.mxu0 %v3821
      %v3835 = vpop.f32.mrf.mxu0
      %v3836 = vadd.f32 0.0, %v3835
      %v3837 = vpop.f32.mrf.mxu0
      %3838 = vdwg.mxu0
      %v3840 = vsel %vm2889, %v3270, 0
      %v3843 = vsel %vm3309, %v3302, 0
      %3845 = vmatpush.bf16.msra.mxu0 0
      %3846 = vmatpush.bf16.msra.mxu0 0
      %3847 = vmatpush.bf16.msra.mxu0 0
      %3848 = vmatpush.bf16.msra.mxu0 0
      %3849 = vmatpush.bf16.msra.mxu0 0
      %3850 = vmatpush.bf16.msra.mxu0 0
      %3851 = vmatpush.bf16.msra.mxu0 0
      %3852 = vmatpush.bf16.msra.mxu0 %v3843
      %3853 = vmatmul.bf16.gmra.mxu0 %v3840
      %v3854 = vpop.f32.mrf.mxu0
      %v3855 = vadd.f32 0.0, %v3854
      %v3856 = vpop.f32.mrf.mxu0
      %3857 = vdwg.mxu0
      %v3859 = vsel %vm2889, %v3271, 0
      %v3862 = vsel %vm3309, %v3303, 0
      %3864 = vmatpush.bf16.msra.mxu0 0
      %3865 = vmatpush.bf16.msra.mxu0 0
      %3866 = vmatpush.bf16.msra.mxu0 0
      %3867 = vmatpush.bf16.msra.mxu0 0
      %3868 = vmatpush.bf16.msra.mxu0 0
      %3869 = vmatpush.bf16.msra.mxu0 0
      %3870 = vmatpush.bf16.msra.mxu0 0
      %3871 = vmatpush.bf16.msra.mxu0 %v3862
      %3872 = vmatmul.bf16.gmra.mxu0 %v3859
      %v3873 = vpop.f32.mrf.mxu0
      %v3874 = vadd.f32 0.0, %v3873
      %v3875 = vpop.f32.mrf.mxu0
      %3876 = vdwg.mxu0
      %v3878 = vsel %vm2889, %v3272, 0
      %v3881 = vsel %vm3309, %v3304, 0
      %3883 = vmatpush.bf16.msra.mxu0 0
      %3884 = vmatpush.bf16.msra.mxu0 0
      %3885 = vmatpush.bf16.msra.mxu0 0
      %3886 = vmatpush.bf16.msra.mxu0 0
      %3887 = vmatpush.bf16.msra.mxu0 0
      %3888 = vmatpush.bf16.msra.mxu0 0
      %3889 = vmatpush.bf16.msra.mxu0 0
      %3890 = vmatpush.bf16.msra.mxu0 %v3881
      %3891 = vmatmul.bf16.gmra.mxu0 %v3878
      %v3892 = vpop.f32.mrf.mxu0
      %v3893 = vadd.f32 0.0, %v3892
      %v3894 = vpop.f32.mrf.mxu0
      %3895 = vdwg.mxu0
      %v3897 = vsel %vm2889, %v3273, 0
      %v3900 = vsel %vm3309, %v3305, 0
      %3902 = vmatpush.bf16.msra.mxu0 0
      %3903 = vmatpush.bf16.msra.mxu0 0
      %3904 = vmatpush.bf16.msra.mxu0 0
      %3905 = vmatpush.bf16.msra.mxu0 0
      %3906 = vmatpush.bf16.msra.mxu0 0
      %3907 = vmatpush.bf16.msra.mxu0 0
      %3908 = vmatpush.bf16.msra.mxu0 0
      %3909 = vmatpush.bf16.msra.mxu0 %v3900
      %3910 = vmatmul.bf16.gmra.mxu0 %v3897
      %v3911 = vpop.f32.mrf.mxu0
      %v3912 = vadd.f32 0.0, %v3911
      %v3913 = vpop.f32.mrf.mxu0
      %3914 = vdwg.mxu0
      %v3915 = vpack.c.bf16 %v3342, %v3323
      %v3916 = vpack.c.bf16 %v3380, %v3361
      %v3917 = vpack.c.bf16 %v3418, %v3399
      %v3918 = vpack.c.bf16 %v3456, %v3437
      %v3919 = vpack.c.bf16 %v3494, %v3475
      %v3920 = vpack.c.bf16 %v3532, %v3513
      %v3921 = vpack.c.bf16 %v3570, %v3551
      %v3922 = vpack.c.bf16 %v3608, %v3589
      %v3923 = vpack.c.bf16 %v3646, %v3627
      %v3924 = vpack.c.bf16 %v3684, %v3665
      %v3925 = vpack.c.bf16 %v3722, %v3703
      %v3926 = vpack.c.bf16 %v3760, %v3741
      %v3927 = vpack.c.bf16 %v3798, %v3779
      %v3928 = vpack.c.bf16 %v3836, %v3817
      %v3929 = vpack.c.bf16 %v3874, %v3855
      %v3930 = vpack.c.bf16 %v3912, %v3893
      %v3931 = vld [vmem:[%s725] sm:$0xf]
      %v3932 = vld [vmem:[%s725 + $0x4] sm:$0xf]
      %v3933 = vld [vmem:[%s725 + $0x8] sm:$0xf]
      %v3934 = vld [vmem:[%s725 + $0xc] sm:$0xf]
      %v3939 = vunpack.c.l.b16 %v3931
      %v3940 = vunpack.c.l.b16 %v3932
      %v3941 = vunpack.c.l.b16 %v3933
      %v3942 = vunpack.c.l.b16 %v3934
      %v3943 = vpack.c.b16 %v3940, %v3939
      %v3944 = vpack.c.b16 %v3942, %v3941
      %v3948 = vsel %vm1677, %v3915, 0
      %v3951 = vsel %vm1677, %v3916, 0
      %v3954 = vsel %vm1677, %v3917, 0
      %v3957 = vsel %vm1677, %v3918, 0
      %v3960 = vsel %vm1677, %v3919, 0
      %v3963 = vsel %vm1677, %v3920, 0
      %v3966 = vsel %vm1677, %v3921, 0
      %v3969 = vsel %vm1677, %v3922, 0
      %v3972 = vsel %vm1677, %v3923, 0
      %v3975 = vsel %vm1677, %v3924, 0
      %v3978 = vsel %vm1677, %v3925, 0
      %v3981 = vsel %vm1677, %v3926, 0
      %v3984 = vsel %vm1677, %v3927, 0
      %v3987 = vsel %vm1677, %v3928, 0
      %v3990 = vsel %vm1677, %v3929, 0
      %v3993 = vsel %vm1677, %v3930, 0
      %3995 = vmatpush.bf16.msra.mxu0 0
      %3996 = vmatpush.bf16.msra.mxu0 0
      %3997 = vmatpush.bf16.msra.mxu0 0
      %3998 = vmatpush.bf16.msra.mxu0 0
      %3999 = vmatpush.bf16.msra.mxu0 0
      %4000 = vmatpush.bf16.msra.mxu0 0
      %4001 = vmatpush.bf16.msra.mxu0 %v3944
      %4002 = vmatpush.bf16.msra.mxu0 %v3943
      %4003 = vmatmul.bf16.gmra.mxu0 %v3948
      %v4004 = vpop.f32.mrf.mxu0
      %v4005 = vadd.f32 0.0, %v4004
      %v4006 = vpop.f32.mrf.mxu0
      %v4007 = vadd.f32 0.0, %v4006
      %4008 = vmatmul.bf16.gmra.mxu0 %v3951
      %v4009 = vpop.f32.mrf.mxu0
      %v4010 = vadd.f32 0.0, %v4009
      %v4011 = vpop.f32.mrf.mxu0
      %v4012 = vadd.f32 0.0, %v4011
      %4013 = vmatmul.bf16.gmra.mxu0 %v3954
      %v4014 = vpop.f32.mrf.mxu0
      %v4015 = vadd.f32 0.0, %v4014
      %v4016 = vpop.f32.mrf.mxu0
      %v4017 = vadd.f32 0.0, %v4016
      %4018 = vmatmul.bf16.gmra.mxu0 %v3957
      %v4019 = vpop.f32.mrf.mxu0
      %v4020 = vadd.f32 0.0, %v4019
      %v4021 = vpop.f32.mrf.mxu0
      %v4022 = vadd.f32 0.0, %v4021
      %4023 = vmatmul.bf16.gmra.mxu0 %v3960
      %v4024 = vpop.f32.mrf.mxu0
      %v4025 = vadd.f32 0.0, %v4024
      %v4026 = vpop.f32.mrf.mxu0
      %v4027 = vadd.f32 0.0, %v4026
      %4028 = vmatmul.bf16.gmra.mxu0 %v3963
      %v4029 = vpop.f32.mrf.mxu0
      %v4030 = vadd.f32 0.0, %v4029
      %v4031 = vpop.f32.mrf.mxu0
      %v4032 = vadd.f32 0.0, %v4031
      %4033 = vmatmul.bf16.gmra.mxu0 %v3966
      %v4034 = vpop.f32.mrf.mxu0
      %v4035 = vadd.f32 0.0, %v4034
      %v4036 = vpop.f32.mrf.mxu0
      %v4037 = vadd.f32 0.0, %v4036
      %4038 = vmatmul.bf16.gmra.mxu0 %v3969
      %v4039 = vpop.f32.mrf.mxu0
      %v4040 = vadd.f32 0.0, %v4039
      %v4041 = vpop.f32.mrf.mxu0
      %v4042 = vadd.f32 0.0, %v4041
      %4043 = vmatmul.bf16.gmra.mxu0 %v3972
      %v4044 = vpop.f32.mrf.mxu0
      %v4045 = vadd.f32 0.0, %v4044
      %v4046 = vpop.f32.mrf.mxu0
      %v4047 = vadd.f32 0.0, %v4046
      %4048 = vmatmul.bf16.gmra.mxu0 %v3975
      %v4049 = vpop.f32.mrf.mxu0
      %v4050 = vadd.f32 0.0, %v4049
      %v4051 = vpop.f32.mrf.mxu0
      %v4052 = vadd.f32 0.0, %v4051
      %4053 = vmatmul.bf16.gmra.mxu0 %v3978
      %v4054 = vpop.f32.mrf.mxu0
      %v4055 = vadd.f32 0.0, %v4054
      %v4056 = vpop.f32.mrf.mxu0
      %v4057 = vadd.f32 0.0, %v4056
      %4058 = vmatmul.bf16.gmra.mxu0 %v3981
      %v4059 = vpop.f32.mrf.mxu0
      %v4060 = vadd.f32 0.0, %v4059
      %v4061 = vpop.f32.mrf.mxu0
      %v4062 = vadd.f32 0.0, %v4061
      %4063 = vmatmul.bf16.gmra.mxu0 %v3984
      %v4064 = vpop.f32.mrf.mxu0
      %v4065 = vadd.f32 0.0, %v4064
      %v4066 = vpop.f32.mrf.mxu0
      %v4067 = vadd.f32 0.0, %v4066
      %4068 = vmatmul.bf16.gmra.mxu0 %v3987
      %v4069 = vpop.f32.mrf.mxu0
      %v4070 = vadd.f32 0.0, %v4069
      %v4071 = vpop.f32.mrf.mxu0
      %v4072 = vadd.f32 0.0, %v4071
      %4073 = vmatmul.bf16.gmra.mxu0 %v3990
      %v4074 = vpop.f32.mrf.mxu0
      %v4075 = vadd.f32 0.0, %v4074
      %v4076 = vpop.f32.mrf.mxu0
      %v4077 = vadd.f32 0.0, %v4076
      %4078 = vmatmul.bf16.gmra.mxu0 %v3993
      %v4079 = vpop.f32.mrf.mxu0
      %v4080 = vadd.f32 0.0, %v4079
      %v4081 = vpop.f32.mrf.mxu0
      %v4082 = vadd.f32 0.0, %v4081
      %4083 = vdwg.mxu0
      %v4084 = vadd.f32 %v4005, %v1613
      %v4085 = vadd.f32 %v4007, %v1614
      %v4086 = vadd.f32 %v4010, %v1615
      %v4087 = vadd.f32 %v4012, %v1616
      %v4088 = vadd.f32 %v4015, %v1617
      %v4089 = vadd.f32 %v4017, %v1618
      %v4090 = vadd.f32 %v4020, %v1619
      %v4091 = vadd.f32 %v4022, %v1620
      %v4092 = vadd.f32 %v4025, %v1621
      %v4093 = vadd.f32 %v4027, %v1622
      %v4094 = vadd.f32 %v4030, %v1623
      %v4095 = vadd.f32 %v4032, %v1624
      %v4096 = vadd.f32 %v4035, %v1625
      %v4097 = vadd.f32 %v4037, %v1626
      %v4098 = vadd.f32 %v4040, %v1627
      %v4099 = vadd.f32 %v4042, %v1628
      %v4100 = vadd.f32 %v4045, %v1629
      %v4101 = vadd.f32 %v4047, %v1630
      %v4102 = vadd.f32 %v4050, %v1631
      %v4103 = vadd.f32 %v4052, %v1632
      %v4104 = vadd.f32 %v4055, %v1633
      %v4105 = vadd.f32 %v4057, %v1634
      %v4106 = vadd.f32 %v4060, %v1635
      %v4107 = vadd.f32 %v4062, %v1636
      %v4108 = vadd.f32 %v4065, %v1637
      %v4109 = vadd.f32 %v4067, %v1638
      %v4110 = vadd.f32 %v4070, %v1639
      %v4111 = vadd.f32 %v4072, %v1640
      %v4112 = vadd.f32 %v4075, %v1641
      %v4113 = vadd.f32 %v4077, %v1642
      %v4114 = vadd.f32 %v4080, %v1643
      %v4115 = vadd.f32 %v4082, %v1644
      %v4116 = vld [vmem:[%s728] sm:$0x1]
      %v4117 = vld [vmem:[%s731] sm:$0x1]
      %v4118 = vsel %vm1677, %v4084, 0.0
      %4119 = vadd.xlane.f32.xlu0 %v4118
      %v4120 = vpop.xlane.xlu0 %4119
      %v4121 = vsel %vm1677, %v4085, 0.0
      %4122 = vadd.xlane.f32.xlu0 %v4121
      %v4123 = vpop.xlane.xlu0 %4122
      %v4124 = vsel %vm1677, %v4086, 0.0
      %4125 = vadd.xlane.f32.xlu0 %v4124
      %v4126 = vpop.xlane.xlu0 %4125
      %v4127 = vsel %vm1677, %v4087, 0.0
      %4128 = vadd.xlane.f32.xlu0 %v4127
      %v4129 = vpop.xlane.xlu0 %4128
      %v4130 = vsel %vm1677, %v4088, 0.0
      %4131 = vadd.xlane.f32.xlu0 %v4130
      %v4132 = vpop.xlane.xlu0 %4131
      %v4133 = vsel %vm1677, %v4089, 0.0
      %4134 = vadd.xlane.f32.xlu0 %v4133
      %v4135 = vpop.xlane.xlu0 %4134
      %v4136 = vsel %vm1677, %v4090, 0.0
      %4137 = vadd.xlane.f32.xlu0 %v4136
      %v4138 = vpop.xlane.xlu0 %4137
      %v4139 = vsel %vm1677, %v4091, 0.0
      %4140 = vadd.xlane.f32.xlu0 %v4139
      %v4141 = vpop.xlane.xlu0 %4140
      %v4142 = vsel %vm1677, %v4092, 0.0
      %4143 = vadd.xlane.f32.xlu0 %v4142
      %v4144 = vpop.xlane.xlu0 %4143
      %v4145 = vsel %vm1677, %v4093, 0.0
      %4146 = vadd.xlane.f32.xlu0 %v4145
      %v4147 = vpop.xlane.xlu0 %4146
      %v4148 = vsel %vm1677, %v4094, 0.0
      %4149 = vadd.xlane.f32.xlu0 %v4148
      %v4150 = vpop.xlane.xlu0 %4149
      %v4151 = vsel %vm1677, %v4095, 0.0
      %4152 = vadd.xlane.f32.xlu0 %v4151
      %v4153 = vpop.xlane.xlu0 %4152
      %v4154 = vsel %vm1677, %v4096, 0.0
      %4155 = vadd.xlane.f32.xlu0 %v4154
      %v4156 = vpop.xlane.xlu0 %4155
      %v4157 = vsel %vm1677, %v4097, 0.0
      %4158 = vadd.xlane.f32.xlu0 %v4157
      %v4159 = vpop.xlane.xlu0 %4158
      %v4160 = vsel %vm1677, %v4098, 0.0
      %4161 = vadd.xlane.f32.xlu0 %v4160
      %v4162 = vpop.xlane.xlu0 %4161
      %v4163 = vsel %vm1677, %v4099, 0.0
      %4164 = vadd.xlane.f32.xlu0 %v4163
      %v4165 = vpop.xlane.xlu0 %4164
      %v4166 = vsel %vm1677, %v4100, 0.0
      %4167 = vadd.xlane.f32.xlu0 %v4166
      %v4168 = vpop.xlane.xlu0 %4167
      %v4169 = vsel %vm1677, %v4101, 0.0
      %4170 = vadd.xlane.f32.xlu0 %v4169
      %v4171 = vpop.xlane.xlu0 %4170
      %v4172 = vsel %vm1677, %v4102, 0.0
      %4173 = vadd.xlane.f32.xlu0 %v4172
      %v4174 = vpop.xlane.xlu0 %4173
      %v4175 = vsel %vm1677, %v4103, 0.0
      %4176 = vadd.xlane.f32.xlu0 %v4175
      %v4177 = vpop.xlane.xlu0 %4176
      %v4178 = vsel %vm1677, %v4104, 0.0
      %4179 = vadd.xlane.f32.xlu0 %v4178
      %v4180 = vpop.xlane.xlu0 %4179
      %v4181 = vsel %vm1677, %v4105, 0.0
      %4182 = vadd.xlane.f32.xlu0 %v4181
      %v4183 = vpop.xlane.xlu0 %4182
      %v4184 = vsel %vm1677, %v4106, 0.0
      %4185 = vadd.xlane.f32.xlu0 %v4184
      %v4186 = vpop.xlane.xlu0 %4185
      %v4187 = vsel %vm1677, %v4107, 0.0
      %4188 = vadd.xlane.f32.xlu0 %v4187
      %v4189 = vpop.xlane.xlu0 %4188
      %v4190 = vsel %vm1677, %v4108, 0.0
      %4191 = vadd.xlane.f32.xlu0 %v4190
      %v4192 = vpop.xlane.xlu0 %4191
      %v4193 = vsel %vm1677, %v4109, 0.0
      %4194 = vadd.xlane.f32.xlu0 %v4193
      %v4195 = vpop.xlane.xlu0 %4194
      %v4196 = vsel %vm1677, %v4110, 0.0
      %4197 = vadd.xlane.f32.xlu0 %v4196
      %v4198 = vpop.xlane.xlu0 %4197
      %v4199 = vsel %vm1677, %v4111, 0.0
      %4200 = vadd.xlane.f32.xlu0 %v4199
      %v4201 = vpop.xlane.xlu0 %4200
      %v4202 = vsel %vm1677, %v4112, 0.0
      %4203 = vadd.xlane.f32.xlu0 %v4202
      %v4204 = vpop.xlane.xlu0 %4203
      %v4205 = vsel %vm1677, %v4113, 0.0
      %4206 = vadd.xlane.f32.xlu0 %v4205
      %v4207 = vpop.xlane.xlu0 %4206
      %v4208 = vsel %vm1677, %v4114, 0.0
      %4209 = vadd.xlane.f32.xlu0 %v4208
      %v4210 = vpop.xlane.xlu0 %4209
      %v4211 = vsel %vm1677, %v4115, 0.0
      %4212 = vadd.xlane.f32.xlu0 %v4211
      %v4213 = vpop.xlane.xlu0 %4212
      %v4214 = vrcp.pop 32.0
      %v4215 = vmul.f32 32.0, %v4214
      %v4216 = vsub.f32 1.0, %v4215
      %v4217 = vmul.f32 %v4214, %v4216
      %v4218 = vadd.f32 %v4214, %v4217
      %vm4219 = vweird.f32 %v4214
      %v4220 = vsel %vm4219, %v4214, %v4218
      %v4221 = vmul.f32 %v4120, %v4220
      %v4222 = vmul.f32 %v4123, %v4220
      %v4223 = vmul.f32 %v4126, %v4220
      %v4224 = vmul.f32 %v4129, %v4220
      %v4225 = vmul.f32 %v4132, %v4220
      %v4226 = vmul.f32 %v4135, %v4220
      %v4227 = vmul.f32 %v4138, %v4220
      %v4228 = vmul.f32 %v4141, %v4220
      %v4229 = vmul.f32 %v4144, %v4220
      %v4230 = vmul.f32 %v4147, %v4220
      %v4231 = vmul.f32 %v4150, %v4220
      %v4232 = vmul.f32 %v4153, %v4220
      %v4233 = vmul.f32 %v4156, %v4220
      %v4234 = vmul.f32 %v4159, %v4220
      %v4235 = vmul.f32 %v4162, %v4220
      %v4236 = vmul.f32 %v4165, %v4220
      %v4237 = vmul.f32 %v4168, %v4220
      %v4238 = vmul.f32 %v4171, %v4220
      %v4239 = vmul.f32 %v4174, %v4220
      %v4240 = vmul.f32 %v4177, %v4220
      %v4241 = vmul.f32 %v4180, %v4220
      %v4242 = vmul.f32 %v4183, %v4220
      %v4243 = vmul.f32 %v4186, %v4220
      %v4244 = vmul.f32 %v4189, %v4220
      %v4245 = vmul.f32 %v4192, %v4220
      %v4246 = vmul.f32 %v4195, %v4220
      %v4247 = vmul.f32 %v4198, %v4220
      %v4248 = vmul.f32 %v4201, %v4220
      %v4249 = vmul.f32 %v4204, %v4220
      %v4250 = vmul.f32 %v4207, %v4220
      %v4251 = vmul.f32 %v4210, %v4220
      %v4252 = vmul.f32 %v4213, %v4220
      %v4253 = vsub.f32 %v4084, %v4221
      %v4254 = vsub.f32 %v4085, %v4222
      %v4255 = vsub.f32 %v4086, %v4223
      %v4256 = vsub.f32 %v4087, %v4224
      %v4257 = vsub.f32 %v4088, %v4225
      %v4258 = vsub.f32 %v4089, %v4226
      %v4259 = vsub.f32 %v4090, %v4227
      %v4260 = vsub.f32 %v4091, %v4228
      %v4261 = vsub.f32 %v4092, %v4229
      %v4262 = vsub.f32 %v4093, %v4230
      %v4263 = vsub.f32 %v4094, %v4231
      %v4264 = vsub.f32 %v4095, %v4232
      %v4265 = vsub.f32 %v4096, %v4233
      %v4266 = vsub.f32 %v4097, %v4234
      %v4267 = vsub.f32 %v4098, %v4235
      %v4268 = vsub.f32 %v4099, %v4236
      %v4269 = vsub.f32 %v4100, %v4237
      %v4270 = vsub.f32 %v4101, %v4238
      %v4271 = vsub.f32 %v4102, %v4239
      %v4272 = vsub.f32 %v4103, %v4240
      %v4273 = vsub.f32 %v4104, %v4241
      %v4274 = vsub.f32 %v4105, %v4242
      %v4275 = vsub.f32 %v4106, %v4243
      %v4276 = vsub.f32 %v4107, %v4244
      %v4277 = vsub.f32 %v4108, %v4245
      %v4278 = vsub.f32 %v4109, %v4246
      %v4279 = vsub.f32 %v4110, %v4247
      %v4280 = vsub.f32 %v4111, %v4248
      %v4281 = vsub.f32 %v4112, %v4249
      %v4282 = vsub.f32 %v4113, %v4250
      %v4283 = vsub.f32 %v4114, %v4251
      %v4284 = vsub.f32 %v4115, %v4252
      %v4285 = vmul.f32 %v4253, %v4253
      %v4286 = vmul.f32 %v4254, %v4254
      %v4287 = vmul.f32 %v4255, %v4255
      %v4288 = vmul.f32 %v4256, %v4256
      %v4289 = vmul.f32 %v4257, %v4257
      %v4290 = vmul.f32 %v4258, %v4258
      %v4291 = vmul.f32 %v4259, %v4259
      %v4292 = vmul.f32 %v4260, %v4260
      %v4293 = vmul.f32 %v4261, %v4261
      %v4294 = vmul.f32 %v4262, %v4262
      %v4295 = vmul.f32 %v4263, %v4263
      %v4296 = vmul.f32 %v4264, %v4264
      %v4297 = vmul.f32 %v4265, %v4265
      %v4298 = vmul.f32 %v4266, %v4266
      %v4299 = vmul.f32 %v4267, %v4267
      %v4300 = vmul.f32 %v4268, %v4268
      %v4301 = vmul.f32 %v4269, %v4269
      %v4302 = vmul.f32 %v4270, %v4270
      %v4303 = vmul.f32 %v4271, %v4271
      %v4304 = vmul.f32 %v4272, %v4272
      %v4305 = vmul.f32 %v4273, %v4273
      %v4306 = vmul.f32 %v4274, %v4274
      %v4307 = vmul.f32 %v4275, %v4275
      %v4308 = vmul.f32 %v4276, %v4276
      %v4309 = vmul.f32 %v4277, %v4277
      %v4310 = vmul.f32 %v4278, %v4278
      %v4311 = vmul.f32 %v4279, %v4279
      %v4312 = vmul.f32 %v4280, %v4280
      %v4313 = vmul.f32 %v4281, %v4281
      %v4314 = vmul.f32 %v4282, %v4282
      %v4315 = vmul.f32 %v4283, %v4283
      %v4316 = vmul.f32 %v4284, %v4284
      %v4317 = vsel %vm1677, %v4285, 0.0
      %4318 = vadd.xlane.f32.xlu0 %v4317
      %v4319 = vpop.xlane.xlu0 %4318
      %v4320 = vsel %vm1677, %v4286, 0.0
      %4321 = vadd.xlane.f32.xlu0 %v4320
      %v4322 = vpop.xlane.xlu0 %4321
      %v4323 = vsel %vm1677, %v4287, 0.0
      %4324 = vadd.xlane.f32.xlu0 %v4323
      %v4325 = vpop.xlane.xlu0 %4324
      %v4326 = vsel %vm1677, %v4288, 0.0
      %4327 = vadd.xlane.f32.xlu0 %v4326
      %v4328 = vpop.xlane.xlu0 %4327
      %v4329 = vsel %vm1677, %v4289, 0.0
      %4330 = vadd.xlane.f32.xlu0 %v4329
      %v4331 = vpop.xlane.xlu0 %4330
      %v4332 = vsel %vm1677, %v4290, 0.0
      %4333 = vadd.xlane.f32.xlu0 %v4332
      %v4334 = vpop.xlane.xlu0 %4333
      %v4335 = vsel %vm1677, %v4291, 0.0
      %4336 = vadd.xlane.f32.xlu0 %v4335
      %v4337 = vpop.xlane.xlu0 %4336
      %v4338 = vsel %vm1677, %v4292, 0.0
      %4339 = vadd.xlane.f32.xlu0 %v4338
      %v4340 = vpop.xlane.xlu0 %4339
      %v4341 = vsel %vm1677, %v4293, 0.0
      %4342 = vadd.xlane.f32.xlu0 %v4341
      %v4343 = vpop.xlane.xlu0 %4342
      %v4344 = vsel %vm1677, %v4294, 0.0
      %4345 = vadd.xlane.f32.xlu0 %v4344
      %v4346 = vpop.xlane.xlu0 %4345
      %v4347 = vsel %vm1677, %v4295, 0.0
      %4348 = vadd.xlane.f32.xlu0 %v4347
      %v4349 = vpop.xlane.xlu0 %4348
      %v4350 = vsel %vm1677, %v4296, 0.0
      %4351 = vadd.xlane.f32.xlu0 %v4350
      %v4352 = vpop.xlane.xlu0 %4351
      %v4353 = vsel %vm1677, %v4297, 0.0
      %4354 = vadd.xlane.f32.xlu0 %v4353
      %v4355 = vpop.xlane.xlu0 %4354
      %v4356 = vsel %vm1677, %v4298, 0.0
      %4357 = vadd.xlane.f32.xlu0 %v4356
      %v4358 = vpop.xlane.xlu0 %4357
      %v4359 = vsel %vm1677, %v4299, 0.0
      %4360 = vadd.xlane.f32.xlu0 %v4359
      %v4361 = vpop.xlane.xlu0 %4360
      %v4362 = vsel %vm1677, %v4300, 0.0
      %4363 = vadd.xlane.f32.xlu0 %v4362
      %v4364 = vpop.xlane.xlu0 %4363
      %v4365 = vsel %vm1677, %v4301, 0.0
      %4366 = vadd.xlane.f32.xlu0 %v4365
      %v4367 = vpop.xlane.xlu0 %4366
      %v4368 = vsel %vm1677, %v4302, 0.0
      %4369 = vadd.xlane.f32.xlu0 %v4368
      %v4370 = vpop.xlane.xlu0 %4369
      %v4371 = vsel %vm1677, %v4303, 0.0
      %4372 = vadd.xlane.f32.xlu0 %v4371
      %v4373 = vpop.xlane.xlu0 %4372
      %v4374 = vsel %vm1677, %v4304, 0.0
      %4375 = vadd.xlane.f32.xlu0 %v4374
      %v4376 = vpop.xlane.xlu0 %4375
      %v4377 = vsel %vm1677, %v4305, 0.0
      %4378 = vadd.xlane.f32.xlu0 %v4377
      %v4379 = vpop.xlane.xlu0 %4378
      %v4380 = vsel %vm1677, %v4306, 0.0
      %4381 = vadd.xlane.f32.xlu0 %v4380
      %v4382 = vpop.xlane.xlu0 %4381
      %v4383 = vsel %vm1677, %v4307, 0.0
      %4384 = vadd.xlane.f32.xlu0 %v4383
      %v4385 = vpop.xlane.xlu0 %4384
      %v4386 = vsel %vm1677, %v4308, 0.0
      %4387 = vadd.xlane.f32.xlu0 %v4386
      %v4388 = vpop.xlane.xlu0 %4387
      %v4389 = vsel %vm1677, %v4309, 0.0
      %4390 = vadd.xlane.f32.xlu0 %v4389
      %v4391 = vpop.xlane.xlu0 %4390
      %v4392 = vsel %vm1677, %v4310, 0.0
      %4393 = vadd.xlane.f32.xlu0 %v4392
      %v4394 = vpop.xlane.xlu0 %4393
      %v4395 = vsel %vm1677, %v4311, 0.0
      %4396 = vadd.xlane.f32.xlu0 %v4395
      %v4397 = vpop.xlane.xlu0 %4396
      %v4398 = vsel %vm1677, %v4312, 0.0
      %4399 = vadd.xlane.f32.xlu0 %v4398
      %v4400 = vpop.xlane.xlu0 %4399
      %v4401 = vsel %vm1677, %v4313, 0.0
      %4402 = vadd.xlane.f32.xlu0 %v4401
      %v4403 = vpop.xlane.xlu0 %4402
      %v4404 = vsel %vm1677, %v4314, 0.0
      %4405 = vadd.xlane.f32.xlu0 %v4404
      %v4406 = vpop.xlane.xlu0 %4405
      %v4407 = vsel %vm1677, %v4315, 0.0
      %4408 = vadd.xlane.f32.xlu0 %v4407
      %v4409 = vpop.xlane.xlu0 %4408
      %v4410 = vsel %vm1677, %v4316, 0.0
      %4411 = vadd.xlane.f32.xlu0 %v4410
      %v4412 = vpop.xlane.xlu0 %4411
      %v4413 = vmul.f32 %v4319, %v4220
      %v4414 = vmul.f32 %v4322, %v4220
      %v4415 = vmul.f32 %v4325, %v4220
      %v4416 = vmul.f32 %v4328, %v4220
      %v4417 = vmul.f32 %v4331, %v4220
      %v4418 = vmul.f32 %v4334, %v4220
      %v4419 = vmul.f32 %v4337, %v4220
      %v4420 = vmul.f32 %v4340, %v4220
      %v4421 = vmul.f32 %v4343, %v4220
      %v4422 = vmul.f32 %v4346, %v4220
      %v4423 = vmul.f32 %v4349, %v4220
      %v4424 = vmul.f32 %v4352, %v4220
      %v4425 = vmul.f32 %v4355, %v4220
      %v4426 = vmul.f32 %v4358, %v4220
      %v4427 = vmul.f32 %v4361, %v4220
      %v4428 = vmul.f32 %v4364, %v4220
      %v4429 = vmul.f32 %v4367, %v4220
      %v4430 = vmul.f32 %v4370, %v4220
      %v4431 = vmul.f32 %v4373, %v4220
      %v4432 = vmul.f32 %v4376, %v4220
      %v4433 = vmul.f32 %v4379, %v4220
      %v4434 = vmul.f32 %v4382, %v4220
      %v4435 = vmul.f32 %v4385, %v4220
      %v4436 = vmul.f32 %v4388, %v4220
      %v4437 = vmul.f32 %v4391, %v4220
      %v4438 = vmul.f32 %v4394, %v4220
      %v4439 = vmul.f32 %v4397, %v4220
      %v4440 = vmul.f32 %v4400, %v4220
      %v4441 = vmul.f32 %v4403, %v4220
      %v4442 = vmul.f32 %v4406, %v4220
      %v4443 = vmul.f32 %v4409, %v4220
      %v4444 = vmul.f32 %v4412, %v4220
      %v4445 = vadd.f32 %v4413, 1e-06
      %v4446 = vadd.f32 %v4414, 1e-06
      %v4447 = vadd.f32 %v4415, 1e-06
      %v4448 = vadd.f32 %v4416, 1e-06
      %v4449 = vadd.f32 %v4417, 1e-06
      %v4450 = vadd.f32 %v4418, 1e-06
      %v4451 = vadd.f32 %v4419, 1e-06
      %v4452 = vadd.f32 %v4420, 1e-06
      %v4453 = vadd.f32 %v4421, 1e-06
      %v4454 = vadd.f32 %v4422, 1e-06
      %v4455 = vadd.f32 %v4423, 1e-06
      %v4456 = vadd.f32 %v4424, 1e-06
      %v4457 = vadd.f32 %v4425, 1e-06
      %v4458 = vadd.f32 %v4426, 1e-06
      %v4459 = vadd.f32 %v4427, 1e-06
      %v4460 = vadd.f32 %v4428, 1e-06
      %v4461 = vadd.f32 %v4429, 1e-06
      %v4462 = vadd.f32 %v4430, 1e-06
      %v4463 = vadd.f32 %v4431, 1e-06
      %v4464 = vadd.f32 %v4432, 1e-06
      %v4465 = vadd.f32 %v4433, 1e-06
      %v4466 = vadd.f32 %v4434, 1e-06
      %v4467 = vadd.f32 %v4435, 1e-06
      %v4468 = vadd.f32 %v4436, 1e-06
      %v4469 = vadd.f32 %v4437, 1e-06
      %v4470 = vadd.f32 %v4438, 1e-06
      %v4471 = vadd.f32 %v4439, 1e-06
      %v4472 = vadd.f32 %v4440, 1e-06
      %v4473 = vadd.f32 %v4441, 1e-06
      %v4474 = vadd.f32 %v4442, 1e-06
      %v4475 = vadd.f32 %v4443, 1e-06
      %v4476 = vadd.f32 %v4444, 1e-06
      %v4477 = vrsqrt.pop %v4445
      %v4478 = vmul.f32 %v4477, %v4445
      %v4479 = vmul.f32 %v4478, %v4477
      %v4480 = vmul.f32 0.5, %v4479
      %v4481 = vsub.f32 1.5, %v4480
      %v4482 = vmul.f32 %v4477, %v4481
      %vm4483 = vweird.f32 %v4445
      %vm4484 = vweird.f32 %v4477
      %vm4485 = vmor %vm4483, %vm4484
      %v4486 = vsel %vm4485, %v4477, %v4482
      %v4487 = vrsqrt.pop %v4446
      %v4488 = vmul.f32 %v4487, %v4446
      %v4489 = vmul.f32 %v4488, %v4487
      %v4490 = vmul.f32 0.5, %v4489
      %v4491 = vsub.f32 1.5, %v4490
      %v4492 = vmul.f32 %v4487, %v4491
      %vm4493 = vweird.f32 %v4446
      %vm4494 = vweird.f32 %v4487
      %vm4495 = vmor %vm4493, %vm4494
      %v4496 = vsel %vm4495, %v4487, %v4492
      %v4497 = vrsqrt.pop %v4447
      %v4498 = vmul.f32 %v4497, %v4447
      %v4499 = vmul.f32 %v4498, %v4497
      %v4500 = vmul.f32 0.5, %v4499
      %v4501 = vsub.f32 1.5, %v4500
      %v4502 = vmul.f32 %v4497, %v4501
      %vm4503 = vweird.f32 %v4447
      %vm4504 = vweird.f32 %v4497
      %vm4505 = vmor %vm4503, %vm4504
      %v4506 = vsel %vm4505, %v4497, %v4502
      %v4507 = vrsqrt.pop %v4448
      %v4508 = vmul.f32 %v4507, %v4448
      %v4509 = vmul.f32 %v4508, %v4507
      %v4510 = vmul.f32 0.5, %v4509
      %v4511 = vsub.f32 1.5, %v4510
      %v4512 = vmul.f32 %v4507, %v4511
      %vm4513 = vweird.f32 %v4448
      %vm4514 = vweird.f32 %v4507
      %vm4515 = vmor %vm4513, %vm4514
      %v4516 = vsel %vm4515, %v4507, %v4512
      %v4517 = vrsqrt.pop %v4449
      %v4518 = vmul.f32 %v4517, %v4449
      %v4519 = vmul.f32 %v4518, %v4517
      %v4520 = vmul.f32 0.5, %v4519
      %v4521 = vsub.f32 1.5, %v4520
      %v4522 = vmul.f32 %v4517, %v4521
      %vm4523 = vweird.f32 %v4449
      %vm4524 = vweird.f32 %v4517
      %vm4525 = vmor %vm4523, %vm4524
      %v4526 = vsel %vm4525, %v4517, %v4522
      %v4527 = vrsqrt.pop %v4450
      %v4528 = vmul.f32 %v4527, %v4450
      %v4529 = vmul.f32 %v4528, %v4527
      %v4530 = vmul.f32 0.5, %v4529
      %v4531 = vsub.f32 1.5, %v4530
      %v4532 = vmul.f32 %v4527, %v4531
      %vm4533 = vweird.f32 %v4450
      %vm4534 = vweird.f32 %v4527
      %vm4535 = vmor %vm4533, %vm4534
      %v4536 = vsel %vm4535, %v4527, %v4532
      %v4537 = vrsqrt.pop %v4451
      %v4538 = vmul.f32 %v4537, %v4451
      %v4539 = vmul.f32 %v4538, %v4537
      %v4540 = vmul.f32 0.5, %v4539
      %v4541 = vsub.f32 1.5, %v4540
      %v4542 = vmul.f32 %v4537, %v4541
      %vm4543 = vweird.f32 %v4451
      %vm4544 = vweird.f32 %v4537
      %vm4545 = vmor %vm4543, %vm4544
      %v4546 = vsel %vm4545, %v4537, %v4542
      %v4547 = vrsqrt.pop %v4452
      %v4548 = vmul.f32 %v4547, %v4452
      %v4549 = vmul.f32 %v4548, %v4547
      %v4550 = vmul.f32 0.5, %v4549
      %v4551 = vsub.f32 1.5, %v4550
      %v4552 = vmul.f32 %v4547, %v4551
      %vm4553 = vweird.f32 %v4452
      %vm4554 = vweird.f32 %v4547
      %vm4555 = vmor %vm4553, %vm4554
      %v4556 = vsel %vm4555, %v4547, %v4552
      %v4557 = vrsqrt.pop %v4453
      %v4558 = vmul.f32 %v4557, %v4453
      %v4559 = vmul.f32 %v4558, %v4557
      %v4560 = vmul.f32 0.5, %v4559
      %v4561 = vsub.f32 1.5, %v4560
      %v4562 = vmul.f32 %v4557, %v4561
      %vm4563 = vweird.f32 %v4453
      %vm4564 = vweird.f32 %v4557
      %vm4565 = vmor %vm4563, %vm4564
      %v4566 = vsel %vm4565, %v4557, %v4562
      %v4567 = vrsqrt.pop %v4454
      %v4568 = vmul.f32 %v4567, %v4454
      %v4569 = vmul.f32 %v4568, %v4567
      %v4570 = vmul.f32 0.5, %v4569
      %v4571 = vsub.f32 1.5, %v4570
      %v4572 = vmul.f32 %v4567, %v4571
      %vm4573 = vweird.f32 %v4454
      %vm4574 = vweird.f32 %v4567
      %vm4575 = vmor %vm4573, %vm4574
      %v4576 = vsel %vm4575, %v4567, %v4572
      %v4577 = vrsqrt.pop %v4455
      %v4578 = vmul.f32 %v4577, %v4455
      %v4579 = vmul.f32 %v4578, %v4577
      %v4580 = vmul.f32 0.5, %v4579
      %v4581 = vsub.f32 1.5, %v4580
      %v4582 = vmul.f32 %v4577, %v4581
      %vm4583 = vweird.f32 %v4455
      %vm4584 = vweird.f32 %v4577
      %vm4585 = vmor %vm4583, %vm4584
      %v4586 = vsel %vm4585, %v4577, %v4582
      %v4587 = vrsqrt.pop %v4456
      %v4588 = vmul.f32 %v4587, %v4456
      %v4589 = vmul.f32 %v4588, %v4587
      %v4590 = vmul.f32 0.5, %v4589
      %v4591 = vsub.f32 1.5, %v4590
      %v4592 = vmul.f32 %v4587, %v4591
      %vm4593 = vweird.f32 %v4456
      %vm4594 = vweird.f32 %v4587
      %vm4595 = vmor %vm4593, %vm4594
      %v4596 = vsel %vm4595, %v4587, %v4592
      %v4597 = vrsqrt.pop %v4457
      %v4598 = vmul.f32 %v4597, %v4457
      %v4599 = vmul.f32 %v4598, %v4597
      %v4600 = vmul.f32 0.5, %v4599
      %v4601 = vsub.f32 1.5, %v4600
      %v4602 = vmul.f32 %v4597, %v4601
      %vm4603 = vweird.f32 %v4457
      %vm4604 = vweird.f32 %v4597
      %vm4605 = vmor %vm4603, %vm4604
      %v4606 = vsel %vm4605, %v4597, %v4602
      %v4607 = vrsqrt.pop %v4458
      %v4608 = vmul.f32 %v4607, %v4458
      %v4609 = vmul.f32 %v4608, %v4607
      %v4610 = vmul.f32 0.5, %v4609
      %v4611 = vsub.f32 1.5, %v4610
      %v4612 = vmul.f32 %v4607, %v4611
      %vm4613 = vweird.f32 %v4458
      %vm4614 = vweird.f32 %v4607
      %vm4615 = vmor %vm4613, %vm4614
      %v4616 = vsel %vm4615, %v4607, %v4612
      %v4617 = vrsqrt.pop %v4459
      %v4618 = vmul.f32 %v4617, %v4459
      %v4619 = vmul.f32 %v4618, %v4617
      %v4620 = vmul.f32 0.5, %v4619
      %v4621 = vsub.f32 1.5, %v4620
      %v4622 = vmul.f32 %v4617, %v4621
      %vm4623 = vweird.f32 %v4459
      %vm4624 = vweird.f32 %v4617
      %vm4625 = vmor %vm4623, %vm4624
      %v4626 = vsel %vm4625, %v4617, %v4622
      %v4627 = vrsqrt.pop %v4460
      %v4628 = vmul.f32 %v4627, %v4460
      %v4629 = vmul.f32 %v4628, %v4627
      %v4630 = vmul.f32 0.5, %v4629
      %v4631 = vsub.f32 1.5, %v4630
      %v4632 = vmul.f32 %v4627, %v4631
      %vm4633 = vweird.f32 %v4460
      %vm4634 = vweird.f32 %v4627
      %vm4635 = vmor %vm4633, %vm4634
      %v4636 = vsel %vm4635, %v4627, %v4632
      %v4637 = vrsqrt.pop %v4461
      %v4638 = vmul.f32 %v4637, %v4461
      %v4639 = vmul.f32 %v4638, %v4637
      %v4640 = vmul.f32 0.5, %v4639
      %v4641 = vsub.f32 1.5, %v4640
      %v4642 = vmul.f32 %v4637, %v4641
      %vm4643 = vweird.f32 %v4461
      %vm4644 = vweird.f32 %v4637
      %vm4645 = vmor %vm4643, %vm4644
      %v4646 = vsel %vm4645, %v4637, %v4642
      %v4647 = vrsqrt.pop %v4462
      %v4648 = vmul.f32 %v4647, %v4462
      %v4649 = vmul.f32 %v4648, %v4647
      %v4650 = vmul.f32 0.5, %v4649
      %v4651 = vsub.f32 1.5, %v4650
      %v4652 = vmul.f32 %v4647, %v4651
      %vm4653 = vweird.f32 %v4462
      %vm4654 = vweird.f32 %v4647
      %vm4655 = vmor %vm4653, %vm4654
      %v4656 = vsel %vm4655, %v4647, %v4652
      %v4657 = vrsqrt.pop %v4463
      %v4658 = vmul.f32 %v4657, %v4463
      %v4659 = vmul.f32 %v4658, %v4657
      %v4660 = vmul.f32 0.5, %v4659
      %v4661 = vsub.f32 1.5, %v4660
      %v4662 = vmul.f32 %v4657, %v4661
      %vm4663 = vweird.f32 %v4463
      %vm4664 = vweird.f32 %v4657
      %vm4665 = vmor %vm4663, %vm4664
      %v4666 = vsel %vm4665, %v4657, %v4662
      %v4667 = vrsqrt.pop %v4464
      %v4668 = vmul.f32 %v4667, %v4464
      %v4669 = vmul.f32 %v4668, %v4667
      %v4670 = vmul.f32 0.5, %v4669
      %v4671 = vsub.f32 1.5, %v4670
      %v4672 = vmul.f32 %v4667, %v4671
      %vm4673 = vweird.f32 %v4464
      %vm4674 = vweird.f32 %v4667
      %vm4675 = vmor %vm4673, %vm4674
      %v4676 = vsel %vm4675, %v4667, %v4672
      %v4677 = vrsqrt.pop %v4465
      %v4678 = vmul.f32 %v4677, %v4465
      %v4679 = vmul.f32 %v4678, %v4677
      %v4680 = vmul.f32 0.5, %v4679
      %v4681 = vsub.f32 1.5, %v4680
      %v4682 = vmul.f32 %v4677, %v4681
      %vm4683 = vweird.f32 %v4465
      %vm4684 = vweird.f32 %v4677
      %vm4685 = vmor %vm4683, %vm4684
      %v4686 = vsel %vm4685, %v4677, %v4682
      %v4687 = vrsqrt.pop %v4466
      %v4688 = vmul.f32 %v4687, %v4466
      %v4689 = vmul.f32 %v4688, %v4687
      %v4690 = vmul.f32 0.5, %v4689
      %v4691 = vsub.f32 1.5, %v4690
      %v4692 = vmul.f32 %v4687, %v4691
      %vm4693 = vweird.f32 %v4466
      %vm4694 = vweird.f32 %v4687
      %vm4695 = vmor %vm4693, %vm4694
      %v4696 = vsel %vm4695, %v4687, %v4692
      %v4697 = vrsqrt.pop %v4467
      %v4698 = vmul.f32 %v4697, %v4467
      %v4699 = vmul.f32 %v4698, %v4697
      %v4700 = vmul.f32 0.5, %v4699
      %v4701 = vsub.f32 1.5, %v4700
      %v4702 = vmul.f32 %v4697, %v4701
      %vm4703 = vweird.f32 %v4467
      %vm4704 = vweird.f32 %v4697
      %vm4705 = vmor %vm4703, %vm4704
      %v4706 = vsel %vm4705, %v4697, %v4702
      %v4707 = vrsqrt.pop %v4468
      %v4708 = vmul.f32 %v4707, %v4468
      %v4709 = vmul.f32 %v4708, %v4707
      %v4710 = vmul.f32 0.5, %v4709
      %v4711 = vsub.f32 1.5, %v4710
      %v4712 = vmul.f32 %v4707, %v4711
      %vm4713 = vweird.f32 %v4468
      %vm4714 = vweird.f32 %v4707
      %vm4715 = vmor %vm4713, %vm4714
      %v4716 = vsel %vm4715, %v4707, %v4712
      %v4717 = vrsqrt.pop %v4469
      %v4718 = vmul.f32 %v4717, %v4469
      %v4719 = vmul.f32 %v4718, %v4717
      %v4720 = vmul.f32 0.5, %v4719
      %v4721 = vsub.f32 1.5, %v4720
      %v4722 = vmul.f32 %v4717, %v4721
      %vm4723 = vweird.f32 %v4469
      %vm4724 = vweird.f32 %v4717
      %vm4725 = vmor %vm4723, %vm4724
      %v4726 = vsel %vm4725, %v4717, %v4722
      %v4727 = vrsqrt.pop %v4470
      %v4728 = vmul.f32 %v4727, %v4470
      %v4729 = vmul.f32 %v4728, %v4727
      %v4730 = vmul.f32 0.5, %v4729
      %v4731 = vsub.f32 1.5, %v4730
      %v4732 = vmul.f32 %v4727, %v4731
      %vm4733 = vweird.f32 %v4470
      %vm4734 = vweird.f32 %v4727
      %vm4735 = vmor %vm4733, %vm4734
      %v4736 = vsel %vm4735, %v4727, %v4732
      %v4737 = vrsqrt.pop %v4471
      %v4738 = vmul.f32 %v4737, %v4471
      %v4739 = vmul.f32 %v4738, %v4737
      %v4740 = vmul.f32 0.5, %v4739
      %v4741 = vsub.f32 1.5, %v4740
      %v4742 = vmul.f32 %v4737, %v4741
      %vm4743 = vweird.f32 %v4471
      %vm4744 = vweird.f32 %v4737
      %vm4745 = vmor %vm4743, %vm4744
      %v4746 = vsel %vm4745, %v4737, %v4742
      %v4747 = vrsqrt.pop %v4472
      %v4748 = vmul.f32 %v4747, %v4472
      %v4749 = vmul.f32 %v4748, %v4747
      %v4750 = vmul.f32 0.5, %v4749
      %v4751 = vsub.f32 1.5, %v4750
      %v4752 = vmul.f32 %v4747, %v4751
      %vm4753 = vweird.f32 %v4472
      %vm4754 = vweird.f32 %v4747
      %vm4755 = vmor %vm4753, %vm4754
      %v4756 = vsel %vm4755, %v4747, %v4752
      %v4757 = vrsqrt.pop %v4473
      %v4758 = vmul.f32 %v4757, %v4473
      %v4759 = vmul.f32 %v4758, %v4757
      %v4760 = vmul.f32 0.5, %v4759
      %v4761 = vsub.f32 1.5, %v4760
      %v4762 = vmul.f32 %v4757, %v4761
      %vm4763 = vweird.f32 %v4473
      %vm4764 = vweird.f32 %v4757
      %vm4765 = vmor %vm4763, %vm4764
      %v4766 = vsel %vm4765, %v4757, %v4762
      %v4767 = vrsqrt.pop %v4474
      %v4768 = vmul.f32 %v4767, %v4474
      %v4769 = vmul.f32 %v4768, %v4767
      %v4770 = vmul.f32 0.5, %v4769
      %v4771 = vsub.f32 1.5, %v4770
      %v4772 = vmul.f32 %v4767, %v4771
      %vm4773 = vweird.f32 %v4474
      %vm4774 = vweird.f32 %v4767
      %vm4775 = vmor %vm4773, %vm4774
      %v4776 = vsel %vm4775, %v4767, %v4772
      %v4777 = vrsqrt.pop %v4475
      %v4778 = vmul.f32 %v4777, %v4475
      %v4779 = vmul.f32 %v4778, %v4777
      %v4780 = vmul.f32 0.5, %v4779
      %v4781 = vsub.f32 1.5, %v4780
      %v4782 = vmul.f32 %v4777, %v4781
      %vm4783 = vweird.f32 %v4475
      %vm4784 = vweird.f32 %v4777
      %vm4785 = vmor %vm4783, %vm4784
      %v4786 = vsel %vm4785, %v4777, %v4782
      %v4787 = vrsqrt.pop %v4476
      %v4788 = vmul.f32 %v4787, %v4476
      %v4789 = vmul.f32 %v4788, %v4787
      %v4790 = vmul.f32 0.5, %v4789
      %v4791 = vsub.f32 1.5, %v4790
      %v4792 = vmul.f32 %v4787, %v4791
      %vm4793 = vweird.f32 %v4476
      %vm4794 = vweird.f32 %v4787
      %vm4795 = vmor %vm4793, %vm4794
      %v4796 = vsel %vm4795, %v4787, %v4792
      %v4797 = vmul.f32 %v4253, %v4486
      %v4798 = vmul.f32 %v4254, %v4496
      %v4799 = vmul.f32 %v4255, %v4506
      %v4800 = vmul.f32 %v4256, %v4516
      %v4801 = vmul.f32 %v4257, %v4526
      %v4802 = vmul.f32 %v4258, %v4536
      %v4803 = vmul.f32 %v4259, %v4546
      %v4804 = vmul.f32 %v4260, %v4556
      %v4805 = vmul.f32 %v4261, %v4566
      %v4806 = vmul.f32 %v4262, %v4576
      %v4807 = vmul.f32 %v4263, %v4586
      %v4808 = vmul.f32 %v4264, %v4596
      %v4809 = vmul.f32 %v4265, %v4606
      %v4810 = vmul.f32 %v4266, %v4616
      %v4811 = vmul.f32 %v4267, %v4626
      %v4812 = vmul.f32 %v4268, %v4636
      %v4813 = vmul.f32 %v4269, %v4646
      %v4814 = vmul.f32 %v4270, %v4656
      %v4815 = vmul.f32 %v4271, %v4666
      %v4816 = vmul.f32 %v4272, %v4676
      %v4817 = vmul.f32 %v4273, %v4686
      %v4818 = vmul.f32 %v4274, %v4696
      %v4819 = vmul.f32 %v4275, %v4706
      %v4820 = vmul.f32 %v4276, %v4716
      %v4821 = vmul.f32 %v4277, %v4726
      %v4822 = vmul.f32 %v4278, %v4736
      %v4823 = vmul.f32 %v4279, %v4746
      %v4824 = vmul.f32 %v4280, %v4756
      %v4825 = vmul.f32 %v4281, %v4766
      %v4826 = vmul.f32 %v4282, %v4776
      %v4827 = vmul.f32 %v4283, %v4786
      %v4828 = vmul.f32 %v4284, %v4796
      %v4830 = vperm.slane %v4116, 0
      %v4832 = vmul.f32 %v4797, %v4830
      %v4833 = vmul.f32 %v4798, %v4830
      %v4834 = vmul.f32 %v4799, %v4830
      %v4835 = vmul.f32 %v4800, %v4830
      %v4836 = vmul.f32 %v4801, %v4830
      %v4837 = vmul.f32 %v4802, %v4830
      %v4838 = vmul.f32 %v4803, %v4830
      %v4839 = vmul.f32 %v4804, %v4830
      %v4840 = vmul.f32 %v4805, %v4830
      %v4841 = vmul.f32 %v4806, %v4830
      %v4842 = vmul.f32 %v4807, %v4830
      %v4843 = vmul.f32 %v4808, %v4830
      %v4844 = vmul.f32 %v4809, %v4830
      %v4845 = vmul.f32 %v4810, %v4830
      %v4846 = vmul.f32 %v4811, %v4830
      %v4847 = vmul.f32 %v4812, %v4830
      %v4848 = vmul.f32 %v4813, %v4830
      %v4849 = vmul.f32 %v4814, %v4830
      %v4850 = vmul.f32 %v4815, %v4830
      %v4851 = vmul.f32 %v4816, %v4830
      %v4852 = vmul.f32 %v4817, %v4830
      %v4853 = vmul.f32 %v4818, %v4830
      %v4854 = vmul.f32 %v4819, %v4830
      %v4855 = vmul.f32 %v4820, %v4830
      %v4856 = vmul.f32 %v4821, %v4830
      %v4857 = vmul.f32 %v4822, %v4830
      %v4858 = vmul.f32 %v4823, %v4830
      %v4859 = vmul.f32 %v4824, %v4830
      %v4860 = vmul.f32 %v4825, %v4830
      %v4861 = vmul.f32 %v4826, %v4830
      %v4862 = vmul.f32 %v4827, %v4830
      %v4863 = vmul.f32 %v4828, %v4830
      %v4865 = vperm.slane %v4117, 0
      %v4867 = vadd.f32 %v4832, %v4865
      %v4868 = vadd.f32 %v4833, %v4865
      %v4869 = vadd.f32 %v4834, %v4865
      %v4870 = vadd.f32 %v4835, %v4865
      %v4871 = vadd.f32 %v4836, %v4865
      %v4872 = vadd.f32 %v4837, %v4865
      %v4873 = vadd.f32 %v4838, %v4865
      %v4874 = vadd.f32 %v4839, %v4865
      %v4875 = vadd.f32 %v4840, %v4865
      %v4876 = vadd.f32 %v4841, %v4865
      %v4877 = vadd.f32 %v4842, %v4865
      %v4878 = vadd.f32 %v4843, %v4865
      %v4879 = vadd.f32 %v4844, %v4865
      %v4880 = vadd.f32 %v4845, %v4865
      %v4881 = vadd.f32 %v4846, %v4865
      %v4882 = vadd.f32 %v4847, %v4865
      %v4883 = vadd.f32 %v4848, %v4865
      %v4884 = vadd.f32 %v4849, %v4865
      %v4885 = vadd.f32 %v4850, %v4865
      %v4886 = vadd.f32 %v4851, %v4865
      %v4887 = vadd.f32 %v4852, %v4865
      %v4888 = vadd.f32 %v4853, %v4865
      %v4889 = vadd.f32 %v4854, %v4865
      %v4890 = vadd.f32 %v4855, %v4865
      %v4891 = vadd.f32 %v4856, %v4865
      %v4892 = vadd.f32 %v4857, %v4865
      %v4893 = vadd.f32 %v4858, %v4865
      %v4894 = vadd.f32 %v4859, %v4865
      %v4895 = vadd.f32 %v4860, %v4865
      %v4896 = vadd.f32 %v4861, %v4865
      %v4897 = vadd.f32 %v4862, %v4865
      %v4898 = vadd.f32 %v4863, %v4865
      %v4899 = vpack.c.bf16 %v4868, %v4867
      %v4900 = vpack.c.bf16 %v4870, %v4869
      %v4901 = vpack.c.bf16 %v4872, %v4871
      %v4902 = vpack.c.bf16 %v4874, %v4873
      %v4903 = vpack.c.bf16 %v4876, %v4875
      %v4904 = vpack.c.bf16 %v4878, %v4877
      %v4905 = vpack.c.bf16 %v4880, %v4879
      %v4906 = vpack.c.bf16 %v4882, %v4881
      %v4907 = vpack.c.bf16 %v4884, %v4883
      %v4908 = vpack.c.bf16 %v4886, %v4885
      %v4909 = vpack.c.bf16 %v4888, %v4887
      %v4910 = vpack.c.bf16 %v4890, %v4889
      %v4911 = vpack.c.bf16 %v4892, %v4891
      %v4912 = vpack.c.bf16 %v4894, %v4893
      %v4913 = vpack.c.bf16 %v4896, %v4895
      %v4914 = vpack.c.bf16 %v4898, %v4897
      %v4915 = vld [vmem:[%s736] sm:$0xf]
      %v4916 = vld [vmem:[%s736 + $0x4] sm:$0xf]
      %v4917 = vld [vmem:[%s736 + $0x8] sm:$0xf]
      %v4918 = vld [vmem:[%s736 + $0xc] sm:$0xf]
      %v4919 = vld [vmem:[%s739] sm:$0x1]
      %v4921 = vperm.slane %v4919, 0
      %v4927 = vunpack.c.l.b16 %v4915
      %v4928 = vunpack.c.l.b16 %v4916
      %v4929 = vunpack.c.l.b16 %v4917
      %v4930 = vunpack.c.l.b16 %v4918
      %v4931 = vpack.c.b16 %v4928, %v4927
      %v4932 = vpack.c.b16 %v4930, %v4929
      %v4936 = vsel %vm1677, %v4899, 0
      %v4939 = vsel %vm1677, %v4900, 0
      %v4942 = vsel %vm1677, %v4901, 0
      %v4945 = vsel %vm1677, %v4902, 0
      %v4948 = vsel %vm1677, %v4903, 0
      %v4951 = vsel %vm1677, %v4904, 0
      %v4954 = vsel %vm1677, %v4905, 0
      %v4957 = vsel %vm1677, %v4906, 0
      %v4960 = vsel %vm1677, %v4907, 0
      %v4963 = vsel %vm1677, %v4908, 0
      %v4966 = vsel %vm1677, %v4909, 0
      %v4969 = vsel %vm1677, %v4910, 0
      %v4972 = vsel %vm1677, %v4911, 0
      %v4975 = vsel %vm1677, %v4912, 0
      %v4978 = vsel %vm1677, %v4913, 0
      %v4981 = vsel %vm1677, %v4914, 0
      %4983 = vmatpush.bf16.msra.mxu0 0
      %4984 = vmatpush.bf16.msra.mxu0 0
      %4985 = vmatpush.bf16.msra.mxu0 0
      %4986 = vmatpush.bf16.msra.mxu0 0
      %4987 = vmatpush.bf16.msra.mxu0 0
      %4988 = vmatpush.bf16.msra.mxu0 0
      %4989 = vmatpush.bf16.msra.mxu0 %v4932
      %4990 = vmatpush.bf16.msra.mxu0 %v4931
      %4991 = vmatmul.bf16.gmra.mxu0 %v4936
      %v4992 = vpop.f32.mrf.mxu0
      %v4993 = vadd.f32 %v4921, %v4992
      %v4994 = vpop.f32.mrf.mxu0
      %v4995 = vadd.f32 %v4921, %v4994
      %4996 = vmatmul.bf16.gmra.mxu0 %v4939
      %v4997 = vpop.f32.mrf.mxu0
      %v4998 = vadd.f32 %v4921, %v4997
      %v4999 = vpop.f32.mrf.mxu0
      %v5000 = vadd.f32 %v4921, %v4999
      %5001 = vmatmul.bf16.gmra.mxu0 %v4942
      %v5002 = vpop.f32.mrf.mxu0
      %v5003 = vadd.f32 %v4921, %v5002
      %v5004 = vpop.f32.mrf.mxu0
      %v5005 = vadd.f32 %v4921, %v5004
      %5006 = vmatmul.bf16.gmra.mxu0 %v4945
      %v5007 = vpop.f32.mrf.mxu0
      %v5008 = vadd.f32 %v4921, %v5007
      %v5009 = vpop.f32.mrf.mxu0
      %v5010 = vadd.f32 %v4921, %v5009
      %5011 = vmatmul.bf16.gmra.mxu0 %v4948
      %v5012 = vpop.f32.mrf.mxu0
      %v5013 = vadd.f32 %v4921, %v5012
      %v5014 = vpop.f32.mrf.mxu0
      %v5015 = vadd.f32 %v4921, %v5014
      %5016 = vmatmul.bf16.gmra.mxu0 %v4951
      %v5017 = vpop.f32.mrf.mxu0
      %v5018 = vadd.f32 %v4921, %v5017
      %v5019 = vpop.f32.mrf.mxu0
      %v5020 = vadd.f32 %v4921, %v5019
      %5021 = vmatmul.bf16.gmra.mxu0 %v4954
      %v5022 = vpop.f32.mrf.mxu0
      %v5023 = vadd.f32 %v4921, %v5022
      %v5024 = vpop.f32.mrf.mxu0
      %v5025 = vadd.f32 %v4921, %v5024
      %5026 = vmatmul.bf16.gmra.mxu0 %v4957
      %v5027 = vpop.f32.mrf.mxu0
      %v5028 = vadd.f32 %v4921, %v5027
      %v5029 = vpop.f32.mrf.mxu0
      %v5030 = vadd.f32 %v4921, %v5029
      %5031 = vmatmul.bf16.gmra.mxu0 %v4960
      %v5032 = vpop.f32.mrf.mxu0
      %v5033 = vadd.f32 %v4921, %v5032
      %v5034 = vpop.f32.mrf.mxu0
      %v5035 = vadd.f32 %v4921, %v5034
      %5036 = vmatmul.bf16.gmra.mxu0 %v4963
      %v5037 = vpop.f32.mrf.mxu0
      %v5038 = vadd.f32 %v4921, %v5037
      %v5039 = vpop.f32.mrf.mxu0
      %v5040 = vadd.f32 %v4921, %v5039
      %5041 = vmatmul.bf16.gmra.mxu0 %v4966
      %v5042 = vpop.f32.mrf.mxu0
      %v5043 = vadd.f32 %v4921, %v5042
      %v5044 = vpop.f32.mrf.mxu0
      %v5045 = vadd.f32 %v4921, %v5044
      %5046 = vmatmul.bf16.gmra.mxu0 %v4969
      %v5047 = vpop.f32.mrf.mxu0
      %v5048 = vadd.f32 %v4921, %v5047
      %v5049 = vpop.f32.mrf.mxu0
      %v5050 = vadd.f32 %v4921, %v5049
      %5051 = vmatmul.bf16.gmra.mxu0 %v4972
      %v5052 = vpop.f32.mrf.mxu0
      %v5053 = vadd.f32 %v4921, %v5052
      %v5054 = vpop.f32.mrf.mxu0
      %v5055 = vadd.f32 %v4921, %v5054
      %5056 = vmatmul.bf16.gmra.mxu0 %v4975
      %v5057 = vpop.f32.mrf.mxu0
      %v5058 = vadd.f32 %v4921, %v5057
      %v5059 = vpop.f32.mrf.mxu0
      %v5060 = vadd.f32 %v4921, %v5059
      %5061 = vmatmul.bf16.gmra.mxu0 %v4978
      %v5062 = vpop.f32.mrf.mxu0
      %v5063 = vadd.f32 %v4921, %v5062
      %v5064 = vpop.f32.mrf.mxu0
      %v5065 = vadd.f32 %v4921, %v5064
      %5066 = vmatmul.bf16.gmra.mxu0 %v4981
      %v5067 = vpop.f32.mrf.mxu0
      %v5068 = vadd.f32 %v4921, %v5067
      %v5069 = vpop.f32.mrf.mxu0
      %v5070 = vadd.f32 %v4921, %v5069
      %5071 = vdwg.mxu0
      %v5072 = vmul.f32 %v4993, 0.5
      %v5073 = vmul.f32 %v4995, 0.5
      %v5074 = vmul.f32 %v4998, 0.5
      %v5075 = vmul.f32 %v5000, 0.5
      %v5076 = vmul.f32 %v5003, 0.5
      %v5077 = vmul.f32 %v5005, 0.5
      %v5078 = vmul.f32 %v5008, 0.5
      %v5079 = vmul.f32 %v5010, 0.5
      %v5080 = vmul.f32 %v5013, 0.5
      %v5081 = vmul.f32 %v5015, 0.5
      %v5082 = vmul.f32 %v5018, 0.5
      %v5083 = vmul.f32 %v5020, 0.5
      %v5084 = vmul.f32 %v5023, 0.5
      %v5085 = vmul.f32 %v5025, 0.5
      %v5086 = vmul.f32 %v5028, 0.5
      %v5087 = vmul.f32 %v5030, 0.5
      %v5088 = vmul.f32 %v5033, 0.5
      %v5089 = vmul.f32 %v5035, 0.5
      %v5090 = vmul.f32 %v5038, 0.5
      %v5091 = vmul.f32 %v5040, 0.5
      %v5092 = vmul.f32 %v5043, 0.5
      %v5093 = vmul.f32 %v5045, 0.5
      %v5094 = vmul.f32 %v5048, 0.5
      %v5095 = vmul.f32 %v5050, 0.5
      %v5096 = vmul.f32 %v5053, 0.5
      %v5097 = vmul.f32 %v5055, 0.5
      %v5098 = vmul.f32 %v5058, 0.5
      %v5099 = vmul.f32 %v5060, 0.5
      %v5100 = vmul.f32 %v5063, 0.5
      %v5101 = vmul.f32 %v5065, 0.5
      %v5102 = vmul.f32 %v5068, 0.5
      %v5103 = vmul.f32 %v5070, 0.5
      %v5104 = vmul.f32 %v4993, 0.044715
      %v5105 = vmul.f32 %v4995, 0.044715
      %v5106 = vmul.f32 %v4998, 0.044715
      %v5107 = vmul.f32 %v5000, 0.044715
      %v5108 = vmul.f32 %v5003, 0.044715
      %v5109 = vmul.f32 %v5005, 0.044715
      %v5110 = vmul.f32 %v5008, 0.044715
      %v5111 = vmul.f32 %v5010, 0.044715
      %v5112 = vmul.f32 %v5013, 0.044715
      %v5113 = vmul.f32 %v5015, 0.044715
      %v5114 = vmul.f32 %v5018, 0.044715
      %v5115 = vmul.f32 %v5020, 0.044715
      %v5116 = vmul.f32 %v5023, 0.044715
      %v5117 = vmul.f32 %v5025, 0.044715
      %v5118 = vmul.f32 %v5028, 0.044715
      %v5119 = vmul.f32 %v5030, 0.044715
      %v5120 = vmul.f32 %v5033, 0.044715
      %v5121 = vmul.f32 %v5035, 0.044715
      %v5122 = vmul.f32 %v5038, 0.044715
      %v5123 = vmul.f32 %v5040, 0.044715
      %v5124 = vmul.f32 %v5043, 0.044715
      %v5125 = vmul.f32 %v5045, 0.044715
      %v5126 = vmul.f32 %v5048, 0.044715
      %v5127 = vmul.f32 %v5050, 0.044715
      %v5128 = vmul.f32 %v5053, 0.044715
      %v5129 = vmul.f32 %v5055, 0.044715
      %v5130 = vmul.f32 %v5058, 0.044715
      %v5131 = vmul.f32 %v5060, 0.044715
      %v5132 = vmul.f32 %v5063, 0.044715
      %v5133 = vmul.f32 %v5065, 0.044715
      %v5134 = vmul.f32 %v5068, 0.044715
      %v5135 = vmul.f32 %v5070, 0.044715
      %v5136 = vmul.f32 %v5104, %v4993
      %v5137 = vmul.f32 %v5105, %v4995
      %v5138 = vmul.f32 %v5106, %v4998
      %v5139 = vmul.f32 %v5107, %v5000
      %v5140 = vmul.f32 %v5108, %v5003
      %v5141 = vmul.f32 %v5109, %v5005
      %v5142 = vmul.f32 %v5110, %v5008
      %v5143 = vmul.f32 %v5111, %v5010
      %v5144 = vmul.f32 %v5112, %v5013
      %v5145 = vmul.f32 %v5113, %v5015
      %v5146 = vmul.f32 %v5114, %v5018
      %v5147 = vmul.f32 %v5115, %v5020
      %v5148 = vmul.f32 %v5116, %v5023
      %v5149 = vmul.f32 %v5117, %v5025
      %v5150 = vmul.f32 %v5118, %v5028
      %v5151 = vmul.f32 %v5119, %v5030
      %v5152 = vmul.f32 %v5120, %v5033
      %v5153 = vmul.f32 %v5121, %v5035
      %v5154 = vmul.f32 %v5122, %v5038
      %v5155 = vmul.f32 %v5123, %v5040
      %v5156 = vmul.f32 %v5124, %v5043
      %v5157 = vmul.f32 %v5125, %v5045
      %v5158 = vmul.f32 %v5126, %v5048
      %v5159 = vmul.f32 %v5127, %v5050
      %v5160 = vmul.f32 %v5128, %v5053
      %v5161 = vmul.f32 %v5129, %v5055
      %v5162 = vmul.f32 %v5130, %v5058
      %v5163 = vmul.f32 %v5131, %v5060
      %v5164 = vmul.f32 %v5132, %v5063
      %v5165 = vmul.f32 %v5133, %v5065
      %v5166 = vmul.f32 %v5134, %v5068
      %v5167 = vmul.f32 %v5135, %v5070
      %v5168 = vmul.f32 %v5136, %v4993
      %v5169 = vmul.f32 %v5137, %v4995
      %v5170 = vmul.f32 %v5138, %v4998
      %v5171 = vmul.f32 %v5139, %v5000
      %v5172 = vmul.f32 %v5140, %v5003
      %v5173 = vmul.f32 %v5141, %v5005
      %v5174 = vmul.f32 %v5142, %v5008
      %v5175 = vmul.f32 %v5143, %v5010
      %v5176 = vmul.f32 %v5144, %v5013
      %v5177 = vmul.f32 %v5145, %v5015
      %v5178 = vmul.f32 %v5146, %v5018
      %v5179 = vmul.f32 %v5147, %v5020
      %v5180 = vmul.f32 %v5148, %v5023
      %v5181 = vmul.f32 %v5149, %v5025
      %v5182 = vmul.f32 %v5150, %v5028
      %v5183 = vmul.f32 %v5151, %v5030
      %v5184 = vmul.f32 %v5152, %v5033
      %v5185 = vmul.f32 %v5153, %v5035
      %v5186 = vmul.f32 %v5154, %v5038
      %v5187 = vmul.f32 %v5155, %v5040
      %v5188 = vmul.f32 %v5156, %v5043
      %v5189 = vmul.f32 %v5157, %v5045
      %v5190 = vmul.f32 %v5158, %v5048
      %v5191 = vmul.f32 %v5159, %v5050
      %v5192 = vmul.f32 %v5160, %v5053
      %v5193 = vmul.f32 %v5161, %v5055
      %v5194 = vmul.f32 %v5162, %v5058
      %v5195 = vmul.f32 %v5163, %v5060
      %v5196 = vmul.f32 %v5164, %v5063
      %v5197 = vmul.f32 %v5165, %v5065
      %v5198 = vmul.f32 %v5166, %v5068
      %v5199 = vmul.f32 %v5167, %v5070
      %v5200 = vadd.f32 %v4993, %v5168
      %v5201 = vadd.f32 %v4995, %v5169
      %v5202 = vadd.f32 %v4998, %v5170
      %v5203 = vadd.f32 %v5000, %v5171
      %v5204 = vadd.f32 %v5003, %v5172
      %v5205 = vadd.f32 %v5005, %v5173
      %v5206 = vadd.f32 %v5008, %v5174
      %v5207 = vadd.f32 %v5010, %v5175
      %v5208 = vadd.f32 %v5013, %v5176
      %v5209 = vadd.f32 %v5015, %v5177
      %v5210 = vadd.f32 %v5018, %v5178
      %v5211 = vadd.f32 %v5020, %v5179
      %v5212 = vadd.f32 %v5023, %v5180
      %v5213 = vadd.f32 %v5025, %v5181
      %v5214 = vadd.f32 %v5028, %v5182
      %v5215 = vadd.f32 %v5030, %v5183
      %v5216 = vadd.f32 %v5033, %v5184
      %v5217 = vadd.f32 %v5035, %v5185
      %v5218 = vadd.f32 %v5038, %v5186
      %v5219 = vadd.f32 %v5040, %v5187
      %v5220 = vadd.f32 %v5043, %v5188
      %v5221 = vadd.f32 %v5045, %v5189
      %v5222 = vadd.f32 %v5048, %v5190
      %v5223 = vadd.f32 %v5050, %v5191
      %v5224 = vadd.f32 %v5053, %v5192
      %v5225 = vadd.f32 %v5055, %v5193
      %v5226 = vadd.f32 %v5058, %v5194
      %v5227 = vadd.f32 %v5060, %v5195
      %v5228 = vadd.f32 %v5063, %v5196
      %v5229 = vadd.f32 %v5065, %v5197
      %v5230 = vadd.f32 %v5068, %v5198
      %v5231 = vadd.f32 %v5070, %v5199
      %v5232 = vmul.f32 %v5200, 0.7978846
      %v5233 = vmul.f32 %v5201, 0.7978846
      %v5234 = vmul.f32 %v5202, 0.7978846
      %v5235 = vmul.f32 %v5203, 0.7978846
      %v5236 = vmul.f32 %v5204, 0.7978846
      %v5237 = vmul.f32 %v5205, 0.7978846
      %v5238 = vmul.f32 %v5206, 0.7978846
      %v5239 = vmul.f32 %v5207, 0.7978846
      %v5240 = vmul.f32 %v5208, 0.7978846
      %v5241 = vmul.f32 %v5209, 0.7978846
      %v5242 = vmul.f32 %v5210, 0.7978846
      %v5243 = vmul.f32 %v5211, 0.7978846
      %v5244 = vmul.f32 %v5212, 0.7978846
      %v5245 = vmul.f32 %v5213, 0.7978846
      %v5246 = vmul.f32 %v5214, 0.7978846
      %v5247 = vmul.f32 %v5215, 0.7978846
      %v5248 = vmul.f32 %v5216, 0.7978846
      %v5249 = vmul.f32 %v5217, 0.7978846
      %v5250 = vmul.f32 %v5218, 0.7978846
      %v5251 = vmul.f32 %v5219, 0.7978846
      %v5252 = vmul.f32 %v5220, 0.7978846
      %v5253 = vmul.f32 %v5221, 0.7978846
      %v5254 = vmul.f32 %v5222, 0.7978846
      %v5255 = vmul.f32 %v5223, 0.7978846
      %v5256 = vmul.f32 %v5224, 0.7978846
      %v5257 = vmul.f32 %v5225, 0.7978846
      %v5258 = vmul.f32 %v5226, 0.7978846
      %v5259 = vmul.f32 %v5227, 0.7978846
      %v5260 = vmul.f32 %v5228, 0.7978846
      %v5261 = vmul.f32 %v5229, 0.7978846
      %v5262 = vmul.f32 %v5230, 0.7978846
      %v5263 = vmul.f32 %v5231, 0.7978846
      %v5264 = vtanh.pop %v5232
      %v5265 = vtanh.pop %v5233
      %v5266 = vtanh.pop %v5234
      %v5267 = vtanh.pop %v5235
      %v5268 = vtanh.pop %v5236
      %v5269 = vtanh.pop %v5237
      %v5270 = vtanh.pop %v5238
      %v5271 = vtanh.pop %v5239
      %v5272 = vtanh.pop %v5240
      %v5273 = vtanh.pop %v5241
      %v5274 = vtanh.pop %v5242
      %v5275 = vtanh.pop %v5243
      %v5276 = vtanh.pop %v5244
      %v5277 = vtanh.pop %v5245
      %v5278 = vtanh.pop %v5246
      %v5279 = vtanh.pop %v5247
      %v5280 = vtanh.pop %v5248
      %v5281 = vtanh.pop %v5249
      %v5282 = vtanh.pop %v5250
      %v5283 = vtanh.pop %v5251
      %v5284 = vtanh.pop %v5252
      %v5285 = vtanh.pop %v5253
      %v5286 = vtanh.pop %v5254
      %v5287 = vtanh.pop %v5255
      %v5288 = vtanh.pop %v5256
      %v5289 = vtanh.pop %v5257
      %v5290 = vtanh.pop %v5258
      %v5291 = vtanh.pop %v5259
      %v5292 = vtanh.pop %v5260
      %v5293 = vtanh.pop %v5261
      %v5294 = vtanh.pop %v5262
      %v5295 = vtanh.pop %v5263
      %v5296 = vadd.f32 %v5264, 1.0
      %v5297 = vadd.f32 %v5265, 1.0
      %v5298 = vadd.f32 %v5266, 1.0
      %v5299 = vadd.f32 %v5267, 1.0
      %v5300 = vadd.f32 %v5268, 1.0
      %v5301 = vadd.f32 %v5269, 1.0
      %v5302 = vadd.f32 %v5270, 1.0
      %v5303 = vadd.f32 %v5271, 1.0
      %v5304 = vadd.f32 %v5272, 1.0
      %v5305 = vadd.f32 %v5273, 1.0
      %v5306 = vadd.f32 %v5274, 1.0
      %v5307 = vadd.f32 %v5275, 1.0
      %v5308 = vadd.f32 %v5276, 1.0
      %v5309 = vadd.f32 %v5277, 1.0
      %v5310 = vadd.f32 %v5278, 1.0
      %v5311 = vadd.f32 %v5279, 1.0
      %v5312 = vadd.f32 %v5280, 1.0
      %v5313 = vadd.f32 %v5281, 1.0
      %v5314 = vadd.f32 %v5282, 1.0
      %v5315 = vadd.f32 %v5283, 1.0
      %v5316 = vadd.f32 %v5284, 1.0
      %v5317 = vadd.f32 %v5285, 1.0
      %v5318 = vadd.f32 %v5286, 1.0
      %v5319 = vadd.f32 %v5287, 1.0
      %v5320 = vadd.f32 %v5288, 1.0
      %v5321 = vadd.f32 %v5289, 1.0
      %v5322 = vadd.f32 %v5290, 1.0
      %v5323 = vadd.f32 %v5291, 1.0
      %v5324 = vadd.f32 %v5292, 1.0
      %v5325 = vadd.f32 %v5293, 1.0
      %v5326 = vadd.f32 %v5294, 1.0
      %v5327 = vadd.f32 %v5295, 1.0
      %v5328 = vmul.f32 %v5072, %v5296
      %v5329 = vmul.f32 %v5073, %v5297
      %v5330 = vmul.f32 %v5074, %v5298
      %v5331 = vmul.f32 %v5075, %v5299
      %v5332 = vmul.f32 %v5076, %v5300
      %v5333 = vmul.f32 %v5077, %v5301
      %v5334 = vmul.f32 %v5078, %v5302
      %v5335 = vmul.f32 %v5079, %v5303
      %v5336 = vmul.f32 %v5080, %v5304
      %v5337 = vmul.f32 %v5081, %v5305
      %v5338 = vmul.f32 %v5082, %v5306
      %v5339 = vmul.f32 %v5083, %v5307
      %v5340 = vmul.f32 %v5084, %v5308
      %v5341 = vmul.f32 %v5085, %v5309
      %v5342 = vmul.f32 %v5086, %v5310
      %v5343 = vmul.f32 %v5087, %v5311
      %v5344 = vmul.f32 %v5088, %v5312
      %v5345 = vmul.f32 %v5089, %v5313
      %v5346 = vmul.f32 %v5090, %v5314
      %v5347 = vmul.f32 %v5091, %v5315
      %v5348 = vmul.f32 %v5092, %v5316
      %v5349 = vmul.f32 %v5093, %v5317
      %v5350 = vmul.f32 %v5094, %v5318
      %v5351 = vmul.f32 %v5095, %v5319
      %v5352 = vmul.f32 %v5096, %v5320
      %v5353 = vmul.f32 %v5097, %v5321
      %v5354 = vmul.f32 %v5098, %v5322
      %v5355 = vmul.f32 %v5099, %v5323
      %v5356 = vmul.f32 %v5100, %v5324
      %v5357 = vmul.f32 %v5101, %v5325
      %v5358 = vmul.f32 %v5102, %v5326
      %v5359 = vmul.f32 %v5103, %v5327
      %v5360 = vpack.c.bf16 %v5329, %v5328
      %v5361 = vpack.c.bf16 %v5331, %v5330
      %v5362 = vpack.c.bf16 %v5333, %v5332
      %v5363 = vpack.c.bf16 %v5335, %v5334
      %v5364 = vpack.c.bf16 %v5337, %v5336
      %v5365 = vpack.c.bf16 %v5339, %v5338
      %v5366 = vpack.c.bf16 %v5341, %v5340
      %v5367 = vpack.c.bf16 %v5343, %v5342
      %v5368 = vpack.c.bf16 %v5345, %v5344
      %v5369 = vpack.c.bf16 %v5347, %v5346
      %v5370 = vpack.c.bf16 %v5349, %v5348
      %v5371 = vpack.c.bf16 %v5351, %v5350
      %v5372 = vpack.c.bf16 %v5353, %v5352
      %v5373 = vpack.c.bf16 %v5355, %v5354
      %v5374 = vpack.c.bf16 %v5357, %v5356
      %v5375 = vpack.c.bf16 %v5359, %v5358
      %v5376 = vld [vmem:[%s744] sm:$0xf]
      %v5377 = vld [vmem:[%s744 + $0x4] sm:$0xf]
      %v5378 = vld [vmem:[%s744 + $0x8] sm:$0xf]
      %v5379 = vld [vmem:[%s744 + $0xc] sm:$0xf]
      %v5380 = vld [vmem:[%s744 + $0x10] sm:$0xf]
      %v5381 = vld [vmem:[%s744 + $0x14] sm:$0xf]
      %v5382 = vld [vmem:[%s744 + $0x18] sm:$0xf]
      %v5383 = vld [vmem:[%s744 + $0x1c] sm:$0xf]
      %v5384 = vld [vmem:[%s744 + $0x20] sm:$0xf]
      %v5385 = vld [vmem:[%s744 + $0x24] sm:$0xf]
      %v5386 = vld [vmem:[%s744 + $0x28] sm:$0xf]
      %v5387 = vld [vmem:[%s744 + $0x2c] sm:$0xf]
      %v5388 = vld [vmem:[%s744 + $0x30] sm:$0xf]
      %v5389 = vld [vmem:[%s744 + $0x34] sm:$0xf]
      %v5390 = vld [vmem:[%s744 + $0x38] sm:$0xf]
      %v5391 = vld [vmem:[%s744 + $0x3c] sm:$0xf]
      %v5408 = vunpack.c.l.b16 %v5376
      %v5409 = vunpack.c.l.b16 %v5377
      %v5410 = vunpack.c.l.b16 %v5378
      %v5411 = vunpack.c.l.b16 %v5379
      %v5412 = vunpack.c.l.b16 %v5380
      %v5413 = vunpack.c.l.b16 %v5381
      %v5414 = vunpack.c.l.b16 %v5382
      %v5415 = vunpack.c.l.b16 %v5383
      %v5416 = vunpack.c.l.b16 %v5384
      %v5417 = vunpack.c.l.b16 %v5385
      %v5418 = vunpack.c.l.b16 %v5386
      %v5419 = vunpack.c.l.b16 %v5387
      %v5420 = vunpack.c.l.b16 %v5388
      %v5421 = vunpack.c.l.b16 %v5389
      %v5422 = vunpack.c.l.b16 %v5390
      %v5423 = vunpack.c.l.b16 %v5391
      %v5424 = vpack.c.b16 %v5409, %v5408
      %v5425 = vpack.c.b16 %v5411, %v5410
      %v5426 = vpack.c.b16 %v5413, %v5412
      %v5427 = vpack.c.b16 %v5415, %v5414
      %v5428 = vpack.c.b16 %v5417, %v5416
      %v5429 = vpack.c.b16 %v5419, %v5418
      %v5430 = vpack.c.b16 %v5421, %v5420
      %v5431 = vpack.c.b16 %v5423, %v5422
      %5440 = vmatpush.bf16.msra.mxu0 %v5431
      %5441 = vmatpush.bf16.msra.mxu0 %v5430
      %5442 = vmatpush.bf16.msra.mxu0 %v5429
      %5443 = vmatpush.bf16.msra.mxu0 %v5428
      %5444 = vmatpush.bf16.msra.mxu0 %v5427
      %5445 = vmatpush.bf16.msra.mxu0 %v5426
      %5446 = vmatpush.bf16.msra.mxu0 %v5425
      %5447 = vmatpush.bf16.msra.mxu0 %v5424
      %5448 = vmatmul.bf16.gmra.mxu0 %v5360
      %v5449 = vpop.f32.mrf.mxu0
      %v5450 = vadd.f32 0.0, %v5449
      %v5451 = vpop.f32.mrf.mxu0
      %v5452 = vadd.f32 0.0, %v5451
      %5453 = vmatmul.bf16.gmra.mxu0 %v5361
      %v5454 = vpop.f32.mrf.mxu0
      %v5455 = vadd.f32 0.0, %v5454
      %v5456 = vpop.f32.mrf.mxu0
      %v5457 = vadd.f32 0.0, %v5456
      %5458 = vmatmul.bf16.gmra.mxu0 %v5362
      %v5459 = vpop.f32.mrf.mxu0
      %v5460 = vadd.f32 0.0, %v5459
      %v5461 = vpop.f32.mrf.mxu0
      %v5462 = vadd.f32 0.0, %v5461
      %5463 = vmatmul.bf16.gmra.mxu0 %v5363
      %v5464 = vpop.f32.mrf.mxu0
      %v5465 = vadd.f32 0.0, %v5464
      %v5466 = vpop.f32.mrf.mxu0
      %v5467 = vadd.f32 0.0, %v5466
      %5468 = vmatmul.bf16.gmra.mxu0 %v5364
      %v5469 = vpop.f32.mrf.mxu0
      %v5470 = vadd.f32 0.0, %v5469
      %v5471 = vpop.f32.mrf.mxu0
      %v5472 = vadd.f32 0.0, %v5471
      %5473 = vmatmul.bf16.gmra.mxu0 %v5365
      %v5474 = vpop.f32.mrf.mxu0
      %v5475 = vadd.f32 0.0, %v5474
      %v5476 = vpop.f32.mrf.mxu0
      %v5477 = vadd.f32 0.0, %v5476
      %5478 = vmatmul.bf16.gmra.mxu0 %v5366
      %v5479 = vpop.f32.mrf.mxu0
      %v5480 = vadd.f32 0.0, %v5479
      %v5481 = vpop.f32.mrf.mxu0
      %v5482 = vadd.f32 0.0, %v5481
      %5483 = vmatmul.bf16.gmra.mxu0 %v5367
      %v5484 = vpop.f32.mrf.mxu0
      %v5485 = vadd.f32 0.0, %v5484
      %v5486 = vpop.f32.mrf.mxu0
      %v5487 = vadd.f32 0.0, %v5486
      %5488 = vmatmul.bf16.gmra.mxu0 %v5368
      %v5489 = vpop.f32.mrf.mxu0
      %v5490 = vadd.f32 0.0, %v5489
      %v5491 = vpop.f32.mrf.mxu0
      %v5492 = vadd.f32 0.0, %v5491
      %5493 = vmatmul.bf16.gmra.mxu0 %v5369
      %v5494 = vpop.f32.mrf.mxu0
      %v5495 = vadd.f32 0.0, %v5494
      %v5496 = vpop.f32.mrf.mxu0
      %v5497 = vadd.f32 0.0, %v5496
      %5498 = vmatmul.bf16.gmra.mxu0 %v5370
      %v5499 = vpop.f32.mrf.mxu0
      %v5500 = vadd.f32 0.0, %v5499
      %v5501 = vpop.f32.mrf.mxu0
      %v5502 = vadd.f32 0.0, %v5501
      %5503 = vmatmul.bf16.gmra.mxu0 %v5371
      %v5504 = vpop.f32.mrf.mxu0
      %v5505 = vadd.f32 0.0, %v5504
      %v5506 = vpop.f32.mrf.mxu0
      %v5507 = vadd.f32 0.0, %v5506
      %5508 = vmatmul.bf16.gmra.mxu0 %v5372
      %v5509 = vpop.f32.mrf.mxu0
      %v5510 = vadd.f32 0.0, %v5509
      %v5511 = vpop.f32.mrf.mxu0
      %v5512 = vadd.f32 0.0, %v5511
      %5513 = vmatmul.bf16.gmra.mxu0 %v5373
      %v5514 = vpop.f32.mrf.mxu0
      %v5515 = vadd.f32 0.0, %v5514
      %v5516 = vpop.f32.mrf.mxu0
      %v5517 = vadd.f32 0.0, %v5516
      %5518 = vmatmul.bf16.gmra.mxu0 %v5374
      %v5519 = vpop.f32.mrf.mxu0
      %v5520 = vadd.f32 0.0, %v5519
      %v5521 = vpop.f32.mrf.mxu0
      %v5522 = vadd.f32 0.0, %v5521
      %5523 = vmatmul.bf16.gmra.mxu0 %v5375
      %v5524 = vpop.f32.mrf.mxu0
      %v5525 = vadd.f32 0.0, %v5524
      %v5526 = vpop.f32.mrf.mxu0
      %v5527 = vadd.f32 0.0, %v5526
      %5528 = vdwg.mxu0
      %v5529 = vld [vmem:[%s747] sm:$0x1]
      %v5531 = vperm.slane %v5529, 0
      %v5533 = vadd.f32 %v5450, %v5531
      %v5534 = vadd.f32 %v5452, %v5531
      %v5535 = vadd.f32 %v5455, %v5531
      %v5536 = vadd.f32 %v5457, %v5531
      %v5537 = vadd.f32 %v5460, %v5531
      %v5538 = vadd.f32 %v5462, %v5531
      %v5539 = vadd.f32 %v5465, %v5531
      %v5540 = vadd.f32 %v5467, %v5531
      %v5541 = vadd.f32 %v5470, %v5531
      %v5542 = vadd.f32 %v5472, %v5531
      %v5543 = vadd.f32 %v5475, %v5531
      %v5544 = vadd.f32 %v5477, %v5531
      %v5545 = vadd.f32 %v5480, %v5531
      %v5546 = vadd.f32 %v5482, %v5531
      %v5547 = vadd.f32 %v5485, %v5531
      %v5548 = vadd.f32 %v5487, %v5531
      %v5549 = vadd.f32 %v5490, %v5531
      %v5550 = vadd.f32 %v5492, %v5531
      %v5551 = vadd.f32 %v5495, %v5531
      %v5552 = vadd.f32 %v5497, %v5531
      %v5553 = vadd.f32 %v5500, %v5531
      %v5554 = vadd.f32 %v5502, %v5531
      %v5555 = vadd.f32 %v5505, %v5531
      %v5556 = vadd.f32 %v5507, %v5531
      %v5557 = vadd.f32 %v5510, %v5531
      %v5558 = vadd.f32 %v5512, %v5531
      %v5559 = vadd.f32 %v5515, %v5531
      %v5560 = vadd.f32 %v5517, %v5531
      %v5561 = vadd.f32 %v5520, %v5531
      %v5562 = vadd.f32 %v5522, %v5531
      %v5563 = vadd.f32 %v5525, %v5531
      %v5564 = vadd.f32 %v5527, %v5531
      %v5565 = vadd.f32 %v5533, %v4867
      %v5566 = vadd.f32 %v5534, %v4868
      %v5567 = vadd.f32 %v5535, %v4869
      %v5568 = vadd.f32 %v5536, %v4870
      %v5569 = vadd.f32 %v5537, %v4871
      %v5570 = vadd.f32 %v5538, %v4872
      %v5571 = vadd.f32 %v5539, %v4873
      %v5572 = vadd.f32 %v5540, %v4874
      %v5573 = vadd.f32 %v5541, %v4875
      %v5574 = vadd.f32 %v5542, %v4876
      %v5575 = vadd.f32 %v5543, %v4877
      %v5576 = vadd.f32 %v5544, %v4878
      %v5577 = vadd.f32 %v5545, %v4879
      %v5578 = vadd.f32 %v5546, %v4880
      %v5579 = vadd.f32 %v5547, %v4881
      %v5580 = vadd.f32 %v5548, %v4882
      %v5581 = vadd.f32 %v5549, %v4883
      %v5582 = vadd.f32 %v5550, %v4884
      %v5583 = vadd.f32 %v5551, %v4885
      %v5584 = vadd.f32 %v5552, %v4886
      %v5585 = vadd.f32 %v5553, %v4887
      %v5586 = vadd.f32 %v5554, %v4888
      %v5587 = vadd.f32 %v5555, %v4889
      %v5588 = vadd.f32 %v5556, %v4890
      %v5589 = vadd.f32 %v5557, %v4891
      %v5590 = vadd.f32 %v5558, %v4892
      %v5591 = vadd.f32 %v5559, %v4893
      %v5592 = vadd.f32 %v5560, %v4894
      %v5593 = vadd.f32 %v5561, %v4895
      %v5594 = vadd.f32 %v5562, %v4896
      %v5595 = vadd.f32 %v5563, %v4897
      %v5596 = vadd.f32 %v5564, %v4898
      %v5597 = vld [vmem:[%s750] sm:$0x1]
      %v5598 = vld [vmem:[%s753] sm:$0x1]
      %v5599 = vsel %vm1677, %v5565, 0.0
      %5600 = vadd.xlane.f32.xlu0 %v5599
      %v5601 = vpop.xlane.xlu0 %5600
      %v5602 = vsel %vm1677, %v5566, 0.0
      %5603 = vadd.xlane.f32.xlu0 %v5602
      %v5604 = vpop.xlane.xlu0 %5603
      %v5605 = vsel %vm1677, %v5567, 0.0
      %5606 = vadd.xlane.f32.xlu0 %v5605
      %v5607 = vpop.xlane.xlu0 %5606
      %v5608 = vsel %vm1677, %v5568, 0.0
      %5609 = vadd.xlane.f32.xlu0 %v5608
      %v5610 = vpop.xlane.xlu0 %5609
      %v5611 = vsel %vm1677, %v5569, 0.0
      %5612 = vadd.xlane.f32.xlu0 %v5611
      %v5613 = vpop.xlane.xlu0 %5612
      %v5614 = vsel %vm1677, %v5570, 0.0
      %5615 = vadd.xlane.f32.xlu0 %v5614
      %v5616 = vpop.xlane.xlu0 %5615
      %v5617 = vsel %vm1677, %v5571, 0.0
      %5618 = vadd.xlane.f32.xlu0 %v5617
      %v5619 = vpop.xlane.xlu0 %5618
      %v5620 = vsel %vm1677, %v5572, 0.0
      %5621 = vadd.xlane.f32.xlu0 %v5620
      %v5622 = vpop.xlane.xlu0 %5621
      %v5623 = vsel %vm1677, %v5573, 0.0
      %5624 = vadd.xlane.f32.xlu0 %v5623
      %v5625 = vpop.xlane.xlu0 %5624
      %v5626 = vsel %vm1677, %v5574, 0.0
      %5627 = vadd.xlane.f32.xlu0 %v5626
      %v5628 = vpop.xlane.xlu0 %5627
      %v5629 = vsel %vm1677, %v5575, 0.0
      %5630 = vadd.xlane.f32.xlu0 %v5629
      %v5631 = vpop.xlane.xlu0 %5630
      %v5632 = vsel %vm1677, %v5576, 0.0
      %5633 = vadd.xlane.f32.xlu0 %v5632
      %v5634 = vpop.xlane.xlu0 %5633
      %v5635 = vsel %vm1677, %v5577, 0.0
      %5636 = vadd.xlane.f32.xlu0 %v5635
      %v5637 = vpop.xlane.xlu0 %5636
      %v5638 = vsel %vm1677, %v5578, 0.0
      %5639 = vadd.xlane.f32.xlu0 %v5638
      %v5640 = vpop.xlane.xlu0 %5639
      %v5641 = vsel %vm1677, %v5579, 0.0
      %5642 = vadd.xlane.f32.xlu0 %v5641
      %v5643 = vpop.xlane.xlu0 %5642
      %v5644 = vsel %vm1677, %v5580, 0.0
      %5645 = vadd.xlane.f32.xlu0 %v5644
      %v5646 = vpop.xlane.xlu0 %5645
      %v5647 = vsel %vm1677, %v5581, 0.0
      %5648 = vadd.xlane.f32.xlu0 %v5647
      %v5649 = vpop.xlane.xlu0 %5648
      %v5650 = vsel %vm1677, %v5582, 0.0
      %5651 = vadd.xlane.f32.xlu0 %v5650
      %v5652 = vpop.xlane.xlu0 %5651
      %v5653 = vsel %vm1677, %v5583, 0.0
      %5654 = vadd.xlane.f32.xlu0 %v5653
      %v5655 = vpop.xlane.xlu0 %5654
      %v5656 = vsel %vm1677, %v5584, 0.0
      %5657 = vadd.xlane.f32.xlu0 %v5656
      %v5658 = vpop.xlane.xlu0 %5657
      %v5659 = vsel %vm1677, %v5585, 0.0
      %5660 = vadd.xlane.f32.xlu0 %v5659
      %v5661 = vpop.xlane.xlu0 %5660
      %v5662 = vsel %vm1677, %v5586, 0.0
      %5663 = vadd.xlane.f32.xlu0 %v5662
      %v5664 = vpop.xlane.xlu0 %5663
      %v5665 = vsel %vm1677, %v5587, 0.0
      %5666 = vadd.xlane.f32.xlu0 %v5665
      %v5667 = vpop.xlane.xlu0 %5666
      %v5668 = vsel %vm1677, %v5588, 0.0
      %5669 = vadd.xlane.f32.xlu0 %v5668
      %v5670 = vpop.xlane.xlu0 %5669
      %v5671 = vsel %vm1677, %v5589, 0.0
      %5672 = vadd.xlane.f32.xlu0 %v5671
      %v5673 = vpop.xlane.xlu0 %5672
      %v5674 = vsel %vm1677, %v5590, 0.0
      %5675 = vadd.xlane.f32.xlu0 %v5674
      %v5676 = vpop.xlane.xlu0 %5675
      %v5677 = vsel %vm1677, %v5591, 0.0
      %5678 = vadd.xlane.f32.xlu0 %v5677
      %v5679 = vpop.xlane.xlu0 %5678
      %v5680 = vsel %vm1677, %v5592, 0.0
      %5681 = vadd.xlane.f32.xlu0 %v5680
      %v5682 = vpop.xlane.xlu0 %5681
      %v5683 = vsel %vm1677, %v5593, 0.0
      %5684 = vadd.xlane.f32.xlu0 %v5683
      %v5685 = vpop.xlane.xlu0 %5684
      %v5686 = vsel %vm1677, %v5594, 0.0
      %5687 = vadd.xlane.f32.xlu0 %v5686
      %v5688 = vpop.xlane.xlu0 %5687
      %v5689 = vsel %vm1677, %v5595, 0.0
      %5690 = vadd.xlane.f32.xlu0 %v5689
      %v5691 = vpop.xlane.xlu0 %5690
      %v5692 = vsel %vm1677, %v5596, 0.0
      %5693 = vadd.xlane.f32.xlu0 %v5692
      %v5694 = vpop.xlane.xlu0 %5693
      %v5695 = vmul.f32 %v5601, %v4220
      %v5696 = vmul.f32 %v5604, %v4220
      %v5697 = vmul.f32 %v5607, %v4220
      %v5698 = vmul.f32 %v5610, %v4220
      %v5699 = vmul.f32 %v5613, %v4220
      %v5700 = vmul.f32 %v5616, %v4220
      %v5701 = vmul.f32 %v5619, %v4220
      %v5702 = vmul.f32 %v5622, %v4220
      %v5703 = vmul.f32 %v5625, %v4220
      %v5704 = vmul.f32 %v5628, %v4220
      %v5705 = vmul.f32 %v5631, %v4220
      %v5706 = vmul.f32 %v5634, %v4220
      %v5707 = vmul.f32 %v5637, %v4220
      %v5708 = vmul.f32 %v5640, %v4220
      %v5709 = vmul.f32 %v5643, %v4220
      %v5710 = vmul.f32 %v5646, %v4220
      %v5711 = vmul.f32 %v5649, %v4220
      %v5712 = vmul.f32 %v5652, %v4220
      %v5713 = vmul.f32 %v5655, %v4220
      %v5714 = vmul.f32 %v5658, %v4220
      %v5715 = vmul.f32 %v5661, %v4220
      %v5716 = vmul.f32 %v5664, %v4220
      %v5717 = vmul.f32 %v5667, %v4220
      %v5718 = vmul.f32 %v5670, %v4220
      %v5719 = vmul.f32 %v5673, %v4220
      %v5720 = vmul.f32 %v5676, %v4220
      %v5721 = vmul.f32 %v5679, %v4220
      %v5722 = vmul.f32 %v5682, %v4220
      %v5723 = vmul.f32 %v5685, %v4220
      %v5724 = vmul.f32 %v5688, %v4220
      %v5725 = vmul.f32 %v5691, %v4220
      %v5726 = vmul.f32 %v5694, %v4220
      %v5727 = vsub.f32 %v5565, %v5695
      %v5728 = vsub.f32 %v5566, %v5696
      %v5729 = vsub.f32 %v5567, %v5697
      %v5730 = vsub.f32 %v5568, %v5698
      %v5731 = vsub.f32 %v5569, %v5699
      %v5732 = vsub.f32 %v5570, %v5700
      %v5733 = vsub.f32 %v5571, %v5701
      %v5734 = vsub.f32 %v5572, %v5702
      %v5735 = vsub.f32 %v5573, %v5703
      %v5736 = vsub.f32 %v5574, %v5704
      %v5737 = vsub.f32 %v5575, %v5705
      %v5738 = vsub.f32 %v5576, %v5706
      %v5739 = vsub.f32 %v5577, %v5707
      %v5740 = vsub.f32 %v5578, %v5708
      %v5741 = vsub.f32 %v5579, %v5709
      %v5742 = vsub.f32 %v5580, %v5710
      %v5743 = vsub.f32 %v5581, %v5711
      %v5744 = vsub.f32 %v5582, %v5712
      %v5745 = vsub.f32 %v5583, %v5713
      %v5746 = vsub.f32 %v5584, %v5714
      %v5747 = vsub.f32 %v5585, %v5715
      %v5748 = vsub.f32 %v5586, %v5716
      %v5749 = vsub.f32 %v5587, %v5717
      %v5750 = vsub.f32 %v5588, %v5718
      %v5751 = vsub.f32 %v5589, %v5719
      %v5752 = vsub.f32 %v5590, %v5720
      %v5753 = vsub.f32 %v5591, %v5721
      %v5754 = vsub.f32 %v5592, %v5722
      %v5755 = vsub.f32 %v5593, %v5723
      %v5756 = vsub.f32 %v5594, %v5724
      %v5757 = vsub.f32 %v5595, %v5725
      %v5758 = vsub.f32 %v5596, %v5726
      %v5759 = vmul.f32 %v5727, %v5727
      %v5760 = vmul.f32 %v5728, %v5728
      %v5761 = vmul.f32 %v5729, %v5729
      %v5762 = vmul.f32 %v5730, %v5730
      %v5763 = vmul.f32 %v5731, %v5731
      %v5764 = vmul.f32 %v5732, %v5732
      %v5765 = vmul.f32 %v5733, %v5733
      %v5766 = vmul.f32 %v5734, %v5734
      %v5767 = vmul.f32 %v5735, %v5735
      %v5768 = vmul.f32 %v5736, %v5736
      %v5769 = vmul.f32 %v5737, %v5737
      %v5770 = vmul.f32 %v5738, %v5738
      %v5771 = vmul.f32 %v5739, %v5739
      %v5772 = vmul.f32 %v5740, %v5740
      %v5773 = vmul.f32 %v5741, %v5741
      %v5774 = vmul.f32 %v5742, %v5742
      %v5775 = vmul.f32 %v5743, %v5743
      %v5776 = vmul.f32 %v5744, %v5744
      %v5777 = vmul.f32 %v5745, %v5745
      %v5778 = vmul.f32 %v5746, %v5746
      %v5779 = vmul.f32 %v5747, %v5747
      %v5780 = vmul.f32 %v5748, %v5748
      %v5781 = vmul.f32 %v5749, %v5749
      %v5782 = vmul.f32 %v5750, %v5750
      %v5783 = vmul.f32 %v5751, %v5751
      %v5784 = vmul.f32 %v5752, %v5752
      %v5785 = vmul.f32 %v5753, %v5753
      %v5786 = vmul.f32 %v5754, %v5754
      %v5787 = vmul.f32 %v5755, %v5755
      %v5788 = vmul.f32 %v5756, %v5756
      %v5789 = vmul.f32 %v5757, %v5757
      %v5790 = vmul.f32 %v5758, %v5758
      %v5791 = vsel %vm1677, %v5759, 0.0
      %5792 = vadd.xlane.f32.xlu0 %v5791
      %v5793 = vpop.xlane.xlu0 %5792
      %v5794 = vsel %vm1677, %v5760, 0.0
      %5795 = vadd.xlane.f32.xlu0 %v5794
      %v5796 = vpop.xlane.xlu0 %5795
      %v5797 = vsel %vm1677, %v5761, 0.0
      %5798 = vadd.xlane.f32.xlu0 %v5797
      %v5799 = vpop.xlane.xlu0 %5798
      %v5800 = vsel %vm1677, %v5762, 0.0
      %5801 = vadd.xlane.f32.xlu0 %v5800
      %v5802 = vpop.xlane.xlu0 %5801
      %v5803 = vsel %vm1677, %v5763, 0.0
      %5804 = vadd.xlane.f32.xlu0 %v5803
      %v5805 = vpop.xlane.xlu0 %5804
      %v5806 = vsel %vm1677, %v5764, 0.0
      %5807 = vadd.xlane.f32.xlu0 %v5806
      %v5808 = vpop.xlane.xlu0 %5807
      %v5809 = vsel %vm1677, %v5765, 0.0
      %5810 = vadd.xlane.f32.xlu0 %v5809
      %v5811 = vpop.xlane.xlu0 %5810
      %v5812 = vsel %vm1677, %v5766, 0.0
      %5813 = vadd.xlane.f32.xlu0 %v5812
      %v5814 = vpop.xlane.xlu0 %5813
      %v5815 = vsel %vm1677, %v5767, 0.0
      %5816 = vadd.xlane.f32.xlu0 %v5815
      %v5817 = vpop.xlane.xlu0 %5816
      %v5818 = vsel %vm1677, %v5768, 0.0
      %5819 = vadd.xlane.f32.xlu0 %v5818
      %v5820 = vpop.xlane.xlu0 %5819
      %v5821 = vsel %vm1677, %v5769, 0.0
      %5822 = vadd.xlane.f32.xlu0 %v5821
      %v5823 = vpop.xlane.xlu0 %5822
      %v5824 = vsel %vm1677, %v5770, 0.0
      %5825 = vadd.xlane.f32.xlu0 %v5824
      %v5826 = vpop.xlane.xlu0 %5825
      %v5827 = vsel %vm1677, %v5771, 0.0
      %5828 = vadd.xlane.f32.xlu0 %v5827
      %v5829 = vpop.xlane.xlu0 %5828
      %v5830 = vsel %vm1677, %v5772, 0.0
      %5831 = vadd.xlane.f32.xlu0 %v5830
      %v5832 = vpop.xlane.xlu0 %5831
      %v5833 = vsel %vm1677, %v5773, 0.0
      %5834 = vadd.xlane.f32.xlu0 %v5833
      %v5835 = vpop.xlane.xlu0 %5834
      %v5836 = vsel %vm1677, %v5774, 0.0
      %5837 = vadd.xlane.f32.xlu0 %v5836
      %v5838 = vpop.xlane.xlu0 %5837
      %v5839 = vsel %vm1677, %v5775, 0.0
      %5840 = vadd.xlane.f32.xlu0 %v5839
      %v5841 = vpop.xlane.xlu0 %5840
      %v5842 = vsel %vm1677, %v5776, 0.0
      %5843 = vadd.xlane.f32.xlu0 %v5842
      %v5844 = vpop.xlane.xlu0 %5843
      %v5845 = vsel %vm1677, %v5777, 0.0
      %5846 = vadd.xlane.f32.xlu0 %v5845
      %v5847 = vpop.xlane.xlu0 %5846
      %v5848 = vsel %vm1677, %v5778, 0.0
      %5849 = vadd.xlane.f32.xlu0 %v5848
      %v5850 = vpop.xlane.xlu0 %5849
      %v5851 = vsel %vm1677, %v5779, 0.0
      %5852 = vadd.xlane.f32.xlu0 %v5851
      %v5853 = vpop.xlane.xlu0 %5852
      %v5854 = vsel %vm1677, %v5780, 0.0
      %5855 = vadd.xlane.f32.xlu0 %v5854
      %v5856 = vpop.xlane.xlu0 %5855
      %v5857 = vsel %vm1677, %v5781, 0.0
      %5858 = vadd.xlane.f32.xlu0 %v5857
      %v5859 = vpop.xlane.xlu0 %5858
      %v5860 = vsel %vm1677, %v5782, 0.0
      %5861 = vadd.xlane.f32.xlu0 %v5860
      %v5862 = vpop.xlane.xlu0 %5861
      %v5863 = vsel %vm1677, %v5783, 0.0
      %5864 = vadd.xlane.f32.xlu0 %v5863
      %v5865 = vpop.xlane.xlu0 %5864
      %v5866 = vsel %vm1677, %v5784, 0.0
      %5867 = vadd.xlane.f32.xlu0 %v5866
      %v5868 = vpop.xlane.xlu0 %5867
      %v5869 = vsel %vm1677, %v5785, 0.0
      %5870 = vadd.xlane.f32.xlu0 %v5869
      %v5871 = vpop.xlane.xlu0 %5870
      %v5872 = vsel %vm1677, %v5786, 0.0
      %5873 = vadd.xlane.f32.xlu0 %v5872
      %v5874 = vpop.xlane.xlu0 %5873
      %v5875 = vsel %vm1677, %v5787, 0.0
      %5876 = vadd.xlane.f32.xlu0 %v5875
      %v5877 = vpop.xlane.xlu0 %5876
      %v5878 = vsel %vm1677, %v5788, 0.0
      %5879 = vadd.xlane.f32.xlu0 %v5878
      %v5880 = vpop.xlane.xlu0 %5879
      %v5881 = vsel %vm1677, %v5789, 0.0
      %5882 = vadd.xlane.f32.xlu0 %v5881
      %v5883 = vpop.xlane.xlu0 %5882
      %v5884 = vsel %vm1677, %v5790, 0.0
      %5885 = vadd.xlane.f32.xlu0 %v5884
      %v5886 = vpop.xlane.xlu0 %5885
      %v5887 = vmul.f32 %v5793, %v4220
      %v5888 = vmul.f32 %v5796, %v4220
      %v5889 = vmul.f32 %v5799, %v4220
      %v5890 = vmul.f32 %v5802, %v4220
      %v5891 = vmul.f32 %v5805, %v4220
      %v5892 = vmul.f32 %v5808, %v4220
      %v5893 = vmul.f32 %v5811, %v4220
      %v5894 = vmul.f32 %v5814, %v4220
      %v5895 = vmul.f32 %v5817, %v4220
      %v5896 = vmul.f32 %v5820, %v4220
      %v5897 = vmul.f32 %v5823, %v4220
      %v5898 = vmul.f32 %v5826, %v4220
      %v5899 = vmul.f32 %v5829, %v4220
      %v5900 = vmul.f32 %v5832, %v4220
      %v5901 = vmul.f32 %v5835, %v4220
      %v5902 = vmul.f32 %v5838, %v4220
      %v5903 = vmul.f32 %v5841, %v4220
      %v5904 = vmul.f32 %v5844, %v4220
      %v5905 = vmul.f32 %v5847, %v4220
      %v5906 = vmul.f32 %v5850, %v4220
      %v5907 = vmul.f32 %v5853, %v4220
      %v5908 = vmul.f32 %v5856, %v4220
      %v5909 = vmul.f32 %v5859, %v4220
      %v5910 = vmul.f32 %v5862, %v4220
      %v5911 = vmul.f32 %v5865, %v4220
      %v5912 = vmul.f32 %v5868, %v4220
      %v5913 = vmul.f32 %v5871, %v4220
      %v5914 = vmul.f32 %v5874, %v4220
      %v5915 = vmul.f32 %v5877, %v4220
      %v5916 = vmul.f32 %v5880, %v4220
      %v5917 = vmul.f32 %v5883, %v4220
      %v5918 = vmul.f32 %v5886, %v4220
      %v5919 = vadd.f32 %v5887, 1e-06
      %v5920 = vadd.f32 %v5888, 1e-06
      %v5921 = vadd.f32 %v5889, 1e-06
      %v5922 = vadd.f32 %v5890, 1e-06
      %v5923 = vadd.f32 %v5891, 1e-06
      %v5924 = vadd.f32 %v5892, 1e-06
      %v5925 = vadd.f32 %v5893, 1e-06
      %v5926 = vadd.f32 %v5894, 1e-06
      %v5927 = vadd.f32 %v5895, 1e-06
      %v5928 = vadd.f32 %v5896, 1e-06
      %v5929 = vadd.f32 %v5897, 1e-06
      %v5930 = vadd.f32 %v5898, 1e-06
      %v5931 = vadd.f32 %v5899, 1e-06
      %v5932 = vadd.f32 %v5900, 1e-06
      %v5933 = vadd.f32 %v5901, 1e-06
      %v5934 = vadd.f32 %v5902, 1e-06
      %v5935 = vadd.f32 %v5903, 1e-06
      %v5936 = vadd.f32 %v5904, 1e-06
      %v5937 = vadd.f32 %v5905, 1e-06
      %v5938 = vadd.f32 %v5906, 1e-06
      %v5939 = vadd.f32 %v5907, 1e-06
      %v5940 = vadd.f32 %v5908, 1e-06
      %v5941 = vadd.f32 %v5909, 1e-06
      %v5942 = vadd.f32 %v5910, 1e-06
      %v5943 = vadd.f32 %v5911, 1e-06
      %v5944 = vadd.f32 %v5912, 1e-06
      %v5945 = vadd.f32 %v5913, 1e-06
      %v5946 = vadd.f32 %v5914, 1e-06
      %v5947 = vadd.f32 %v5915, 1e-06
      %v5948 = vadd.f32 %v5916, 1e-06
      %v5949 = vadd.f32 %v5917, 1e-06
      %v5950 = vadd.f32 %v5918, 1e-06
      %v5951 = vrsqrt.pop %v5919
      %v5952 = vmul.f32 %v5951, %v5919
      %v5953 = vmul.f32 %v5952, %v5951
      %v5954 = vmul.f32 0.5, %v5953
      %v5955 = vsub.f32 1.5, %v5954
      %v5956 = vmul.f32 %v5951, %v5955
      %vm5957 = vweird.f32 %v5919
      %vm5958 = vweird.f32 %v5951
      %vm5959 = vmor %vm5957, %vm5958
      %v5960 = vsel %vm5959, %v5951, %v5956
      %v5961 = vrsqrt.pop %v5920
      %v5962 = vmul.f32 %v5961, %v5920
      %v5963 = vmul.f32 %v5962, %v5961
      %v5964 = vmul.f32 0.5, %v5963
      %v5965 = vsub.f32 1.5, %v5964
      %v5966 = vmul.f32 %v5961, %v5965
      %vm5967 = vweird.f32 %v5920
      %vm5968 = vweird.f32 %v5961
      %vm5969 = vmor %vm5967, %vm5968
      %v5970 = vsel %vm5969, %v5961, %v5966
      %v5971 = vrsqrt.pop %v5921
      %v5972 = vmul.f32 %v5971, %v5921
      %v5973 = vmul.f32 %v5972, %v5971
      %v5974 = vmul.f32 0.5, %v5973
      %v5975 = vsub.f32 1.5, %v5974
      %v5976 = vmul.f32 %v5971, %v5975
      %vm5977 = vweird.f32 %v5921
      %vm5978 = vweird.f32 %v5971
      %vm5979 = vmor %vm5977, %vm5978
      %v5980 = vsel %vm5979, %v5971, %v5976
      %v5981 = vrsqrt.pop %v5922
      %v5982 = vmul.f32 %v5981, %v5922
      %v5983 = vmul.f32 %v5982, %v5981
      %v5984 = vmul.f32 0.5, %v5983
      %v5985 = vsub.f32 1.5, %v5984
      %v5986 = vmul.f32 %v5981, %v5985
      %vm5987 = vweird.f32 %v5922
      %vm5988 = vweird.f32 %v5981
      %vm5989 = vmor %vm5987, %vm5988
      %v5990 = vsel %vm5989, %v5981, %v5986
      %v5991 = vrsqrt.pop %v5923
      %v5992 = vmul.f32 %v5991, %v5923
      %v5993 = vmul.f32 %v5992, %v5991
      %v5994 = vmul.f32 0.5, %v5993
      %v5995 = vsub.f32 1.5, %v5994
      %v5996 = vmul.f32 %v5991, %v5995
      %vm5997 = vweird.f32 %v5923
      %vm5998 = vweird.f32 %v5991
      %vm5999 = vmor %vm5997, %vm5998
      %v6000 = vsel %vm5999, %v5991, %v5996
      %v6001 = vrsqrt.pop %v5924
      %v6002 = vmul.f32 %v6001, %v5924
      %v6003 = vmul.f32 %v6002, %v6001
      %v6004 = vmul.f32 0.5, %v6003
      %v6005 = vsub.f32 1.5, %v6004
      %v6006 = vmul.f32 %v6001, %v6005
      %vm6007 = vweird.f32 %v5924
      %vm6008 = vweird.f32 %v6001
      %vm6009 = vmor %vm6007, %vm6008
      %v6010 = vsel %vm6009, %v6001, %v6006
      %v6011 = vrsqrt.pop %v5925
      %v6012 = vmul.f32 %v6011, %v5925
      %v6013 = vmul.f32 %v6012, %v6011
      %v6014 = vmul.f32 0.5, %v6013
      %v6015 = vsub.f32 1.5, %v6014
      %v6016 = vmul.f32 %v6011, %v6015
      %vm6017 = vweird.f32 %v5925
      %vm6018 = vweird.f32 %v6011
      %vm6019 = vmor %vm6017, %vm6018
      %v6020 = vsel %vm6019, %v6011, %v6016
      %v6021 = vrsqrt.pop %v5926
      %v6022 = vmul.f32 %v6021, %v5926
      %v6023 = vmul.f32 %v6022, %v6021
      %v6024 = vmul.f32 0.5, %v6023
      %v6025 = vsub.f32 1.5, %v6024
      %v6026 = vmul.f32 %v6021, %v6025
      %vm6027 = vweird.f32 %v5926
      %vm6028 = vweird.f32 %v6021
      %vm6029 = vmor %vm6027, %vm6028
      %v6030 = vsel %vm6029, %v6021, %v6026
      %v6031 = vrsqrt.pop %v5927
      %v6032 = vmul.f32 %v6031, %v5927
      %v6033 = vmul.f32 %v6032, %v6031
      %v6034 = vmul.f32 0.5, %v6033
      %v6035 = vsub.f32 1.5, %v6034
      %v6036 = vmul.f32 %v6031, %v6035
      %vm6037 = vweird.f32 %v5927
      %vm6038 = vweird.f32 %v6031
      %vm6039 = vmor %vm6037, %vm6038
      %v6040 = vsel %vm6039, %v6031, %v6036
      %v6041 = vrsqrt.pop %v5928
      %v6042 = vmul.f32 %v6041, %v5928
      %v6043 = vmul.f32 %v6042, %v6041
      %v6044 = vmul.f32 0.5, %v6043
      %v6045 = vsub.f32 1.5, %v6044
      %v6046 = vmul.f32 %v6041, %v6045
      %vm6047 = vweird.f32 %v5928
      %vm6048 = vweird.f32 %v6041
      %vm6049 = vmor %vm6047, %vm6048
      %v6050 = vsel %vm6049, %v6041, %v6046
      %v6051 = vrsqrt.pop %v5929
      %v6052 = vmul.f32 %v6051, %v5929
      %v6053 = vmul.f32 %v6052, %v6051
      %v6054 = vmul.f32 0.5, %v6053
      %v6055 = vsub.f32 1.5, %v6054
      %v6056 = vmul.f32 %v6051, %v6055
      %vm6057 = vweird.f32 %v5929
      %vm6058 = vweird.f32 %v6051
      %vm6059 = vmor %vm6057, %vm6058
      %v6060 = vsel %vm6059, %v6051, %v6056
      %v6061 = vrsqrt.pop %v5930
      %v6062 = vmul.f32 %v6061, %v5930
      %v6063 = vmul.f32 %v6062, %v6061
      %v6064 = vmul.f32 0.5, %v6063
      %v6065 = vsub.f32 1.5, %v6064
      %v6066 = vmul.f32 %v6061, %v6065
      %vm6067 = vweird.f32 %v5930
      %vm6068 = vweird.f32 %v6061
      %vm6069 = vmor %vm6067, %vm6068
      %v6070 = vsel %vm6069, %v6061, %v6066
      %v6071 = vrsqrt.pop %v5931
      %v6072 = vmul.f32 %v6071, %v5931
      %v6073 = vmul.f32 %v6072, %v6071
      %v6074 = vmul.f32 0.5, %v6073
      %v6075 = vsub.f32 1.5, %v6074
      %v6076 = vmul.f32 %v6071, %v6075
      %vm6077 = vweird.f32 %v5931
      %vm6078 = vweird.f32 %v6071
      %vm6079 = vmor %vm6077, %vm6078
      %v6080 = vsel %vm6079, %v6071, %v6076
      %v6081 = vrsqrt.pop %v5932
      %v6082 = vmul.f32 %v6081, %v5932
      %v6083 = vmul.f32 %v6082, %v6081
      %v6084 = vmul.f32 0.5, %v6083
      %v6085 = vsub.f32 1.5, %v6084
      %v6086 = vmul.f32 %v6081, %v6085
      %vm6087 = vweird.f32 %v5932
      %vm6088 = vweird.f32 %v6081
      %vm6089 = vmor %vm6087, %vm6088
      %v6090 = vsel %vm6089, %v6081, %v6086
      %v6091 = vrsqrt.pop %v5933
      %v6092 = vmul.f32 %v6091, %v5933
      %v6093 = vmul.f32 %v6092, %v6091
      %v6094 = vmul.f32 0.5, %v6093
      %v6095 = vsub.f32 1.5, %v6094
      %v6096 = vmul.f32 %v6091, %v6095
      %vm6097 = vweird.f32 %v5933
      %vm6098 = vweird.f32 %v6091
      %vm6099 = vmor %vm6097, %vm6098
      %v6100 = vsel %vm6099, %v6091, %v6096
      %v6101 = vrsqrt.pop %v5934
      %v6102 = vmul.f32 %v6101, %v5934
      %v6103 = vmul.f32 %v6102, %v6101
      %v6104 = vmul.f32 0.5, %v6103
      %v6105 = vsub.f32 1.5, %v6104
      %v6106 = vmul.f32 %v6101, %v6105
      %vm6107 = vweird.f32 %v5934
      %vm6108 = vweird.f32 %v6101
      %vm6109 = vmor %vm6107, %vm6108
      %v6110 = vsel %vm6109, %v6101, %v6106
      %v6111 = vrsqrt.pop %v5935
      %v6112 = vmul.f32 %v6111, %v5935
      %v6113 = vmul.f32 %v6112, %v6111
      %v6114 = vmul.f32 0.5, %v6113
      %v6115 = vsub.f32 1.5, %v6114
      %v6116 = vmul.f32 %v6111, %v6115
      %vm6117 = vweird.f32 %v5935
      %vm6118 = vweird.f32 %v6111
      %vm6119 = vmor %vm6117, %vm6118
      %v6120 = vsel %vm6119, %v6111, %v6116
      %v6121 = vrsqrt.pop %v5936
      %v6122 = vmul.f32 %v6121, %v5936
      %v6123 = vmul.f32 %v6122, %v6121
      %v6124 = vmul.f32 0.5, %v6123
      %v6125 = vsub.f32 1.5, %v6124
      %v6126 = vmul.f32 %v6121, %v6125
      %vm6127 = vweird.f32 %v5936
      %vm6128 = vweird.f32 %v6121
      %vm6129 = vmor %vm6127, %vm6128
      %v6130 = vsel %vm6129, %v6121, %v6126
      %v6131 = vrsqrt.pop %v5937
      %v6132 = vmul.f32 %v6131, %v5937
      %v6133 = vmul.f32 %v6132, %v6131
      %v6134 = vmul.f32 0.5, %v6133
      %v6135 = vsub.f32 1.5, %v6134
      %v6136 = vmul.f32 %v6131, %v6135
      %vm6137 = vweird.f32 %v5937
      %vm6138 = vweird.f32 %v6131
      %vm6139 = vmor %vm6137, %vm6138
      %v6140 = vsel %vm6139, %v6131, %v6136
      %v6141 = vrsqrt.pop %v5938
      %v6142 = vmul.f32 %v6141, %v5938
      %v6143 = vmul.f32 %v6142, %v6141
      %v6144 = vmul.f32 0.5, %v6143
      %v6145 = vsub.f32 1.5, %v6144
      %v6146 = vmul.f32 %v6141, %v6145
      %vm6147 = vweird.f32 %v5938
      %vm6148 = vweird.f32 %v6141
      %vm6149 = vmor %vm6147, %vm6148
      %v6150 = vsel %vm6149, %v6141, %v6146
      %v6151 = vrsqrt.pop %v5939
      %v6152 = vmul.f32 %v6151, %v5939
      %v6153 = vmul.f32 %v6152, %v6151
      %v6154 = vmul.f32 0.5, %v6153
      %v6155 = vsub.f32 1.5, %v6154
      %v6156 = vmul.f32 %v6151, %v6155
      %vm6157 = vweird.f32 %v5939
      %vm6158 = vweird.f32 %v6151
      %vm6159 = vmor %vm6157, %vm6158
      %v6160 = vsel %vm6159, %v6151, %v6156
      %v6161 = vrsqrt.pop %v5940
      %v6162 = vmul.f32 %v6161, %v5940
      %v6163 = vmul.f32 %v6162, %v6161
      %v6164 = vmul.f32 0.5, %v6163
      %v6165 = vsub.f32 1.5, %v6164
      %v6166 = vmul.f32 %v6161, %v6165
      %vm6167 = vweird.f32 %v5940
      %vm6168 = vweird.f32 %v6161
      %vm6169 = vmor %vm6167, %vm6168
      %v6170 = vsel %vm6169, %v6161, %v6166
      %v6171 = vrsqrt.pop %v5941
      %v6172 = vmul.f32 %v6171, %v5941
      %v6173 = vmul.f32 %v6172, %v6171
      %v6174 = vmul.f32 0.5, %v6173
      %v6175 = vsub.f32 1.5, %v6174
      %v6176 = vmul.f32 %v6171, %v6175
      %vm6177 = vweird.f32 %v5941
      %vm6178 = vweird.f32 %v6171
      %vm6179 = vmor %vm6177, %vm6178
      %v6180 = vsel %vm6179, %v6171, %v6176
      %v6181 = vrsqrt.pop %v5942
      %v6182 = vmul.f32 %v6181, %v5942
      %v6183 = vmul.f32 %v6182, %v6181
      %v6184 = vmul.f32 0.5, %v6183
      %v6185 = vsub.f32 1.5, %v6184
      %v6186 = vmul.f32 %v6181, %v6185
      %vm6187 = vweird.f32 %v5942
      %vm6188 = vweird.f32 %v6181
      %vm6189 = vmor %vm6187, %vm6188
      %v6190 = vsel %vm6189, %v6181, %v6186
      %v6191 = vrsqrt.pop %v5943
      %v6192 = vmul.f32 %v6191, %v5943
      %v6193 = vmul.f32 %v6192, %v6191
      %v6194 = vmul.f32 0.5, %v6193
      %v6195 = vsub.f32 1.5, %v6194
      %v6196 = vmul.f32 %v6191, %v6195
      %vm6197 = vweird.f32 %v5943
      %vm6198 = vweird.f32 %v6191
      %vm6199 = vmor %vm6197, %vm6198
      %v6200 = vsel %vm6199, %v6191, %v6196
      %v6201 = vrsqrt.pop %v5944
      %v6202 = vmul.f32 %v6201, %v5944
      %v6203 = vmul.f32 %v6202, %v6201
      %v6204 = vmul.f32 0.5, %v6203
      %v6205 = vsub.f32 1.5, %v6204
      %v6206 = vmul.f32 %v6201, %v6205
      %vm6207 = vweird.f32 %v5944
      %vm6208 = vweird.f32 %v6201
      %vm6209 = vmor %vm6207, %vm6208
      %v6210 = vsel %vm6209, %v6201, %v6206
      %v6211 = vrsqrt.pop %v5945
      %v6212 = vmul.f32 %v6211, %v5945
      %v6213 = vmul.f32 %v6212, %v6211
      %v6214 = vmul.f32 0.5, %v6213
      %v6215 = vsub.f32 1.5, %v6214
      %v6216 = vmul.f32 %v6211, %v6215
      %vm6217 = vweird.f32 %v5945
      %vm6218 = vweird.f32 %v6211
      %vm6219 = vmor %vm6217, %vm6218
      %v6220 = vsel %vm6219, %v6211, %v6216
      %v6221 = vrsqrt.pop %v5946
      %v6222 = vmul.f32 %v6221, %v5946
      %v6223 = vmul.f32 %v6222, %v6221
      %v6224 = vmul.f32 0.5, %v6223
      %v6225 = vsub.f32 1.5, %v6224
      %v6226 = vmul.f32 %v6221, %v6225
      %vm6227 = vweird.f32 %v5946
      %vm6228 = vweird.f32 %v6221
      %vm6229 = vmor %vm6227, %vm6228
      %v6230 = vsel %vm6229, %v6221, %v6226
      %v6231 = vrsqrt.pop %v5947
      %v6232 = vmul.f32 %v6231, %v5947
      %v6233 = vmul.f32 %v6232, %v6231
      %v6234 = vmul.f32 0.5, %v6233
      %v6235 = vsub.f32 1.5, %v6234
      %v6236 = vmul.f32 %v6231, %v6235
      %vm6237 = vweird.f32 %v5947
      %vm6238 = vweird.f32 %v6231
      %vm6239 = vmor %vm6237, %vm6238
      %v6240 = vsel %vm6239, %v6231, %v6236
      %v6241 = vrsqrt.pop %v5948
      %v6242 = vmul.f32 %v6241, %v5948
      %v6243 = vmul.f32 %v6242, %v6241
      %v6244 = vmul.f32 0.5, %v6243
      %v6245 = vsub.f32 1.5, %v6244
      %v6246 = vmul.f32 %v6241, %v6245
      %vm6247 = vweird.f32 %v5948
      %vm6248 = vweird.f32 %v6241
      %vm6249 = vmor %vm6247, %vm6248
      %v6250 = vsel %vm6249, %v6241, %v6246
      %v6251 = vrsqrt.pop %v5949
      %v6252 = vmul.f32 %v6251, %v5949
      %v6253 = vmul.f32 %v6252, %v6251
      %v6254 = vmul.f32 0.5, %v6253
      %v6255 = vsub.f32 1.5, %v6254
      %v6256 = vmul.f32 %v6251, %v6255
      %vm6257 = vweird.f32 %v5949
      %vm6258 = vweird.f32 %v6251
      %vm6259 = vmor %vm6257, %vm6258
      %v6260 = vsel %vm6259, %v6251, %v6256
      %v6261 = vrsqrt.pop %v5950
      %v6262 = vmul.f32 %v6261, %v5950
      %v6263 = vmul.f32 %v6262, %v6261
      %v6264 = vmul.f32 0.5, %v6263
      %v6265 = vsub.f32 1.5, %v6264
      %v6266 = vmul.f32 %v6261, %v6265
      %vm6267 = vweird.f32 %v5950
      %vm6268 = vweird.f32 %v6261
      %vm6269 = vmor %vm6267, %vm6268
      %v6270 = vsel %vm6269, %v6261, %v6266
      %v6271 = vmul.f32 %v5727, %v5960
      %v6272 = vmul.f32 %v5728, %v5970
      %v6273 = vmul.f32 %v5729, %v5980
      %v6274 = vmul.f32 %v5730, %v5990
      %v6275 = vmul.f32 %v5731, %v6000
      %v6276 = vmul.f32 %v5732, %v6010
      %v6277 = vmul.f32 %v5733, %v6020
      %v6278 = vmul.f32 %v5734, %v6030
      %v6279 = vmul.f32 %v5735, %v6040
      %v6280 = vmul.f32 %v5736, %v6050
      %v6281 = vmul.f32 %v5737, %v6060
      %v6282 = vmul.f32 %v5738, %v6070
      %v6283 = vmul.f32 %v5739, %v6080
      %v6284 = vmul.f32 %v5740, %v6090
      %v6285 = vmul.f32 %v5741, %v6100
      %v6286 = vmul.f32 %v5742, %v6110
      %v6287 = vmul.f32 %v5743, %v6120
      %v6288 = vmul.f32 %v5744, %v6130
      %v6289 = vmul.f32 %v5745, %v6140
      %v6290 = vmul.f32 %v5746, %v6150
      %v6291 = vmul.f32 %v5747, %v6160
      %v6292 = vmul.f32 %v5748, %v6170
      %v6293 = vmul.f32 %v5749, %v6180
      %v6294 = vmul.f32 %v5750, %v6190
      %v6295 = vmul.f32 %v5751, %v6200
      %v6296 = vmul.f32 %v5752, %v6210
      %v6297 = vmul.f32 %v5753, %v6220
      %v6298 = vmul.f32 %v5754, %v6230
      %v6299 = vmul.f32 %v5755, %v6240
      %v6300 = vmul.f32 %v5756, %v6250
      %v6301 = vmul.f32 %v5757, %v6260
      %v6302 = vmul.f32 %v5758, %v6270
      %v6304 = vperm.slane %v5597, 0
      %v6306 = vmul.f32 %v6271, %v6304
      %v6307 = vmul.f32 %v6272, %v6304
      %v6308 = vmul.f32 %v6273, %v6304
      %v6309 = vmul.f32 %v6274, %v6304
      %v6310 = vmul.f32 %v6275, %v6304
      %v6311 = vmul.f32 %v6276, %v6304
      %v6312 = vmul.f32 %v6277, %v6304
      %v6313 = vmul.f32 %v6278, %v6304
      %v6314 = vmul.f32 %v6279, %v6304
      %v6315 = vmul.f32 %v6280, %v6304
      %v6316 = vmul.f32 %v6281, %v6304
      %v6317 = vmul.f32 %v6282, %v6304
      %v6318 = vmul.f32 %v6283, %v6304
      %v6319 = vmul.f32 %v6284, %v6304
      %v6320 = vmul.f32 %v6285, %v6304
      %v6321 = vmul.f32 %v6286, %v6304
      %v6322 = vmul.f32 %v6287, %v6304
      %v6323 = vmul.f32 %v6288, %v6304
      %v6324 = vmul.f32 %v6289, %v6304
      %v6325 = vmul.f32 %v6290, %v6304
      %v6326 = vmul.f32 %v6291, %v6304
      %v6327 = vmul.f32 %v6292, %v6304
      %v6328 = vmul.f32 %v6293, %v6304
      %v6329 = vmul.f32 %v6294, %v6304
      %v6330 = vmul.f32 %v6295, %v6304
      %v6331 = vmul.f32 %v6296, %v6304
      %v6332 = vmul.f32 %v6297, %v6304
      %v6333 = vmul.f32 %v6298, %v6304
      %v6334 = vmul.f32 %v6299, %v6304
      %v6335 = vmul.f32 %v6300, %v6304
      %v6336 = vmul.f32 %v6301, %v6304
      %v6337 = vmul.f32 %v6302, %v6304
      %v6339 = vperm.slane %v5598, 0
      %v6341 = vadd.f32 %v6306, %v6339
      %v6342 = vadd.f32 %v6307, %v6339
      %v6343 = vadd.f32 %v6308, %v6339
      %v6344 = vadd.f32 %v6309, %v6339
      %v6345 = vadd.f32 %v6310, %v6339
      %v6346 = vadd.f32 %v6311, %v6339
      %v6347 = vadd.f32 %v6312, %v6339
      %v6348 = vadd.f32 %v6313, %v6339
      %v6349 = vadd.f32 %v6314, %v6339
      %v6350 = vadd.f32 %v6315, %v6339
      %v6351 = vadd.f32 %v6316, %v6339
      %v6352 = vadd.f32 %v6317, %v6339
      %v6353 = vadd.f32 %v6318, %v6339
      %v6354 = vadd.f32 %v6319, %v6339
      %v6355 = vadd.f32 %v6320, %v6339
      %v6356 = vadd.f32 %v6321, %v6339
      %v6357 = vadd.f32 %v6322, %v6339
      %v6358 = vadd.f32 %v6323, %v6339
      %v6359 = vadd.f32 %v6324, %v6339
      %v6360 = vadd.f32 %v6325, %v6339
      %v6361 = vadd.f32 %v6326, %v6339
      %v6362 = vadd.f32 %v6327, %v6339
      %v6363 = vadd.f32 %v6328, %v6339
      %v6364 = vadd.f32 %v6329, %v6339
      %v6365 = vadd.f32 %v6330, %v6339
      %v6366 = vadd.f32 %v6331, %v6339
      %v6367 = vadd.f32 %v6332, %v6339
      %v6368 = vadd.f32 %v6333, %v6339
      %v6369 = vadd.f32 %v6334, %v6339
      %v6370 = vadd.f32 %v6335, %v6339
      %v6371 = vadd.f32 %v6336, %v6339
      %v6372 = vadd.f32 %v6337, %v6339
      %6373 = vst.msk [vmem:[%s758] sm:$0xff] %vm1677, %v6341
      %6374 = vst.msk [vmem:[%s758 + $0x8] sm:$0xff] %vm1677, %v6342
      %6375 = vst.msk [vmem:[%s758 + $0x10] sm:$0xff] %vm1677, %v6343
      %6376 = vst.msk [vmem:[%s758 + $0x18] sm:$0xff] %vm1677, %v6344
      %6377 = vst.msk [vmem:[%s758 + $0x20] sm:$0xff] %vm1677, %v6345
      %6378 = vst.msk [vmem:[%s758 + $0x28] sm:$0xff] %vm1677, %v6346
      %6379 = vst.msk [vmem:[%s758 + $0x30] sm:$0xff] %vm1677, %v6347
      %6380 = vst.msk [vmem:[%s758 + $0x38] sm:$0xff] %vm1677, %v6348
      %6381 = vst.msk [vmem:[%s758 + $0x40] sm:$0xff] %vm1677, %v6349
      %6382 = vst.msk [vmem:[%s758 + $0x48] sm:$0xff] %vm1677, %v6350
      %6383 = vst.msk [vmem:[%s758 + $0x50] sm:$0xff] %vm1677, %v6351
      %6384 = vst.msk [vmem:[%s758 + $0x58] sm:$0xff] %vm1677, %v6352
      %6385 = vst.msk [vmem:[%s758 + $0x60] sm:$0xff] %vm1677, %v6353
      %6386 = vst.msk [vmem:[%s758 + $0x68] sm:$0xff] %vm1677, %v6354
      %6387 = vst.msk [vmem:[%s758 + $0x70] sm:$0xff] %vm1677, %v6355
      %6388 = vst.msk [vmem:[%s758 + $0x78] sm:$0xff] %vm1677, %v6356
      %6389 = vst.msk [vmem:[%s758 + $0x80] sm:$0xff] %vm1677, %v6357
      %6390 = vst.msk [vmem:[%s758 + $0x88] sm:$0xff] %vm1677, %v6358
      %6391 = vst.msk [vmem:[%s758 + $0x90] sm:$0xff] %vm1677, %v6359
      %6392 = vst.msk [vmem:[%s758 + $0x98] sm:$0xff] %vm1677, %v6360
      %6393 = vst.msk [vmem:[%s758 + $0xa0] sm:$0xff] %vm1677, %v6361
      %6394 = vst.msk [vmem:[%s758 + $0xa8] sm:$0xff] %vm1677, %v6362
      %6395 = vst.msk [vmem:[%s758 + $0xb0] sm:$0xff] %vm1677, %v6363
      %6396 = vst.msk [vmem:[%s758 + $0xb8] sm:$0xff] %vm1677, %v6364
      %6397 = vst.msk [vmem:[%s758 + $0xc0] sm:$0xff] %vm1677, %v6365
      %6398 = vst.msk [vmem:[%s758 + $0xc8] sm:$0xff] %vm1677, %v6366
      %6399 = vst.msk [vmem:[%s758 + $0xd0] sm:$0xff] %vm1677, %v6367
      %6400 = vst.msk [vmem:[%s758 + $0xd8] sm:$0xff] %vm1677, %v6368
      %6401 = vst.msk [vmem:[%s758 + $0xe0] sm:$0xff] %vm1677, %v6369
      %6402 = vst.msk [vmem:[%s758 + $0xe8] sm:$0xff] %vm1677, %v6370
      %6403 = vst.msk [vmem:[%s758 + $0xf0] sm:$0xff] %vm1677, %v6371
      %6404 = vst.msk [vmem:[%s758 + $0xf8] sm:$0xff] %vm1677, %v6372
      %s6405 = smul.u32 32, %s31
      %p6406 = scmp.lt.s32.totalorder %s6405, 63
      %s6407 = scalar_select %p6406, %s6405, 63
      %s6408 = smul.addr %s6407, 8
      %s6409 = scalar_lea.vmem %s16, %s6408
      // Predicated region
      $region89: #{bert4rec_forward.2} parent=83 // pred_check
        %p6410 = pneg %p463
      $region90: #{bert4rec_forward.2} parent=83 // pred_check_branch
        %6412 = sbr.rel (%p6410) target = $region92
      $region91: #{bert4rec_forward.2} parent=83 // pred_region
        %s6413 = smul.u32 32, %s31
      $region92: #{bert4rec_forward.2} parent=83 // pred_fallthru
        _
    $region84: #{bert4rec_forward.2} parent=5 // pred_fallthru
      _
    %p6414 = scmp.le.s32.totalorder 2, %s22
    // Predicated region
    $region93: #{bert4rec_forward.2} parent=5 // pred_check
      %p6415 = pneg %p6414
    $region94: #{bert4rec_forward.2} parent=5 // pred_check_branch
      %6417 = sbr.rel (%p6415) target = $region96
    $region95: #{bert4rec_forward.2} parent=5 // pred_region
      %s6418 = ssub.s32 %s22, 2
      // Predicated region
      $region97: #{bert4rec_forward.2} parent=95 // pred_check
        %p6419 = pneg %p469
      $region98: #{bert4rec_forward.2} parent=95 // pred_check_branch
        %6421 = sbr.rel (%p6419) target = $region100
      $region99: #{bert4rec_forward.2} parent=95 // pred_region
        %s6422 = smul.u32 32, %s33
        %p6423 = scmp.lt.s32.totalorder %s6422, 63
        %s6424 = scalar_select %p6423, %s6422, 63
        %s6425 = smul.addr %s6424, 8
        %s6426 = scalar_lea.vmem %s16, %s6425
      $region100: #{bert4rec_forward.2} parent=95 // pred_fallthru
        _
    $region96: #{bert4rec_forward.2} parent=5 // pred_fallthru
      _
  $region6: #{bert4rec_forward.2} parent=0 // loop_footer
    %s26 = sadd.s32 1, %s22
  $region7: #{bert4rec_forward.2} parent=0 // loop_footer_branch
    %21 = sbr.rel target = $region3
  $region8: #{bert4rec_forward.2} parent=0 // loop_exit
    _

</llo_original>
